<compile_context>
chip_gen: v7x
topology: tpu7x:2x2x1
jax: 0.10.0
libtpu: 0.0.40
codegen_flags: <defaults>
</compile_context>

<pallas_src>
import functools

import jax
import jax.numpy as jnp
from jax import lax
from jax.experimental import pallas as pl
from jax.experimental.pallas import tpu as pltpu

NUM_LAYERS = 4
EOS_ID = 2


def _decode_kernel(x_ref, enc_ref, h0_ref, c0_ref, wcat_ref, bgate_ref,
                   wcls_ref, bcls_ref,
                   logp_ref, hout_ref, cout_ref):
  """Whole teacher-forced decode loop in one kernel invocation."""
  max_len, B, H = x_ref.shape

  # ---- hoisted constants (computed once, reused every decode step) --------
  lane = jax.lax.broadcasted_iota(jnp.int32, (B, 4 * H), 1)
  g_block = (lane >= 2 * H) & (lane < 3 * H)          # cell-candidate lanes
  g_scale = jnp.where(g_block, jnp.float32(1.0), jnp.float32(0.5))

  enc = enc_ref[...].astype(jnp.float32)              # (B, T, H), resident
  w_cls = wcls_ref[...]                               # (2H, V)
  b_cls = bcls_ref[...]                               # (1, V)

  h_init = tuple(h0_ref[l].astype(jnp.float32) for l in range(NUM_LAYERS))
  c_init = tuple(c0_ref[l].astype(jnp.float32) for l in range(NUM_LAYERS))

  def step(t, carry):
    h_prev, c_prev = carry
    inp = x_ref[t].astype(jnp.float32)                # (B, H)
    new_h, new_c = [], []
    for l in range(NUM_LAYERS):                       # static unroll
      # One fused matmul per layer: [x, h_prev] @ concat(W_ih^T, W_hh^T).
      z = jnp.concatenate([inp, h_prev[l]], axis=-1)  # (B, I+H)
      gates = (jnp.dot(z, wcat_ref[l], preferred_element_type=jnp.float32)
               + bgate_ref[l])                        # (B, 4H)
      # Single tanh over the full vreg; sigmoid via 0.5*(1+tanh(x/2)).
      y = jnp.tanh(gates * g_scale)
      act = jnp.where(g_block, y, 0.5 * y + 0.5)
      i_g = act[:, 0 * H:1 * H]
      f_g = act[:, 1 * H:2 * H]
      g_g = act[:, 2 * H:3 * H]
      o_g = act[:, 3 * H:4 * H]
      c_n = f_g * c_prev[l] + i_g * g_g
      h_n = o_g * jnp.tanh(c_n)
      new_h.append(h_n)
      new_c.append(c_n)
      inp = h_n

    # Attention over encoder outputs with the layer-4 hidden state.
    s_t = new_h[-1]                                   # (B, H)
    e = jnp.sum(enc * s_t[:, None, :], axis=-1)       # (B, T)
    e_max = jnp.max(e, axis=-1, keepdims=True)
    p = jnp.exp(e - e_max)
    alpha = p / jnp.sum(p, axis=-1, keepdims=True)
    context = jnp.sum(enc * alpha[:, :, None], axis=1)  # (B, H)

    # Fused classifier: one K=2H matmul on concat([context, s_t]).
    feat = jnp.concatenate([context, s_t], axis=-1)   # (B, 2H)
    logits = (jnp.dot(feat, w_cls, preferred_element_type=jnp.float32)
              + b_cls)                                # (B, V)
    m = jnp.max(logits, axis=-1, keepdims=True)
    lse = m + jnp.log(jnp.sum(jnp.exp(logits - m), axis=-1, keepdims=True))
    logp_ref[t] = (logits - lse).astype(logp_ref.dtype)

    return (tuple(new_h), tuple(new_c))

  h_fin, c_fin = lax.fori_loop(0, max_len, step, (h_init, c_init),
                               unroll=True)

  # Lane-dense (B, NUM_LAYERS*H) final-state stores; reshaped in the wrapper.
  hout_ref[...] = jnp.concatenate(list(h_fin), axis=-1).astype(hout_ref.dtype)
  cout_ref[...] = jnp.concatenate(list(c_fin), axis=-1).astype(cout_ref.dtype)


@functools.partial(jax.jit, static_argnames=("max_len",))
def attn_decoder_forward(tgt, enc_outputs, h0, c0,
                         emb, w_ih, w_hh, b_ih, b_hh, w_cls, b_cls,
                         *, max_len):
  """AttnDecoder.forward with ar=True, tf=True. Returns (log_probs, (h, c)).

  Parameters are in PyTorch layout:
    emb   (V, H)            embedding table
    w_ih  (4, 4H, I=H)      LSTMCell weight_ih per layer
    w_hh  (4, 4H, H)        LSTMCell weight_hh per layer
    b_ih  (4, 4H), b_hh (4, 4H)
    w_cls (V, 2H), b_cls (V,)
  """
  B, T_enc, H = enc_outputs.shape
  V = w_cls.shape[0]

  # ---- parameter prep: fused weights, pre-summed biases, fused classifier --
  # (On v6e/v7x at real sizes these could be cast to bf16 for the MXU; kept
  #  f32 here so the test matches the f32 reference to 1e-4.)
  w_cat = jnp.concatenate([jnp.swapaxes(w_ih, 1, 2),       # (L, I, 4H)
                           jnp.swapaxes(w_hh, 1, 2)],      # (L, H, 4H)
                          axis=1)                          # (L, I+H, 4H)
  b_gate = (b_ih + b_hh)[:, None, :]                       # (L, 1, 4H)
  w_cls_t = w_cls.T                                        # (2H, V)
  b_c = b_cls[None, :]                                     # (1, V)

  # Only DMA the rows of the initial state that this batch uses.
  h0_b = h0[:, :B]
  c0_b = c0[:, :B]

  # ---- teacher-forced input tokens for every decode step (known ahead) ----
  # step 0: <eos>; step i>0: tgt[:, i-1]. Embedding lookup is an XLA gather.
  # TODO(synk): the autoregressive-without-teacher-forcing branch needs an
  # in-kernel argmax over the vocab + embedding gather (data-dependent next
  # input); only the teacher-forcing / known-token path is fused here.
  eos_tok = jnp.full((1, B), EOS_ID, dtype=jnp.int32)
  toks = jnp.concatenate(
      [eos_tok, tgt[:, :max_len - 1].T.astype(jnp.int32)], axis=0)  # (L_dec, B)
  x_seq = emb[toks]                                        # (max_len, B, H)

  const3 = lambda i: (0, 0, 0)
  const2 = lambda i: (0, 0)

  log_probs, h_flat, c_flat = pl.pallas_call(
      _decode_kernel,
      grid=(1,),                                           # whole decode, one step
      out_shape=(
          jax.ShapeDtypeStruct((max_len, B, V), jnp.float32),
          jax.ShapeDtypeStruct((B, NUM_LAYERS * H), jnp.float32),
          jax.ShapeDtypeStruct((B, NUM_LAYERS * H), jnp.float32),
      ),
      in_specs=[
          pl.BlockSpec((max_len, B, H), const3),           # embedded inputs (resident)
          pl.BlockSpec((B, T_enc, H), const3),             # encoder outputs
          pl.BlockSpec((NUM_LAYERS, B, H), const3),        # h0
          pl.BlockSpec((NUM_LAYERS, B, H), const3),        # c0
          pl.BlockSpec(w_cat.shape, const3),               # fused LSTM weights
          pl.BlockSpec(b_gate.shape, const3),              # fused LSTM bias
          pl.BlockSpec(w_cls_t.shape, const2),             # fused classifier weight
          pl.BlockSpec(b_c.shape, const2),                 # classifier bias
      ],
      out_specs=(
          pl.BlockSpec((max_len, B, V), const3),           # log-probs (one writeback)
          pl.BlockSpec((B, NUM_LAYERS * H), const2),       # final h (lane-dense)
          pl.BlockSpec((B, NUM_LAYERS * H), const2),       # final c (lane-dense)
      ),
      compiler_params=pltpu.CompilerParams(
          dimension_semantics=("arbitrary",)),
  )(x_seq, enc_outputs, h0_b, c0_b, w_cat, b_gate, w_cls_t, b_c)

  out_h = jnp.transpose(h_flat.reshape(B, NUM_LAYERS, H), (1, 0, 2))
  out_c = jnp.transpose(c_flat.reshape(B, NUM_LAYERS, H), (1, 0, 2))
  return log_probs, (out_h, out_c)


def _reference(tgt, enc, h0, c0, emb, w_ih, w_hh, b_ih, b_hh, w_cls, b_cls,
               *, max_len):
  """Pure-JAX reference of the same forward pass (PyTorch semantics)."""
  B, _, H = enc.shape
  h = [h0[l, :B].astype(jnp.float32) for l in range(NUM_LAYERS)]
  c = [c0[l, :B].astype(jnp.float32) for l in range(NUM_LAYERS)]
  outs = []
  x = emb[jnp.full((B,), EOS_ID, jnp.int32)]
  for i in range(max_len):
    if i > 0:
      x = emb[tgt[:, i - 1]]
    inp = x
    for l in range(NUM_LAYERS):
      gates = inp @ w_ih[l].T + h[l] @ w_hh[l].T + b_ih[l] + b_hh[l]
      i_g = jax.nn.sigmoid(gates[:, 0 * H:1 * H])
      f_g = jax.nn.sigmoid(gates[:, 1 * H:2 * H])
      g_g = jnp.tanh(gates[:, 2 * H:3 * H])
      o_g = jax.nn.sigmoid(gates[:, 3 * H:4 * H])
      c[l] = f_g * c[l] + i_g * g_g
      h[l] = o_g * jnp.tanh(c[l])
      inp = h[l]
    s_t = h[NUM_LAYERS - 1]
    e = jnp.einsum("bth,bh->bt", enc, s_t)
    alpha = jax.nn.softmax(e, axis=-1)
    ctx = jnp.einsum("bt,bth->bh", alpha, enc)
    res = jnp.concatenate([ctx, s_t], axis=1)
    outs.append(jax.nn.log_softmax(res @ w_cls.T + b_cls, axis=-1))
  return jnp.stack(outs, 0), (jnp.stack(h, 0), jnp.stack(c, 0))


if __name__ == "__main__":
  B = 2
  HIDDEN = 32          # input_size == hidden_size (cells 2-4 consume hidden)
  VOCAB = 128          # lane-dense vocab for the classifier / output stores
  T_ENC = 8
  MAX_LEN = 8

  key = jax.random.PRNGKey(0)
  ks = jax.random.split(key, 12)
  bound = 1.0 / jnp.sqrt(HIDDEN)
  cls_bound = 1.0 / jnp.sqrt(2.0 * HIDDEN)

  emb = jax.random.normal(ks[0], (VOCAB, HIDDEN), jnp.float32)
  w_ih = jax.random.uniform(ks[1], (NUM_LAYERS, 4 * HIDDEN, HIDDEN),
                            jnp.float32, -bound, bound)
  w_hh = jax.random.uniform(ks[2], (NUM_LAYERS, 4 * HIDDEN, HIDDEN),
                            jnp.float32, -bound, bound)
  b_ih = jax.random.uniform(ks[3], (NUM_LAYERS, 4 * HIDDEN),
                            jnp.float32, -bound, bound)
  b_hh = jax.random.uniform(ks[4], (NUM_LAYERS, 4 * HIDDEN),
                            jnp.float32, -bound, bound)
  w_cls = jax.random.uniform(ks[5], (VOCAB, 2 * HIDDEN),
                             jnp.float32, -cls_bound, cls_bound)
  b_cls = jax.random.uniform(ks[6], (VOCAB,),
                             jnp.float32, -cls_bound, cls_bound)

  enc_outputs = jax.random.normal(ks[7], (B, T_ENC, HIDDEN), jnp.float32)
  h0 = jax.random.normal(ks[8], (NUM_LAYERS, B, HIDDEN), jnp.float32)
  c0 = jax.random.normal(ks[9], (NUM_LAYERS, B, HIDDEN), jnp.float32)
  tgt = jax.random.randint(ks[10], (B, MAX_LEN), 0, VOCAB, jnp.int32)

  log_probs, (out_h, out_c) = attn_decoder_forward(
      tgt, enc_outputs, h0, c0, emb, w_ih, w_hh, b_ih, b_hh, w_cls, b_cls,
      max_len=MAX_LEN)
  jax.block_until_ready((log_probs, out_h, out_c))

  ref_lp, (ref_h, ref_c) = _reference(
      tgt, enc_outputs, h0, c0, emb, w_ih, w_hh, b_ih, b_hh, w_cls, b_cls,
      max_len=MAX_LEN)

  assert log_probs.shape == (MAX_LEN, B, VOCAB)
  assert out_h.shape == (NUM_LAYERS, B, HIDDEN)
  assert out_c.shape == (NUM_LAYERS, B, HIDDEN)
  assert jnp.allclose(log_probs, ref_lp, atol=1e-4, rtol=1e-4)
  assert jnp.allclose(out_h, ref_h, atol=1e-4, rtol=1e-4)
  assert jnp.allclose(out_c, ref_c, atol=1e-4, rtol=1e-4)
  print("KERNEL_OK")
</pallas_src>

<mosaic_0001>
module attributes {stable_mosaic.version = 11 : i64} {
  func.func @_decode_kernel(%arg0: i32, %arg1: memref<8x2x32xf32, #tpu.memory_space<vmem>>, %arg2: memref<2x8x32xf32, #tpu.memory_space<vmem>>, %arg3: memref<4x2x32xf32, #tpu.memory_space<vmem>>, %arg4: memref<4x2x32xf32, #tpu.memory_space<vmem>>, %arg5: memref<4x64x128xf32, #tpu.memory_space<vmem>>, %arg6: memref<4x1x128xf32, #tpu.memory_space<vmem>>, %arg7: memref<64x128xf32, #tpu.memory_space<vmem>>, %arg8: memref<1x128xf32, #tpu.memory_space<vmem>>, %arg9: memref<8x2x128xf32, #tpu.memory_space<vmem>>, %arg10: memref<2x128xf32, #tpu.memory_space<vmem>>, %arg11: memref<2x128xf32, #tpu.memory_space<vmem>>) attributes {dimension_semantics = [#tpu.dimension_semantics<arbitrary>], iteration_bounds = array<i64: 1>, scalar_prefetch = 0 : i64, scratch_operands = 0 : i64, tpu.core_type = #tpu.core_type<tc>, window_params = [{pipeline_mode = #tpu.pipeline_mode<synchronous>, transform_indices = @transform_0, window_bounds = array<i64: 8, 2, 32>}, {pipeline_mode = #tpu.pipeline_mode<synchronous>, transform_indices = @transform_1, window_bounds = array<i64: 2, 8, 32>}, {pipeline_mode = #tpu.pipeline_mode<synchronous>, transform_indices = @transform_2, window_bounds = array<i64: 4, 2, 32>}, {pipeline_mode = #tpu.pipeline_mode<synchronous>, transform_indices = @transform_3, window_bounds = array<i64: 4, 2, 32>}, {pipeline_mode = #tpu.pipeline_mode<synchronous>, transform_indices = @transform_4, window_bounds = array<i64: 4, 64, 128>}, {pipeline_mode = #tpu.pipeline_mode<synchronous>, transform_indices = @transform_5, window_bounds = array<i64: 4, 1, 128>}, {pipeline_mode = #tpu.pipeline_mode<synchronous>, transform_indices = @transform_6, window_bounds = array<i64: 64, 128>}, {pipeline_mode = #tpu.pipeline_mode<synchronous>, transform_indices = @transform_7, window_bounds = array<i64: 1, 128>}, {pipeline_mode = #tpu.pipeline_mode<synchronous>, transform_indices = @transform_8, window_bounds = array<i64: 8, 2, 128>}, {pipeline_mode = #tpu.pipeline_mode<synchronous>, transform_indices = @transform_9, window_bounds = array<i64: 2, 128>}, {pipeline_mode = #tpu.pipeline_mode<synchronous>, transform_indices = @transform_10, window_bounds = array<i64: 2, 128>}]} {
    %0 = tpu.iota {dimensions = array<i32: 1>} : vector<2x128xi32>
    %c64_i32 = arith.constant 64 : i32
    %1 = vector.broadcast %c64_i32 : i32 to vector<2x128xi32>
    %2 = arith.cmpi sge, %0, %1 : vector<2x128xi32>
    %c96_i32 = arith.constant 96 : i32
    %3 = vector.broadcast %c96_i32 : i32 to vector<2x128xi32>
    %4 = arith.cmpi slt, %0, %3 : vector<2x128xi32>
    %5 = arith.andi %2, %4 : vector<2x128xi1>
    %cst = arith.constant 1.000000e+00 : f32
    %cst_0 = arith.constant 5.000000e-01 : f32
    %6 = vector.broadcast %cst : f32 to vector<2x128xf32>
    %7 = vector.broadcast %cst_0 : f32 to vector<2x128xf32>
    %8 = arith.select %5, %6, %7 : vector<2x128xi1>, vector<2x128xf32>
    %c0 = arith.constant 0 : index
    %c0_1 = arith.constant 0 : index
    %c0_2 = arith.constant 0 : index
    %9 = vector.load %arg2[%c0, %c0_1, %c0_2] : memref<2x8x32xf32, #tpu.memory_space<vmem>>, vector<2x8x32xf32>
    %c0_3 = arith.constant 0 : index
    %c0_4 = arith.constant 0 : index
    %10 = vector.load %arg7[%c0_3, %c0_4] : memref<64x128xf32, #tpu.memory_space<vmem>>, vector<64x128xf32>
    %c0_5 = arith.constant 0 : index
    %c0_6 = arith.constant 0 : index
    %11 = vector.load %arg8[%c0_5, %c0_6] : memref<1x128xf32, #tpu.memory_space<vmem>>, vector<1x128xf32>
    %c0_7 = arith.constant 0 : index
    %c0_8 = arith.constant 0 : index
    %c0_9 = arith.constant 0 : index
    %12 = vector.load %arg3[%c0_7, %c0_8, %c0_9] : memref<4x2x32xf32, #tpu.memory_space<vmem>>, vector<1x2x32xf32>
    %13 = vector.shape_cast %12 : vector<1x2x32xf32> to vector<2x32xf32>
    %c1 = arith.constant 1 : index
    %c0_10 = arith.constant 0 : index
    %c0_11 = arith.constant 0 : index
    %14 = vector.load %arg3[%c1, %c0_10, %c0_11] : memref<4x2x32xf32, #tpu.memory_space<vmem>>, vector<1x2x32xf32>
    %15 = vector.shape_cast %14 : vector<1x2x32xf32> to vector<2x32xf32>
    %c2 = arith.constant 2 : index
    %c0_12 = arith.constant 0 : index
    %c0_13 = arith.constant 0 : index
    %16 = vector.load %arg3[%c2, %c0_12, %c0_13] : memref<4x2x32xf32, #tpu.memory_space<vmem>>, vector<1x2x32xf32>
    %17 = vector.shape_cast %16 : vector<1x2x32xf32> to vector<2x32xf32>
    %c3 = arith.constant 3 : index
    %c0_14 = arith.constant 0 : index
    %c0_15 = arith.constant 0 : index
    %18 = vector.load %arg3[%c3, %c0_14, %c0_15] : memref<4x2x32xf32, #tpu.memory_space<vmem>>, vector<1x2x32xf32>
    %19 = vector.shape_cast %18 : vector<1x2x32xf32> to vector<2x32xf32>
    %c0_16 = arith.constant 0 : index
    %c0_17 = arith.constant 0 : index
    %c0_18 = arith.constant 0 : index
    %20 = vector.load %arg4[%c0_16, %c0_17, %c0_18] : memref<4x2x32xf32, #tpu.memory_space<vmem>>, vector<1x2x32xf32>
    %21 = vector.shape_cast %20 : vector<1x2x32xf32> to vector<2x32xf32>
    %c1_19 = arith.constant 1 : index
    %c0_20 = arith.constant 0 : index
    %c0_21 = arith.constant 0 : index
    %22 = vector.load %arg4[%c1_19, %c0_20, %c0_21] : memref<4x2x32xf32, #tpu.memory_space<vmem>>, vector<1x2x32xf32>
    %23 = vector.shape_cast %22 : vector<1x2x32xf32> to vector<2x32xf32>
    %c2_22 = arith.constant 2 : index
    %c0_23 = arith.constant 0 : index
    %c0_24 = arith.constant 0 : index
    %24 = vector.load %arg4[%c2_22, %c0_23, %c0_24] : memref<4x2x32xf32, #tpu.memory_space<vmem>>, vector<1x2x32xf32>
    %25 = vector.shape_cast %24 : vector<1x2x32xf32> to vector<2x32xf32>
    %c3_25 = arith.constant 3 : index
    %c0_26 = arith.constant 0 : index
    %c0_27 = arith.constant 0 : index
    %26 = vector.load %arg4[%c3_25, %c0_26, %c0_27] : memref<4x2x32xf32, #tpu.memory_space<vmem>>, vector<1x2x32xf32>
    %27 = vector.shape_cast %26 : vector<1x2x32xf32> to vector<2x32xf32>
    %c0_i32 = arith.constant 0 : i32
    %28 = arith.index_cast %c0_i32 : i32 to index
    %c0_28 = arith.constant 0 : index
    %c0_29 = arith.constant 0 : index
    %29 = vector.load %arg1[%28, %c0_28, %c0_29] : memref<8x2x32xf32, #tpu.memory_space<vmem>>, vector<1x2x32xf32>
    %30 = vector.shape_cast %29 : vector<1x2x32xf32> to vector<2x32xf32>
    %31 = tpu.concatenate %30, %13 in 1 : vector<2x32xf32>, vector<2x32xf32> -> vector<2x64xf32>
    %c0_30 = arith.constant 0 : index
    %c0_31 = arith.constant 0 : index
    %c0_32 = arith.constant 0 : index
    %32 = vector.load %arg5[%c0_30, %c0_31, %c0_32] : memref<4x64x128xf32, #tpu.memory_space<vmem>>, vector<1x64x128xf32>
    %33 = vector.shape_cast %32 : vector<1x64x128xf32> to vector<64x128xf32>
    %cst_33 = arith.constant dense<0.000000e+00> : vector<2x128xf32>
    %34 = tpu.matmul %31, %33, %cst_33 {dimension_numbers = #tpu.dot_dimension_numbers<[1], [0], [0], [1], [0, 0, 1, 1], [], []>} : vector<2x64xf32>, vector<64x128xf32>, vector<2x128xf32> -> vector<2x128xf32>
    %c0_34 = arith.constant 0 : index
    %c0_35 = arith.constant 0 : index
    %c0_36 = arith.constant 0 : index
    %35 = vector.load %arg6[%c0_34, %c0_35, %c0_36] : memref<4x1x128xf32, #tpu.memory_space<vmem>>, vector<1x1x128xf32>
    %36 = vector.shape_cast %35 : vector<1x1x128xf32> to vector<1x128xf32>
    %37 = vector.broadcast %36 : vector<1x128xf32> to vector<2x128xf32>
    %38 = arith.addf %34, %37 : vector<2x128xf32>
    %39 = arith.mulf %38, %8 : vector<2x128xf32>
    %40 = math.tanh %39 : vector<2x128xf32>
    %cst_37 = arith.constant 5.000000e-01 : f32
    %41 = vector.broadcast %cst_37 : f32 to vector<2x128xf32>
    %42 = arith.mulf %41, %40 : vector<2x128xf32>
    %cst_38 = arith.constant 5.000000e-01 : f32
    %43 = vector.broadcast %cst_38 : f32 to vector<2x128xf32>
    %44 = arith.addf %42, %43 : vector<2x128xf32>
    %45 = arith.select %5, %40, %44 : vector<2x128xi1>, vector<2x128xf32>
    %46 = vector.extract_strided_slice %45 {offsets = [0, 0], sizes = [2, 32], strides = [1, 1]} : vector<2x128xf32> to vector<2x32xf32>
    %47 = vector.extract_strided_slice %45 {offsets = [0, 32], sizes = [2, 32], strides = [1, 1]} : vector<2x128xf32> to vector<2x32xf32>
    %48 = vector.extract_strided_slice %45 {offsets = [0, 64], sizes = [2, 32], strides = [1, 1]} : vector<2x128xf32> to vector<2x32xf32>
    %49 = vector.extract_strided_slice %45 {offsets = [0, 96], sizes = [2, 32], strides = [1, 1]} : vector<2x128xf32> to vector<2x32xf32>
    %50 = arith.mulf %47, %21 : vector<2x32xf32>
    %51 = arith.mulf %46, %48 : vector<2x32xf32>
    %52 = arith.addf %50, %51 : vector<2x32xf32>
    %53 = math.tanh %52 : vector<2x32xf32>
    %54 = arith.mulf %49, %53 : vector<2x32xf32>
    %55 = tpu.concatenate %54, %15 in 1 : vector<2x32xf32>, vector<2x32xf32> -> vector<2x64xf32>
    %c1_39 = arith.constant 1 : index
    %c0_40 = arith.constant 0 : index
    %c0_41 = arith.constant 0 : index
    %56 = vector.load %arg5[%c1_39, %c0_40, %c0_41] : memref<4x64x128xf32, #tpu.memory_space<vmem>>, vector<1x64x128xf32>
    %57 = vector.shape_cast %56 : vector<1x64x128xf32> to vector<64x128xf32>
    %cst_42 = arith.constant dense<0.000000e+00> : vector<2x128xf32>
    %58 = tpu.matmul %55, %57, %cst_42 {dimension_numbers = #tpu.dot_dimension_numbers<[1], [0], [0], [1], [0, 0, 1, 1], [], []>} : vector<2x64xf32>, vector<64x128xf32>, vector<2x128xf32> -> vector<2x128xf32>
    %c1_43 = arith.constant 1 : index
    %c0_44 = arith.constant 0 : index
    %c0_45 = arith.constant 0 : index
    %59 = vector.load %arg6[%c1_43, %c0_44, %c0_45] : memref<4x1x128xf32, #tpu.memory_space<vmem>>, vector<1x1x128xf32>
    %60 = vector.shape_cast %59 : vector<1x1x128xf32> to vector<1x128xf32>
    %61 = vector.broadcast %60 : vector<1x128xf32> to vector<2x128xf32>
    %62 = arith.addf %58, %61 : vector<2x128xf32>
    %63 = arith.mulf %62, %8 : vector<2x128xf32>
    %64 = math.tanh %63 : vector<2x128xf32>
    %cst_46 = arith.constant 5.000000e-01 : f32
    %65 = vector.broadcast %cst_46 : f32 to vector<2x128xf32>
    %66 = arith.mulf %65, %64 : vector<2x128xf32>
    %cst_47 = arith.constant 5.000000e-01 : f32
    %67 = vector.broadcast %cst_47 : f32 to vector<2x128xf32>
    %68 = arith.addf %66, %67 : vector<2x128xf32>
    %69 = arith.select %5, %64, %68 : vector<2x128xi1>, vector<2x128xf32>
    %70 = vector.extract_strided_slice %69 {offsets = [0, 0], sizes = [2, 32], strides = [1, 1]} : vector<2x128xf32> to vector<2x32xf32>
    %71 = vector.extract_strided_slice %69 {offsets = [0, 32], sizes = [2, 32], strides = [1, 1]} : vector<2x128xf32> to vector<2x32xf32>
    %72 = vector.extract_strided_slice %69 {offsets = [0, 64], sizes = [2, 32], strides = [1, 1]} : vector<2x128xf32> to vector<2x32xf32>
    %73 = vector.extract_strided_slice %69 {offsets = [0, 96], sizes = [2, 32], strides = [1, 1]} : vector<2x128xf32> to vector<2x32xf32>
    %74 = arith.mulf %71, %23 : vector<2x32xf32>
    %75 = arith.mulf %70, %72 : vector<2x32xf32>
    %76 = arith.addf %74, %75 : vector<2x32xf32>
    %77 = math.tanh %76 : vector<2x32xf32>
    %78 = arith.mulf %73, %77 : vector<2x32xf32>
    %79 = tpu.concatenate %78, %17 in 1 : vector<2x32xf32>, vector<2x32xf32> -> vector<2x64xf32>
    %c2_48 = arith.constant 2 : index
    %c0_49 = arith.constant 0 : index
    %c0_50 = arith.constant 0 : index
    %80 = vector.load %arg5[%c2_48, %c0_49, %c0_50] : memref<4x64x128xf32, #tpu.memory_space<vmem>>, vector<1x64x128xf32>
    %81 = vector.shape_cast %80 : vector<1x64x128xf32> to vector<64x128xf32>
    %cst_51 = arith.constant dense<0.000000e+00> : vector<2x128xf32>
    %82 = tpu.matmul %79, %81, %cst_51 {dimension_numbers = #tpu.dot_dimension_numbers<[1], [0], [0], [1], [0, 0, 1, 1], [], []>} : vector<2x64xf32>, vector<64x128xf32>, vector<2x128xf32> -> vector<2x128xf32>
    %c2_52 = arith.constant 2 : index
    %c0_53 = arith.constant 0 : index
    %c0_54 = arith.constant 0 : index
    %83 = vector.load %arg6[%c2_52, %c0_53, %c0_54] : memref<4x1x128xf32, #tpu.memory_space<vmem>>, vector<1x1x128xf32>
    %84 = vector.shape_cast %83 : vector<1x1x128xf32> to vector<1x128xf32>
    %85 = vector.broadcast %84 : vector<1x128xf32> to vector<2x128xf32>
    %86 = arith.addf %82, %85 : vector<2x128xf32>
    %87 = arith.mulf %86, %8 : vector<2x128xf32>
    %88 = math.tanh %87 : vector<2x128xf32>
    %cst_55 = arith.constant 5.000000e-01 : f32
    %89 = vector.broadcast %cst_55 : f32 to vector<2x128xf32>
    %90 = arith.mulf %89, %88 : vector<2x128xf32>
    %cst_56 = arith.constant 5.000000e-01 : f32
    %91 = vector.broadcast %cst_56 : f32 to vector<2x128xf32>
    %92 = arith.addf %90, %91 : vector<2x128xf32>
    %93 = arith.select %5, %88, %92 : vector<2x128xi1>, vector<2x128xf32>
    %94 = vector.extract_strided_slice %93 {offsets = [0, 0], sizes = [2, 32], strides = [1, 1]} : vector<2x128xf32> to vector<2x32xf32>
    %95 = vector.extract_strided_slice %93 {offsets = [0, 32], sizes = [2, 32], strides = [1, 1]} : vector<2x128xf32> to vector<2x32xf32>
    %96 = vector.extract_strided_slice %93 {offsets = [0, 64], sizes = [2, 32], strides = [1, 1]} : vector<2x128xf32> to vector<2x32xf32>
    %97 = vector.extract_strided_slice %93 {offsets = [0, 96], sizes = [2, 32], strides = [1, 1]} : vector<2x128xf32> to vector<2x32xf32>
    %98 = arith.mulf %95, %25 : vector<2x32xf32>
    %99 = arith.mulf %94, %96 : vector<2x32xf32>
    %100 = arith.addf %98, %99 : vector<2x32xf32>
    %101 = math.tanh %100 : vector<2x32xf32>
    %102 = arith.mulf %97, %101 : vector<2x32xf32>
    %103 = tpu.concatenate %102, %19 in 1 : vector<2x32xf32>, vector<2x32xf32> -> vector<2x64xf32>
    %c3_57 = arith.constant 3 : index
    %c0_58 = arith.constant 0 : index
    %c0_59 = arith.constant 0 : index
    %104 = vector.load %arg5[%c3_57, %c0_58, %c0_59] : memref<4x64x128xf32, #tpu.memory_space<vmem>>, vector<1x64x128xf32>
    %105 = vector.shape_cast %104 : vector<1x64x128xf32> to vector<64x128xf32>
    %cst_60 = arith.constant dense<0.000000e+00> : vector<2x128xf32>
    %106 = tpu.matmul %103, %105, %cst_60 {dimension_numbers = #tpu.dot_dimension_numbers<[1], [0], [0], [1], [0, 0, 1, 1], [], []>} : vector<2x64xf32>, vector<64x128xf32>, vector<2x128xf32> -> vector<2x128xf32>
    %c3_61 = arith.constant 3 : index
    %c0_62 = arith.constant 0 : index
    %c0_63 = arith.constant 0 : index
    %107 = vector.load %arg6[%c3_61, %c0_62, %c0_63] : memref<4x1x128xf32, #tpu.memory_space<vmem>>, vector<1x1x128xf32>
    %108 = vector.shape_cast %107 : vector<1x1x128xf32> to vector<1x128xf32>
    %109 = vector.broadcast %108 : vector<1x128xf32> to vector<2x128xf32>
    %110 = arith.addf %106, %109 : vector<2x128xf32>
    %111 = arith.mulf %110, %8 : vector<2x128xf32>
    %112 = math.tanh %111 : vector<2x128xf32>
    %cst_64 = arith.constant 5.000000e-01 : f32
    %113 = vector.broadcast %cst_64 : f32 to vector<2x128xf32>
    %114 = arith.mulf %113, %112 : vector<2x128xf32>
    %cst_65 = arith.constant 5.000000e-01 : f32
    %115 = vector.broadcast %cst_65 : f32 to vector<2x128xf32>
    %116 = arith.addf %114, %115 : vector<2x128xf32>
    %117 = arith.select %5, %112, %116 : vector<2x128xi1>, vector<2x128xf32>
    %118 = vector.extract_strided_slice %117 {offsets = [0, 0], sizes = [2, 32], strides = [1, 1]} : vector<2x128xf32> to vector<2x32xf32>
    %119 = vector.extract_strided_slice %117 {offsets = [0, 32], sizes = [2, 32], strides = [1, 1]} : vector<2x128xf32> to vector<2x32xf32>
    %120 = vector.extract_strided_slice %117 {offsets = [0, 64], sizes = [2, 32], strides = [1, 1]} : vector<2x128xf32> to vector<2x32xf32>
    %121 = vector.extract_strided_slice %117 {offsets = [0, 96], sizes = [2, 32], strides = [1, 1]} : vector<2x128xf32> to vector<2x32xf32>
    %122 = arith.mulf %119, %27 : vector<2x32xf32>
    %123 = arith.mulf %118, %120 : vector<2x32xf32>
    %124 = arith.addf %122, %123 : vector<2x32xf32>
    %125 = math.tanh %124 : vector<2x32xf32>
    %126 = arith.mulf %121, %125 : vector<2x32xf32>
    %127 = vector.shape_cast %126 : vector<2x32xf32> to vector<2x1x32xf32>
    %128 = vector.broadcast %127 : vector<2x1x32xf32> to vector<2x8x32xf32>
    %129 = arith.mulf %9, %128 : vector<2x8x32xf32>
    %cst_66 = arith.constant dense<0.000000e+00> : vector<2x8xf32>
    %130 = vector.multi_reduction <add>, %129, %cst_66 [2] : vector<2x8x32xf32> to vector<2x8xf32>
    %cst_67 = arith.constant dense<0xFF800000> : vector<2xf32>
    %131 = vector.multi_reduction <maximumf>, %130, %cst_67 [1] : vector<2x8xf32> to vector<2xf32>
    %132 = vector.shape_cast %131 : vector<2xf32> to vector<2x1xf32>
    %133 = vector.broadcast %132 : vector<2x1xf32> to vector<2x8xf32>
    %134 = arith.subf %130, %133 : vector<2x8xf32>
    %135 = math.exp %134 : vector<2x8xf32>
    %cst_68 = arith.constant dense<0.000000e+00> : vector<2xf32>
    %136 = vector.multi_reduction <add>, %135, %cst_68 [1] : vector<2x8xf32> to vector<2xf32>
    %137 = vector.shape_cast %136 : vector<2xf32> to vector<2x1xf32>
    %138 = vector.broadcast %137 : vector<2x1xf32> to vector<2x8xf32>
    %139 = arith.divf %135, %138 : vector<2x8xf32>
    %140 = vector.shape_cast %139 : vector<2x8xf32> to vector<2x8x1xf32>
    %141 = vector.broadcast %140 : vector<2x8x1xf32> to vector<2x8x32xf32>
    %142 = arith.mulf %9, %141 : vector<2x8x32xf32>
    %cst_69 = arith.constant dense<0.000000e+00> : vector<2x32xf32>
    %143 = vector.multi_reduction <add>, %142, %cst_69 [1] : vector<2x8x32xf32> to vector<2x32xf32>
    %144 = tpu.concatenate %143, %126 in 1 : vector<2x32xf32>, vector<2x32xf32> -> vector<2x64xf32>
    %cst_70 = arith.constant dense<0.000000e+00> : vector<2x128xf32>
    %145 = tpu.matmul %144, %10, %cst_70 {dimension_numbers = #tpu.dot_dimension_numbers<[1], [0], [0], [1], [0, 0, 1, 1], [], []>} : vector<2x64xf32>, vector<64x128xf32>, vector<2x128xf32> -> vector<2x128xf32>
    %146 = vector.broadcast %11 : vector<1x128xf32> to vector<2x128xf32>
    %147 = arith.addf %145, %146 : vector<2x128xf32>
    %cst_71 = arith.constant dense<0xFF800000> : vector<2xf32>
    %148 = vector.multi_reduction <maximumf>, %147, %cst_71 [1] : vector<2x128xf32> to vector<2xf32>
    %149 = vector.shape_cast %148 : vector<2xf32> to vector<2x1xf32>
    %150 = vector.broadcast %149 : vector<2x1xf32> to vector<2x128xf32>
    %151 = arith.subf %147, %150 : vector<2x128xf32>
    %152 = math.exp %151 : vector<2x128xf32>
    %cst_72 = arith.constant dense<0.000000e+00> : vector<2xf32>
    %153 = vector.multi_reduction <add>, %152, %cst_72 [1] : vector<2x128xf32> to vector<2xf32>
    %154 = vector.shape_cast %153 : vector<2xf32> to vector<2x1xf32>
    %155 = math.log %154 : vector<2x1xf32>
    %156 = arith.addf %149, %155 : vector<2x1xf32>
    %157 = vector.broadcast %156 : vector<2x1xf32> to vector<2x128xf32>
    %158 = arith.subf %147, %157 : vector<2x128xf32>
    %159 = arith.index_cast %c0_i32 : i32 to index
    %c0_73 = arith.constant 0 : index
    %c0_74 = arith.constant 0 : index
    %160 = vector.load %arg9[%159, %c0_73, %c0_74] : memref<8x2x128xf32, #tpu.memory_space<vmem>>, vector<1x2x128xf32>
    %161 = vector.shape_cast %160 : vector<1x2x128xf32> to vector<2x128xf32>
    %162 = vector.shape_cast %158 : vector<2x128xf32> to vector<1x2x128xf32>
    tpu.vector_store %arg9[%159, %c0_73, %c0_74], %162 {strides = array<i32>} : memref<8x2x128xf32, #tpu.memory_space<vmem>>, vector<1x2x128xf32>,
    %c1_i32 = arith.constant 1 : i32
    %163 = arith.index_cast %c1_i32 : i32 to index
    %c0_75 = arith.constant 0 : index
    %c0_76 = arith.constant 0 : index
    %164 = vector.load %arg1[%163, %c0_75, %c0_76] : memref<8x2x32xf32, #tpu.memory_space<vmem>>, vector<1x2x32xf32>
    %165 = vector.shape_cast %164 : vector<1x2x32xf32> to vector<2x32xf32>
    %166 = tpu.concatenate %165, %54 in 1 : vector<2x32xf32>, vector<2x32xf32> -> vector<2x64xf32>
    %c0_77 = arith.constant 0 : index
    %c0_78 = arith.constant 0 : index
    %c0_79 = arith.constant 0 : index
    %167 = vector.load %arg5[%c0_77, %c0_78, %c0_79] : memref<4x64x128xf32, #tpu.memory_space<vmem>>, vector<1x64x128xf32>
    %168 = vector.shape_cast %167 : vector<1x64x128xf32> to vector<64x128xf32>
    %cst_80 = arith.constant dense<0.000000e+00> : vector<2x128xf32>
    %169 = tpu.matmul %166, %168, %cst_80 {dimension_numbers = #tpu.dot_dimension_numbers<[1], [0], [0], [1], [0, 0, 1, 1], [], []>} : vector<2x64xf32>, vector<64x128xf32>, vector<2x128xf32> -> vector<2x128xf32>
    %c0_81 = arith.constant 0 : index
    %c0_82 = arith.constant 0 : index
    %c0_83 = arith.constant 0 : index
    %170 = vector.load %arg6[%c0_81, %c0_82, %c0_83] : memref<4x1x128xf32, #tpu.memory_space<vmem>>, vector<1x1x128xf32>
    %171 = vector.shape_cast %170 : vector<1x1x128xf32> to vector<1x128xf32>
    %172 = vector.broadcast %171 : vector<1x128xf32> to vector<2x128xf32>
    %173 = arith.addf %169, %172 : vector<2x128xf32>
    %174 = arith.mulf %173, %8 : vector<2x128xf32>
    %175 = math.tanh %174 : vector<2x128xf32>
    %cst_84 = arith.constant 5.000000e-01 : f32
    %176 = vector.broadcast %cst_84 : f32 to vector<2x128xf32>
    %177 = arith.mulf %176, %175 : vector<2x128xf32>
    %cst_85 = arith.constant 5.000000e-01 : f32
    %178 = vector.broadcast %cst_85 : f32 to vector<2x128xf32>
    %179 = arith.addf %177, %178 : vector<2x128xf32>
    %180 = arith.select %5, %175, %179 : vector<2x128xi1>, vector<2x128xf32>
    %181 = vector.extract_strided_slice %180 {offsets = [0, 0], sizes = [2, 32], strides = [1, 1]} : vector<2x128xf32> to vector<2x32xf32>
    %182 = vector.extract_strided_slice %180 {offsets = [0, 32], sizes = [2, 32], strides = [1, 1]} : vector<2x128xf32> to vector<2x32xf32>
    %183 = vector.extract_strided_slice %180 {offsets = [0, 64], sizes = [2, 32], strides = [1, 1]} : vector<2x128xf32> to vector<2x32xf32>
    %184 = vector.extract_strided_slice %180 {offsets = [0, 96], sizes = [2, 32], strides = [1, 1]} : vector<2x128xf32> to vector<2x32xf32>
    %185 = arith.mulf %182, %52 : vector<2x32xf32>
    %186 = arith.mulf %181, %183 : vector<2x32xf32>
    %187 = arith.addf %185, %186 : vector<2x32xf32>
    %188 = math.tanh %187 : vector<2x32xf32>
    %189 = arith.mulf %184, %188 : vector<2x32xf32>
    %190 = tpu.concatenate %189, %78 in 1 : vector<2x32xf32>, vector<2x32xf32> -> vector<2x64xf32>
    %c1_86 = arith.constant 1 : index
    %c0_87 = arith.constant 0 : index
    %c0_88 = arith.constant 0 : index
    %191 = vector.load %arg5[%c1_86, %c0_87, %c0_88] : memref<4x64x128xf32, #tpu.memory_space<vmem>>, vector<1x64x128xf32>
    %192 = vector.shape_cast %191 : vector<1x64x128xf32> to vector<64x128xf32>
    %cst_89 = arith.constant dense<0.000000e+00> : vector<2x128xf32>
    %193 = tpu.matmul %190, %192, %cst_89 {dimension_numbers = #tpu.dot_dimension_numbers<[1], [0], [0], [1], [0, 0, 1, 1], [], []>} : vector<2x64xf32>, vector<64x128xf32>, vector<2x128xf32> -> vector<2x128xf32>
    %c1_90 = arith.constant 1 : index
    %c0_91 = arith.constant 0 : index
    %c0_92 = arith.constant 0 : index
    %194 = vector.load %arg6[%c1_90, %c0_91, %c0_92] : memref<4x1x128xf32, #tpu.memory_space<vmem>>, vector<1x1x128xf32>
    %195 = vector.shape_cast %194 : vector<1x1x128xf32> to vector<1x128xf32>
    %196 = vector.broadcast %195 : vector<1x128xf32> to vector<2x128xf32>
    %197 = arith.addf %193, %196 : vector<2x128xf32>
    %198 = arith.mulf %197, %8 : vector<2x128xf32>
    %199 = math.tanh %198 : vector<2x128xf32>
    %cst_93 = arith.constant 5.000000e-01 : f32
    %200 = vector.broadcast %cst_93 : f32 to vector<2x128xf32>
    %201 = arith.mulf %200, %199 : vector<2x128xf32>
    %cst_94 = arith.constant 5.000000e-01 : f32
    %202 = vector.broadcast %cst_94 : f32 to vector<2x128xf32>
    %203 = arith.addf %201, %202 : vector<2x128xf32>
    %204 = arith.select %5, %199, %203 : vector<2x128xi1>, vector<2x128xf32>
    %205 = vector.extract_strided_slice %204 {offsets = [0, 0], sizes = [2, 32], strides = [1, 1]} : vector<2x128xf32> to vector<2x32xf32>
    %206 = vector.extract_strided_slice %204 {offsets = [0, 32], sizes = [2, 32], strides = [1, 1]} : vector<2x128xf32> to vector<2x32xf32>
    %207 = vector.extract_strided_slice %204 {offsets = [0, 64], sizes = [2, 32], strides = [1, 1]} : vector<2x128xf32> to vector<2x32xf32>
    %208 = vector.extract_strided_slice %204 {offsets = [0, 96], sizes = [2, 32], strides = [1, 1]} : vector<2x128xf32> to vector<2x32xf32>
    %209 = arith.mulf %206, %76 : vector<2x32xf32>
    %210 = arith.mulf %205, %207 : vector<2x32xf32>
    %211 = arith.addf %209, %210 : vector<2x32xf32>
    %212 = math.tanh %211 : vector<2x32xf32>
    %213 = arith.mulf %208, %212 : vector<2x32xf32>
    %214 = tpu.concatenate %213, %102 in 1 : vector<2x32xf32>, vector<2x32xf32> -> vector<2x64xf32>
    %c2_95 = arith.constant 2 : index
    %c0_96 = arith.constant 0 : index
    %c0_97 = arith.constant 0 : index
    %215 = vector.load %arg5[%c2_95, %c0_96, %c0_97] : memref<4x64x128xf32, #tpu.memory_space<vmem>>, vector<1x64x128xf32>
    %216 = vector.shape_cast %215 : vector<1x64x128xf32> to vector<64x128xf32>
    %cst_98 = arith.constant dense<0.000000e+00> : vector<2x128xf32>
    %217 = tpu.matmul %214, %216, %cst_98 {dimension_numbers = #tpu.dot_dimension_numbers<[1], [0], [0], [1], [0, 0, 1, 1], [], []>} : vector<2x64xf32>, vector<64x128xf32>, vector<2x128xf32> -> vector<2x128xf32>
    %c2_99 = arith.constant 2 : index
    %c0_100 = arith.constant 0 : index
    %c0_101 = arith.constant 0 : index
    %218 = vector.load %arg6[%c2_99, %c0_100, %c0_101] : memref<4x1x128xf32, #tpu.memory_space<vmem>>, vector<1x1x128xf32>
    %219 = vector.shape_cast %218 : vector<1x1x128xf32> to vector<1x128xf32>
    %220 = vector.broadcast %219 : vector<1x128xf32> to vector<2x128xf32>
    %221 = arith.addf %217, %220 : vector<2x128xf32>
    %222 = arith.mulf %221, %8 : vector<2x128xf32>
    %223 = math.tanh %222 : vector<2x128xf32>
    %cst_102 = arith.constant 5.000000e-01 : f32
    %224 = vector.broadcast %cst_102 : f32 to vector<2x128xf32>
    %225 = arith.mulf %224, %223 : vector<2x128xf32>
    %cst_103 = arith.constant 5.000000e-01 : f32
    %226 = vector.broadcast %cst_103 : f32 to vector<2x128xf32>
    %227 = arith.addf %225, %226 : vector<2x128xf32>
    %228 = arith.select %5, %223, %227 : vector<2x128xi1>, vector<2x128xf32>
    %229 = vector.extract_strided_slice %228 {offsets = [0, 0], sizes = [2, 32], strides = [1, 1]} : vector<2x128xf32> to vector<2x32xf32>
    %230 = vector.extract_strided_slice %228 {offsets = [0, 32], sizes = [2, 32], strides = [1, 1]} : vector<2x128xf32> to vector<2x32xf32>
    %231 = vector.extract_strided_slice %228 {offsets = [0, 64], sizes = [2, 32], strides = [1, 1]} : vector<2x128xf32> to vector<2x32xf32>
    %232 = vector.extract_strided_slice %228 {offsets = [0, 96], sizes = [2, 32], strides = [1, 1]} : vector<2x128xf32> to vector<2x32xf32>
    %233 = arith.mulf %230, %100 : vector<2x32xf32>
    %234 = arith.mulf %229, %231 : vector<2x32xf32>
    %235 = arith.addf %233, %234 : vector<2x32xf32>
    %236 = math.tanh %235 : vector<2x32xf32>
    %237 = arith.mulf %232, %236 : vector<2x32xf32>
    %238 = tpu.concatenate %237, %126 in 1 : vector<2x32xf32>, vector<2x32xf32> -> vector<2x64xf32>
    %c3_104 = arith.constant 3 : index
    %c0_105 = arith.constant 0 : index
    %c0_106 = arith.constant 0 : index
    %239 = vector.load %arg5[%c3_104, %c0_105, %c0_106] : memref<4x64x128xf32, #tpu.memory_space<vmem>>, vector<1x64x128xf32>
    %240 = vector.shape_cast %239 : vector<1x64x128xf32> to vector<64x128xf32>
    %cst_107 = arith.constant dense<0.000000e+00> : vector<2x128xf32>
    %241 = tpu.matmul %238, %240, %cst_107 {dimension_numbers = #tpu.dot_dimension_numbers<[1], [0], [0], [1], [0, 0, 1, 1], [], []>} : vector<2x64xf32>, vector<64x128xf32>, vector<2x128xf32> -> vector<2x128xf32>
    %c3_108 = arith.constant 3 : index
    %c0_109 = arith.constant 0 : index
    %c0_110 = arith.constant 0 : index
    %242 = vector.load %arg6[%c3_108, %c0_109, %c0_110] : memref<4x1x128xf32, #tpu.memory_space<vmem>>, vector<1x1x128xf32>
    %243 = vector.shape_cast %242 : vector<1x1x128xf32> to vector<1x128xf32>
    %244 = vector.broadcast %243 : vector<1x128xf32> to vector<2x128xf32>
    %245 = arith.addf %241, %244 : vector<2x128xf32>
    %246 = arith.mulf %245, %8 : vector<2x128xf32>
    %247 = math.tanh %246 : vector<2x128xf32>
    %cst_111 = arith.constant 5.000000e-01 : f32
    %248 = vector.broadcast %cst_111 : f32 to vector<2x128xf32>
    %249 = arith.mulf %248, %247 : vector<2x128xf32>
    %cst_112 = arith.constant 5.000000e-01 : f32
    %250 = vector.broadcast %cst_112 : f32 to vector<2x128xf32>
    %251 = arith.addf %249, %250 : vector<2x128xf32>
    %252 = arith.select %5, %247, %251 : vector<2x128xi1>, vector<2x128xf32>
    %253 = vector.extract_strided_slice %252 {offsets = [0, 0], sizes = [2, 32], strides = [1, 1]} : vector<2x128xf32> to vector<2x32xf32>
    %254 = vector.extract_strided_slice %252 {offsets = [0, 32], sizes = [2, 32], strides = [1, 1]} : vector<2x128xf32> to vector<2x32xf32>
    %255 = vector.extract_strided_slice %252 {offsets = [0, 64], sizes = [2, 32], strides = [1, 1]} : vector<2x128xf32> to vector<2x32xf32>
    %256 = vector.extract_strided_slice %252 {offsets = [0, 96], sizes = [2, 32], strides = [1, 1]} : vector<2x128xf32> to vector<2x32xf32>
    %257 = arith.mulf %254, %124 : vector<2x32xf32>
    %258 = arith.mulf %253, %255 : vector<2x32xf32>
    %259 = arith.addf %257, %258 : vector<2x32xf32>
    %260 = math.tanh %259 : vector<2x32xf32>
    %261 = arith.mulf %256, %260 : vector<2x32xf32>
    %262 = vector.shape_cast %261 : vector<2x32xf32> to vector<2x1x32xf32>
    %263 = vector.broadcast %262 : vector<2x1x32xf32> to vector<2x8x32xf32>
    %264 = arith.mulf %9, %263 : vector<2x8x32xf32>
    %cst_113 = arith.constant dense<0.000000e+00> : vector<2x8xf32>
    %265 = vector.multi_reduction <add>, %264, %cst_113 [2] : vector<2x8x32xf32> to vector<2x8xf32>
    %cst_114 = arith.constant dense<0xFF800000> : vector<2xf32>
    %266 = vector.multi_reduction <maximumf>, %265, %cst_114 [1] : vector<2x8xf32> to vector<2xf32>
    %267 = vector.shape_cast %266 : vector<2xf32> to vector<2x1xf32>
    %268 = vector.broadcast %267 : vector<2x1xf32> to vector<2x8xf32>
    %269 = arith.subf %265, %268 : vector<2x8xf32>
    %270 = math.exp %269 : vector<2x8xf32>
    %cst_115 = arith.constant dense<0.000000e+00> : vector<2xf32>
    %271 = vector.multi_reduction <add>, %270, %cst_115 [1] : vector<2x8xf32> to vector<2xf32>
    %272 = vector.shape_cast %271 : vector<2xf32> to vector<2x1xf32>
    %273 = vector.broadcast %272 : vector<2x1xf32> to vector<2x8xf32>
    %274 = arith.divf %270, %273 : vector<2x8xf32>
    %275 = vector.shape_cast %274 : vector<2x8xf32> to vector<2x8x1xf32>
    %276 = vector.broadcast %275 : vector<2x8x1xf32> to vector<2x8x32xf32>
    %277 = arith.mulf %9, %276 : vector<2x8x32xf32>
    %cst_116 = arith.constant dense<0.000000e+00> : vector<2x32xf32>
    %278 = vector.multi_reduction <add>, %277, %cst_116 [1] : vector<2x8x32xf32> to vector<2x32xf32>
    %279 = tpu.concatenate %278, %261 in 1 : vector<2x32xf32>, vector<2x32xf32> -> vector<2x64xf32>
    %cst_117 = arith.constant dense<0.000000e+00> : vector<2x128xf32>
    %280 = tpu.matmul %279, %10, %cst_117 {dimension_numbers = #tpu.dot_dimension_numbers<[1], [0], [0], [1], [0, 0, 1, 1], [], []>} : vector<2x64xf32>, vector<64x128xf32>, vector<2x128xf32> -> vector<2x128xf32>
    %281 = vector.broadcast %11 : vector<1x128xf32> to vector<2x128xf32>
    %282 = arith.addf %280, %281 : vector<2x128xf32>
    %cst_118 = arith.constant dense<0xFF800000> : vector<2xf32>
    %283 = vector.multi_reduction <maximumf>, %282, %cst_118 [1] : vector<2x128xf32> to vector<2xf32>
    %284 = vector.shape_cast %283 : vector<2xf32> to vector<2x1xf32>
    %285 = vector.broadcast %284 : vector<2x1xf32> to vector<2x128xf32>
    %286 = arith.subf %282, %285 : vector<2x128xf32>
    %287 = math.exp %286 : vector<2x128xf32>
    %cst_119 = arith.constant dense<0.000000e+00> : vector<2xf32>
    %288 = vector.multi_reduction <add>, %287, %cst_119 [1] : vector<2x128xf32> to vector<2xf32>
    %289 = vector.shape_cast %288 : vector<2xf32> to vector<2x1xf32>
    %290 = math.log %289 : vector<2x1xf32>
    %291 = arith.addf %284, %290 : vector<2x1xf32>
    %292 = vector.broadcast %291 : vector<2x1xf32> to vector<2x128xf32>
    %293 = arith.subf %282, %292 : vector<2x128xf32>
    %294 = arith.index_cast %c1_i32 : i32 to index
    %c0_120 = arith.constant 0 : index
    %c0_121 = arith.constant 0 : index
    %295 = vector.load %arg9[%294, %c0_120, %c0_121] : memref<8x2x128xf32, #tpu.memory_space<vmem>>, vector<1x2x128xf32>
    %296 = vector.shape_cast %295 : vector<1x2x128xf32> to vector<2x128xf32>
    %297 = vector.shape_cast %293 : vector<2x128xf32> to vector<1x2x128xf32>
    tpu.vector_store %arg9[%294, %c0_120, %c0_121], %297 {strides = array<i32>} : memref<8x2x128xf32, #tpu.memory_space<vmem>>, vector<1x2x128xf32>,
    %c2_i32 = arith.constant 2 : i32
    %298 = arith.index_cast %c2_i32 : i32 to index
    %c0_122 = arith.constant 0 : index
    %c0_123 = arith.constant 0 : index
    %299 = vector.load %arg1[%298, %c0_122, %c0_123] : memref<8x2x32xf32, #tpu.memory_space<vmem>>, vector<1x2x32xf32>
    %300 = vector.shape_cast %299 : vector<1x2x32xf32> to vector<2x32xf32>
    %301 = tpu.concatenate %300, %189 in 1 : vector<2x32xf32>, vector<2x32xf32> -> vector<2x64xf32>
    %c0_124 = arith.constant 0 : index
    %c0_125 = arith.constant 0 : index
    %c0_126 = arith.constant 0 : index
    %302 = vector.load %arg5[%c0_124, %c0_125, %c0_126] : memref<4x64x128xf32, #tpu.memory_space<vmem>>, vector<1x64x128xf32>
    %303 = vector.shape_cast %302 : vector<1x64x128xf32> to vector<64x128xf32>
    %cst_127 = arith.constant dense<0.000000e+00> : vector<2x128xf32>
    %304 = tpu.matmul %301, %303, %cst_127 {dimension_numbers = #tpu.dot_dimension_numbers<[1], [0], [0], [1], [0, 0, 1, 1], [], []>} : vector<2x64xf32>, vector<64x128xf32>, vector<2x128xf32> -> vector<2x128xf32>
    %c0_128 = arith.constant 0 : index
    %c0_129 = arith.constant 0 : index
    %c0_130 = arith.constant 0 : index
    %305 = vector.load %arg6[%c0_128, %c0_129, %c0_130] : memref<4x1x128xf32, #tpu.memory_space<vmem>>, vector<1x1x128xf32>
    %306 = vector.shape_cast %305 : vector<1x1x128xf32> to vector<1x128xf32>
    %307 = vector.broadcast %306 : vector<1x128xf32> to vector<2x128xf32>
    %308 = arith.addf %304, %307 : vector<2x128xf32>
    %309 = arith.mulf %308, %8 : vector<2x128xf32>
    %310 = math.tanh %309 : vector<2x128xf32>
    %cst_131 = arith.constant 5.000000e-01 : f32
    %311 = vector.broadcast %cst_131 : f32 to vector<2x128xf32>
    %312 = arith.mulf %311, %310 : vector<2x128xf32>
    %cst_132 = arith.constant 5.000000e-01 : f32
    %313 = vector.broadcast %cst_132 : f32 to vector<2x128xf32>
    %314 = arith.addf %312, %313 : vector<2x128xf32>
    %315 = arith.select %5, %310, %314 : vector<2x128xi1>, vector<2x128xf32>
    %316 = vector.extract_strided_slice %315 {offsets = [0, 0], sizes = [2, 32], strides = [1, 1]} : vector<2x128xf32> to vector<2x32xf32>
    %317 = vector.extract_strided_slice %315 {offsets = [0, 32], sizes = [2, 32], strides = [1, 1]} : vector<2x128xf32> to vector<2x32xf32>
    %318 = vector.extract_strided_slice %315 {offsets = [0, 64], sizes = [2, 32], strides = [1, 1]} : vector<2x128xf32> to vector<2x32xf32>
    %319 = vector.extract_strided_slice %315 {offsets = [0, 96], sizes = [2, 32], strides = [1, 1]} : vector<2x128xf32> to vector<2x32xf32>
    %320 = arith.mulf %317, %187 : vector<2x32xf32>
    %321 = arith.mulf %316, %318 : vector<2x32xf32>
    %322 = arith.addf %320, %321 : vector<2x32xf32>
    %323 = math.tanh %322 : vector<2x32xf32>
    %324 = arith.mulf %319, %323 : vector<2x32xf32>
    %325 = tpu.concatenate %324, %213 in 1 : vector<2x32xf32>, vector<2x32xf32> -> vector<2x64xf32>
    %c1_133 = arith.constant 1 : index
    %c0_134 = arith.constant 0 : index
    %c0_135 = arith.constant 0 : index
    %326 = vector.load %arg5[%c1_133, %c0_134, %c0_135] : memref<4x64x128xf32, #tpu.memory_space<vmem>>, vector<1x64x128xf32>
    %327 = vector.shape_cast %326 : vector<1x64x128xf32> to vector<64x128xf32>
    %cst_136 = arith.constant dense<0.000000e+00> : vector<2x128xf32>
    %328 = tpu.matmul %325, %327, %cst_136 {dimension_numbers = #tpu.dot_dimension_numbers<[1], [0], [0], [1], [0, 0, 1, 1], [], []>} : vector<2x64xf32>, vector<64x128xf32>, vector<2x128xf32> -> vector<2x128xf32>
    %c1_137 = arith.constant 1 : index
    %c0_138 = arith.constant 0 : index
    %c0_139 = arith.constant 0 : index
    %329 = vector.load %arg6[%c1_137, %c0_138, %c0_139] : memref<4x1x128xf32, #tpu.memory_space<vmem>>, vector<1x1x128xf32>
    %330 = vector.shape_cast %329 : vector<1x1x128xf32> to vector<1x128xf32>
    %331 = vector.broadcast %330 : vector<1x128xf32> to vector<2x128xf32>
    %332 = arith.addf %328, %331 : vector<2x128xf32>
    %333 = arith.mulf %332, %8 : vector<2x128xf32>
    %334 = math.tanh %333 : vector<2x128xf32>
    %cst_140 = arith.constant 5.000000e-01 : f32
    %335 = vector.broadcast %cst_140 : f32 to vector<2x128xf32>
    %336 = arith.mulf %335, %334 : vector<2x128xf32>
    %cst_141 = arith.constant 5.000000e-01 : f32
    %337 = vector.broadcast %cst_141 : f32 to vector<2x128xf32>
    %338 = arith.addf %336, %337 : vector<2x128xf32>
    %339 = arith.select %5, %334, %338 : vector<2x128xi1>, vector<2x128xf32>
    %340 = vector.extract_strided_slice %339 {offsets = [0, 0], sizes = [2, 32], strides = [1, 1]} : vector<2x128xf32> to vector<2x32xf32>
    %341 = vector.extract_strided_slice %339 {offsets = [0, 32], sizes = [2, 32], strides = [1, 1]} : vector<2x128xf32> to vector<2x32xf32>
    %342 = vector.extract_strided_slice %339 {offsets = [0, 64], sizes = [2, 32], strides = [1, 1]} : vector<2x128xf32> to vector<2x32xf32>
    %343 = vector.extract_strided_slice %339 {offsets = [0, 96], sizes = [2, 32], strides = [1, 1]} : vector<2x128xf32> to vector<2x32xf32>
    %344 = arith.mulf %341, %211 : vector<2x32xf32>
    %345 = arith.mulf %340, %342 : vector<2x32xf32>
    %346 = arith.addf %344, %345 : vector<2x32xf32>
    %347 = math.tanh %346 : vector<2x32xf32>
    %348 = arith.mulf %343, %347 : vector<2x32xf32>
    %349 = tpu.concatenate %348, %237 in 1 : vector<2x32xf32>, vector<2x32xf32> -> vector<2x64xf32>
    %c2_142 = arith.constant 2 : index
    %c0_143 = arith.constant 0 : index
    %c0_144 = arith.constant 0 : index
    %350 = vector.load %arg5[%c2_142, %c0_143, %c0_144] : memref<4x64x128xf32, #tpu.memory_space<vmem>>, vector<1x64x128xf32>
    %351 = vector.shape_cast %350 : vector<1x64x128xf32> to vector<64x128xf32>
    %cst_145 = arith.constant dense<0.000000e+00> : vector<2x128xf32>
    %352 = tpu.matmul %349, %351, %cst_145 {dimension_numbers = #tpu.dot_dimension_numbers<[1], [0], [0], [1], [0, 0, 1, 1], [], []>} : vector<2x64xf32>, vector<64x128xf32>, vector<2x128xf32> -> vector<2x128xf32>
    %c2_146 = arith.constant 2 : index
    %c0_147 = arith.constant 0 : index
    %c0_148 = arith.constant 0 : index
    %353 = vector.load %arg6[%c2_146, %c0_147, %c0_148] : memref<4x1x128xf32, #tpu.memory_space<vmem>>, vector<1x1x128xf32>
    %354 = vector.shape_cast %353 : vector<1x1x128xf32> to vector<1x128xf32>
    %355 = vector.broadcast %354 : vector<1x128xf32> to vector<2x128xf32>
    %356 = arith.addf %352, %355 : vector<2x128xf32>
    %357 = arith.mulf %356, %8 : vector<2x128xf32>
    %358 = math.tanh %357 : vector<2x128xf32>
    %cst_149 = arith.constant 5.000000e-01 : f32
    %359 = vector.broadcast %cst_149 : f32 to vector<2x128xf32>
    %360 = arith.mulf %359, %358 : vector<2x128xf32>
    %cst_150 = arith.constant 5.000000e-01 : f32
    %361 = vector.broadcast %cst_150 : f32 to vector<2x128xf32>
    %362 = arith.addf %360, %361 : vector<2x128xf32>
    %363 = arith.select %5, %358, %362 : vector<2x128xi1>, vector<2x128xf32>
    %364 = vector.extract_strided_slice %363 {offsets = [0, 0], sizes = [2, 32], strides = [1, 1]} : vector<2x128xf32> to vector<2x32xf32>
    %365 = vector.extract_strided_slice %363 {offsets = [0, 32], sizes = [2, 32], strides = [1, 1]} : vector<2x128xf32> to vector<2x32xf32>
    %366 = vector.extract_strided_slice %363 {offsets = [0, 64], sizes = [2, 32], strides = [1, 1]} : vector<2x128xf32> to vector<2x32xf32>
    %367 = vector.extract_strided_slice %363 {offsets = [0, 96], sizes = [2, 32], strides = [1, 1]} : vector<2x128xf32> to vector<2x32xf32>
    %368 = arith.mulf %365, %235 : vector<2x32xf32>
    %369 = arith.mulf %364, %366 : vector<2x32xf32>
    %370 = arith.addf %368, %369 : vector<2x32xf32>
    %371 = math.tanh %370 : vector<2x32xf32>
    %372 = arith.mulf %367, %371 : vector<2x32xf32>
    %373 = tpu.concatenate %372, %261 in 1 : vector<2x32xf32>, vector<2x32xf32> -> vector<2x64xf32>
    %c3_151 = arith.constant 3 : index
    %c0_152 = arith.constant 0 : index
    %c0_153 = arith.constant 0 : index
    %374 = vector.load %arg5[%c3_151, %c0_152, %c0_153] : memref<4x64x128xf32, #tpu.memory_space<vmem>>, vector<1x64x128xf32>
    %375 = vector.shape_cast %374 : vector<1x64x128xf32> to vector<64x128xf32>
    %cst_154 = arith.constant dense<0.000000e+00> : vector<2x128xf32>
    %376 = tpu.matmul %373, %375, %cst_154 {dimension_numbers = #tpu.dot_dimension_numbers<[1], [0], [0], [1], [0, 0, 1, 1], [], []>} : vector<2x64xf32>, vector<64x128xf32>, vector<2x128xf32> -> vector<2x128xf32>
    %c3_155 = arith.constant 3 : index
    %c0_156 = arith.constant 0 : index
    %c0_157 = arith.constant 0 : index
    %377 = vector.load %arg6[%c3_155, %c0_156, %c0_157] : memref<4x1x128xf32, #tpu.memory_space<vmem>>, vector<1x1x128xf32>
    %378 = vector.shape_cast %377 : vector<1x1x128xf32> to vector<1x128xf32>
    %379 = vector.broadcast %378 : vector<1x128xf32> to vector<2x128xf32>
    %380 = arith.addf %376, %379 : vector<2x128xf32>
    %381 = arith.mulf %380, %8 : vector<2x128xf32>
    %382 = math.tanh %381 : vector<2x128xf32>
    %cst_158 = arith.constant 5.000000e-01 : f32
    %383 = vector.broadcast %cst_158 : f32 to vector<2x128xf32>
    %384 = arith.mulf %383, %382 : vector<2x128xf32>
    %cst_159 = arith.constant 5.000000e-01 : f32
    %385 = vector.broadcast %cst_159 : f32 to vector<2x128xf32>
    %386 = arith.addf %384, %385 : vector<2x128xf32>
    %387 = arith.select %5, %382, %386 : vector<2x128xi1>, vector<2x128xf32>
    %388 = vector.extract_strided_slice %387 {offsets = [0, 0], sizes = [2, 32], strides = [1, 1]} : vector<2x128xf32> to vector<2x32xf32>
    %389 = vector.extract_strided_slice %387 {offsets = [0, 32], sizes = [2, 32], strides = [1, 1]} : vector<2x128xf32> to vector<2x32xf32>
    %390 = vector.extract_strided_slice %387 {offsets = [0, 64], sizes = [2, 32], strides = [1, 1]} : vector<2x128xf32> to vector<2x32xf32>
    %391 = vector.extract_strided_slice %387 {offsets = [0, 96], sizes = [2, 32], strides = [1, 1]} : vector<2x128xf32> to vector<2x32xf32>
    %392 = arith.mulf %389, %259 : vector<2x32xf32>
    %393 = arith.mulf %388, %390 : vector<2x32xf32>
    %394 = arith.addf %392, %393 : vector<2x32xf32>
    %395 = math.tanh %394 : vector<2x32xf32>
    %396 = arith.mulf %391, %395 : vector<2x32xf32>
    %397 = vector.shape_cast %396 : vector<2x32xf32> to vector<2x1x32xf32>
    %398 = vector.broadcast %397 : vector<2x1x32xf32> to vector<2x8x32xf32>
    %399 = arith.mulf %9, %398 : vector<2x8x32xf32>
    %cst_160 = arith.constant dense<0.000000e+00> : vector<2x8xf32>
    %400 = vector.multi_reduction <add>, %399, %cst_160 [2] : vector<2x8x32xf32> to vector<2x8xf32>
    %cst_161 = arith.constant dense<0xFF800000> : vector<2xf32>
    %401 = vector.multi_reduction <maximumf>, %400, %cst_161 [1] : vector<2x8xf32> to vector<2xf32>
    %402 = vector.shape_cast %401 : vector<2xf32> to vector<2x1xf32>
    %403 = vector.broadcast %402 : vector<2x1xf32> to vector<2x8xf32>
    %404 = arith.subf %400, %403 : vector<2x8xf32>
    %405 = math.exp %404 : vector<2x8xf32>
    %cst_162 = arith.constant dense<0.000000e+00> : vector<2xf32>
    %406 = vector.multi_reduction <add>, %405, %cst_162 [1] : vector<2x8xf32> to vector<2xf32>
    %407 = vector.shape_cast %406 : vector<2xf32> to vector<2x1xf32>
    %408 = vector.broadcast %407 : vector<2x1xf32> to vector<2x8xf32>
    %409 = arith.divf %405, %408 : vector<2x8xf32>
    %410 = vector.shape_cast %409 : vector<2x8xf32> to vector<2x8x1xf32>
    %411 = vector.broadcast %410 : vector<2x8x1xf32> to vector<2x8x32xf32>
    %412 = arith.mulf %9, %411 : vector<2x8x32xf32>
    %cst_163 = arith.constant dense<0.000000e+00> : vector<2x32xf32>
    %413 = vector.multi_reduction <add>, %412, %cst_163 [1] : vector<2x8x32xf32> to vector<2x32xf32>
    %414 = tpu.concatenate %413, %396 in 1 : vector<2x32xf32>, vector<2x32xf32> -> vector<2x64xf32>
    %cst_164 = arith.constant dense<0.000000e+00> : vector<2x128xf32>
    %415 = tpu.matmul %414, %10, %cst_164 {dimension_numbers = #tpu.dot_dimension_numbers<[1], [0], [0], [1], [0, 0, 1, 1], [], []>} : vector<2x64xf32>, vector<64x128xf32>, vector<2x128xf32> -> vector<2x128xf32>
    %416 = vector.broadcast %11 : vector<1x128xf32> to vector<2x128xf32>
    %417 = arith.addf %415, %416 : vector<2x128xf32>
    %cst_165 = arith.constant dense<0xFF800000> : vector<2xf32>
    %418 = vector.multi_reduction <maximumf>, %417, %cst_165 [1] : vector<2x128xf32> to vector<2xf32>
    %419 = vector.shape_cast %418 : vector<2xf32> to vector<2x1xf32>
    %420 = vector.broadcast %419 : vector<2x1xf32> to vector<2x128xf32>
    %421 = arith.subf %417, %420 : vector<2x128xf32>
    %422 = math.exp %421 : vector<2x128xf32>
    %cst_166 = arith.constant dense<0.000000e+00> : vector<2xf32>
    %423 = vector.multi_reduction <add>, %422, %cst_166 [1] : vector<2x128xf32> to vector<2xf32>
    %424 = vector.shape_cast %423 : vector<2xf32> to vector<2x1xf32>
    %425 = math.log %424 : vector<2x1xf32>
    %426 = arith.addf %419, %425 : vector<2x1xf32>
    %427 = vector.broadcast %426 : vector<2x1xf32> to vector<2x128xf32>
    %428 = arith.subf %417, %427 : vector<2x128xf32>
    %429 = arith.index_cast %c2_i32 : i32 to index
    %c0_167 = arith.constant 0 : index
    %c0_168 = arith.constant 0 : index
    %430 = vector.load %arg9[%429, %c0_167, %c0_168] : memref<8x2x128xf32, #tpu.memory_space<vmem>>, vector<1x2x128xf32>
    %431 = vector.shape_cast %430 : vector<1x2x128xf32> to vector<2x128xf32>
    %432 = vector.shape_cast %428 : vector<2x128xf32> to vector<1x2x128xf32>
    tpu.vector_store %arg9[%429, %c0_167, %c0_168], %432 {strides = array<i32>} : memref<8x2x128xf32, #tpu.memory_space<vmem>>, vector<1x2x128xf32>,
    %c3_i32 = arith.constant 3 : i32
    %433 = arith.index_cast %c3_i32 : i32 to index
    %c0_169 = arith.constant 0 : index
    %c0_170 = arith.constant 0 : index
    %434 = vector.load %arg1[%433, %c0_169, %c0_170] : memref<8x2x32xf32, #tpu.memory_space<vmem>>, vector<1x2x32xf32>
    %435 = vector.shape_cast %434 : vector<1x2x32xf32> to vector<2x32xf32>
    %436 = tpu.concatenate %435, %324 in 1 : vector<2x32xf32>, vector<2x32xf32> -> vector<2x64xf32>
    %c0_171 = arith.constant 0 : index
    %c0_172 = arith.constant 0 : index
    %c0_173 = arith.constant 0 : index
    %437 = vector.load %arg5[%c0_171, %c0_172, %c0_173] : memref<4x64x128xf32, #tpu.memory_space<vmem>>, vector<1x64x128xf32>
    %438 = vector.shape_cast %437 : vector<1x64x128xf32> to vector<64x128xf32>
    %cst_174 = arith.constant dense<0.000000e+00> : vector<2x128xf32>
    %439 = tpu.matmul %436, %438, %cst_174 {dimension_numbers = #tpu.dot_dimension_numbers<[1], [0], [0], [1], [0, 0, 1, 1], [], []>} : vector<2x64xf32>, vector<64x128xf32>, vector<2x128xf32> -> vector<2x128xf32>
    %c0_175 = arith.constant 0 : index
    %c0_176 = arith.constant 0 : index
    %c0_177 = arith.constant 0 : index
    %440 = vector.load %arg6[%c0_175, %c0_176, %c0_177] : memref<4x1x128xf32, #tpu.memory_space<vmem>>, vector<1x1x128xf32>
    %441 = vector.shape_cast %440 : vector<1x1x128xf32> to vector<1x128xf32>
    %442 = vector.broadcast %441 : vector<1x128xf32> to vector<2x128xf32>
    %443 = arith.addf %439, %442 : vector<2x128xf32>
    %444 = arith.mulf %443, %8 : vector<2x128xf32>
    %445 = math.tanh %444 : vector<2x128xf32>
    %cst_178 = arith.constant 5.000000e-01 : f32
    %446 = vector.broadcast %cst_178 : f32 to vector<2x128xf32>
    %447 = arith.mulf %446, %445 : vector<2x128xf32>
    %cst_179 = arith.constant 5.000000e-01 : f32
    %448 = vector.broadcast %cst_179 : f32 to vector<2x128xf32>
    %449 = arith.addf %447, %448 : vector<2x128xf32>
    %450 = arith.select %5, %445, %449 : vector<2x128xi1>, vector<2x128xf32>
    %451 = vector.extract_strided_slice %450 {offsets = [0, 0], sizes = [2, 32], strides = [1, 1]} : vector<2x128xf32> to vector<2x32xf32>
    %452 = vector.extract_strided_slice %450 {offsets = [0, 32], sizes = [2, 32], strides = [1, 1]} : vector<2x128xf32> to vector<2x32xf32>
    %453 = vector.extract_strided_slice %450 {offsets = [0, 64], sizes = [2, 32], strides = [1, 1]} : vector<2x128xf32> to vector<2x32xf32>
    %454 = vector.extract_strided_slice %450 {offsets = [0, 96], sizes = [2, 32], strides = [1, 1]} : vector<2x128xf32> to vector<2x32xf32>
    %455 = arith.mulf %452, %322 : vector<2x32xf32>
    %456 = arith.mulf %451, %453 : vector<2x32xf32>
    %457 = arith.addf %455, %456 : vector<2x32xf32>
    %458 = math.tanh %457 : vector<2x32xf32>
    %459 = arith.mulf %454, %458 : vector<2x32xf32>
    %460 = tpu.concatenate %459, %348 in 1 : vector<2x32xf32>, vector<2x32xf32> -> vector<2x64xf32>
    %c1_180 = arith.constant 1 : index
    %c0_181 = arith.constant 0 : index
    %c0_182 = arith.constant 0 : index
    %461 = vector.load %arg5[%c1_180, %c0_181, %c0_182] : memref<4x64x128xf32, #tpu.memory_space<vmem>>, vector<1x64x128xf32>
    %462 = vector.shape_cast %461 : vector<1x64x128xf32> to vector<64x128xf32>
    %cst_183 = arith.constant dense<0.000000e+00> : vector<2x128xf32>
    %463 = tpu.matmul %460, %462, %cst_183 {dimension_numbers = #tpu.dot_dimension_numbers<[1], [0], [0], [1], [0, 0, 1, 1], [], []>} : vector<2x64xf32>, vector<64x128xf32>, vector<2x128xf32> -> vector<2x128xf32>
    %c1_184 = arith.constant 1 : index
    %c0_185 = arith.constant 0 : index
    %c0_186 = arith.constant 0 : index
    %464 = vector.load %arg6[%c1_184, %c0_185, %c0_186] : memref<4x1x128xf32, #tpu.memory_space<vmem>>, vector<1x1x128xf32>
    %465 = vector.shape_cast %464 : vector<1x1x128xf32> to vector<1x128xf32>
    %466 = vector.broadcast %465 : vector<1x128xf32> to vector<2x128xf32>
    %467 = arith.addf %463, %466 : vector<2x128xf32>
    %468 = arith.mulf %467, %8 : vector<2x128xf32>
    %469 = math.tanh %468 : vector<2x128xf32>
    %cst_187 = arith.constant 5.000000e-01 : f32
    %470 = vector.broadcast %cst_187 : f32 to vector<2x128xf32>
    %471 = arith.mulf %470, %469 : vector<2x128xf32>
    %cst_188 = arith.constant 5.000000e-01 : f32
    %472 = vector.broadcast %cst_188 : f32 to vector<2x128xf32>
    %473 = arith.addf %471, %472 : vector<2x128xf32>
    %474 = arith.select %5, %469, %473 : vector<2x128xi1>, vector<2x128xf32>
    %475 = vector.extract_strided_slice %474 {offsets = [0, 0], sizes = [2, 32], strides = [1, 1]} : vector<2x128xf32> to vector<2x32xf32>
    %476 = vector.extract_strided_slice %474 {offsets = [0, 32], sizes = [2, 32], strides = [1, 1]} : vector<2x128xf32> to vector<2x32xf32>
    %477 = vector.extract_strided_slice %474 {offsets = [0, 64], sizes = [2, 32], strides = [1, 1]} : vector<2x128xf32> to vector<2x32xf32>
    %478 = vector.extract_strided_slice %474 {offsets = [0, 96], sizes = [2, 32], strides = [1, 1]} : vector<2x128xf32> to vector<2x32xf32>
    %479 = arith.mulf %476, %346 : vector<2x32xf32>
    %480 = arith.mulf %475, %477 : vector<2x32xf32>
    %481 = arith.addf %479, %480 : vector<2x32xf32>
    %482 = math.tanh %481 : vector<2x32xf32>
    %483 = arith.mulf %478, %482 : vector<2x32xf32>
    %484 = tpu.concatenate %483, %372 in 1 : vector<2x32xf32>, vector<2x32xf32> -> vector<2x64xf32>
    %c2_189 = arith.constant 2 : index
    %c0_190 = arith.constant 0 : index
    %c0_191 = arith.constant 0 : index
    %485 = vector.load %arg5[%c2_189, %c0_190, %c0_191] : memref<4x64x128xf32, #tpu.memory_space<vmem>>, vector<1x64x128xf32>
    %486 = vector.shape_cast %485 : vector<1x64x128xf32> to vector<64x128xf32>
    %cst_192 = arith.constant dense<0.000000e+00> : vector<2x128xf32>
    %487 = tpu.matmul %484, %486, %cst_192 {dimension_numbers = #tpu.dot_dimension_numbers<[1], [0], [0], [1], [0, 0, 1, 1], [], []>} : vector<2x64xf32>, vector<64x128xf32>, vector<2x128xf32> -> vector<2x128xf32>
    %c2_193 = arith.constant 2 : index
    %c0_194 = arith.constant 0 : index
    %c0_195 = arith.constant 0 : index
    %488 = vector.load %arg6[%c2_193, %c0_194, %c0_195] : memref<4x1x128xf32, #tpu.memory_space<vmem>>, vector<1x1x128xf32>
    %489 = vector.shape_cast %488 : vector<1x1x128xf32> to vector<1x128xf32>
    %490 = vector.broadcast %489 : vector<1x128xf32> to vector<2x128xf32>
    %491 = arith.addf %487, %490 : vector<2x128xf32>
    %492 = arith.mulf %491, %8 : vector<2x128xf32>
    %493 = math.tanh %492 : vector<2x128xf32>
    %cst_196 = arith.constant 5.000000e-01 : f32
    %494 = vector.broadcast %cst_196 : f32 to vector<2x128xf32>
    %495 = arith.mulf %494, %493 : vector<2x128xf32>
    %cst_197 = arith.constant 5.000000e-01 : f32
    %496 = vector.broadcast %cst_197 : f32 to vector<2x128xf32>
    %497 = arith.addf %495, %496 : vector<2x128xf32>
    %498 = arith.select %5, %493, %497 : vector<2x128xi1>, vector<2x128xf32>
    %499 = vector.extract_strided_slice %498 {offsets = [0, 0], sizes = [2, 32], strides = [1, 1]} : vector<2x128xf32> to vector<2x32xf32>
    %500 = vector.extract_strided_slice %498 {offsets = [0, 32], sizes = [2, 32], strides = [1, 1]} : vector<2x128xf32> to vector<2x32xf32>
    %501 = vector.extract_strided_slice %498 {offsets = [0, 64], sizes = [2, 32], strides = [1, 1]} : vector<2x128xf32> to vector<2x32xf32>
    %502 = vector.extract_strided_slice %498 {offsets = [0, 96], sizes = [2, 32], strides = [1, 1]} : vector<2x128xf32> to vector<2x32xf32>
    %503 = arith.mulf %500, %370 : vector<2x32xf32>
    %504 = arith.mulf %499, %501 : vector<2x32xf32>
    %505 = arith.addf %503, %504 : vector<2x32xf32>
    %506 = math.tanh %505 : vector<2x32xf32>
    %507 = arith.mulf %502, %506 : vector<2x32xf32>
    %508 = tpu.concatenate %507, %396 in 1 : vector<2x32xf32>, vector<2x32xf32> -> vector<2x64xf32>
    %c3_198 = arith.constant 3 : index
    %c0_199 = arith.constant 0 : index
    %c0_200 = arith.constant 0 : index
    %509 = vector.load %arg5[%c3_198, %c0_199, %c0_200] : memref<4x64x128xf32, #tpu.memory_space<vmem>>, vector<1x64x128xf32>
    %510 = vector.shape_cast %509 : vector<1x64x128xf32> to vector<64x128xf32>
    %cst_201 = arith.constant dense<0.000000e+00> : vector<2x128xf32>
    %511 = tpu.matmul %508, %510, %cst_201 {dimension_numbers = #tpu.dot_dimension_numbers<[1], [0], [0], [1], [0, 0, 1, 1], [], []>} : vector<2x64xf32>, vector<64x128xf32>, vector<2x128xf32> -> vector<2x128xf32>
    %c3_202 = arith.constant 3 : index
    %c0_203 = arith.constant 0 : index
    %c0_204 = arith.constant 0 : index
    %512 = vector.load %arg6[%c3_202, %c0_203, %c0_204] : memref<4x1x128xf32, #tpu.memory_space<vmem>>, vector<1x1x128xf32>
    %513 = vector.shape_cast %512 : vector<1x1x128xf32> to vector<1x128xf32>
    %514 = vector.broadcast %513 : vector<1x128xf32> to vector<2x128xf32>
    %515 = arith.addf %511, %514 : vector<2x128xf32>
    %516 = arith.mulf %515, %8 : vector<2x128xf32>
    %517 = math.tanh %516 : vector<2x128xf32>
    %cst_205 = arith.constant 5.000000e-01 : f32
    %518 = vector.broadcast %cst_205 : f32 to vector<2x128xf32>
    %519 = arith.mulf %518, %517 : vector<2x128xf32>
    %cst_206 = arith.constant 5.000000e-01 : f32
    %520 = vector.broadcast %cst_206 : f32 to vector<2x128xf32>
    %521 = arith.addf %519, %520 : vector<2x128xf32>
    %522 = arith.select %5, %517, %521 : vector<2x128xi1>, vector<2x128xf32>
    %523 = vector.extract_strided_slice %522 {offsets = [0, 0], sizes = [2, 32], strides = [1, 1]} : vector<2x128xf32> to vector<2x32xf32>
    %524 = vector.extract_strided_slice %522 {offsets = [0, 32], sizes = [2, 32], strides = [1, 1]} : vector<2x128xf32> to vector<2x32xf32>
    %525 = vector.extract_strided_slice %522 {offsets = [0, 64], sizes = [2, 32], strides = [1, 1]} : vector<2x128xf32> to vector<2x32xf32>
    %526 = vector.extract_strided_slice %522 {offsets = [0, 96], sizes = [2, 32], strides = [1, 1]} : vector<2x128xf32> to vector<2x32xf32>
    %527 = arith.mulf %524, %394 : vector<2x32xf32>
    %528 = arith.mulf %523, %525 : vector<2x32xf32>
    %529 = arith.addf %527, %528 : vector<2x32xf32>
    %530 = math.tanh %529 : vector<2x32xf32>
    %531 = arith.mulf %526, %530 : vector<2x32xf32>
    %532 = vector.shape_cast %531 : vector<2x32xf32> to vector<2x1x32xf32>
    %533 = vector.broadcast %532 : vector<2x1x32xf32> to vector<2x8x32xf32>
    %534 = arith.mulf %9, %533 : vector<2x8x32xf32>
    %cst_207 = arith.constant dense<0.000000e+00> : vector<2x8xf32>
    %535 = vector.multi_reduction <add>, %534, %cst_207 [2] : vector<2x8x32xf32> to vector<2x8xf32>
    %cst_208 = arith.constant dense<0xFF800000> : vector<2xf32>
    %536 = vector.multi_reduction <maximumf>, %535, %cst_208 [1] : vector<2x8xf32> to vector<2xf32>
    %537 = vector.shape_cast %536 : vector<2xf32> to vector<2x1xf32>
    %538 = vector.broadcast %537 : vector<2x1xf32> to vector<2x8xf32>
    %539 = arith.subf %535, %538 : vector<2x8xf32>
    %540 = math.exp %539 : vector<2x8xf32>
    %cst_209 = arith.constant dense<0.000000e+00> : vector<2xf32>
    %541 = vector.multi_reduction <add>, %540, %cst_209 [1] : vector<2x8xf32> to vector<2xf32>
    %542 = vector.shape_cast %541 : vector<2xf32> to vector<2x1xf32>
    %543 = vector.broadcast %542 : vector<2x1xf32> to vector<2x8xf32>
    %544 = arith.divf %540, %543 : vector<2x8xf32>
    %545 = vector.shape_cast %544 : vector<2x8xf32> to vector<2x8x1xf32>
    %546 = vector.broadcast %545 : vector<2x8x1xf32> to vector<2x8x32xf32>
    %547 = arith.mulf %9, %546 : vector<2x8x32xf32>
    %cst_210 = arith.constant dense<0.000000e+00> : vector<2x32xf32>
    %548 = vector.multi_reduction <add>, %547, %cst_210 [1] : vector<2x8x32xf32> to vector<2x32xf32>
    %549 = tpu.concatenate %548, %531 in 1 : vector<2x32xf32>, vector<2x32xf32> -> vector<2x64xf32>
    %cst_211 = arith.constant dense<0.000000e+00> : vector<2x128xf32>
    %550 = tpu.matmul %549, %10, %cst_211 {dimension_numbers = #tpu.dot_dimension_numbers<[1], [0], [0], [1], [0, 0, 1, 1], [], []>} : vector<2x64xf32>, vector<64x128xf32>, vector<2x128xf32> -> vector<2x128xf32>
    %551 = vector.broadcast %11 : vector<1x128xf32> to vector<2x128xf32>
    %552 = arith.addf %550, %551 : vector<2x128xf32>
    %cst_212 = arith.constant dense<0xFF800000> : vector<2xf32>
    %553 = vector.multi_reduction <maximumf>, %552, %cst_212 [1] : vector<2x128xf32> to vector<2xf32>
    %554 = vector.shape_cast %553 : vector<2xf32> to vector<2x1xf32>
    %555 = vector.broadcast %554 : vector<2x1xf32> to vector<2x128xf32>
    %556 = arith.subf %552, %555 : vector<2x128xf32>
    %557 = math.exp %556 : vector<2x128xf32>
    %cst_213 = arith.constant dense<0.000000e+00> : vector<2xf32>
    %558 = vector.multi_reduction <add>, %557, %cst_213 [1] : vector<2x128xf32> to vector<2xf32>
    %559 = vector.shape_cast %558 : vector<2xf32> to vector<2x1xf32>
    %560 = math.log %559 : vector<2x1xf32>
    %561 = arith.addf %554, %560 : vector<2x1xf32>
    %562 = vector.broadcast %561 : vector<2x1xf32> to vector<2x128xf32>
    %563 = arith.subf %552, %562 : vector<2x128xf32>
    %564 = arith.index_cast %c3_i32 : i32 to index
    %c0_214 = arith.constant 0 : index
    %c0_215 = arith.constant 0 : index
    %565 = vector.load %arg9[%564, %c0_214, %c0_215] : memref<8x2x128xf32, #tpu.memory_space<vmem>>, vector<1x2x128xf32>
    %566 = vector.shape_cast %565 : vector<1x2x128xf32> to vector<2x128xf32>
    %567 = vector.shape_cast %563 : vector<2x128xf32> to vector<1x2x128xf32>
    tpu.vector_store %arg9[%564, %c0_214, %c0_215], %567 {strides = array<i32>} : memref<8x2x128xf32, #tpu.memory_space<vmem>>, vector<1x2x128xf32>,
    %c4_i32 = arith.constant 4 : i32
    %568 = arith.index_cast %c4_i32 : i32 to index
    %c0_216 = arith.constant 0 : index
    %c0_217 = arith.constant 0 : index
    %569 = vector.load %arg1[%568, %c0_216, %c0_217] : memref<8x2x32xf32, #tpu.memory_space<vmem>>, vector<1x2x32xf32>
    %570 = vector.shape_cast %569 : vector<1x2x32xf32> to vector<2x32xf32>
    %571 = tpu.concatenate %570, %459 in 1 : vector<2x32xf32>, vector<2x32xf32> -> vector<2x64xf32>
    %c0_218 = arith.constant 0 : index
    %c0_219 = arith.constant 0 : index
    %c0_220 = arith.constant 0 : index
    %572 = vector.load %arg5[%c0_218, %c0_219, %c0_220] : memref<4x64x128xf32, #tpu.memory_space<vmem>>, vector<1x64x128xf32>
    %573 = vector.shape_cast %572 : vector<1x64x128xf32> to vector<64x128xf32>
    %cst_221 = arith.constant dense<0.000000e+00> : vector<2x128xf32>
    %574 = tpu.matmul %571, %573, %cst_221 {dimension_numbers = #tpu.dot_dimension_numbers<[1], [0], [0], [1], [0, 0, 1, 1], [], []>} : vector<2x64xf32>, vector<64x128xf32>, vector<2x128xf32> -> vector<2x128xf32>
    %c0_222 = arith.constant 0 : index
    %c0_223 = arith.constant 0 : index
    %c0_224 = arith.constant 0 : index
    %575 = vector.load %arg6[%c0_222, %c0_223, %c0_224] : memref<4x1x128xf32, #tpu.memory_space<vmem>>, vector<1x1x128xf32>
    %576 = vector.shape_cast %575 : vector<1x1x128xf32> to vector<1x128xf32>
    %577 = vector.broadcast %576 : vector<1x128xf32> to vector<2x128xf32>
    %578 = arith.addf %574, %577 : vector<2x128xf32>
    %579 = arith.mulf %578, %8 : vector<2x128xf32>
    %580 = math.tanh %579 : vector<2x128xf32>
    %cst_225 = arith.constant 5.000000e-01 : f32
    %581 = vector.broadcast %cst_225 : f32 to vector<2x128xf32>
    %582 = arith.mulf %581, %580 : vector<2x128xf32>
    %cst_226 = arith.constant 5.000000e-01 : f32
    %583 = vector.broadcast %cst_226 : f32 to vector<2x128xf32>
    %584 = arith.addf %582, %583 : vector<2x128xf32>
    %585 = arith.select %5, %580, %584 : vector<2x128xi1>, vector<2x128xf32>
    %586 = vector.extract_strided_slice %585 {offsets = [0, 0], sizes = [2, 32], strides = [1, 1]} : vector<2x128xf32> to vector<2x32xf32>
    %587 = vector.extract_strided_slice %585 {offsets = [0, 32], sizes = [2, 32], strides = [1, 1]} : vector<2x128xf32> to vector<2x32xf32>
    %588 = vector.extract_strided_slice %585 {offsets = [0, 64], sizes = [2, 32], strides = [1, 1]} : vector<2x128xf32> to vector<2x32xf32>
    %589 = vector.extract_strided_slice %585 {offsets = [0, 96], sizes = [2, 32], strides = [1, 1]} : vector<2x128xf32> to vector<2x32xf32>
    %590 = arith.mulf %587, %457 : vector<2x32xf32>
    %591 = arith.mulf %586, %588 : vector<2x32xf32>
    %592 = arith.addf %590, %591 : vector<2x32xf32>
    %593 = math.tanh %592 : vector<2x32xf32>
    %594 = arith.mulf %589, %593 : vector<2x32xf32>
    %595 = tpu.concatenate %594, %483 in 1 : vector<2x32xf32>, vector<2x32xf32> -> vector<2x64xf32>
    %c1_227 = arith.constant 1 : index
    %c0_228 = arith.constant 0 : index
    %c0_229 = arith.constant 0 : index
    %596 = vector.load %arg5[%c1_227, %c0_228, %c0_229] : memref<4x64x128xf32, #tpu.memory_space<vmem>>, vector<1x64x128xf32>
    %597 = vector.shape_cast %596 : vector<1x64x128xf32> to vector<64x128xf32>
    %cst_230 = arith.constant dense<0.000000e+00> : vector<2x128xf32>
    %598 = tpu.matmul %595, %597, %cst_230 {dimension_numbers = #tpu.dot_dimension_numbers<[1], [0], [0], [1], [0, 0, 1, 1], [], []>} : vector<2x64xf32>, vector<64x128xf32>, vector<2x128xf32> -> vector<2x128xf32>
    %c1_231 = arith.constant 1 : index
    %c0_232 = arith.constant 0 : index
    %c0_233 = arith.constant 0 : index
    %599 = vector.load %arg6[%c1_231, %c0_232, %c0_233] : memref<4x1x128xf32, #tpu.memory_space<vmem>>, vector<1x1x128xf32>
    %600 = vector.shape_cast %599 : vector<1x1x128xf32> to vector<1x128xf32>
    %601 = vector.broadcast %600 : vector<1x128xf32> to vector<2x128xf32>
    %602 = arith.addf %598, %601 : vector<2x128xf32>
    %603 = arith.mulf %602, %8 : vector<2x128xf32>
    %604 = math.tanh %603 : vector<2x128xf32>
    %cst_234 = arith.constant 5.000000e-01 : f32
    %605 = vector.broadcast %cst_234 : f32 to vector<2x128xf32>
    %606 = arith.mulf %605, %604 : vector<2x128xf32>
    %cst_235 = arith.constant 5.000000e-01 : f32
    %607 = vector.broadcast %cst_235 : f32 to vector<2x128xf32>
    %608 = arith.addf %606, %607 : vector<2x128xf32>
    %609 = arith.select %5, %604, %608 : vector<2x128xi1>, vector<2x128xf32>
    %610 = vector.extract_strided_slice %609 {offsets = [0, 0], sizes = [2, 32], strides = [1, 1]} : vector<2x128xf32> to vector<2x32xf32>
    %611 = vector.extract_strided_slice %609 {offsets = [0, 32], sizes = [2, 32], strides = [1, 1]} : vector<2x128xf32> to vector<2x32xf32>
    %612 = vector.extract_strided_slice %609 {offsets = [0, 64], sizes = [2, 32], strides = [1, 1]} : vector<2x128xf32> to vector<2x32xf32>
    %613 = vector.extract_strided_slice %609 {offsets = [0, 96], sizes = [2, 32], strides = [1, 1]} : vector<2x128xf32> to vector<2x32xf32>
    %614 = arith.mulf %611, %481 : vector<2x32xf32>
    %615 = arith.mulf %610, %612 : vector<2x32xf32>
    %616 = arith.addf %614, %615 : vector<2x32xf32>
    %617 = math.tanh %616 : vector<2x32xf32>
    %618 = arith.mulf %613, %617 : vector<2x32xf32>
    %619 = tpu.concatenate %618, %507 in 1 : vector<2x32xf32>, vector<2x32xf32> -> vector<2x64xf32>
    %c2_236 = arith.constant 2 : index
    %c0_237 = arith.constant 0 : index
    %c0_238 = arith.constant 0 : index
    %620 = vector.load %arg5[%c2_236, %c0_237, %c0_238] : memref<4x64x128xf32, #tpu.memory_space<vmem>>, vector<1x64x128xf32>
    %621 = vector.shape_cast %620 : vector<1x64x128xf32> to vector<64x128xf32>
    %cst_239 = arith.constant dense<0.000000e+00> : vector<2x128xf32>
    %622 = tpu.matmul %619, %621, %cst_239 {dimension_numbers = #tpu.dot_dimension_numbers<[1], [0], [0], [1], [0, 0, 1, 1], [], []>} : vector<2x64xf32>, vector<64x128xf32>, vector<2x128xf32> -> vector<2x128xf32>
    %c2_240 = arith.constant 2 : index
    %c0_241 = arith.constant 0 : index
    %c0_242 = arith.constant 0 : index
    %623 = vector.load %arg6[%c2_240, %c0_241, %c0_242] : memref<4x1x128xf32, #tpu.memory_space<vmem>>, vector<1x1x128xf32>
    %624 = vector.shape_cast %623 : vector<1x1x128xf32> to vector<1x128xf32>
    %625 = vector.broadcast %624 : vector<1x128xf32> to vector<2x128xf32>
    %626 = arith.addf %622, %625 : vector<2x128xf32>
    %627 = arith.mulf %626, %8 : vector<2x128xf32>
    %628 = math.tanh %627 : vector<2x128xf32>
    %cst_243 = arith.constant 5.000000e-01 : f32
    %629 = vector.broadcast %cst_243 : f32 to vector<2x128xf32>
    %630 = arith.mulf %629, %628 : vector<2x128xf32>
    %cst_244 = arith.constant 5.000000e-01 : f32
    %631 = vector.broadcast %cst_244 : f32 to vector<2x128xf32>
    %632 = arith.addf %630, %631 : vector<2x128xf32>
    %633 = arith.select %5, %628, %632 : vector<2x128xi1>, vector<2x128xf32>
    %634 = vector.extract_strided_slice %633 {offsets = [0, 0], sizes = [2, 32], strides = [1, 1]} : vector<2x128xf32> to vector<2x32xf32>
    %635 = vector.extract_strided_slice %633 {offsets = [0, 32], sizes = [2, 32], strides = [1, 1]} : vector<2x128xf32> to vector<2x32xf32>
    %636 = vector.extract_strided_slice %633 {offsets = [0, 64], sizes = [2, 32], strides = [1, 1]} : vector<2x128xf32> to vector<2x32xf32>
    %637 = vector.extract_strided_slice %633 {offsets = [0, 96], sizes = [2, 32], strides = [1, 1]} : vector<2x128xf32> to vector<2x32xf32>
    %638 = arith.mulf %635, %505 : vector<2x32xf32>
    %639 = arith.mulf %634, %636 : vector<2x32xf32>
    %640 = arith.addf %638, %639 : vector<2x32xf32>
    %641 = math.tanh %640 : vector<2x32xf32>
    %642 = arith.mulf %637, %641 : vector<2x32xf32>
    %643 = tpu.concatenate %642, %531 in 1 : vector<2x32xf32>, vector<2x32xf32> -> vector<2x64xf32>
    %c3_245 = arith.constant 3 : index
    %c0_246 = arith.constant 0 : index
    %c0_247 = arith.constant 0 : index
    %644 = vector.load %arg5[%c3_245, %c0_246, %c0_247] : memref<4x64x128xf32, #tpu.memory_space<vmem>>, vector<1x64x128xf32>
    %645 = vector.shape_cast %644 : vector<1x64x128xf32> to vector<64x128xf32>
    %cst_248 = arith.constant dense<0.000000e+00> : vector<2x128xf32>
    %646 = tpu.matmul %643, %645, %cst_248 {dimension_numbers = #tpu.dot_dimension_numbers<[1], [0], [0], [1], [0, 0, 1, 1], [], []>} : vector<2x64xf32>, vector<64x128xf32>, vector<2x128xf32> -> vector<2x128xf32>
    %c3_249 = arith.constant 3 : index
    %c0_250 = arith.constant 0 : index
    %c0_251 = arith.constant 0 : index
    %647 = vector.load %arg6[%c3_249, %c0_250, %c0_251] : memref<4x1x128xf32, #tpu.memory_space<vmem>>, vector<1x1x128xf32>
    %648 = vector.shape_cast %647 : vector<1x1x128xf32> to vector<1x128xf32>
    %649 = vector.broadcast %648 : vector<1x128xf32> to vector<2x128xf32>
    %650 = arith.addf %646, %649 : vector<2x128xf32>
    %651 = arith.mulf %650, %8 : vector<2x128xf32>
    %652 = math.tanh %651 : vector<2x128xf32>
    %cst_252 = arith.constant 5.000000e-01 : f32
    %653 = vector.broadcast %cst_252 : f32 to vector<2x128xf32>
    %654 = arith.mulf %653, %652 : vector<2x128xf32>
    %cst_253 = arith.constant 5.000000e-01 : f32
    %655 = vector.broadcast %cst_253 : f32 to vector<2x128xf32>
    %656 = arith.addf %654, %655 : vector<2x128xf32>
    %657 = arith.select %5, %652, %656 : vector<2x128xi1>, vector<2x128xf32>
    %658 = vector.extract_strided_slice %657 {offsets = [0, 0], sizes = [2, 32], strides = [1, 1]} : vector<2x128xf32> to vector<2x32xf32>
    %659 = vector.extract_strided_slice %657 {offsets = [0, 32], sizes = [2, 32], strides = [1, 1]} : vector<2x128xf32> to vector<2x32xf32>
    %660 = vector.extract_strided_slice %657 {offsets = [0, 64], sizes = [2, 32], strides = [1, 1]} : vector<2x128xf32> to vector<2x32xf32>
    %661 = vector.extract_strided_slice %657 {offsets = [0, 96], sizes = [2, 32], strides = [1, 1]} : vector<2x128xf32> to vector<2x32xf32>
    %662 = arith.mulf %659, %529 : vector<2x32xf32>
    %663 = arith.mulf %658, %660 : vector<2x32xf32>
    %664 = arith.addf %662, %663 : vector<2x32xf32>
    %665 = math.tanh %664 : vector<2x32xf32>
    %666 = arith.mulf %661, %665 : vector<2x32xf32>
    %667 = vector.shape_cast %666 : vector<2x32xf32> to vector<2x1x32xf32>
    %668 = vector.broadcast %667 : vector<2x1x32xf32> to vector<2x8x32xf32>
    %669 = arith.mulf %9, %668 : vector<2x8x32xf32>
    %cst_254 = arith.constant dense<0.000000e+00> : vector<2x8xf32>
    %670 = vector.multi_reduction <add>, %669, %cst_254 [2] : vector<2x8x32xf32> to vector<2x8xf32>
    %cst_255 = arith.constant dense<0xFF800000> : vector<2xf32>
    %671 = vector.multi_reduction <maximumf>, %670, %cst_255 [1] : vector<2x8xf32> to vector<2xf32>
    %672 = vector.shape_cast %671 : vector<2xf32> to vector<2x1xf32>
    %673 = vector.broadcast %672 : vector<2x1xf32> to vector<2x8xf32>
    %674 = arith.subf %670, %673 : vector<2x8xf32>
    %675 = math.exp %674 : vector<2x8xf32>
    %cst_256 = arith.constant dense<0.000000e+00> : vector<2xf32>
    %676 = vector.multi_reduction <add>, %675, %cst_256 [1] : vector<2x8xf32> to vector<2xf32>
    %677 = vector.shape_cast %676 : vector<2xf32> to vector<2x1xf32>
    %678 = vector.broadcast %677 : vector<2x1xf32> to vector<2x8xf32>
    %679 = arith.divf %675, %678 : vector<2x8xf32>
    %680 = vector.shape_cast %679 : vector<2x8xf32> to vector<2x8x1xf32>
    %681 = vector.broadcast %680 : vector<2x8x1xf32> to vector<2x8x32xf32>
    %682 = arith.mulf %9, %681 : vector<2x8x32xf32>
    %cst_257 = arith.constant dense<0.000000e+00> : vector<2x32xf32>
    %683 = vector.multi_reduction <add>, %682, %cst_257 [1] : vector<2x8x32xf32> to vector<2x32xf32>
    %684 = tpu.concatenate %683, %666 in 1 : vector<2x32xf32>, vector<2x32xf32> -> vector<2x64xf32>
    %cst_258 = arith.constant dense<0.000000e+00> : vector<2x128xf32>
    %685 = tpu.matmul %684, %10, %cst_258 {dimension_numbers = #tpu.dot_dimension_numbers<[1], [0], [0], [1], [0, 0, 1, 1], [], []>} : vector<2x64xf32>, vector<64x128xf32>, vector<2x128xf32> -> vector<2x128xf32>
    %686 = vector.broadcast %11 : vector<1x128xf32> to vector<2x128xf32>
    %687 = arith.addf %685, %686 : vector<2x128xf32>
    %cst_259 = arith.constant dense<0xFF800000> : vector<2xf32>
    %688 = vector.multi_reduction <maximumf>, %687, %cst_259 [1] : vector<2x128xf32> to vector<2xf32>
    %689 = vector.shape_cast %688 : vector<2xf32> to vector<2x1xf32>
    %690 = vector.broadcast %689 : vector<2x1xf32> to vector<2x128xf32>
    %691 = arith.subf %687, %690 : vector<2x128xf32>
    %692 = math.exp %691 : vector<2x128xf32>
    %cst_260 = arith.constant dense<0.000000e+00> : vector<2xf32>
    %693 = vector.multi_reduction <add>, %692, %cst_260 [1] : vector<2x128xf32> to vector<2xf32>
    %694 = vector.shape_cast %693 : vector<2xf32> to vector<2x1xf32>
    %695 = math.log %694 : vector<2x1xf32>
    %696 = arith.addf %689, %695 : vector<2x1xf32>
    %697 = vector.broadcast %696 : vector<2x1xf32> to vector<2x128xf32>
    %698 = arith.subf %687, %697 : vector<2x128xf32>
    %699 = arith.index_cast %c4_i32 : i32 to index
    %c0_261 = arith.constant 0 : index
    %c0_262 = arith.constant 0 : index
    %700 = vector.load %arg9[%699, %c0_261, %c0_262] : memref<8x2x128xf32, #tpu.memory_space<vmem>>, vector<1x2x128xf32>
    %701 = vector.shape_cast %700 : vector<1x2x128xf32> to vector<2x128xf32>
    %702 = vector.shape_cast %698 : vector<2x128xf32> to vector<1x2x128xf32>
    tpu.vector_store %arg9[%699, %c0_261, %c0_262], %702 {strides = array<i32>} : memref<8x2x128xf32, #tpu.memory_space<vmem>>, vector<1x2x128xf32>,
    %c5_i32 = arith.constant 5 : i32
    %703 = arith.index_cast %c5_i32 : i32 to index
    %c0_263 = arith.constant 0 : index
    %c0_264 = arith.constant 0 : index
    %704 = vector.load %arg1[%703, %c0_263, %c0_264] : memref<8x2x32xf32, #tpu.memory_space<vmem>>, vector<1x2x32xf32>
    %705 = vector.shape_cast %704 : vector<1x2x32xf32> to vector<2x32xf32>
    %706 = tpu.concatenate %705, %594 in 1 : vector<2x32xf32>, vector<2x32xf32> -> vector<2x64xf32>
    %c0_265 = arith.constant 0 : index
    %c0_266 = arith.constant 0 : index
    %c0_267 = arith.constant 0 : index
    %707 = vector.load %arg5[%c0_265, %c0_266, %c0_267] : memref<4x64x128xf32, #tpu.memory_space<vmem>>, vector<1x64x128xf32>
    %708 = vector.shape_cast %707 : vector<1x64x128xf32> to vector<64x128xf32>
    %cst_268 = arith.constant dense<0.000000e+00> : vector<2x128xf32>
    %709 = tpu.matmul %706, %708, %cst_268 {dimension_numbers = #tpu.dot_dimension_numbers<[1], [0], [0], [1], [0, 0, 1, 1], [], []>} : vector<2x64xf32>, vector<64x128xf32>, vector<2x128xf32> -> vector<2x128xf32>
    %c0_269 = arith.constant 0 : index
    %c0_270 = arith.constant 0 : index
    %c0_271 = arith.constant 0 : index
    %710 = vector.load %arg6[%c0_269, %c0_270, %c0_271] : memref<4x1x128xf32, #tpu.memory_space<vmem>>, vector<1x1x128xf32>
    %711 = vector.shape_cast %710 : vector<1x1x128xf32> to vector<1x128xf32>
    %712 = vector.broadcast %711 : vector<1x128xf32> to vector<2x128xf32>
    %713 = arith.addf %709, %712 : vector<2x128xf32>
    %714 = arith.mulf %713, %8 : vector<2x128xf32>
    %715 = math.tanh %714 : vector<2x128xf32>
    %cst_272 = arith.constant 5.000000e-01 : f32
    %716 = vector.broadcast %cst_272 : f32 to vector<2x128xf32>
    %717 = arith.mulf %716, %715 : vector<2x128xf32>
    %cst_273 = arith.constant 5.000000e-01 : f32
    %718 = vector.broadcast %cst_273 : f32 to vector<2x128xf32>
    %719 = arith.addf %717, %718 : vector<2x128xf32>
    %720 = arith.select %5, %715, %719 : vector<2x128xi1>, vector<2x128xf32>
    %721 = vector.extract_strided_slice %720 {offsets = [0, 0], sizes = [2, 32], strides = [1, 1]} : vector<2x128xf32> to vector<2x32xf32>
    %722 = vector.extract_strided_slice %720 {offsets = [0, 32], sizes = [2, 32], strides = [1, 1]} : vector<2x128xf32> to vector<2x32xf32>
    %723 = vector.extract_strided_slice %720 {offsets = [0, 64], sizes = [2, 32], strides = [1, 1]} : vector<2x128xf32> to vector<2x32xf32>
    %724 = vector.extract_strided_slice %720 {offsets = [0, 96], sizes = [2, 32], strides = [1, 1]} : vector<2x128xf32> to vector<2x32xf32>
    %725 = arith.mulf %722, %592 : vector<2x32xf32>
    %726 = arith.mulf %721, %723 : vector<2x32xf32>
    %727 = arith.addf %725, %726 : vector<2x32xf32>
    %728 = math.tanh %727 : vector<2x32xf32>
    %729 = arith.mulf %724, %728 : vector<2x32xf32>
    %730 = tpu.concatenate %729, %618 in 1 : vector<2x32xf32>, vector<2x32xf32> -> vector<2x64xf32>
    %c1_274 = arith.constant 1 : index
    %c0_275 = arith.constant 0 : index
    %c0_276 = arith.constant 0 : index
    %731 = vector.load %arg5[%c1_274, %c0_275, %c0_276] : memref<4x64x128xf32, #tpu.memory_space<vmem>>, vector<1x64x128xf32>
    %732 = vector.shape_cast %731 : vector<1x64x128xf32> to vector<64x128xf32>
    %cst_277 = arith.constant dense<0.000000e+00> : vector<2x128xf32>
    %733 = tpu.matmul %730, %732, %cst_277 {dimension_numbers = #tpu.dot_dimension_numbers<[1], [0], [0], [1], [0, 0, 1, 1], [], []>} : vector<2x64xf32>, vector<64x128xf32>, vector<2x128xf32> -> vector<2x128xf32>
    %c1_278 = arith.constant 1 : index
    %c0_279 = arith.constant 0 : index
    %c0_280 = arith.constant 0 : index
    %734 = vector.load %arg6[%c1_278, %c0_279, %c0_280] : memref<4x1x128xf32, #tpu.memory_space<vmem>>, vector<1x1x128xf32>
    %735 = vector.shape_cast %734 : vector<1x1x128xf32> to vector<1x128xf32>
    %736 = vector.broadcast %735 : vector<1x128xf32> to vector<2x128xf32>
    %737 = arith.addf %733, %736 : vector<2x128xf32>
    %738 = arith.mulf %737, %8 : vector<2x128xf32>
    %739 = math.tanh %738 : vector<2x128xf32>
    %cst_281 = arith.constant 5.000000e-01 : f32
    %740 = vector.broadcast %cst_281 : f32 to vector<2x128xf32>
    %741 = arith.mulf %740, %739 : vector<2x128xf32>
    %cst_282 = arith.constant 5.000000e-01 : f32
    %742 = vector.broadcast %cst_282 : f32 to vector<2x128xf32>
    %743 = arith.addf %741, %742 : vector<2x128xf32>
    %744 = arith.select %5, %739, %743 : vector<2x128xi1>, vector<2x128xf32>
    %745 = vector.extract_strided_slice %744 {offsets = [0, 0], sizes = [2, 32], strides = [1, 1]} : vector<2x128xf32> to vector<2x32xf32>
    %746 = vector.extract_strided_slice %744 {offsets = [0, 32], sizes = [2, 32], strides = [1, 1]} : vector<2x128xf32> to vector<2x32xf32>
    %747 = vector.extract_strided_slice %744 {offsets = [0, 64], sizes = [2, 32], strides = [1, 1]} : vector<2x128xf32> to vector<2x32xf32>
    %748 = vector.extract_strided_slice %744 {offsets = [0, 96], sizes = [2, 32], strides = [1, 1]} : vector<2x128xf32> to vector<2x32xf32>
    %749 = arith.mulf %746, %616 : vector<2x32xf32>
    %750 = arith.mulf %745, %747 : vector<2x32xf32>
    %751 = arith.addf %749, %750 : vector<2x32xf32>
    %752 = math.tanh %751 : vector<2x32xf32>
    %753 = arith.mulf %748, %752 : vector<2x32xf32>
    %754 = tpu.concatenate %753, %642 in 1 : vector<2x32xf32>, vector<2x32xf32> -> vector<2x64xf32>
    %c2_283 = arith.constant 2 : index
    %c0_284 = arith.constant 0 : index
    %c0_285 = arith.constant 0 : index
    %755 = vector.load %arg5[%c2_283, %c0_284, %c0_285] : memref<4x64x128xf32, #tpu.memory_space<vmem>>, vector<1x64x128xf32>
    %756 = vector.shape_cast %755 : vector<1x64x128xf32> to vector<64x128xf32>
    %cst_286 = arith.constant dense<0.000000e+00> : vector<2x128xf32>
    %757 = tpu.matmul %754, %756, %cst_286 {dimension_numbers = #tpu.dot_dimension_numbers<[1], [0], [0], [1], [0, 0, 1, 1], [], []>} : vector<2x64xf32>, vector<64x128xf32>, vector<2x128xf32> -> vector<2x128xf32>
    %c2_287 = arith.constant 2 : index
    %c0_288 = arith.constant 0 : index
    %c0_289 = arith.constant 0 : index
    %758 = vector.load %arg6[%c2_287, %c0_288, %c0_289] : memref<4x1x128xf32, #tpu.memory_space<vmem>>, vector<1x1x128xf32>
    %759 = vector.shape_cast %758 : vector<1x1x128xf32> to vector<1x128xf32>
    %760 = vector.broadcast %759 : vector<1x128xf32> to vector<2x128xf32>
    %761 = arith.addf %757, %760 : vector<2x128xf32>
    %762 = arith.mulf %761, %8 : vector<2x128xf32>
    %763 = math.tanh %762 : vector<2x128xf32>
    %cst_290 = arith.constant 5.000000e-01 : f32
    %764 = vector.broadcast %cst_290 : f32 to vector<2x128xf32>
    %765 = arith.mulf %764, %763 : vector<2x128xf32>
    %cst_291 = arith.constant 5.000000e-01 : f32
    %766 = vector.broadcast %cst_291 : f32 to vector<2x128xf32>
    %767 = arith.addf %765, %766 : vector<2x128xf32>
    %768 = arith.select %5, %763, %767 : vector<2x128xi1>, vector<2x128xf32>
    %769 = vector.extract_strided_slice %768 {offsets = [0, 0], sizes = [2, 32], strides = [1, 1]} : vector<2x128xf32> to vector<2x32xf32>
    %770 = vector.extract_strided_slice %768 {offsets = [0, 32], sizes = [2, 32], strides = [1, 1]} : vector<2x128xf32> to vector<2x32xf32>
    %771 = vector.extract_strided_slice %768 {offsets = [0, 64], sizes = [2, 32], strides = [1, 1]} : vector<2x128xf32> to vector<2x32xf32>
    %772 = vector.extract_strided_slice %768 {offsets = [0, 96], sizes = [2, 32], strides = [1, 1]} : vector<2x128xf32> to vector<2x32xf32>
    %773 = arith.mulf %770, %640 : vector<2x32xf32>
    %774 = arith.mulf %769, %771 : vector<2x32xf32>
    %775 = arith.addf %773, %774 : vector<2x32xf32>
    %776 = math.tanh %775 : vector<2x32xf32>
    %777 = arith.mulf %772, %776 : vector<2x32xf32>
    %778 = tpu.concatenate %777, %666 in 1 : vector<2x32xf32>, vector<2x32xf32> -> vector<2x64xf32>
    %c3_292 = arith.constant 3 : index
    %c0_293 = arith.constant 0 : index
    %c0_294 = arith.constant 0 : index
    %779 = vector.load %arg5[%c3_292, %c0_293, %c0_294] : memref<4x64x128xf32, #tpu.memory_space<vmem>>, vector<1x64x128xf32>
    %780 = vector.shape_cast %779 : vector<1x64x128xf32> to vector<64x128xf32>
    %cst_295 = arith.constant dense<0.000000e+00> : vector<2x128xf32>
    %781 = tpu.matmul %778, %780, %cst_295 {dimension_numbers = #tpu.dot_dimension_numbers<[1], [0], [0], [1], [0, 0, 1, 1], [], []>} : vector<2x64xf32>, vector<64x128xf32>, vector<2x128xf32> -> vector<2x128xf32>
    %c3_296 = arith.constant 3 : index
    %c0_297 = arith.constant 0 : index
    %c0_298 = arith.constant 0 : index
    %782 = vector.load %arg6[%c3_296, %c0_297, %c0_298] : memref<4x1x128xf32, #tpu.memory_space<vmem>>, vector<1x1x128xf32>
    %783 = vector.shape_cast %782 : vector<1x1x128xf32> to vector<1x128xf32>
    %784 = vector.broadcast %783 : vector<1x128xf32> to vector<2x128xf32>
    %785 = arith.addf %781, %784 : vector<2x128xf32>
    %786 = arith.mulf %785, %8 : vector<2x128xf32>
    %787 = math.tanh %786 : vector<2x128xf32>
    %cst_299 = arith.constant 5.000000e-01 : f32
    %788 = vector.broadcast %cst_299 : f32 to vector<2x128xf32>
    %789 = arith.mulf %788, %787 : vector<2x128xf32>
    %cst_300 = arith.constant 5.000000e-01 : f32
    %790 = vector.broadcast %cst_300 : f32 to vector<2x128xf32>
    %791 = arith.addf %789, %790 : vector<2x128xf32>
    %792 = arith.select %5, %787, %791 : vector<2x128xi1>, vector<2x128xf32>
    %793 = vector.extract_strided_slice %792 {offsets = [0, 0], sizes = [2, 32], strides = [1, 1]} : vector<2x128xf32> to vector<2x32xf32>
    %794 = vector.extract_strided_slice %792 {offsets = [0, 32], sizes = [2, 32], strides = [1, 1]} : vector<2x128xf32> to vector<2x32xf32>
    %795 = vector.extract_strided_slice %792 {offsets = [0, 64], sizes = [2, 32], strides = [1, 1]} : vector<2x128xf32> to vector<2x32xf32>
    %796 = vector.extract_strided_slice %792 {offsets = [0, 96], sizes = [2, 32], strides = [1, 1]} : vector<2x128xf32> to vector<2x32xf32>
    %797 = arith.mulf %794, %664 : vector<2x32xf32>
    %798 = arith.mulf %793, %795 : vector<2x32xf32>
    %799 = arith.addf %797, %798 : vector<2x32xf32>
    %800 = math.tanh %799 : vector<2x32xf32>
    %801 = arith.mulf %796, %800 : vector<2x32xf32>
    %802 = vector.shape_cast %801 : vector<2x32xf32> to vector<2x1x32xf32>
    %803 = vector.broadcast %802 : vector<2x1x32xf32> to vector<2x8x32xf32>
    %804 = arith.mulf %9, %803 : vector<2x8x32xf32>
    %cst_301 = arith.constant dense<0.000000e+00> : vector<2x8xf32>
    %805 = vector.multi_reduction <add>, %804, %cst_301 [2] : vector<2x8x32xf32> to vector<2x8xf32>
    %cst_302 = arith.constant dense<0xFF800000> : vector<2xf32>
    %806 = vector.multi_reduction <maximumf>, %805, %cst_302 [1] : vector<2x8xf32> to vector<2xf32>
    %807 = vector.shape_cast %806 : vector<2xf32> to vector<2x1xf32>
    %808 = vector.broadcast %807 : vector<2x1xf32> to vector<2x8xf32>
    %809 = arith.subf %805, %808 : vector<2x8xf32>
    %810 = math.exp %809 : vector<2x8xf32>
    %cst_303 = arith.constant dense<0.000000e+00> : vector<2xf32>
    %811 = vector.multi_reduction <add>, %810, %cst_303 [1] : vector<2x8xf32> to vector<2xf32>
    %812 = vector.shape_cast %811 : vector<2xf32> to vector<2x1xf32>
    %813 = vector.broadcast %812 : vector<2x1xf32> to vector<2x8xf32>
    %814 = arith.divf %810, %813 : vector<2x8xf32>
    %815 = vector.shape_cast %814 : vector<2x8xf32> to vector<2x8x1xf32>
    %816 = vector.broadcast %815 : vector<2x8x1xf32> to vector<2x8x32xf32>
    %817 = arith.mulf %9, %816 : vector<2x8x32xf32>
    %cst_304 = arith.constant dense<0.000000e+00> : vector<2x32xf32>
    %818 = vector.multi_reduction <add>, %817, %cst_304 [1] : vector<2x8x32xf32> to vector<2x32xf32>
    %819 = tpu.concatenate %818, %801 in 1 : vector<2x32xf32>, vector<2x32xf32> -> vector<2x64xf32>
    %cst_305 = arith.constant dense<0.000000e+00> : vector<2x128xf32>
    %820 = tpu.matmul %819, %10, %cst_305 {dimension_numbers = #tpu.dot_dimension_numbers<[1], [0], [0], [1], [0, 0, 1, 1], [], []>} : vector<2x64xf32>, vector<64x128xf32>, vector<2x128xf32> -> vector<2x128xf32>
    %821 = vector.broadcast %11 : vector<1x128xf32> to vector<2x128xf32>
    %822 = arith.addf %820, %821 : vector<2x128xf32>
    %cst_306 = arith.constant dense<0xFF800000> : vector<2xf32>
    %823 = vector.multi_reduction <maximumf>, %822, %cst_306 [1] : vector<2x128xf32> to vector<2xf32>
    %824 = vector.shape_cast %823 : vector<2xf32> to vector<2x1xf32>
    %825 = vector.broadcast %824 : vector<2x1xf32> to vector<2x128xf32>
    %826 = arith.subf %822, %825 : vector<2x128xf32>
    %827 = math.exp %826 : vector<2x128xf32>
    %cst_307 = arith.constant dense<0.000000e+00> : vector<2xf32>
    %828 = vector.multi_reduction <add>, %827, %cst_307 [1] : vector<2x128xf32> to vector<2xf32>
    %829 = vector.shape_cast %828 : vector<2xf32> to vector<2x1xf32>
    %830 = math.log %829 : vector<2x1xf32>
    %831 = arith.addf %824, %830 : vector<2x1xf32>
    %832 = vector.broadcast %831 : vector<2x1xf32> to vector<2x128xf32>
    %833 = arith.subf %822, %832 : vector<2x128xf32>
    %834 = arith.index_cast %c5_i32 : i32 to index
    %c0_308 = arith.constant 0 : index
    %c0_309 = arith.constant 0 : index
    %835 = vector.load %arg9[%834, %c0_308, %c0_309] : memref<8x2x128xf32, #tpu.memory_space<vmem>>, vector<1x2x128xf32>
    %836 = vector.shape_cast %835 : vector<1x2x128xf32> to vector<2x128xf32>
    %837 = vector.shape_cast %833 : vector<2x128xf32> to vector<1x2x128xf32>
    tpu.vector_store %arg9[%834, %c0_308, %c0_309], %837 {strides = array<i32>} : memref<8x2x128xf32, #tpu.memory_space<vmem>>, vector<1x2x128xf32>,
    %c6_i32 = arith.constant 6 : i32
    %838 = arith.index_cast %c6_i32 : i32 to index
    %c0_310 = arith.constant 0 : index
    %c0_311 = arith.constant 0 : index
    %839 = vector.load %arg1[%838, %c0_310, %c0_311] : memref<8x2x32xf32, #tpu.memory_space<vmem>>, vector<1x2x32xf32>
    %840 = vector.shape_cast %839 : vector<1x2x32xf32> to vector<2x32xf32>
    %841 = tpu.concatenate %840, %729 in 1 : vector<2x32xf32>, vector<2x32xf32> -> vector<2x64xf32>
    %c0_312 = arith.constant 0 : index
    %c0_313 = arith.constant 0 : index
    %c0_314 = arith.constant 0 : index
    %842 = vector.load %arg5[%c0_312, %c0_313, %c0_314] : memref<4x64x128xf32, #tpu.memory_space<vmem>>, vector<1x64x128xf32>
    %843 = vector.shape_cast %842 : vector<1x64x128xf32> to vector<64x128xf32>
    %cst_315 = arith.constant dense<0.000000e+00> : vector<2x128xf32>
    %844 = tpu.matmul %841, %843, %cst_315 {dimension_numbers = #tpu.dot_dimension_numbers<[1], [0], [0], [1], [0, 0, 1, 1], [], []>} : vector<2x64xf32>, vector<64x128xf32>, vector<2x128xf32> -> vector<2x128xf32>
    %c0_316 = arith.constant 0 : index
    %c0_317 = arith.constant 0 : index
    %c0_318 = arith.constant 0 : index
    %845 = vector.load %arg6[%c0_316, %c0_317, %c0_318] : memref<4x1x128xf32, #tpu.memory_space<vmem>>, vector<1x1x128xf32>
    %846 = vector.shape_cast %845 : vector<1x1x128xf32> to vector<1x128xf32>
    %847 = vector.broadcast %846 : vector<1x128xf32> to vector<2x128xf32>
    %848 = arith.addf %844, %847 : vector<2x128xf32>
    %849 = arith.mulf %848, %8 : vector<2x128xf32>
    %850 = math.tanh %849 : vector<2x128xf32>
    %cst_319 = arith.constant 5.000000e-01 : f32
    %851 = vector.broadcast %cst_319 : f32 to vector<2x128xf32>
    %852 = arith.mulf %851, %850 : vector<2x128xf32>
    %cst_320 = arith.constant 5.000000e-01 : f32
    %853 = vector.broadcast %cst_320 : f32 to vector<2x128xf32>
    %854 = arith.addf %852, %853 : vector<2x128xf32>
    %855 = arith.select %5, %850, %854 : vector<2x128xi1>, vector<2x128xf32>
    %856 = vector.extract_strided_slice %855 {offsets = [0, 0], sizes = [2, 32], strides = [1, 1]} : vector<2x128xf32> to vector<2x32xf32>
    %857 = vector.extract_strided_slice %855 {offsets = [0, 32], sizes = [2, 32], strides = [1, 1]} : vector<2x128xf32> to vector<2x32xf32>
    %858 = vector.extract_strided_slice %855 {offsets = [0, 64], sizes = [2, 32], strides = [1, 1]} : vector<2x128xf32> to vector<2x32xf32>
    %859 = vector.extract_strided_slice %855 {offsets = [0, 96], sizes = [2, 32], strides = [1, 1]} : vector<2x128xf32> to vector<2x32xf32>
    %860 = arith.mulf %857, %727 : vector<2x32xf32>
    %861 = arith.mulf %856, %858 : vector<2x32xf32>
    %862 = arith.addf %860, %861 : vector<2x32xf32>
    %863 = math.tanh %862 : vector<2x32xf32>
    %864 = arith.mulf %859, %863 : vector<2x32xf32>
    %865 = tpu.concatenate %864, %753 in 1 : vector<2x32xf32>, vector<2x32xf32> -> vector<2x64xf32>
    %c1_321 = arith.constant 1 : index
    %c0_322 = arith.constant 0 : index
    %c0_323 = arith.constant 0 : index
    %866 = vector.load %arg5[%c1_321, %c0_322, %c0_323] : memref<4x64x128xf32, #tpu.memory_space<vmem>>, vector<1x64x128xf32>
    %867 = vector.shape_cast %866 : vector<1x64x128xf32> to vector<64x128xf32>
    %cst_324 = arith.constant dense<0.000000e+00> : vector<2x128xf32>
    %868 = tpu.matmul %865, %867, %cst_324 {dimension_numbers = #tpu.dot_dimension_numbers<[1], [0], [0], [1], [0, 0, 1, 1], [], []>} : vector<2x64xf32>, vector<64x128xf32>, vector<2x128xf32> -> vector<2x128xf32>
    %c1_325 = arith.constant 1 : index
    %c0_326 = arith.constant 0 : index
    %c0_327 = arith.constant 0 : index
    %869 = vector.load %arg6[%c1_325, %c0_326, %c0_327] : memref<4x1x128xf32, #tpu.memory_space<vmem>>, vector<1x1x128xf32>
    %870 = vector.shape_cast %869 : vector<1x1x128xf32> to vector<1x128xf32>
    %871 = vector.broadcast %870 : vector<1x128xf32> to vector<2x128xf32>
    %872 = arith.addf %868, %871 : vector<2x128xf32>
    %873 = arith.mulf %872, %8 : vector<2x128xf32>
    %874 = math.tanh %873 : vector<2x128xf32>
    %cst_328 = arith.constant 5.000000e-01 : f32
    %875 = vector.broadcast %cst_328 : f32 to vector<2x128xf32>
    %876 = arith.mulf %875, %874 : vector<2x128xf32>
    %cst_329 = arith.constant 5.000000e-01 : f32
    %877 = vector.broadcast %cst_329 : f32 to vector<2x128xf32>
    %878 = arith.addf %876, %877 : vector<2x128xf32>
    %879 = arith.select %5, %874, %878 : vector<2x128xi1>, vector<2x128xf32>
    %880 = vector.extract_strided_slice %879 {offsets = [0, 0], sizes = [2, 32], strides = [1, 1]} : vector<2x128xf32> to vector<2x32xf32>
    %881 = vector.extract_strided_slice %879 {offsets = [0, 32], sizes = [2, 32], strides = [1, 1]} : vector<2x128xf32> to vector<2x32xf32>
    %882 = vector.extract_strided_slice %879 {offsets = [0, 64], sizes = [2, 32], strides = [1, 1]} : vector<2x128xf32> to vector<2x32xf32>
    %883 = vector.extract_strided_slice %879 {offsets = [0, 96], sizes = [2, 32], strides = [1, 1]} : vector<2x128xf32> to vector<2x32xf32>
    %884 = arith.mulf %881, %751 : vector<2x32xf32>
    %885 = arith.mulf %880, %882 : vector<2x32xf32>
    %886 = arith.addf %884, %885 : vector<2x32xf32>
    %887 = math.tanh %886 : vector<2x32xf32>
    %888 = arith.mulf %883, %887 : vector<2x32xf32>
    %889 = tpu.concatenate %888, %777 in 1 : vector<2x32xf32>, vector<2x32xf32> -> vector<2x64xf32>
    %c2_330 = arith.constant 2 : index
    %c0_331 = arith.constant 0 : index
    %c0_332 = arith.constant 0 : index
    %890 = vector.load %arg5[%c2_330, %c0_331, %c0_332] : memref<4x64x128xf32, #tpu.memory_space<vmem>>, vector<1x64x128xf32>
    %891 = vector.shape_cast %890 : vector<1x64x128xf32> to vector<64x128xf32>
    %cst_333 = arith.constant dense<0.000000e+00> : vector<2x128xf32>
    %892 = tpu.matmul %889, %891, %cst_333 {dimension_numbers = #tpu.dot_dimension_numbers<[1], [0], [0], [1], [0, 0, 1, 1], [], []>} : vector<2x64xf32>, vector<64x128xf32>, vector<2x128xf32> -> vector<2x128xf32>
    %c2_334 = arith.constant 2 : index
    %c0_335 = arith.constant 0 : index
    %c0_336 = arith.constant 0 : index
    %893 = vector.load %arg6[%c2_334, %c0_335, %c0_336] : memref<4x1x128xf32, #tpu.memory_space<vmem>>, vector<1x1x128xf32>
    %894 = vector.shape_cast %893 : vector<1x1x128xf32> to vector<1x128xf32>
    %895 = vector.broadcast %894 : vector<1x128xf32> to vector<2x128xf32>
    %896 = arith.addf %892, %895 : vector<2x128xf32>
    %897 = arith.mulf %896, %8 : vector<2x128xf32>
    %898 = math.tanh %897 : vector<2x128xf32>
    %cst_337 = arith.constant 5.000000e-01 : f32
    %899 = vector.broadcast %cst_337 : f32 to vector<2x128xf32>
    %900 = arith.mulf %899, %898 : vector<2x128xf32>
    %cst_338 = arith.constant 5.000000e-01 : f32
    %901 = vector.broadcast %cst_338 : f32 to vector<2x128xf32>
    %902 = arith.addf %900, %901 : vector<2x128xf32>
    %903 = arith.select %5, %898, %902 : vector<2x128xi1>, vector<2x128xf32>
    %904 = vector.extract_strided_slice %903 {offsets = [0, 0], sizes = [2, 32], strides = [1, 1]} : vector<2x128xf32> to vector<2x32xf32>
    %905 = vector.extract_strided_slice %903 {offsets = [0, 32], sizes = [2, 32], strides = [1, 1]} : vector<2x128xf32> to vector<2x32xf32>
    %906 = vector.extract_strided_slice %903 {offsets = [0, 64], sizes = [2, 32], strides = [1, 1]} : vector<2x128xf32> to vector<2x32xf32>
    %907 = vector.extract_strided_slice %903 {offsets = [0, 96], sizes = [2, 32], strides = [1, 1]} : vector<2x128xf32> to vector<2x32xf32>
    %908 = arith.mulf %905, %775 : vector<2x32xf32>
    %909 = arith.mulf %904, %906 : vector<2x32xf32>
    %910 = arith.addf %908, %909 : vector<2x32xf32>
    %911 = math.tanh %910 : vector<2x32xf32>
    %912 = arith.mulf %907, %911 : vector<2x32xf32>
    %913 = tpu.concatenate %912, %801 in 1 : vector<2x32xf32>, vector<2x32xf32> -> vector<2x64xf32>
    %c3_339 = arith.constant 3 : index
    %c0_340 = arith.constant 0 : index
    %c0_341 = arith.constant 0 : index
    %914 = vector.load %arg5[%c3_339, %c0_340, %c0_341] : memref<4x64x128xf32, #tpu.memory_space<vmem>>, vector<1x64x128xf32>
    %915 = vector.shape_cast %914 : vector<1x64x128xf32> to vector<64x128xf32>
    %cst_342 = arith.constant dense<0.000000e+00> : vector<2x128xf32>
    %916 = tpu.matmul %913, %915, %cst_342 {dimension_numbers = #tpu.dot_dimension_numbers<[1], [0], [0], [1], [0, 0, 1, 1], [], []>} : vector<2x64xf32>, vector<64x128xf32>, vector<2x128xf32> -> vector<2x128xf32>
    %c3_343 = arith.constant 3 : index
    %c0_344 = arith.constant 0 : index
    %c0_345 = arith.constant 0 : index
    %917 = vector.load %arg6[%c3_343, %c0_344, %c0_345] : memref<4x1x128xf32, #tpu.memory_space<vmem>>, vector<1x1x128xf32>
    %918 = vector.shape_cast %917 : vector<1x1x128xf32> to vector<1x128xf32>
    %919 = vector.broadcast %918 : vector<1x128xf32> to vector<2x128xf32>
    %920 = arith.addf %916, %919 : vector<2x128xf32>
    %921 = arith.mulf %920, %8 : vector<2x128xf32>
    %922 = math.tanh %921 : vector<2x128xf32>
    %cst_346 = arith.constant 5.000000e-01 : f32
    %923 = vector.broadcast %cst_346 : f32 to vector<2x128xf32>
    %924 = arith.mulf %923, %922 : vector<2x128xf32>
    %cst_347 = arith.constant 5.000000e-01 : f32
    %925 = vector.broadcast %cst_347 : f32 to vector<2x128xf32>
    %926 = arith.addf %924, %925 : vector<2x128xf32>
    %927 = arith.select %5, %922, %926 : vector<2x128xi1>, vector<2x128xf32>
    %928 = vector.extract_strided_slice %927 {offsets = [0, 0], sizes = [2, 32], strides = [1, 1]} : vector<2x128xf32> to vector<2x32xf32>
    %929 = vector.extract_strided_slice %927 {offsets = [0, 32], sizes = [2, 32], strides = [1, 1]} : vector<2x128xf32> to vector<2x32xf32>
    %930 = vector.extract_strided_slice %927 {offsets = [0, 64], sizes = [2, 32], strides = [1, 1]} : vector<2x128xf32> to vector<2x32xf32>
    %931 = vector.extract_strided_slice %927 {offsets = [0, 96], sizes = [2, 32], strides = [1, 1]} : vector<2x128xf32> to vector<2x32xf32>
    %932 = arith.mulf %929, %799 : vector<2x32xf32>
    %933 = arith.mulf %928, %930 : vector<2x32xf32>
    %934 = arith.addf %932, %933 : vector<2x32xf32>
    %935 = math.tanh %934 : vector<2x32xf32>
    %936 = arith.mulf %931, %935 : vector<2x32xf32>
    %937 = vector.shape_cast %936 : vector<2x32xf32> to vector<2x1x32xf32>
    %938 = vector.broadcast %937 : vector<2x1x32xf32> to vector<2x8x32xf32>
    %939 = arith.mulf %9, %938 : vector<2x8x32xf32>
    %cst_348 = arith.constant dense<0.000000e+00> : vector<2x8xf32>
    %940 = vector.multi_reduction <add>, %939, %cst_348 [2] : vector<2x8x32xf32> to vector<2x8xf32>
    %cst_349 = arith.constant dense<0xFF800000> : vector<2xf32>
    %941 = vector.multi_reduction <maximumf>, %940, %cst_349 [1] : vector<2x8xf32> to vector<2xf32>
    %942 = vector.shape_cast %941 : vector<2xf32> to vector<2x1xf32>
    %943 = vector.broadcast %942 : vector<2x1xf32> to vector<2x8xf32>
    %944 = arith.subf %940, %943 : vector<2x8xf32>
    %945 = math.exp %944 : vector<2x8xf32>
    %cst_350 = arith.constant dense<0.000000e+00> : vector<2xf32>
    %946 = vector.multi_reduction <add>, %945, %cst_350 [1] : vector<2x8xf32> to vector<2xf32>
    %947 = vector.shape_cast %946 : vector<2xf32> to vector<2x1xf32>
    %948 = vector.broadcast %947 : vector<2x1xf32> to vector<2x8xf32>
    %949 = arith.divf %945, %948 : vector<2x8xf32>
    %950 = vector.shape_cast %949 : vector<2x8xf32> to vector<2x8x1xf32>
    %951 = vector.broadcast %950 : vector<2x8x1xf32> to vector<2x8x32xf32>
    %952 = arith.mulf %9, %951 : vector<2x8x32xf32>
    %cst_351 = arith.constant dense<0.000000e+00> : vector<2x32xf32>
    %953 = vector.multi_reduction <add>, %952, %cst_351 [1] : vector<2x8x32xf32> to vector<2x32xf32>
    %954 = tpu.concatenate %953, %936 in 1 : vector<2x32xf32>, vector<2x32xf32> -> vector<2x64xf32>
    %cst_352 = arith.constant dense<0.000000e+00> : vector<2x128xf32>
    %955 = tpu.matmul %954, %10, %cst_352 {dimension_numbers = #tpu.dot_dimension_numbers<[1], [0], [0], [1], [0, 0, 1, 1], [], []>} : vector<2x64xf32>, vector<64x128xf32>, vector<2x128xf32> -> vector<2x128xf32>
    %956 = vector.broadcast %11 : vector<1x128xf32> to vector<2x128xf32>
    %957 = arith.addf %955, %956 : vector<2x128xf32>
    %cst_353 = arith.constant dense<0xFF800000> : vector<2xf32>
    %958 = vector.multi_reduction <maximumf>, %957, %cst_353 [1] : vector<2x128xf32> to vector<2xf32>
    %959 = vector.shape_cast %958 : vector<2xf32> to vector<2x1xf32>
    %960 = vector.broadcast %959 : vector<2x1xf32> to vector<2x128xf32>
    %961 = arith.subf %957, %960 : vector<2x128xf32>
    %962 = math.exp %961 : vector<2x128xf32>
    %cst_354 = arith.constant dense<0.000000e+00> : vector<2xf32>
    %963 = vector.multi_reduction <add>, %962, %cst_354 [1] : vector<2x128xf32> to vector<2xf32>
    %964 = vector.shape_cast %963 : vector<2xf32> to vector<2x1xf32>
    %965 = math.log %964 : vector<2x1xf32>
    %966 = arith.addf %959, %965 : vector<2x1xf32>
    %967 = vector.broadcast %966 : vector<2x1xf32> to vector<2x128xf32>
    %968 = arith.subf %957, %967 : vector<2x128xf32>
    %969 = arith.index_cast %c6_i32 : i32 to index
    %c0_355 = arith.constant 0 : index
    %c0_356 = arith.constant 0 : index
    %970 = vector.load %arg9[%969, %c0_355, %c0_356] : memref<8x2x128xf32, #tpu.memory_space<vmem>>, vector<1x2x128xf32>
    %971 = vector.shape_cast %970 : vector<1x2x128xf32> to vector<2x128xf32>
    %972 = vector.shape_cast %968 : vector<2x128xf32> to vector<1x2x128xf32>
    tpu.vector_store %arg9[%969, %c0_355, %c0_356], %972 {strides = array<i32>} : memref<8x2x128xf32, #tpu.memory_space<vmem>>, vector<1x2x128xf32>,
    %c7_i32 = arith.constant 7 : i32
    %973 = arith.index_cast %c7_i32 : i32 to index
    %c0_357 = arith.constant 0 : index
    %c0_358 = arith.constant 0 : index
    %974 = vector.load %arg1[%973, %c0_357, %c0_358] : memref<8x2x32xf32, #tpu.memory_space<vmem>>, vector<1x2x32xf32>
    %975 = vector.shape_cast %974 : vector<1x2x32xf32> to vector<2x32xf32>
    %976 = tpu.concatenate %975, %864 in 1 : vector<2x32xf32>, vector<2x32xf32> -> vector<2x64xf32>
    %c0_359 = arith.constant 0 : index
    %c0_360 = arith.constant 0 : index
    %c0_361 = arith.constant 0 : index
    %977 = vector.load %arg5[%c0_359, %c0_360, %c0_361] : memref<4x64x128xf32, #tpu.memory_space<vmem>>, vector<1x64x128xf32>
    %978 = vector.shape_cast %977 : vector<1x64x128xf32> to vector<64x128xf32>
    %cst_362 = arith.constant dense<0.000000e+00> : vector<2x128xf32>
    %979 = tpu.matmul %976, %978, %cst_362 {dimension_numbers = #tpu.dot_dimension_numbers<[1], [0], [0], [1], [0, 0, 1, 1], [], []>} : vector<2x64xf32>, vector<64x128xf32>, vector<2x128xf32> -> vector<2x128xf32>
    %c0_363 = arith.constant 0 : index
    %c0_364 = arith.constant 0 : index
    %c0_365 = arith.constant 0 : index
    %980 = vector.load %arg6[%c0_363, %c0_364, %c0_365] : memref<4x1x128xf32, #tpu.memory_space<vmem>>, vector<1x1x128xf32>
    %981 = vector.shape_cast %980 : vector<1x1x128xf32> to vector<1x128xf32>
    %982 = vector.broadcast %981 : vector<1x128xf32> to vector<2x128xf32>
    %983 = arith.addf %979, %982 : vector<2x128xf32>
    %984 = arith.mulf %983, %8 : vector<2x128xf32>
    %985 = math.tanh %984 : vector<2x128xf32>
    %cst_366 = arith.constant 5.000000e-01 : f32
    %986 = vector.broadcast %cst_366 : f32 to vector<2x128xf32>
    %987 = arith.mulf %986, %985 : vector<2x128xf32>
    %cst_367 = arith.constant 5.000000e-01 : f32
    %988 = vector.broadcast %cst_367 : f32 to vector<2x128xf32>
    %989 = arith.addf %987, %988 : vector<2x128xf32>
    %990 = arith.select %5, %985, %989 : vector<2x128xi1>, vector<2x128xf32>
    %991 = vector.extract_strided_slice %990 {offsets = [0, 0], sizes = [2, 32], strides = [1, 1]} : vector<2x128xf32> to vector<2x32xf32>
    %992 = vector.extract_strided_slice %990 {offsets = [0, 32], sizes = [2, 32], strides = [1, 1]} : vector<2x128xf32> to vector<2x32xf32>
    %993 = vector.extract_strided_slice %990 {offsets = [0, 64], sizes = [2, 32], strides = [1, 1]} : vector<2x128xf32> to vector<2x32xf32>
    %994 = vector.extract_strided_slice %990 {offsets = [0, 96], sizes = [2, 32], strides = [1, 1]} : vector<2x128xf32> to vector<2x32xf32>
    %995 = arith.mulf %992, %862 : vector<2x32xf32>
    %996 = arith.mulf %991, %993 : vector<2x32xf32>
    %997 = arith.addf %995, %996 : vector<2x32xf32>
    %998 = math.tanh %997 : vector<2x32xf32>
    %999 = arith.mulf %994, %998 : vector<2x32xf32>
    %1000 = tpu.concatenate %999, %888 in 1 : vector<2x32xf32>, vector<2x32xf32> -> vector<2x64xf32>
    %c1_368 = arith.constant 1 : index
    %c0_369 = arith.constant 0 : index
    %c0_370 = arith.constant 0 : index
    %1001 = vector.load %arg5[%c1_368, %c0_369, %c0_370] : memref<4x64x128xf32, #tpu.memory_space<vmem>>, vector<1x64x128xf32>
    %1002 = vector.shape_cast %1001 : vector<1x64x128xf32> to vector<64x128xf32>
    %cst_371 = arith.constant dense<0.000000e+00> : vector<2x128xf32>
    %1003 = tpu.matmul %1000, %1002, %cst_371 {dimension_numbers = #tpu.dot_dimension_numbers<[1], [0], [0], [1], [0, 0, 1, 1], [], []>} : vector<2x64xf32>, vector<64x128xf32>, vector<2x128xf32> -> vector<2x128xf32>
    %c1_372 = arith.constant 1 : index
    %c0_373 = arith.constant 0 : index
    %c0_374 = arith.constant 0 : index
    %1004 = vector.load %arg6[%c1_372, %c0_373, %c0_374] : memref<4x1x128xf32, #tpu.memory_space<vmem>>, vector<1x1x128xf32>
    %1005 = vector.shape_cast %1004 : vector<1x1x128xf32> to vector<1x128xf32>
    %1006 = vector.broadcast %1005 : vector<1x128xf32> to vector<2x128xf32>
    %1007 = arith.addf %1003, %1006 : vector<2x128xf32>
    %1008 = arith.mulf %1007, %8 : vector<2x128xf32>
    %1009 = math.tanh %1008 : vector<2x128xf32>
    %cst_375 = arith.constant 5.000000e-01 : f32
    %1010 = vector.broadcast %cst_375 : f32 to vector<2x128xf32>
    %1011 = arith.mulf %1010, %1009 : vector<2x128xf32>
    %cst_376 = arith.constant 5.000000e-01 : f32
    %1012 = vector.broadcast %cst_376 : f32 to vector<2x128xf32>
    %1013 = arith.addf %1011, %1012 : vector<2x128xf32>
    %1014 = arith.select %5, %1009, %1013 : vector<2x128xi1>, vector<2x128xf32>
    %1015 = vector.extract_strided_slice %1014 {offsets = [0, 0], sizes = [2, 32], strides = [1, 1]} : vector<2x128xf32> to vector<2x32xf32>
    %1016 = vector.extract_strided_slice %1014 {offsets = [0, 32], sizes = [2, 32], strides = [1, 1]} : vector<2x128xf32> to vector<2x32xf32>
    %1017 = vector.extract_strided_slice %1014 {offsets = [0, 64], sizes = [2, 32], strides = [1, 1]} : vector<2x128xf32> to vector<2x32xf32>
    %1018 = vector.extract_strided_slice %1014 {offsets = [0, 96], sizes = [2, 32], strides = [1, 1]} : vector<2x128xf32> to vector<2x32xf32>
    %1019 = arith.mulf %1016, %886 : vector<2x32xf32>
    %1020 = arith.mulf %1015, %1017 : vector<2x32xf32>
    %1021 = arith.addf %1019, %1020 : vector<2x32xf32>
    %1022 = math.tanh %1021 : vector<2x32xf32>
    %1023 = arith.mulf %1018, %1022 : vector<2x32xf32>
    %1024 = tpu.concatenate %1023, %912 in 1 : vector<2x32xf32>, vector<2x32xf32> -> vector<2x64xf32>
    %c2_377 = arith.constant 2 : index
    %c0_378 = arith.constant 0 : index
    %c0_379 = arith.constant 0 : index
    %1025 = vector.load %arg5[%c2_377, %c0_378, %c0_379] : memref<4x64x128xf32, #tpu.memory_space<vmem>>, vector<1x64x128xf32>
    %1026 = vector.shape_cast %1025 : vector<1x64x128xf32> to vector<64x128xf32>
    %cst_380 = arith.constant dense<0.000000e+00> : vector<2x128xf32>
    %1027 = tpu.matmul %1024, %1026, %cst_380 {dimension_numbers = #tpu.dot_dimension_numbers<[1], [0], [0], [1], [0, 0, 1, 1], [], []>} : vector<2x64xf32>, vector<64x128xf32>, vector<2x128xf32> -> vector<2x128xf32>
    %c2_381 = arith.constant 2 : index
    %c0_382 = arith.constant 0 : index
    %c0_383 = arith.constant 0 : index
    %1028 = vector.load %arg6[%c2_381, %c0_382, %c0_383] : memref<4x1x128xf32, #tpu.memory_space<vmem>>, vector<1x1x128xf32>
    %1029 = vector.shape_cast %1028 : vector<1x1x128xf32> to vector<1x128xf32>
    %1030 = vector.broadcast %1029 : vector<1x128xf32> to vector<2x128xf32>
    %1031 = arith.addf %1027, %1030 : vector<2x128xf32>
    %1032 = arith.mulf %1031, %8 : vector<2x128xf32>
    %1033 = math.tanh %1032 : vector<2x128xf32>
    %cst_384 = arith.constant 5.000000e-01 : f32
    %1034 = vector.broadcast %cst_384 : f32 to vector<2x128xf32>
    %1035 = arith.mulf %1034, %1033 : vector<2x128xf32>
    %cst_385 = arith.constant 5.000000e-01 : f32
    %1036 = vector.broadcast %cst_385 : f32 to vector<2x128xf32>
    %1037 = arith.addf %1035, %1036 : vector<2x128xf32>
    %1038 = arith.select %5, %1033, %1037 : vector<2x128xi1>, vector<2x128xf32>
    %1039 = vector.extract_strided_slice %1038 {offsets = [0, 0], sizes = [2, 32], strides = [1, 1]} : vector<2x128xf32> to vector<2x32xf32>
    %1040 = vector.extract_strided_slice %1038 {offsets = [0, 32], sizes = [2, 32], strides = [1, 1]} : vector<2x128xf32> to vector<2x32xf32>
    %1041 = vector.extract_strided_slice %1038 {offsets = [0, 64], sizes = [2, 32], strides = [1, 1]} : vector<2x128xf32> to vector<2x32xf32>
    %1042 = vector.extract_strided_slice %1038 {offsets = [0, 96], sizes = [2, 32], strides = [1, 1]} : vector<2x128xf32> to vector<2x32xf32>
    %1043 = arith.mulf %1040, %910 : vector<2x32xf32>
    %1044 = arith.mulf %1039, %1041 : vector<2x32xf32>
    %1045 = arith.addf %1043, %1044 : vector<2x32xf32>
    %1046 = math.tanh %1045 : vector<2x32xf32>
    %1047 = arith.mulf %1042, %1046 : vector<2x32xf32>
    %1048 = tpu.concatenate %1047, %936 in 1 : vector<2x32xf32>, vector<2x32xf32> -> vector<2x64xf32>
    %c3_386 = arith.constant 3 : index
    %c0_387 = arith.constant 0 : index
    %c0_388 = arith.constant 0 : index
    %1049 = vector.load %arg5[%c3_386, %c0_387, %c0_388] : memref<4x64x128xf32, #tpu.memory_space<vmem>>, vector<1x64x128xf32>
    %1050 = vector.shape_cast %1049 : vector<1x64x128xf32> to vector<64x128xf32>
    %cst_389 = arith.constant dense<0.000000e+00> : vector<2x128xf32>
    %1051 = tpu.matmul %1048, %1050, %cst_389 {dimension_numbers = #tpu.dot_dimension_numbers<[1], [0], [0], [1], [0, 0, 1, 1], [], []>} : vector<2x64xf32>, vector<64x128xf32>, vector<2x128xf32> -> vector<2x128xf32>
    %c3_390 = arith.constant 3 : index
    %c0_391 = arith.constant 0 : index
    %c0_392 = arith.constant 0 : index
    %1052 = vector.load %arg6[%c3_390, %c0_391, %c0_392] : memref<4x1x128xf32, #tpu.memory_space<vmem>>, vector<1x1x128xf32>
    %1053 = vector.shape_cast %1052 : vector<1x1x128xf32> to vector<1x128xf32>
    %1054 = vector.broadcast %1053 : vector<1x128xf32> to vector<2x128xf32>
    %1055 = arith.addf %1051, %1054 : vector<2x128xf32>
    %1056 = arith.mulf %1055, %8 : vector<2x128xf32>
    %1057 = math.tanh %1056 : vector<2x128xf32>
    %cst_393 = arith.constant 5.000000e-01 : f32
    %1058 = vector.broadcast %cst_393 : f32 to vector<2x128xf32>
    %1059 = arith.mulf %1058, %1057 : vector<2x128xf32>
    %cst_394 = arith.constant 5.000000e-01 : f32
    %1060 = vector.broadcast %cst_394 : f32 to vector<2x128xf32>
    %1061 = arith.addf %1059, %1060 : vector<2x128xf32>
    %1062 = arith.select %5, %1057, %1061 : vector<2x128xi1>, vector<2x128xf32>
    %1063 = vector.extract_strided_slice %1062 {offsets = [0, 0], sizes = [2, 32], strides = [1, 1]} : vector<2x128xf32> to vector<2x32xf32>
    %1064 = vector.extract_strided_slice %1062 {offsets = [0, 32], sizes = [2, 32], strides = [1, 1]} : vector<2x128xf32> to vector<2x32xf32>
    %1065 = vector.extract_strided_slice %1062 {offsets = [0, 64], sizes = [2, 32], strides = [1, 1]} : vector<2x128xf32> to vector<2x32xf32>
    %1066 = vector.extract_strided_slice %1062 {offsets = [0, 96], sizes = [2, 32], strides = [1, 1]} : vector<2x128xf32> to vector<2x32xf32>
    %1067 = arith.mulf %1064, %934 : vector<2x32xf32>
    %1068 = arith.mulf %1063, %1065 : vector<2x32xf32>
    %1069 = arith.addf %1067, %1068 : vector<2x32xf32>
    %1070 = math.tanh %1069 : vector<2x32xf32>
    %1071 = arith.mulf %1066, %1070 : vector<2x32xf32>
    %1072 = vector.shape_cast %1071 : vector<2x32xf32> to vector<2x1x32xf32>
    %1073 = vector.broadcast %1072 : vector<2x1x32xf32> to vector<2x8x32xf32>
    %1074 = arith.mulf %9, %1073 : vector<2x8x32xf32>
    %cst_395 = arith.constant dense<0.000000e+00> : vector<2x8xf32>
    %1075 = vector.multi_reduction <add>, %1074, %cst_395 [2] : vector<2x8x32xf32> to vector<2x8xf32>
    %cst_396 = arith.constant dense<0xFF800000> : vector<2xf32>
    %1076 = vector.multi_reduction <maximumf>, %1075, %cst_396 [1] : vector<2x8xf32> to vector<2xf32>
    %1077 = vector.shape_cast %1076 : vector<2xf32> to vector<2x1xf32>
    %1078 = vector.broadcast %1077 : vector<2x1xf32> to vector<2x8xf32>
    %1079 = arith.subf %1075, %1078 : vector<2x8xf32>
    %1080 = math.exp %1079 : vector<2x8xf32>
    %cst_397 = arith.constant dense<0.000000e+00> : vector<2xf32>
    %1081 = vector.multi_reduction <add>, %1080, %cst_397 [1] : vector<2x8xf32> to vector<2xf32>
    %1082 = vector.shape_cast %1081 : vector<2xf32> to vector<2x1xf32>
    %1083 = vector.broadcast %1082 : vector<2x1xf32> to vector<2x8xf32>
    %1084 = arith.divf %1080, %1083 : vector<2x8xf32>
    %1085 = vector.shape_cast %1084 : vector<2x8xf32> to vector<2x8x1xf32>
    %1086 = vector.broadcast %1085 : vector<2x8x1xf32> to vector<2x8x32xf32>
    %1087 = arith.mulf %9, %1086 : vector<2x8x32xf32>
    %cst_398 = arith.constant dense<0.000000e+00> : vector<2x32xf32>
    %1088 = vector.multi_reduction <add>, %1087, %cst_398 [1] : vector<2x8x32xf32> to vector<2x32xf32>
    %1089 = tpu.concatenate %1088, %1071 in 1 : vector<2x32xf32>, vector<2x32xf32> -> vector<2x64xf32>
    %cst_399 = arith.constant dense<0.000000e+00> : vector<2x128xf32>
    %1090 = tpu.matmul %1089, %10, %cst_399 {dimension_numbers = #tpu.dot_dimension_numbers<[1], [0], [0], [1], [0, 0, 1, 1], [], []>} : vector<2x64xf32>, vector<64x128xf32>, vector<2x128xf32> -> vector<2x128xf32>
    %1091 = vector.broadcast %11 : vector<1x128xf32> to vector<2x128xf32>
    %1092 = arith.addf %1090, %1091 : vector<2x128xf32>
    %cst_400 = arith.constant dense<0xFF800000> : vector<2xf32>
    %1093 = vector.multi_reduction <maximumf>, %1092, %cst_400 [1] : vector<2x128xf32> to vector<2xf32>
    %1094 = vector.shape_cast %1093 : vector<2xf32> to vector<2x1xf32>
    %1095 = vector.broadcast %1094 : vector<2x1xf32> to vector<2x128xf32>
    %1096 = arith.subf %1092, %1095 : vector<2x128xf32>
    %1097 = math.exp %1096 : vector<2x128xf32>
    %cst_401 = arith.constant dense<0.000000e+00> : vector<2xf32>
    %1098 = vector.multi_reduction <add>, %1097, %cst_401 [1] : vector<2x128xf32> to vector<2xf32>
    %1099 = vector.shape_cast %1098 : vector<2xf32> to vector<2x1xf32>
    %1100 = math.log %1099 : vector<2x1xf32>
    %1101 = arith.addf %1094, %1100 : vector<2x1xf32>
    %1102 = vector.broadcast %1101 : vector<2x1xf32> to vector<2x128xf32>
    %1103 = arith.subf %1092, %1102 : vector<2x128xf32>
    %1104 = arith.index_cast %c7_i32 : i32 to index
    %c0_402 = arith.constant 0 : index
    %c0_403 = arith.constant 0 : index
    %1105 = vector.load %arg9[%1104, %c0_402, %c0_403] : memref<8x2x128xf32, #tpu.memory_space<vmem>>, vector<1x2x128xf32>
    %1106 = vector.shape_cast %1105 : vector<1x2x128xf32> to vector<2x128xf32>
    %1107 = vector.shape_cast %1103 : vector<2x128xf32> to vector<1x2x128xf32>
    tpu.vector_store %arg9[%1104, %c0_402, %c0_403], %1107 {strides = array<i32>} : memref<8x2x128xf32, #tpu.memory_space<vmem>>, vector<1x2x128xf32>,
    %c8_i32 = arith.constant 8 : i32
    %1108 = tpu.concatenate %999, %1023, %1047, %1071 in 1 : vector<2x32xf32>, vector<2x32xf32>, vector<2x32xf32>, vector<2x32xf32> -> vector<2x128xf32>
    %c0_404 = arith.constant 0 : index
    %c0_405 = arith.constant 0 : index
    %1109 = vector.load %arg10[%c0_404, %c0_405] : memref<2x128xf32, #tpu.memory_space<vmem>>, vector<2x128xf32>
    tpu.vector_store %arg10[%c0_404, %c0_405], %1108 {strides = array<i32>} : memref<2x128xf32, #tpu.memory_space<vmem>>, vector<2x128xf32>,
    %1110 = tpu.concatenate %997, %1021, %1045, %1069 in 1 : vector<2x32xf32>, vector<2x32xf32>, vector<2x32xf32>, vector<2x32xf32> -> vector<2x128xf32>
    %c0_406 = arith.constant 0 : index
    %c0_407 = arith.constant 0 : index
    %1111 = vector.load %arg11[%c0_406, %c0_407] : memref<2x128xf32, #tpu.memory_space<vmem>>, vector<2x128xf32>
    tpu.vector_store %arg11[%c0_406, %c0_407], %1110 {strides = array<i32>} : memref<2x128xf32, #tpu.memory_space<vmem>>, vector<2x128xf32>,
    return
  }
  func.func @transform_0(%arg0: i32) -> (i32, i32, i32) {
    %c0_i32 = arith.constant 0 : i32
    %c0_i32_0 = arith.constant 0 : i32
    %c0_i32_1 = arith.constant 0 : i32
    %c0_i32_2 = arith.constant 0 : i32
    return %c0_i32, %c0_i32_0, %c0_i32_1 : i32, i32, i32
  }
  func.func @transform_1(%arg0: i32) -> (i32, i32, i32) {
    %c0_i32 = arith.constant 0 : i32
    %c0_i32_0 = arith.constant 0 : i32
    %c0_i32_1 = arith.constant 0 : i32
    %c0_i32_2 = arith.constant 0 : i32
    return %c0_i32, %c0_i32_0, %c0_i32_1 : i32, i32, i32
  }
  func.func @transform_2(%arg0: i32) -> (i32, i32, i32) {
    %c0_i32 = arith.constant 0 : i32
    %c0_i32_0 = arith.constant 0 : i32
    %c0_i32_1 = arith.constant 0 : i32
    %c0_i32_2 = arith.constant 0 : i32
    return %c0_i32, %c0_i32_0, %c0_i32_1 : i32, i32, i32
  }
  func.func @transform_3(%arg0: i32) -> (i32, i32, i32) {
    %c0_i32 = arith.constant 0 : i32
    %c0_i32_0 = arith.constant 0 : i32
    %c0_i32_1 = arith.constant 0 : i32
    %c0_i32_2 = arith.constant 0 : i32
    return %c0_i32, %c0_i32_0, %c0_i32_1 : i32, i32, i32
  }
  func.func @transform_4(%arg0: i32) -> (i32, i32, i32) {
    %c0_i32 = arith.constant 0 : i32
    %c0_i32_0 = arith.constant 0 : i32
    %c0_i32_1 = arith.constant 0 : i32
    %c0_i32_2 = arith.constant 0 : i32
    return %c0_i32, %c0_i32_0, %c0_i32_1 : i32, i32, i32
  }
  func.func @transform_5(%arg0: i32) -> (i32, i32, i32) {
    %c0_i32 = arith.constant 0 : i32
    %c0_i32_0 = arith.constant 0 : i32
    %c0_i32_1 = arith.constant 0 : i32
    %c0_i32_2 = arith.constant 0 : i32
    return %c0_i32, %c0_i32_0, %c0_i32_1 : i32, i32, i32
  }
  func.func @transform_6(%arg0: i32) -> (i32, i32) {
    %c0_i32 = arith.constant 0 : i32
    %c0_i32_0 = arith.constant 0 : i32
    %c0_i32_1 = arith.constant 0 : i32
    return %c0_i32, %c0_i32_0 : i32, i32
  }
  func.func @transform_7(%arg0: i32) -> (i32, i32) {
    %c0_i32 = arith.constant 0 : i32
    %c0_i32_0 = arith.constant 0 : i32
    %c0_i32_1 = arith.constant 0 : i32
    return %c0_i32, %c0_i32_0 : i32, i32
  }
  func.func @transform_8(%arg0: i32) -> (i32, i32, i32) {
    %c0_i32 = arith.constant 0 : i32
    %c0_i32_0 = arith.constant 0 : i32
    %c0_i32_1 = arith.constant 0 : i32
    %c0_i32_2 = arith.constant 0 : i32
    return %c0_i32, %c0_i32_0, %c0_i32_1 : i32, i32, i32
  }
  func.func @transform_9(%arg0: i32) -> (i32, i32) {
    %c0_i32 = arith.constant 0 : i32
    %c0_i32_0 = arith.constant 0 : i32
    %c0_i32_1 = arith.constant 0 : i32
    return %c0_i32, %c0_i32_0 : i32, i32
  }
  func.func @transform_10(%arg0: i32) -> (i32, i32) {
    %c0_i32 = arith.constant 0 : i32
    %c0_i32_0 = arith.constant 0 : i32
    %c0_i32_1 = arith.constant 0 : i32
    return %c0_i32, %c0_i32_0 : i32, i32
  }
}

</mosaic_0001>

<llo_original>
// kernel: attn_decoder_forward.1
$region0: #{attn_decoder_forward.1}
  #allocation0 [shape = 'u32[]', space=smem, size = 0x4, offset = 0x4, fixed_abs, tag = 'smem constant byte address 0x4 - core index']
  #allocation1 [shape = 'u32[144,128]{1,0:T(1,128)}', space=vmem, size = 0x12000, scoped, tag = 'internal scratch']
  %s0 = inlined_call_operand.vmem [shape: f32[8,2,32], index: 0, kind: input, shape index: {}]
  %s1 = inlined_call_operand.vmem [shape: f32[2,8,32], index: 1, kind: input, shape index: {}]
  %s2 = inlined_call_operand.vmem [shape: f32[4,2,32], index: 2, kind: input, shape index: {}]
  %s3 = inlined_call_operand.vmem [shape: f32[4,2,32], index: 3, kind: input, shape index: {}]
  %s4 = inlined_call_operand.vmem [shape: f32[4,64,128], index: 4, kind: input, shape index: {}]
  %s5 = inlined_call_operand.vmem [shape: f32[4,1,128], index: 5, kind: input, shape index: {}]
  %s6 = inlined_call_operand.vmem [shape: f32[64,128], index: 6, kind: input, shape index: {}]
  %s7 = inlined_call_operand.vmem [shape: f32[1,128], index: 7, kind: input, shape index: {}]
  %s8 = inlined_call_operand.hbm [shape: f32[8,2,128], index: 8, kind: output, shape index: {0}]
  %s9 = inlined_call_operand.vmem [shape: f32[2,128], index: 9, kind: output, shape index: {1}]
  %s10 = inlined_call_operand.vmem [shape: f32[2,128], index: 10, kind: output, shape index: {2}]
  %11 = xla_tuple %s8, %s9, %s10
  %s12 = sld [smem:[#allocation0]]
  $region58: #{attn_decoder_forward.1} parent=0
    _
  %s14 = ssub.s32 1, %s12
  %s15 = scalar_select 0, %s14, %s12
  $region1: #{attn_decoder_forward.1} parent=0
    #allocation2 [shape = 'u8[8192]{0}', space=vmem, size = 0x2000, scoped, tag = 'output window, operand 0, single buffered']
    #allocation3 [shape = 's32[1]{0}', space=sflag, size = 0x4, scoped, tag = 'scoped memory for attn_decoder_forward.1']
    %16 = vsyncpa [#allocation3], 0
    // Predicated region
    $region2: #{attn_decoder_forward.1} parent=1 // pred_check
      _
    $region3: #{attn_decoder_forward.1} parent=1 // pred_check_branch
      %18 = sbr.rel (0) target = $region5
    $region4: #{attn_decoder_forward.1} parent=1 // pred_region
      _
    $region5: #{attn_decoder_forward.1} parent=1 // pred_fallthru
      _
    // Predicated region
    $region6: #{attn_decoder_forward.1} parent=1 // pred_check
      _
    $region7: #{attn_decoder_forward.1} parent=1 // pred_check_branch
      %20 = sbr.rel (0) target = $region9
    $region8: #{attn_decoder_forward.1} parent=1 // pred_region
      _
    $region9: #{attn_decoder_forward.1} parent=1 // pred_fallthru
      _
    // Predicated region
    $region10: #{attn_decoder_forward.1} parent=1 // pred_check
      _
    $region11: #{attn_decoder_forward.1} parent=1 // pred_check_branch
      %22 = sbr.rel (0) target = $region13
    $region12: #{attn_decoder_forward.1} parent=1 // pred_region
      _
    $region13: #{attn_decoder_forward.1} parent=1 // pred_fallthru
      _
    // Predicated region
    $region14: #{attn_decoder_forward.1} parent=1 // pred_check
      _
    $region15: #{attn_decoder_forward.1} parent=1 // pred_check_branch
      %24 = sbr.rel (0) target = $region17
    $region16: #{attn_decoder_forward.1} parent=1 // pred_region
      _
    $region17: #{attn_decoder_forward.1} parent=1 // pred_fallthru
      _
    // Predicated region
    $region18: #{attn_decoder_forward.1} parent=1 // pred_check
      _
    $region19: #{attn_decoder_forward.1} parent=1 // pred_check_branch
      %26 = sbr.rel (0) target = $region21
    $region20: #{attn_decoder_forward.1} parent=1 // pred_region
      _
    $region21: #{attn_decoder_forward.1} parent=1 // pred_fallthru
      _
    // Predicated region
    $region22: #{attn_decoder_forward.1} parent=1 // pred_check
      _
    $region23: #{attn_decoder_forward.1} parent=1 // pred_check_branch
      %28 = sbr.rel (0) target = $region25
    $region24: #{attn_decoder_forward.1} parent=1 // pred_region
      _
    $region25: #{attn_decoder_forward.1} parent=1 // pred_fallthru
      _
    // Predicated region
    $region26: #{attn_decoder_forward.1} parent=1 // pred_check
      _
    $region27: #{attn_decoder_forward.1} parent=1 // pred_check_branch
      %30 = sbr.rel (0) target = $region29
    $region28: #{attn_decoder_forward.1} parent=1 // pred_region
      _
    $region29: #{attn_decoder_forward.1} parent=1 // pred_fallthru
      _
    // Predicated region
    $region30: #{attn_decoder_forward.1} parent=1 // pred_check
      _
    $region31: #{attn_decoder_forward.1} parent=1 // pred_check_branch
      %32 = sbr.rel (0) target = $region33
    $region32: #{attn_decoder_forward.1} parent=1 // pred_region
      _
    $region33: #{attn_decoder_forward.1} parent=1 // pred_fallthru
      _
    %v33 = vlaneseq
    %v34 = vand.u32 %v33, 127
    %vm35 = vcmp.ge.s32.totalorder %v34, 64
    %vm36 = vcmp.lt.s32.totalorder %v34, 96
    %vm37 = vmand %vm35, %vm36
    %v38 = vsel %vm37, 1.0, 0.5
    %v39 = vld [vmem:[%s1] sm:$0xff]
    %v40 = vld [vmem:[%s1 + $0x8] sm:$0xff]
    %v41 = vld [vmem:[%s6] sm:$0xff]
    %v42 = vld [vmem:[%s6 + $0x8] sm:$0xff]
    %v43 = vld [vmem:[%s6 + $0x10] sm:$0xff]
    %v44 = vld [vmem:[%s6 + $0x18] sm:$0xff]
    %v45 = vld [vmem:[%s6 + $0x20] sm:$0xff]
    %v46 = vld [vmem:[%s6 + $0x28] sm:$0xff]
    %v47 = vld [vmem:[%s6 + $0x30] sm:$0xff]
    %v48 = vld [vmem:[%s6 + $0x38] sm:$0xff]
    %v49 = vld [vmem:[%s7] sm:$0x1]
    %v50 = vld [vmem:[%s2] sm:$0x3]
    %s51 = scalar_lea.vmem %s2, 2
    %v52 = vld [vmem:[%s51] sm:$0x3]
    %s53 = scalar_lea.vmem %s2, 4
    %v54 = vld [vmem:[%s53] sm:$0x3]
    %s55 = scalar_lea.vmem %s2, 6
    %v56 = vld [vmem:[%s55] sm:$0x3]
    %v57 = vld [vmem:[%s3] sm:$0x3]
    %s58 = scalar_lea.vmem %s3, 2
    %v59 = vld [vmem:[%s58] sm:$0x3]
    %s60 = scalar_lea.vmem %s3, 4
    %v61 = vld [vmem:[%s60] sm:$0x3]
    %s62 = scalar_lea.vmem %s3, 6
    %v63 = vld [vmem:[%s62] sm:$0x3]
    %v64 = vld [vmem:[%s0] sm:$0x3]
    %66 = vrot.lane.b32.xlu0 %v50, 32
    %v67 = vpop.permute.xlu0 %66
    %vm69 = vcmask 261120
    %v70 = vsel %vm69, %v64, %v67
    %v71 = vld [vmem:[%s4] sm:$0xff]
    %v72 = vld [vmem:[%s4 + $0x8] sm:$0xff]
    %v73 = vld [vmem:[%s4 + $0x10] sm:$0xff]
    %v74 = vld [vmem:[%s4 + $0x18] sm:$0xff]
    %v75 = vld [vmem:[%s4 + $0x20] sm:$0xff]
    %v76 = vld [vmem:[%s4 + $0x28] sm:$0xff]
    %v77 = vld [vmem:[%s4 + $0x30] sm:$0xff]
    %v78 = vld [vmem:[%s4 + $0x38] sm:$0xff]
    %v79 = vld [vmem:[%s5] sm:$0x1]
    %v81 = vlaneseq
    %v82 = vshrl.u32 %v81, 7
    %v83 = vsub.s32 0, %v82
    %v84 = vrot.slane %v79, %v83
    %vm86 = vcmask 523264
    %v88 = vsel %vm86, %v70, 0
    %90 = vmatprep.subr.mxu0 0.0
    %91 = vmatpush1.msra.mxu0 %v71
    %92 = vmatprep.subr.mxu0 0.0
    %93 = vmatpush1.msra.mxu0 %v72
    %94 = vmatprep.subr.mxu0 0.0
    %95 = vmatpush1.msra.mxu0 %v73
    %96 = vmatprep.subr.mxu0 0.0
    %97 = vmatpush1.msra.mxu0 %v74
    %98 = vmatprep.subr.mxu0 0.0
    %99 = vmatpush1.msra.mxu0 %v75
    %100 = vmatprep.subr.mxu0 0.0
    %101 = vmatpush1.msra.mxu0 %v76
    %102 = vmatprep.subr.mxu0 0.0
    %103 = vmatpush1.msra.mxu0 %v77
    %104 = vmatprep.subr.mxu0 0.0
    %105 = vmatpush1.msra.mxu0 %v78
    %106 = vmatprep.subr.mxu0 0.0
    %107 = vmatpush1.msra.mxu0 0.0
    %108 = vmatprep.subr.mxu0 0.0
    %109 = vmatpush1.msra.mxu0 0.0
    %110 = vmatprep.subr.mxu0 0.0
    %111 = vmatpush1.msra.mxu0 0.0
    %112 = vmatprep.subr.mxu0 0.0
    %113 = vmatpush1.msra.mxu0 0.0
    %114 = vmatprep.subr.mxu0 0.0
    %115 = vmatpush1.msra.mxu0 0.0
    %116 = vmatprep.subr.mxu0 0.0
    %117 = vmatpush1.msra.mxu0 0.0
    %118 = vmatprep.subr.mxu0 0.0
    %119 = vmatpush1.msra.mxu0 0.0
    %120 = vmatprep.subr.mxu0 0.0
    %121 = vmatpush1.msra.mxu0 0.0
    %122 = vmatprep.subr.mxu0 0.0
    %123 = vmatpush1.msra.mxu0 0.0
    %124 = vmatprep.subr.mxu0 0.0
    %125 = vmatpush1.msra.mxu0 0.0
    %126 = vmatprep.subr.mxu0 0.0
    %127 = vmatpush1.msra.mxu0 0.0
    %128 = vmatprep.subr.mxu0 0.0
    %129 = vmatpush1.msra.mxu0 0.0
    %130 = vmatprep.subr.mxu0 0.0
    %131 = vmatpush1.msra.mxu0 0.0
    %132 = vmatprep.subr.mxu0 0.0
    %133 = vmatpush1.msra.mxu0 0.0
    %134 = vmatprep.subr.mxu0 0.0
    %135 = vmatpush1.msra.mxu0 0.0
    %136 = vmatprep.subr.mxu0 0.0
    %137 = vmatpush1.msra.mxu0 0.0
    %138 = vmatprep.subr.mxu0 0.0
    %139 = vmatpush1.msra.mxu0 0.0
    %140 = vmatprep.subr.mxu0 0.0
    %141 = vmatpush1.msra.mxu0 0.0
    %142 = vmatprep.subr.mxu0 0.0
    %143 = vmatpush1.msra.mxu0 0.0
    %144 = vmatprep.subr.mxu0 0.0
    %145 = vmatpush1.msra.mxu0 0.0
    %146 = vmatprep.subr.mxu0 0.0
    %147 = vmatpush1.msra.mxu0 0.0
    %148 = vmatprep.subr.mxu0 0.0
    %149 = vmatpush1.msra.mxu0 0.0
    %150 = vmatprep.subr.mxu0 0.0
    %151 = vmatpush1.msra.mxu0 0.0
    %152 = vmatprep.subr.mxu0 0.0
    %153 = vmatpush1.msra.mxu0 0.0
    %154 = vmatprep.mubr.f32.mxu0 0.0
    %155 = vmatmul.mubr.f32.gmra.mrb[0].mxu0 %v88
    %v156 = vpop.f32.mrb[0].mxu0
    %v157 = vadd.f32 %v84, %v156
    %v158 = vpop.f32.mrb[0].mxu0
    %159 = vdwg.mxu0
    %v160 = vmul.f32 %v157, %v38
    %v161 = vtanh.pop %v160
    %v162 = vmul.f32 %v161, 0.5
    %v163 = vadd.f32 %v162, 0.5
    %v164 = vsel %vm37, %v161, %v163
    %166 = vrot.lane.b32.xlu0 %v57, 32
    %v167 = vpop.permute.xlu0 %166
    %v169 = vmul.f32 %v164, %v167
    %171 = vrot.lane.b32.xlu0 %v164, 64
    %v172 = vpop.permute.xlu0 %171
    %v174 = vmul.f32 %v164, %v172
    %176 = vrot.lane.b32.xlu0 %v174, 32
    %v177 = vpop.permute.xlu0 %176
    %v179 = vadd.f32 %v169, %v177
    %v180 = vtanh.pop %v179
    %182 = vrot.lane.b32.xlu0 %v180, 64
    %v183 = vpop.permute.xlu0 %182
    %v185 = vmul.f32 %v164, %v183
    %187 = vrot.lane.b32.xlu0 %v185, 32
    %v188 = vpop.permute.xlu0 %187
    %191 = vrot.lane.b32.xlu0 %v52, 32
    %v192 = vpop.permute.xlu0 %191
    %v194 = vsel %vm69, %v188, %v192
    %s195 = scalar_lea.vmem %s4, 64
    %v196 = vld [vmem:[%s195] sm:$0xff]
    %v197 = vld [vmem:[%s195 + $0x8] sm:$0xff]
    %v198 = vld [vmem:[%s195 + $0x10] sm:$0xff]
    %v199 = vld [vmem:[%s195 + $0x18] sm:$0xff]
    %v200 = vld [vmem:[%s195 + $0x20] sm:$0xff]
    %v201 = vld [vmem:[%s195 + $0x28] sm:$0xff]
    %v202 = vld [vmem:[%s195 + $0x30] sm:$0xff]
    %v203 = vld [vmem:[%s195 + $0x38] sm:$0xff]
    %s204 = scalar_lea.vmem %s5, 1
    %v205 = vld [vmem:[%s204] sm:$0x1]
    %v207 = vlaneseq
    %v208 = vshrl.u32 %v207, 7
    %v209 = vsub.s32 0, %v208
    %v210 = vrot.slane %v205, %v209
    %v213 = vsel %vm86, %v194, 0
    %215 = vmatprep.subr.mxu0 0.0
    %216 = vmatpush1.msra.mxu0 %v196
    %217 = vmatprep.subr.mxu0 0.0
    %218 = vmatpush1.msra.mxu0 %v197
    %219 = vmatprep.subr.mxu0 0.0
    %220 = vmatpush1.msra.mxu0 %v198
    %221 = vmatprep.subr.mxu0 0.0
    %222 = vmatpush1.msra.mxu0 %v199
    %223 = vmatprep.subr.mxu0 0.0
    %224 = vmatpush1.msra.mxu0 %v200
    %225 = vmatprep.subr.mxu0 0.0
    %226 = vmatpush1.msra.mxu0 %v201
    %227 = vmatprep.subr.mxu0 0.0
    %228 = vmatpush1.msra.mxu0 %v202
    %229 = vmatprep.subr.mxu0 0.0
    %230 = vmatpush1.msra.mxu0 %v203
    %231 = vmatprep.subr.mxu0 0.0
    %232 = vmatpush1.msra.mxu0 0.0
    %233 = vmatprep.subr.mxu0 0.0
    %234 = vmatpush1.msra.mxu0 0.0
    %235 = vmatprep.subr.mxu0 0.0
    %236 = vmatpush1.msra.mxu0 0.0
    %237 = vmatprep.subr.mxu0 0.0
    %238 = vmatpush1.msra.mxu0 0.0
    %239 = vmatprep.subr.mxu0 0.0
    %240 = vmatpush1.msra.mxu0 0.0
    %241 = vmatprep.subr.mxu0 0.0
    %242 = vmatpush1.msra.mxu0 0.0
    %243 = vmatprep.subr.mxu0 0.0
    %244 = vmatpush1.msra.mxu0 0.0
    %245 = vmatprep.subr.mxu0 0.0
    %246 = vmatpush1.msra.mxu0 0.0
    %247 = vmatprep.subr.mxu0 0.0
    %248 = vmatpush1.msra.mxu0 0.0
    %249 = vmatprep.subr.mxu0 0.0
    %250 = vmatpush1.msra.mxu0 0.0
    %251 = vmatprep.subr.mxu0 0.0
    %252 = vmatpush1.msra.mxu0 0.0
    %253 = vmatprep.subr.mxu0 0.0
    %254 = vmatpush1.msra.mxu0 0.0
    %255 = vmatprep.subr.mxu0 0.0
    %256 = vmatpush1.msra.mxu0 0.0
    %257 = vmatprep.subr.mxu0 0.0
    %258 = vmatpush1.msra.mxu0 0.0
    %259 = vmatprep.subr.mxu0 0.0
    %260 = vmatpush1.msra.mxu0 0.0
    %261 = vmatprep.subr.mxu0 0.0
    %262 = vmatpush1.msra.mxu0 0.0
    %263 = vmatprep.subr.mxu0 0.0
    %264 = vmatpush1.msra.mxu0 0.0
    %265 = vmatprep.subr.mxu0 0.0
    %266 = vmatpush1.msra.mxu0 0.0
    %267 = vmatprep.subr.mxu0 0.0
    %268 = vmatpush1.msra.mxu0 0.0
    %269 = vmatprep.subr.mxu0 0.0
    %270 = vmatpush1.msra.mxu0 0.0
    %271 = vmatprep.subr.mxu0 0.0
    %272 = vmatpush1.msra.mxu0 0.0
    %273 = vmatprep.subr.mxu0 0.0
    %274 = vmatpush1.msra.mxu0 0.0
    %275 = vmatprep.subr.mxu0 0.0
    %276 = vmatpush1.msra.mxu0 0.0
    %277 = vmatprep.subr.mxu0 0.0
    %278 = vmatpush1.msra.mxu0 0.0
    %279 = vmatprep.mubr.f32.mxu0 0.0
    %280 = vmatmul.mubr.f32.gmra.mrb[0].mxu0 %v213
    %v281 = vpop.f32.mrb[0].mxu0
    %v282 = vadd.f32 %v210, %v281
    %v283 = vpop.f32.mrb[0].mxu0
    %284 = vdwg.mxu0
    %v285 = vmul.f32 %v282, %v38
    %v286 = vtanh.pop %v285
    %v287 = vmul.f32 %v286, 0.5
    %v288 = vadd.f32 %v287, 0.5
    %v289 = vsel %vm37, %v286, %v288
    %291 = vrot.lane.b32.xlu0 %v59, 32
    %v292 = vpop.permute.xlu0 %291
    %v294 = vmul.f32 %v289, %v292
    %296 = vrot.lane.b32.xlu0 %v289, 64
    %v297 = vpop.permute.xlu0 %296
    %v299 = vmul.f32 %v289, %v297
    %301 = vrot.lane.b32.xlu0 %v299, 32
    %v302 = vpop.permute.xlu0 %301
    %v304 = vadd.f32 %v294, %v302
    %v305 = vtanh.pop %v304
    %307 = vrot.lane.b32.xlu0 %v305, 64
    %v308 = vpop.permute.xlu0 %307
    %v310 = vmul.f32 %v289, %v308
    %312 = vrot.lane.b32.xlu0 %v310, 32
    %v313 = vpop.permute.xlu0 %312
    %316 = vrot.lane.b32.xlu0 %v54, 32
    %v317 = vpop.permute.xlu0 %316
    %v319 = vsel %vm69, %v313, %v317
    %s320 = scalar_lea.vmem %s4, 128
    %v321 = vld [vmem:[%s320] sm:$0xff]
    %v322 = vld [vmem:[%s320 + $0x8] sm:$0xff]
    %v323 = vld [vmem:[%s320 + $0x10] sm:$0xff]
    %v324 = vld [vmem:[%s320 + $0x18] sm:$0xff]
    %v325 = vld [vmem:[%s320 + $0x20] sm:$0xff]
    %v326 = vld [vmem:[%s320 + $0x28] sm:$0xff]
    %v327 = vld [vmem:[%s320 + $0x30] sm:$0xff]
    %v328 = vld [vmem:[%s320 + $0x38] sm:$0xff]
    %s329 = scalar_lea.vmem %s5, 2
    %v330 = vld [vmem:[%s329] sm:$0x1]
    %v332 = vlaneseq
    %v333 = vshrl.u32 %v332, 7
    %v334 = vsub.s32 0, %v333
    %v335 = vrot.slane %v330, %v334
    %v338 = vsel %vm86, %v319, 0
    %340 = vmatprep.subr.mxu0 0.0
    %341 = vmatpush1.msra.mxu0 %v321
    %342 = vmatprep.subr.mxu0 0.0
    %343 = vmatpush1.msra.mxu0 %v322
    %344 = vmatprep.subr.mxu0 0.0
    %345 = vmatpush1.msra.mxu0 %v323
    %346 = vmatprep.subr.mxu0 0.0
    %347 = vmatpush1.msra.mxu0 %v324
    %348 = vmatprep.subr.mxu0 0.0
    %349 = vmatpush1.msra.mxu0 %v325
    %350 = vmatprep.subr.mxu0 0.0
    %351 = vmatpush1.msra.mxu0 %v326
    %352 = vmatprep.subr.mxu0 0.0
    %353 = vmatpush1.msra.mxu0 %v327
    %354 = vmatprep.subr.mxu0 0.0
    %355 = vmatpush1.msra.mxu0 %v328
    %356 = vmatprep.subr.mxu0 0.0
    %357 = vmatpush1.msra.mxu0 0.0
    %358 = vmatprep.subr.mxu0 0.0
    %359 = vmatpush1.msra.mxu0 0.0
    %360 = vmatprep.subr.mxu0 0.0
    %361 = vmatpush1.msra.mxu0 0.0
    %362 = vmatprep.subr.mxu0 0.0
    %363 = vmatpush1.msra.mxu0 0.0
    %364 = vmatprep.subr.mxu0 0.0
    %365 = vmatpush1.msra.mxu0 0.0
    %366 = vmatprep.subr.mxu0 0.0
    %367 = vmatpush1.msra.mxu0 0.0
    %368 = vmatprep.subr.mxu0 0.0
    %369 = vmatpush1.msra.mxu0 0.0
    %370 = vmatprep.subr.mxu0 0.0
    %371 = vmatpush1.msra.mxu0 0.0
    %372 = vmatprep.subr.mxu0 0.0
    %373 = vmatpush1.msra.mxu0 0.0
    %374 = vmatprep.subr.mxu0 0.0
    %375 = vmatpush1.msra.mxu0 0.0
    %376 = vmatprep.subr.mxu0 0.0
    %377 = vmatpush1.msra.mxu0 0.0
    %378 = vmatprep.subr.mxu0 0.0
    %379 = vmatpush1.msra.mxu0 0.0
    %380 = vmatprep.subr.mxu0 0.0
    %381 = vmatpush1.msra.mxu0 0.0
    %382 = vmatprep.subr.mxu0 0.0
    %383 = vmatpush1.msra.mxu0 0.0
    %384 = vmatprep.subr.mxu0 0.0
    %385 = vmatpush1.msra.mxu0 0.0
    %386 = vmatprep.subr.mxu0 0.0
    %387 = vmatpush1.msra.mxu0 0.0
    %388 = vmatprep.subr.mxu0 0.0
    %389 = vmatpush1.msra.mxu0 0.0
    %390 = vmatprep.subr.mxu0 0.0
    %391 = vmatpush1.msra.mxu0 0.0
    %392 = vmatprep.subr.mxu0 0.0
    %393 = vmatpush1.msra.mxu0 0.0
    %394 = vmatprep.subr.mxu0 0.0
    %395 = vmatpush1.msra.mxu0 0.0
    %396 = vmatprep.subr.mxu0 0.0
    %397 = vmatpush1.msra.mxu0 0.0
    %398 = vmatprep.subr.mxu0 0.0
    %399 = vmatpush1.msra.mxu0 0.0
    %400 = vmatprep.subr.mxu0 0.0
    %401 = vmatpush1.msra.mxu0 0.0
    %402 = vmatprep.subr.mxu0 0.0
    %403 = vmatpush1.msra.mxu0 0.0
    %404 = vmatprep.mubr.f32.mxu0 0.0
    %405 = vmatmul.mubr.f32.gmra.mrb[0].mxu0 %v338
    %v406 = vpop.f32.mrb[0].mxu0
    %v407 = vadd.f32 %v335, %v406
    %v408 = vpop.f32.mrb[0].mxu0
    %409 = vdwg.mxu0
    %v410 = vmul.f32 %v407, %v38
    %v411 = vtanh.pop %v410
    %v412 = vmul.f32 %v411, 0.5
    %v413 = vadd.f32 %v412, 0.5
    %v414 = vsel %vm37, %v411, %v413
    %416 = vrot.lane.b32.xlu0 %v61, 32
    %v417 = vpop.permute.xlu0 %416
    %v419 = vmul.f32 %v414, %v417
    %421 = vrot.lane.b32.xlu0 %v414, 64
    %v422 = vpop.permute.xlu0 %421
    %v424 = vmul.f32 %v414, %v422
    %426 = vrot.lane.b32.xlu0 %v424, 32
    %v427 = vpop.permute.xlu0 %426
    %v429 = vadd.f32 %v419, %v427
    %v430 = vtanh.pop %v429
    %432 = vrot.lane.b32.xlu0 %v430, 64
    %v433 = vpop.permute.xlu0 %432
    %v435 = vmul.f32 %v414, %v433
    %437 = vrot.lane.b32.xlu0 %v435, 32
    %v438 = vpop.permute.xlu0 %437
    %441 = vrot.lane.b32.xlu0 %v56, 32
    %v442 = vpop.permute.xlu0 %441
    %v444 = vsel %vm69, %v438, %v442
    %s445 = scalar_lea.vmem %s4, 192
    %v446 = vld [vmem:[%s445] sm:$0xff]
    %v447 = vld [vmem:[%s445 + $0x8] sm:$0xff]
    %v448 = vld [vmem:[%s445 + $0x10] sm:$0xff]
    %v449 = vld [vmem:[%s445 + $0x18] sm:$0xff]
    %v450 = vld [vmem:[%s445 + $0x20] sm:$0xff]
    %v451 = vld [vmem:[%s445 + $0x28] sm:$0xff]
    %v452 = vld [vmem:[%s445 + $0x30] sm:$0xff]
    %v453 = vld [vmem:[%s445 + $0x38] sm:$0xff]
    %s454 = scalar_lea.vmem %s5, 3
    %v455 = vld [vmem:[%s454] sm:$0x1]
    %v457 = vlaneseq
    %v458 = vshrl.u32 %v457, 7
    %v459 = vsub.s32 0, %v458
    %v460 = vrot.slane %v455, %v459
    %v463 = vsel %vm86, %v444, 0
    %465 = vmatprep.subr.mxu0 0.0
    %466 = vmatpush1.msra.mxu0 %v446
    %467 = vmatprep.subr.mxu0 0.0
    %468 = vmatpush1.msra.mxu0 %v447
    %469 = vmatprep.subr.mxu0 0.0
    %470 = vmatpush1.msra.mxu0 %v448
    %471 = vmatprep.subr.mxu0 0.0
    %472 = vmatpush1.msra.mxu0 %v449
    %473 = vmatprep.subr.mxu0 0.0
    %474 = vmatpush1.msra.mxu0 %v450
    %475 = vmatprep.subr.mxu0 0.0
    %476 = vmatpush1.msra.mxu0 %v451
    %477 = vmatprep.subr.mxu0 0.0
    %478 = vmatpush1.msra.mxu0 %v452
    %479 = vmatprep.subr.mxu0 0.0
    %480 = vmatpush1.msra.mxu0 %v453
    %481 = vmatprep.subr.mxu0 0.0
    %482 = vmatpush1.msra.mxu0 0.0
    %483 = vmatprep.subr.mxu0 0.0
    %484 = vmatpush1.msra.mxu0 0.0
    %485 = vmatprep.subr.mxu0 0.0
    %486 = vmatpush1.msra.mxu0 0.0
    %487 = vmatprep.subr.mxu0 0.0
    %488 = vmatpush1.msra.mxu0 0.0
    %489 = vmatprep.subr.mxu0 0.0
    %490 = vmatpush1.msra.mxu0 0.0
    %491 = vmatprep.subr.mxu0 0.0
    %492 = vmatpush1.msra.mxu0 0.0
    %493 = vmatprep.subr.mxu0 0.0
    %494 = vmatpush1.msra.mxu0 0.0
    %495 = vmatprep.subr.mxu0 0.0
    %496 = vmatpush1.msra.mxu0 0.0
    %497 = vmatprep.subr.mxu0 0.0
    %498 = vmatpush1.msra.mxu0 0.0
    %499 = vmatprep.subr.mxu0 0.0
    %500 = vmatpush1.msra.mxu0 0.0
    %501 = vmatprep.subr.mxu0 0.0
    %502 = vmatpush1.msra.mxu0 0.0
    %503 = vmatprep.subr.mxu0 0.0
    %504 = vmatpush1.msra.mxu0 0.0
    %505 = vmatprep.subr.mxu0 0.0
    %506 = vmatpush1.msra.mxu0 0.0
    %507 = vmatprep.subr.mxu0 0.0
    %508 = vmatpush1.msra.mxu0 0.0
    %509 = vmatprep.subr.mxu0 0.0
    %510 = vmatpush1.msra.mxu0 0.0
    %511 = vmatprep.subr.mxu0 0.0
    %512 = vmatpush1.msra.mxu0 0.0
    %513 = vmatprep.subr.mxu0 0.0
    %514 = vmatpush1.msra.mxu0 0.0
    %515 = vmatprep.subr.mxu0 0.0
    %516 = vmatpush1.msra.mxu0 0.0
    %517 = vmatprep.subr.mxu0 0.0
    %518 = vmatpush1.msra.mxu0 0.0
    %519 = vmatprep.subr.mxu0 0.0
    %520 = vmatpush1.msra.mxu0 0.0
    %521 = vmatprep.subr.mxu0 0.0
    %522 = vmatpush1.msra.mxu0 0.0
    %523 = vmatprep.subr.mxu0 0.0
    %524 = vmatpush1.msra.mxu0 0.0
    %525 = vmatprep.subr.mxu0 0.0
    %526 = vmatpush1.msra.mxu0 0.0
    %527 = vmatprep.subr.mxu0 0.0
    %528 = vmatpush1.msra.mxu0 0.0
    %529 = vmatprep.mubr.f32.mxu0 0.0
    %530 = vmatmul.mubr.f32.gmra.mrb[0].mxu0 %v463
    %v531 = vpop.f32.mrb[0].mxu0
    %v532 = vadd.f32 %v460, %v531
    %v533 = vpop.f32.mrb[0].mxu0
    %534 = vdwg.mxu0
    %v535 = vmul.f32 %v532, %v38
    %v536 = vtanh.pop %v535
    %v537 = vmul.f32 %v536, 0.5
    %v538 = vadd.f32 %v537, 0.5
    %v539 = vsel %vm37, %v536, %v538
    %541 = vrot.lane.b32.xlu0 %v63, 32
    %v542 = vpop.permute.xlu0 %541
    %v544 = vmul.f32 %v539, %v542
    %546 = vrot.lane.b32.xlu0 %v539, 64
    %v547 = vpop.permute.xlu0 %546
    %v549 = vmul.f32 %v539, %v547
    %551 = vrot.lane.b32.xlu0 %v549, 32
    %v552 = vpop.permute.xlu0 %551
    %v554 = vadd.f32 %v544, %v552
    %v555 = vtanh.pop %v554
    %557 = vrot.lane.b32.xlu0 %v555, 64
    %v558 = vpop.permute.xlu0 %557
    %v560 = vmul.f32 %v539, %v558
    %v563 = vunpack.c.l.s4 1966171168
    %v564 = vunpack.c.0.s8 %v563
    %v565 = vlaneseq
    %v566 = vshrl.u32 %v565, 7
    %v567 = vsub.s32 %v564, %v566
    %v568 = vrot.slane %v560, %v567
    %v569 = vcombine.high %v568, %v568
    %v571 = vunpack.c.l.s4 1966171168
    %v572 = vunpack.c.0.s8 %v571
    %v573 = vlaneseq
    %v574 = vshrl.u32 %v573, 7
    %v575 = vsub.s32 %v572, %v574
    %v576 = vrot.slane %v568, %v575
    %v578 = vunpack.c.l.s4 1966171168
    %v579 = vunpack.c.0.s8 %v578
    %v580 = vlaneseq
    %v581 = vshrl.u32 %v580, 7
    %v582 = vsub.s32 %v579, %v581
    %v583 = vrot.slane %v569, %v582
    %v584 = vlaneseq
    %v585 = vshrl.u32 %v584, 7
    %v586 = vsub.s32 0, %v585
    %v587 = vrot.slane %v576, %v586
    %v588 = vlaneseq
    %v589 = vshrl.u32 %v588, 7
    %v590 = vsub.s32 0, %v589
    %v591 = vrot.slane %v583, %v590
    %592 = vrot.lane.b32.xlu0 %v587, 32
    %v593 = vpop.permute.xlu0 %592
    %594 = vrot.lane.b32.xlu0 %v591, 32
    %v595 = vpop.permute.xlu0 %594
    %v598 = vmul.f32 %v39, %v593
    %v599 = vmul.f32 %v40, %v595
    %v600 = vsel %vm69, %v598, 0.0
    %601 = vadd.xlane.f32.xlu0 %v600
    %v602 = vpop.xlane.xlu0 %601
    %v603 = vsel %vm69, %v599, 0.0
    %604 = vadd.xlane.f32.xlu0 %v603
    %v605 = vpop.xlane.xlu0 %604
    %v608 = vlaneseq
    %v609 = vshrl.u32 %v608, 7
    %v610 = vsub.s32 %v34, %v609
    %v611 = vrot.slane %v602, %v610
    %v612 = vlaneseq
    %v613 = vshrl.u32 %v612, 7
    %v614 = vsub.s32 %v34, %v613
    %v615 = vrot.slane %v605, %v614
    %vm616 = vcmask 1041409
    %v617 = vsel %vm616, %v615, %v611
    %vm619 = vcmask 58368
    %v620 = vsel %vm619, %v617, -inf
    %621 = vmax.xlane.f32.xlu0 %v620
    %v622 = vpop.xlane.xlu0 %621
    %v624 = vlaneseq
    %v625 = vshrl.u32 %v624, 7
    %v626 = vsub.s32 0, %v625
    %v627 = vrot.slane %v622, %v626
    %v628 = vlaneseq
    %v629 = vshrl.u32 %v628, 7
    %v630 = vsub.s32 1, %v629
    %v631 = vrot.slane %v622, %v630
    %v634 = vsub.f32 %v602, %v627
    %v635 = vsub.f32 %v605, %v631
    %v636 = vmul.f32 %v634, 1.442695
    %v637 = vpow.pop %v636
    %v638 = vmul.f32 %v635, 1.442695
    %v639 = vpow.pop %v638
    %642 = vset.pattern.permute.xlu0 0
    %643 = vperm.xlu0 %642, %v637
    %v644 = vpop.permute.xlu0 %643
    %645 = vset.pattern.permute.xlu0 0
    %646 = vperm.xlu0 %645, %v639
    %v647 = vpop.permute.xlu0 %646
    %v648 = vlaneseq
    %v649 = vshrl.u32 %v648, 7
    %v650 = vsub.s32 %v34, %v649
    %v651 = vrot.slane %v644, %v650
    %v652 = vlaneseq
    %v653 = vshrl.u32 %v652, 7
    %v654 = vsub.s32 %v34, %v653
    %v655 = vrot.slane %v647, %v654
    %v656 = vsel %vm616, %v655, %v651
    %v658 = vsel %vm619, %v656, 0.0
    %659 = vadd.xlane.f32.xlu0 %v658
    %v660 = vpop.xlane.xlu0 %659
    %v662 = vlaneseq
    %v663 = vshrl.u32 %v662, 7
    %v664 = vsub.s32 0, %v663
    %v665 = vrot.slane %v660, %v664
    %v666 = vlaneseq
    %v667 = vshrl.u32 %v666, 7
    %v668 = vsub.s32 1, %v667
    %v669 = vrot.slane %v660, %v668
    %v672 = vrcp.pop %v665
    %v673 = vmul.f32 %v637, %v672
    %v674 = vrcp.pop %v669
    %v675 = vmul.f32 %v639, %v674
    %677 = vset.pattern.permute.xlu0 0
    %678 = vperm.xlu0 %677, %v673
    %v679 = vpop.permute.xlu0 %678
    %682 = vset.pattern.permute.xlu0 0
    %683 = vperm.xlu0 %682, %v675
    %v684 = vpop.permute.xlu0 %683
    %v686 = vmul.f32 %v39, %v679
    %v687 = vmul.f32 %v40, %v684
    %v688 = vsel %vm69, %v686, 0.0
    %v689 = vrot.slane %v688, 4
    %v690 = vadd.f32 %v688, %v689
    %v691 = vrot.slane %v690, 2
    %v692 = vadd.f32 %v690, %v691
    %v693 = vrot.slane %v692, 1
    %v694 = vadd.f32 %v692, %v693
    %v695 = vsel %vm69, %v687, 0.0
    %v696 = vrot.slane %v695, 4
    %v697 = vadd.f32 %v695, %v696
    %v698 = vrot.slane %v697, 2
    %v699 = vadd.f32 %v697, %v698
    %v700 = vrot.slane %v699, 1
    %v701 = vadd.f32 %v699, %v700
    %v704 = vsel %vm616, %v701, %v694
    %706 = vrot.lane.b32.xlu0 %v560, 64
    %v707 = vpop.permute.xlu0 %706
    %v709 = vsel %vm69, %v704, %v707
    %v711 = vlaneseq
    %v712 = vshrl.u32 %v711, 7
    %v713 = vsub.s32 0, %v712
    %v714 = vrot.slane %v49, %v713
    %v717 = vsel %vm86, %v709, 0
    %719 = vmatprep.subr.mxu0 0.0
    %720 = vmatpush1.msra.mxu0 %v41
    %721 = vmatprep.subr.mxu0 0.0
    %722 = vmatpush1.msra.mxu0 %v42
    %723 = vmatprep.subr.mxu0 0.0
    %724 = vmatpush1.msra.mxu0 %v43
    %725 = vmatprep.subr.mxu0 0.0
    %726 = vmatpush1.msra.mxu0 %v44
    %727 = vmatprep.subr.mxu0 0.0
    %728 = vmatpush1.msra.mxu0 %v45
    %729 = vmatprep.subr.mxu0 0.0
    %730 = vmatpush1.msra.mxu0 %v46
    %731 = vmatprep.subr.mxu0 0.0
    %732 = vmatpush1.msra.mxu0 %v47
    %733 = vmatprep.subr.mxu0 0.0
    %734 = vmatpush1.msra.mxu0 %v48
    %735 = vmatprep.subr.mxu0 0.0
    %736 = vmatpush1.msra.mxu0 0.0
    %737 = vmatprep.subr.mxu0 0.0
    %738 = vmatpush1.msra.mxu0 0.0
    %739 = vmatprep.subr.mxu0 0.0
    %740 = vmatpush1.msra.mxu0 0.0
    %741 = vmatprep.subr.mxu0 0.0
    %742 = vmatpush1.msra.mxu0 0.0
    %743 = vmatprep.subr.mxu0 0.0
    %744 = vmatpush1.msra.mxu0 0.0
    %745 = vmatprep.subr.mxu0 0.0
    %746 = vmatpush1.msra.mxu0 0.0
    %747 = vmatprep.subr.mxu0 0.0
    %748 = vmatpush1.msra.mxu0 0.0
    %749 = vmatprep.subr.mxu0 0.0
    %750 = vmatpush1.msra.mxu0 0.0
    %751 = vmatprep.subr.mxu0 0.0
    %752 = vmatpush1.msra.mxu0 0.0
    %753 = vmatprep.subr.mxu0 0.0
    %754 = vmatpush1.msra.mxu0 0.0
    %755 = vmatprep.subr.mxu0 0.0
    %756 = vmatpush1.msra.mxu0 0.0
    %757 = vmatprep.subr.mxu0 0.0
    %758 = vmatpush1.msra.mxu0 0.0
    %759 = vmatprep.subr.mxu0 0.0
    %760 = vmatpush1.msra.mxu0 0.0
    %761 = vmatprep.subr.mxu0 0.0
    %762 = vmatpush1.msra.mxu0 0.0
    %763 = vmatprep.subr.mxu0 0.0
    %764 = vmatpush1.msra.mxu0 0.0
    %765 = vmatprep.subr.mxu0 0.0
    %766 = vmatpush1.msra.mxu0 0.0
    %767 = vmatprep.subr.mxu0 0.0
    %768 = vmatpush1.msra.mxu0 0.0
    %769 = vmatprep.subr.mxu0 0.0
    %770 = vmatpush1.msra.mxu0 0.0
    %771 = vmatprep.subr.mxu0 0.0
    %772 = vmatpush1.msra.mxu0 0.0
    %773 = vmatprep.subr.mxu0 0.0
    %774 = vmatpush1.msra.mxu0 0.0
    %775 = vmatprep.subr.mxu0 0.0
    %776 = vmatpush1.msra.mxu0 0.0
    %777 = vmatprep.subr.mxu0 0.0
    %778 = vmatpush1.msra.mxu0 0.0
    %779 = vmatprep.subr.mxu0 0.0
    %780 = vmatpush1.msra.mxu0 0.0
    %781 = vmatprep.subr.mxu0 0.0
    %782 = vmatpush1.msra.mxu0 0.0
    %783 = vmatprep.mubr.f32.mxu0 0.0
    %784 = vmatmul.mubr.f32.gmra.mrb[0].mxu0 %v717
    %v785 = vpop.f32.mrb[0].mxu0
    %v786 = vadd.f32 %v714, %v785
    %v787 = vpop.f32.mrb[0].mxu0
    %788 = vdwg.mxu0
    %vm789 = vcmask 1041408
    %v790 = vsel %vm789, %v786, -inf
    %791 = vmax.xlane.f32.xlu0 %v790
    %v792 = vpop.xlane.xlu0 %791
    %v793 = vsub.f32 %v786, %v792
    %v794 = vmul.f32 %v793, 1.442695
    %v795 = vpow.pop %v794
    %v796 = vsel %vm789, %v795, 0.0
    %797 = vadd.xlane.f32.xlu0 %v796
    %v798 = vpop.xlane.xlu0 %797
    %v799 = vlog2.pop %v798
    %v800 = vmul.f32 %v799, 0.6931472
    %v801 = vadd.f32 %v792, %v800
    %v802 = vsub.f32 %v786, %v801
    %803 = vst [vmem:[#allocation2] sm:$0x3] %v802
    %s804 = scalar_lea.vmem %s0, 2
    %v805 = vld [vmem:[%s804] sm:$0x3]
    %806 = vrot.lane.b32.xlu0 %v185, 64
    %v807 = vpop.permute.xlu0 %806
    %v809 = vsel %vm69, %v805, %v807
    %v810 = vld [vmem:[%s4] sm:$0xff]
    %v811 = vld [vmem:[%s4 + $0x8] sm:$0xff]
    %v812 = vld [vmem:[%s4 + $0x10] sm:$0xff]
    %v813 = vld [vmem:[%s4 + $0x18] sm:$0xff]
    %v814 = vld [vmem:[%s4 + $0x20] sm:$0xff]
    %v815 = vld [vmem:[%s4 + $0x28] sm:$0xff]
    %v816 = vld [vmem:[%s4 + $0x30] sm:$0xff]
    %v817 = vld [vmem:[%s4 + $0x38] sm:$0xff]
    %v818 = vld [vmem:[%s5] sm:$0x1]
    %v820 = vlaneseq
    %v821 = vshrl.u32 %v820, 7
    %v822 = vsub.s32 0, %v821
    %v823 = vrot.slane %v818, %v822
    %v826 = vsel %vm86, %v809, 0
    %828 = vmatprep.subr.mxu0 0.0
    %829 = vmatpush1.msra.mxu0 %v810
    %830 = vmatprep.subr.mxu0 0.0
    %831 = vmatpush1.msra.mxu0 %v811
    %832 = vmatprep.subr.mxu0 0.0
    %833 = vmatpush1.msra.mxu0 %v812
    %834 = vmatprep.subr.mxu0 0.0
    %835 = vmatpush1.msra.mxu0 %v813
    %836 = vmatprep.subr.mxu0 0.0
    %837 = vmatpush1.msra.mxu0 %v814
    %838 = vmatprep.subr.mxu0 0.0
    %839 = vmatpush1.msra.mxu0 %v815
    %840 = vmatprep.subr.mxu0 0.0
    %841 = vmatpush1.msra.mxu0 %v816
    %842 = vmatprep.subr.mxu0 0.0
    %843 = vmatpush1.msra.mxu0 %v817
    %844 = vmatprep.subr.mxu0 0.0
    %845 = vmatpush1.msra.mxu0 0.0
    %846 = vmatprep.subr.mxu0 0.0
    %847 = vmatpush1.msra.mxu0 0.0
    %848 = vmatprep.subr.mxu0 0.0
    %849 = vmatpush1.msra.mxu0 0.0
    %850 = vmatprep.subr.mxu0 0.0
    %851 = vmatpush1.msra.mxu0 0.0
    %852 = vmatprep.subr.mxu0 0.0
    %853 = vmatpush1.msra.mxu0 0.0
    %854 = vmatprep.subr.mxu0 0.0
    %855 = vmatpush1.msra.mxu0 0.0
    %856 = vmatprep.subr.mxu0 0.0
    %857 = vmatpush1.msra.mxu0 0.0
    %858 = vmatprep.subr.mxu0 0.0
    %859 = vmatpush1.msra.mxu0 0.0
    %860 = vmatprep.subr.mxu0 0.0
    %861 = vmatpush1.msra.mxu0 0.0
    %862 = vmatprep.subr.mxu0 0.0
    %863 = vmatpush1.msra.mxu0 0.0
    %864 = vmatprep.subr.mxu0 0.0
    %865 = vmatpush1.msra.mxu0 0.0
    %866 = vmatprep.subr.mxu0 0.0
    %867 = vmatpush1.msra.mxu0 0.0
    %868 = vmatprep.subr.mxu0 0.0
    %869 = vmatpush1.msra.mxu0 0.0
    %870 = vmatprep.subr.mxu0 0.0
    %871 = vmatpush1.msra.mxu0 0.0
    %872 = vmatprep.subr.mxu0 0.0
    %873 = vmatpush1.msra.mxu0 0.0
    %874 = vmatprep.subr.mxu0 0.0
    %875 = vmatpush1.msra.mxu0 0.0
    %876 = vmatprep.subr.mxu0 0.0
    %877 = vmatpush1.msra.mxu0 0.0
    %878 = vmatprep.subr.mxu0 0.0
    %879 = vmatpush1.msra.mxu0 0.0
    %880 = vmatprep.subr.mxu0 0.0
    %881 = vmatpush1.msra.mxu0 0.0
    %882 = vmatprep.subr.mxu0 0.0
    %883 = vmatpush1.msra.mxu0 0.0
    %884 = vmatprep.subr.mxu0 0.0
    %885 = vmatpush1.msra.mxu0 0.0
    %886 = vmatprep.subr.mxu0 0.0
    %887 = vmatpush1.msra.mxu0 0.0
    %888 = vmatprep.subr.mxu0 0.0
    %889 = vmatpush1.msra.mxu0 0.0
    %890 = vmatprep.subr.mxu0 0.0
    %891 = vmatpush1.msra.mxu0 0.0
    %892 = vmatprep.mubr.f32.mxu0 0.0
    %893 = vmatmul.mubr.f32.gmra.mrb[0].mxu0 %v826
    %v894 = vpop.f32.mrb[0].mxu0
    %v895 = vadd.f32 %v823, %v894
    %v896 = vpop.f32.mrb[0].mxu0
    %897 = vdwg.mxu0
    %v898 = vmul.f32 %v895, %v38
    %v899 = vtanh.pop %v898
    %v900 = vmul.f32 %v899, 0.5
    %v901 = vadd.f32 %v900, 0.5
    %v902 = vsel %vm37, %v899, %v901
    %v903 = vmul.f32 %v902, %v179
    %905 = vrot.lane.b32.xlu0 %v902, 64
    %v906 = vpop.permute.xlu0 %905
    %v908 = vmul.f32 %v902, %v906
    %910 = vrot.lane.b32.xlu0 %v908, 32
    %v911 = vpop.permute.xlu0 %910
    %v913 = vadd.f32 %v903, %v911
    %v914 = vtanh.pop %v913
    %916 = vrot.lane.b32.xlu0 %v914, 64
    %v917 = vpop.permute.xlu0 %916
    %v919 = vmul.f32 %v902, %v917
    %921 = vrot.lane.b32.xlu0 %v919, 32
    %v922 = vpop.permute.xlu0 %921
    %924 = vrot.lane.b32.xlu0 %v310, 64
    %v925 = vpop.permute.xlu0 %924
    %v927 = vsel %vm69, %v922, %v925
    %v928 = vld [vmem:[%s195] sm:$0xff]
    %v929 = vld [vmem:[%s195 + $0x8] sm:$0xff]
    %v930 = vld [vmem:[%s195 + $0x10] sm:$0xff]
    %v931 = vld [vmem:[%s195 + $0x18] sm:$0xff]
    %v932 = vld [vmem:[%s195 + $0x20] sm:$0xff]
    %v933 = vld [vmem:[%s195 + $0x28] sm:$0xff]
    %v934 = vld [vmem:[%s195 + $0x30] sm:$0xff]
    %v935 = vld [vmem:[%s195 + $0x38] sm:$0xff]
    %v936 = vld [vmem:[%s204] sm:$0x1]
    %v938 = vlaneseq
    %v939 = vshrl.u32 %v938, 7
    %v940 = vsub.s32 0, %v939
    %v941 = vrot.slane %v936, %v940
    %v944 = vsel %vm86, %v927, 0
    %946 = vmatprep.subr.mxu0 0.0
    %947 = vmatpush1.msra.mxu0 %v928
    %948 = vmatprep.subr.mxu0 0.0
    %949 = vmatpush1.msra.mxu0 %v929
    %950 = vmatprep.subr.mxu0 0.0
    %951 = vmatpush1.msra.mxu0 %v930
    %952 = vmatprep.subr.mxu0 0.0
    %953 = vmatpush1.msra.mxu0 %v931
    %954 = vmatprep.subr.mxu0 0.0
    %955 = vmatpush1.msra.mxu0 %v932
    %956 = vmatprep.subr.mxu0 0.0
    %957 = vmatpush1.msra.mxu0 %v933
    %958 = vmatprep.subr.mxu0 0.0
    %959 = vmatpush1.msra.mxu0 %v934
    %960 = vmatprep.subr.mxu0 0.0
    %961 = vmatpush1.msra.mxu0 %v935
    %962 = vmatprep.subr.mxu0 0.0
    %963 = vmatpush1.msra.mxu0 0.0
    %964 = vmatprep.subr.mxu0 0.0
    %965 = vmatpush1.msra.mxu0 0.0
    %966 = vmatprep.subr.mxu0 0.0
    %967 = vmatpush1.msra.mxu0 0.0
    %968 = vmatprep.subr.mxu0 0.0
    %969 = vmatpush1.msra.mxu0 0.0
    %970 = vmatprep.subr.mxu0 0.0
    %971 = vmatpush1.msra.mxu0 0.0
    %972 = vmatprep.subr.mxu0 0.0
    %973 = vmatpush1.msra.mxu0 0.0
    %974 = vmatprep.subr.mxu0 0.0
    %975 = vmatpush1.msra.mxu0 0.0
    %976 = vmatprep.subr.mxu0 0.0
    %977 = vmatpush1.msra.mxu0 0.0
    %978 = vmatprep.subr.mxu0 0.0
    %979 = vmatpush1.msra.mxu0 0.0
    %980 = vmatprep.subr.mxu0 0.0
    %981 = vmatpush1.msra.mxu0 0.0
    %982 = vmatprep.subr.mxu0 0.0
    %983 = vmatpush1.msra.mxu0 0.0
    %984 = vmatprep.subr.mxu0 0.0
    %985 = vmatpush1.msra.mxu0 0.0
    %986 = vmatprep.subr.mxu0 0.0
    %987 = vmatpush1.msra.mxu0 0.0
    %988 = vmatprep.subr.mxu0 0.0
    %989 = vmatpush1.msra.mxu0 0.0
    %990 = vmatprep.subr.mxu0 0.0
    %991 = vmatpush1.msra.mxu0 0.0
    %992 = vmatprep.subr.mxu0 0.0
    %993 = vmatpush1.msra.mxu0 0.0
    %994 = vmatprep.subr.mxu0 0.0
    %995 = vmatpush1.msra.mxu0 0.0
    %996 = vmatprep.subr.mxu0 0.0
    %997 = vmatpush1.msra.mxu0 0.0
    %998 = vmatprep.subr.mxu0 0.0
    %999 = vmatpush1.msra.mxu0 0.0
    %1000 = vmatprep.subr.mxu0 0.0
    %1001 = vmatpush1.msra.mxu0 0.0
    %1002 = vmatprep.subr.mxu0 0.0
    %1003 = vmatpush1.msra.mxu0 0.0
    %1004 = vmatprep.subr.mxu0 0.0
    %1005 = vmatpush1.msra.mxu0 0.0
    %1006 = vmatprep.subr.mxu0 0.0
    %1007 = vmatpush1.msra.mxu0 0.0
    %1008 = vmatprep.subr.mxu0 0.0
    %1009 = vmatpush1.msra.mxu0 0.0
    %1010 = vmatprep.mubr.f32.mxu0 0.0
    %1011 = vmatmul.mubr.f32.gmra.mrb[0].mxu0 %v944
    %v1012 = vpop.f32.mrb[0].mxu0
    %v1013 = vadd.f32 %v941, %v1012
    %v1014 = vpop.f32.mrb[0].mxu0
    %1015 = vdwg.mxu0
    %v1016 = vmul.f32 %v1013, %v38
    %v1017 = vtanh.pop %v1016
    %v1018 = vmul.f32 %v1017, 0.5
    %v1019 = vadd.f32 %v1018, 0.5
    %v1020 = vsel %vm37, %v1017, %v1019
    %v1021 = vmul.f32 %v1020, %v304
    %1023 = vrot.lane.b32.xlu0 %v1020, 64
    %v1024 = vpop.permute.xlu0 %1023
    %v1026 = vmul.f32 %v1020, %v1024
    %1028 = vrot.lane.b32.xlu0 %v1026, 32
    %v1029 = vpop.permute.xlu0 %1028
    %v1031 = vadd.f32 %v1021, %v1029
    %v1032 = vtanh.pop %v1031
    %1034 = vrot.lane.b32.xlu0 %v1032, 64
    %v1035 = vpop.permute.xlu0 %1034
    %v1037 = vmul.f32 %v1020, %v1035
    %1039 = vrot.lane.b32.xlu0 %v1037, 32
    %v1040 = vpop.permute.xlu0 %1039
    %1042 = vrot.lane.b32.xlu0 %v435, 64
    %v1043 = vpop.permute.xlu0 %1042
    %v1045 = vsel %vm69, %v1040, %v1043
    %v1046 = vld [vmem:[%s320] sm:$0xff]
    %v1047 = vld [vmem:[%s320 + $0x8] sm:$0xff]
    %v1048 = vld [vmem:[%s320 + $0x10] sm:$0xff]
    %v1049 = vld [vmem:[%s320 + $0x18] sm:$0xff]
    %v1050 = vld [vmem:[%s320 + $0x20] sm:$0xff]
    %v1051 = vld [vmem:[%s320 + $0x28] sm:$0xff]
    %v1052 = vld [vmem:[%s320 + $0x30] sm:$0xff]
    %v1053 = vld [vmem:[%s320 + $0x38] sm:$0xff]
    %v1054 = vld [vmem:[%s329] sm:$0x1]
    %v1056 = vlaneseq
    %v1057 = vshrl.u32 %v1056, 7
    %v1058 = vsub.s32 0, %v1057
    %v1059 = vrot.slane %v1054, %v1058
    %v1062 = vsel %vm86, %v1045, 0
    %1064 = vmatprep.subr.mxu0 0.0
    %1065 = vmatpush1.msra.mxu0 %v1046
    %1066 = vmatprep.subr.mxu0 0.0
    %1067 = vmatpush1.msra.mxu0 %v1047
    %1068 = vmatprep.subr.mxu0 0.0
    %1069 = vmatpush1.msra.mxu0 %v1048
    %1070 = vmatprep.subr.mxu0 0.0
    %1071 = vmatpush1.msra.mxu0 %v1049
    %1072 = vmatprep.subr.mxu0 0.0
    %1073 = vmatpush1.msra.mxu0 %v1050
    %1074 = vmatprep.subr.mxu0 0.0
    %1075 = vmatpush1.msra.mxu0 %v1051
    %1076 = vmatprep.subr.mxu0 0.0
    %1077 = vmatpush1.msra.mxu0 %v1052
    %1078 = vmatprep.subr.mxu0 0.0
    %1079 = vmatpush1.msra.mxu0 %v1053
    %1080 = vmatprep.subr.mxu0 0.0
    %1081 = vmatpush1.msra.mxu0 0.0
    %1082 = vmatprep.subr.mxu0 0.0
    %1083 = vmatpush1.msra.mxu0 0.0
    %1084 = vmatprep.subr.mxu0 0.0
    %1085 = vmatpush1.msra.mxu0 0.0
    %1086 = vmatprep.subr.mxu0 0.0
    %1087 = vmatpush1.msra.mxu0 0.0
    %1088 = vmatprep.subr.mxu0 0.0
    %1089 = vmatpush1.msra.mxu0 0.0
    %1090 = vmatprep.subr.mxu0 0.0
    %1091 = vmatpush1.msra.mxu0 0.0
    %1092 = vmatprep.subr.mxu0 0.0
    %1093 = vmatpush1.msra.mxu0 0.0
    %1094 = vmatprep.subr.mxu0 0.0
    %1095 = vmatpush1.msra.mxu0 0.0
    %1096 = vmatprep.subr.mxu0 0.0
    %1097 = vmatpush1.msra.mxu0 0.0
    %1098 = vmatprep.subr.mxu0 0.0
    %1099 = vmatpush1.msra.mxu0 0.0
    %1100 = vmatprep.subr.mxu0 0.0
    %1101 = vmatpush1.msra.mxu0 0.0
    %1102 = vmatprep.subr.mxu0 0.0
    %1103 = vmatpush1.msra.mxu0 0.0
    %1104 = vmatprep.subr.mxu0 0.0
    %1105 = vmatpush1.msra.mxu0 0.0
    %1106 = vmatprep.subr.mxu0 0.0
    %1107 = vmatpush1.msra.mxu0 0.0
    %1108 = vmatprep.subr.mxu0 0.0
    %1109 = vmatpush1.msra.mxu0 0.0
    %1110 = vmatprep.subr.mxu0 0.0
    %1111 = vmatpush1.msra.mxu0 0.0
    %1112 = vmatprep.subr.mxu0 0.0
    %1113 = vmatpush1.msra.mxu0 0.0
    %1114 = vmatprep.subr.mxu0 0.0
    %1115 = vmatpush1.msra.mxu0 0.0
    %1116 = vmatprep.subr.mxu0 0.0
    %1117 = vmatpush1.msra.mxu0 0.0
    %1118 = vmatprep.subr.mxu0 0.0
    %1119 = vmatpush1.msra.mxu0 0.0
    %1120 = vmatprep.subr.mxu0 0.0
    %1121 = vmatpush1.msra.mxu0 0.0
    %1122 = vmatprep.subr.mxu0 0.0
    %1123 = vmatpush1.msra.mxu0 0.0
    %1124 = vmatprep.subr.mxu0 0.0
    %1125 = vmatpush1.msra.mxu0 0.0
    %1126 = vmatprep.subr.mxu0 0.0
    %1127 = vmatpush1.msra.mxu0 0.0
    %1128 = vmatprep.mubr.f32.mxu0 0.0
    %1129 = vmatmul.mubr.f32.gmra.mrb[0].mxu0 %v1062
    %v1130 = vpop.f32.mrb[0].mxu0
    %v1131 = vadd.f32 %v1059, %v1130
    %v1132 = vpop.f32.mrb[0].mxu0
    %1133 = vdwg.mxu0
    %v1134 = vmul.f32 %v1131, %v38
    %v1135 = vtanh.pop %v1134
    %v1136 = vmul.f32 %v1135, 0.5
    %v1137 = vadd.f32 %v1136, 0.5
    %v1138 = vsel %vm37, %v1135, %v1137
    %v1139 = vmul.f32 %v1138, %v429
    %1141 = vrot.lane.b32.xlu0 %v1138, 64
    %v1142 = vpop.permute.xlu0 %1141
    %v1144 = vmul.f32 %v1138, %v1142
    %1146 = vrot.lane.b32.xlu0 %v1144, 32
    %v1147 = vpop.permute.xlu0 %1146
    %v1149 = vadd.f32 %v1139, %v1147
    %v1150 = vtanh.pop %v1149
    %1152 = vrot.lane.b32.xlu0 %v1150, 64
    %v1153 = vpop.permute.xlu0 %1152
    %v1155 = vmul.f32 %v1138, %v1153
    %1157 = vrot.lane.b32.xlu0 %v1155, 32
    %v1158 = vpop.permute.xlu0 %1157
    %v1160 = vsel %vm69, %v1158, %v707
    %v1161 = vld [vmem:[%s445] sm:$0xff]
    %v1162 = vld [vmem:[%s445 + $0x8] sm:$0xff]
    %v1163 = vld [vmem:[%s445 + $0x10] sm:$0xff]
    %v1164 = vld [vmem:[%s445 + $0x18] sm:$0xff]
    %v1165 = vld [vmem:[%s445 + $0x20] sm:$0xff]
    %v1166 = vld [vmem:[%s445 + $0x28] sm:$0xff]
    %v1167 = vld [vmem:[%s445 + $0x30] sm:$0xff]
    %v1168 = vld [vmem:[%s445 + $0x38] sm:$0xff]
    %v1169 = vld [vmem:[%s454] sm:$0x1]
    %v1171 = vlaneseq
    %v1172 = vshrl.u32 %v1171, 7
    %v1173 = vsub.s32 0, %v1172
    %v1174 = vrot.slane %v1169, %v1173
    %v1177 = vsel %vm86, %v1160, 0
    %1179 = vmatprep.subr.mxu0 0.0
    %1180 = vmatpush1.msra.mxu0 %v1161
    %1181 = vmatprep.subr.mxu0 0.0
    %1182 = vmatpush1.msra.mxu0 %v1162
    %1183 = vmatprep.subr.mxu0 0.0
    %1184 = vmatpush1.msra.mxu0 %v1163
    %1185 = vmatprep.subr.mxu0 0.0
    %1186 = vmatpush1.msra.mxu0 %v1164
    %1187 = vmatprep.subr.mxu0 0.0
    %1188 = vmatpush1.msra.mxu0 %v1165
    %1189 = vmatprep.subr.mxu0 0.0
    %1190 = vmatpush1.msra.mxu0 %v1166
    %1191 = vmatprep.subr.mxu0 0.0
    %1192 = vmatpush1.msra.mxu0 %v1167
    %1193 = vmatprep.subr.mxu0 0.0
    %1194 = vmatpush1.msra.mxu0 %v1168
    %1195 = vmatprep.subr.mxu0 0.0
    %1196 = vmatpush1.msra.mxu0 0.0
    %1197 = vmatprep.subr.mxu0 0.0
    %1198 = vmatpush1.msra.mxu0 0.0
    %1199 = vmatprep.subr.mxu0 0.0
    %1200 = vmatpush1.msra.mxu0 0.0
    %1201 = vmatprep.subr.mxu0 0.0
    %1202 = vmatpush1.msra.mxu0 0.0
    %1203 = vmatprep.subr.mxu0 0.0
    %1204 = vmatpush1.msra.mxu0 0.0
    %1205 = vmatprep.subr.mxu0 0.0
    %1206 = vmatpush1.msra.mxu0 0.0
    %1207 = vmatprep.subr.mxu0 0.0
    %1208 = vmatpush1.msra.mxu0 0.0
    %1209 = vmatprep.subr.mxu0 0.0
    %1210 = vmatpush1.msra.mxu0 0.0
    %1211 = vmatprep.subr.mxu0 0.0
    %1212 = vmatpush1.msra.mxu0 0.0
    %1213 = vmatprep.subr.mxu0 0.0
    %1214 = vmatpush1.msra.mxu0 0.0
    %1215 = vmatprep.subr.mxu0 0.0
    %1216 = vmatpush1.msra.mxu0 0.0
    %1217 = vmatprep.subr.mxu0 0.0
    %1218 = vmatpush1.msra.mxu0 0.0
    %1219 = vmatprep.subr.mxu0 0.0
    %1220 = vmatpush1.msra.mxu0 0.0
    %1221 = vmatprep.subr.mxu0 0.0
    %1222 = vmatpush1.msra.mxu0 0.0
    %1223 = vmatprep.subr.mxu0 0.0
    %1224 = vmatpush1.msra.mxu0 0.0
    %1225 = vmatprep.subr.mxu0 0.0
    %1226 = vmatpush1.msra.mxu0 0.0
    %1227 = vmatprep.subr.mxu0 0.0
    %1228 = vmatpush1.msra.mxu0 0.0
    %1229 = vmatprep.subr.mxu0 0.0
    %1230 = vmatpush1.msra.mxu0 0.0
    %1231 = vmatprep.subr.mxu0 0.0
    %1232 = vmatpush1.msra.mxu0 0.0
    %1233 = vmatprep.subr.mxu0 0.0
    %1234 = vmatpush1.msra.mxu0 0.0
    %1235 = vmatprep.subr.mxu0 0.0
    %1236 = vmatpush1.msra.mxu0 0.0
    %1237 = vmatprep.subr.mxu0 0.0
    %1238 = vmatpush1.msra.mxu0 0.0
    %1239 = vmatprep.subr.mxu0 0.0
    %1240 = vmatpush1.msra.mxu0 0.0
    %1241 = vmatprep.subr.mxu0 0.0
    %1242 = vmatpush1.msra.mxu0 0.0
    %1243 = vmatprep.mubr.f32.mxu0 0.0
    %1244 = vmatmul.mubr.f32.gmra.mrb[0].mxu0 %v1177
    %v1245 = vpop.f32.mrb[0].mxu0
    %v1246 = vadd.f32 %v1174, %v1245
    %v1247 = vpop.f32.mrb[0].mxu0
    %1248 = vdwg.mxu0
    %v1249 = vmul.f32 %v1246, %v38
    %v1250 = vtanh.pop %v1249
    %v1251 = vmul.f32 %v1250, 0.5
    %v1252 = vadd.f32 %v1251, 0.5
    %v1253 = vsel %vm37, %v1250, %v1252
    %v1254 = vmul.f32 %v1253, %v554
    %1256 = vrot.lane.b32.xlu0 %v1253, 64
    %v1257 = vpop.permute.xlu0 %1256
    %v1259 = vmul.f32 %v1253, %v1257
    %1261 = vrot.lane.b32.xlu0 %v1259, 32
    %v1262 = vpop.permute.xlu0 %1261
    %v1264 = vadd.f32 %v1254, %v1262
    %v1265 = vtanh.pop %v1264
    %1267 = vrot.lane.b32.xlu0 %v1265, 64
    %v1268 = vpop.permute.xlu0 %1267
    %v1270 = vmul.f32 %v1253, %v1268
    %v1273 = vunpack.c.l.s4 1966171168
    %v1274 = vunpack.c.0.s8 %v1273
    %v1275 = vlaneseq
    %v1276 = vshrl.u32 %v1275, 7
    %v1277 = vsub.s32 %v1274, %v1276
    %v1278 = vrot.slane %v1270, %v1277
    %v1279 = vcombine.high %v1278, %v1278
    %v1281 = vunpack.c.l.s4 1966171168
    %v1282 = vunpack.c.0.s8 %v1281
    %v1283 = vlaneseq
    %v1284 = vshrl.u32 %v1283, 7
    %v1285 = vsub.s32 %v1282, %v1284
    %v1286 = vrot.slane %v1278, %v1285
    %v1288 = vunpack.c.l.s4 1966171168
    %v1289 = vunpack.c.0.s8 %v1288
    %v1290 = vlaneseq
    %v1291 = vshrl.u32 %v1290, 7
    %v1292 = vsub.s32 %v1289, %v1291
    %v1293 = vrot.slane %v1279, %v1292
    %v1294 = vlaneseq
    %v1295 = vshrl.u32 %v1294, 7
    %v1296 = vsub.s32 0, %v1295
    %v1297 = vrot.slane %v1286, %v1296
    %v1298 = vlaneseq
    %v1299 = vshrl.u32 %v1298, 7
    %v1300 = vsub.s32 0, %v1299
    %v1301 = vrot.slane %v1293, %v1300
    %1302 = vrot.lane.b32.xlu0 %v1297, 32
    %v1303 = vpop.permute.xlu0 %1302
    %1304 = vrot.lane.b32.xlu0 %v1301, 32
    %v1305 = vpop.permute.xlu0 %1304
    %v1308 = vmul.f32 %v39, %v1303
    %v1309 = vmul.f32 %v40, %v1305
    %v1310 = vsel %vm69, %v1308, 0.0
    %1311 = vadd.xlane.f32.xlu0 %v1310
    %v1312 = vpop.xlane.xlu0 %1311
    %v1313 = vsel %vm69, %v1309, 0.0
    %1314 = vadd.xlane.f32.xlu0 %v1313
    %v1315 = vpop.xlane.xlu0 %1314
    %v1318 = vlaneseq
    %v1319 = vshrl.u32 %v1318, 7
    %v1320 = vsub.s32 %v34, %v1319
    %v1321 = vrot.slane %v1312, %v1320
    %v1322 = vlaneseq
    %v1323 = vshrl.u32 %v1322, 7
    %v1324 = vsub.s32 %v34, %v1323
    %v1325 = vrot.slane %v1315, %v1324
    %v1326 = vsel %vm616, %v1325, %v1321
    %v1328 = vsel %vm619, %v1326, -inf
    %1329 = vmax.xlane.f32.xlu0 %v1328
    %v1330 = vpop.xlane.xlu0 %1329
    %v1332 = vlaneseq
    %v1333 = vshrl.u32 %v1332, 7
    %v1334 = vsub.s32 0, %v1333
    %v1335 = vrot.slane %v1330, %v1334
    %v1336 = vlaneseq
    %v1337 = vshrl.u32 %v1336, 7
    %v1338 = vsub.s32 1, %v1337
    %v1339 = vrot.slane %v1330, %v1338
    %v1342 = vsub.f32 %v1312, %v1335
    %v1343 = vsub.f32 %v1315, %v1339
    %v1344 = vmul.f32 %v1342, 1.442695
    %v1345 = vpow.pop %v1344
    %v1346 = vmul.f32 %v1343, 1.442695
    %v1347 = vpow.pop %v1346
    %1350 = vset.pattern.permute.xlu0 0
    %1351 = vperm.xlu0 %1350, %v1345
    %v1352 = vpop.permute.xlu0 %1351
    %1353 = vset.pattern.permute.xlu0 0
    %1354 = vperm.xlu0 %1353, %v1347
    %v1355 = vpop.permute.xlu0 %1354
    %v1356 = vlaneseq
    %v1357 = vshrl.u32 %v1356, 7
    %v1358 = vsub.s32 %v34, %v1357
    %v1359 = vrot.slane %v1352, %v1358
    %v1360 = vlaneseq
    %v1361 = vshrl.u32 %v1360, 7
    %v1362 = vsub.s32 %v34, %v1361
    %v1363 = vrot.slane %v1355, %v1362
    %v1364 = vsel %vm616, %v1363, %v1359
    %v1366 = vsel %vm619, %v1364, 0.0
    %1367 = vadd.xlane.f32.xlu0 %v1366
    %v1368 = vpop.xlane.xlu0 %1367
    %v1370 = vlaneseq
    %v1371 = vshrl.u32 %v1370, 7
    %v1372 = vsub.s32 0, %v1371
    %v1373 = vrot.slane %v1368, %v1372
    %v1374 = vlaneseq
    %v1375 = vshrl.u32 %v1374, 7
    %v1376 = vsub.s32 1, %v1375
    %v1377 = vrot.slane %v1368, %v1376
    %v1380 = vrcp.pop %v1373
    %v1381 = vmul.f32 %v1345, %v1380
    %v1382 = vrcp.pop %v1377
    %v1383 = vmul.f32 %v1347, %v1382
    %1385 = vset.pattern.permute.xlu0 0
    %1386 = vperm.xlu0 %1385, %v1381
    %v1387 = vpop.permute.xlu0 %1386
    %1390 = vset.pattern.permute.xlu0 0
    %1391 = vperm.xlu0 %1390, %v1383
    %v1392 = vpop.permute.xlu0 %1391
    %v1394 = vmul.f32 %v39, %v1387
    %v1395 = vmul.f32 %v40, %v1392
    %v1396 = vsel %vm69, %v1394, 0.0
    %v1397 = vrot.slane %v1396, 4
    %v1398 = vadd.f32 %v1396, %v1397
    %v1399 = vrot.slane %v1398, 2
    %v1400 = vadd.f32 %v1398, %v1399
    %v1401 = vrot.slane %v1400, 1
    %v1402 = vadd.f32 %v1400, %v1401
    %v1403 = vsel %vm69, %v1395, 0.0
    %v1404 = vrot.slane %v1403, 4
    %v1405 = vadd.f32 %v1403, %v1404
    %v1406 = vrot.slane %v1405, 2
    %v1407 = vadd.f32 %v1405, %v1406
    %v1408 = vrot.slane %v1407, 1
    %v1409 = vadd.f32 %v1407, %v1408
    %v1412 = vsel %vm616, %v1409, %v1402
    %1414 = vrot.lane.b32.xlu0 %v1270, 64
    %v1415 = vpop.permute.xlu0 %1414
    %v1417 = vsel %vm69, %v1412, %v1415
    %v1419 = vsel %vm86, %v1417, 0
    %1421 = vmatprep.subr.mxu0 0.0
    %1422 = vmatpush1.msra.mxu0 %v41
    %1423 = vmatprep.subr.mxu0 0.0
    %1424 = vmatpush1.msra.mxu0 %v42
    %1425 = vmatprep.subr.mxu0 0.0
    %1426 = vmatpush1.msra.mxu0 %v43
    %1427 = vmatprep.subr.mxu0 0.0
    %1428 = vmatpush1.msra.mxu0 %v44
    %1429 = vmatprep.subr.mxu0 0.0
    %1430 = vmatpush1.msra.mxu0 %v45
    %1431 = vmatprep.subr.mxu0 0.0
    %1432 = vmatpush1.msra.mxu0 %v46
    %1433 = vmatprep.subr.mxu0 0.0
    %1434 = vmatpush1.msra.mxu0 %v47
    %1435 = vmatprep.subr.mxu0 0.0
    %1436 = vmatpush1.msra.mxu0 %v48
    %1437 = vmatprep.subr.mxu0 0.0
    %1438 = vmatpush1.msra.mxu0 0.0
    %1439 = vmatprep.subr.mxu0 0.0
    %1440 = vmatpush1.msra.mxu0 0.0
    %1441 = vmatprep.subr.mxu0 0.0
    %1442 = vmatpush1.msra.mxu0 0.0
    %1443 = vmatprep.subr.mxu0 0.0
    %1444 = vmatpush1.msra.mxu0 0.0
    %1445 = vmatprep.subr.mxu0 0.0
    %1446 = vmatpush1.msra.mxu0 0.0
    %1447 = vmatprep.subr.mxu0 0.0
    %1448 = vmatpush1.msra.mxu0 0.0
    %1449 = vmatprep.subr.mxu0 0.0
    %1450 = vmatpush1.msra.mxu0 0.0
    %1451 = vmatprep.subr.mxu0 0.0
    %1452 = vmatpush1.msra.mxu0 0.0
    %1453 = vmatprep.subr.mxu0 0.0
    %1454 = vmatpush1.msra.mxu0 0.0
    %1455 = vmatprep.subr.mxu0 0.0
    %1456 = vmatpush1.msra.mxu0 0.0
    %1457 = vmatprep.subr.mxu0 0.0
    %1458 = vmatpush1.msra.mxu0 0.0
    %1459 = vmatprep.subr.mxu0 0.0
    %1460 = vmatpush1.msra.mxu0 0.0
    %1461 = vmatprep.subr.mxu0 0.0
    %1462 = vmatpush1.msra.mxu0 0.0
    %1463 = vmatprep.subr.mxu0 0.0
    %1464 = vmatpush1.msra.mxu0 0.0
    %1465 = vmatprep.subr.mxu0 0.0
    %1466 = vmatpush1.msra.mxu0 0.0
    %1467 = vmatprep.subr.mxu0 0.0
    %1468 = vmatpush1.msra.mxu0 0.0
    %1469 = vmatprep.subr.mxu0 0.0
    %1470 = vmatpush1.msra.mxu0 0.0
    %1471 = vmatprep.subr.mxu0 0.0
    %1472 = vmatpush1.msra.mxu0 0.0
    %1473 = vmatprep.subr.mxu0 0.0
    %1474 = vmatpush1.msra.mxu0 0.0
    %1475 = vmatprep.subr.mxu0 0.0
    %1476 = vmatpush1.msra.mxu0 0.0
    %1477 = vmatprep.subr.mxu0 0.0
    %1478 = vmatpush1.msra.mxu0 0.0
    %1479 = vmatprep.subr.mxu0 0.0
    %1480 = vmatpush1.msra.mxu0 0.0
    %1481 = vmatprep.subr.mxu0 0.0
    %1482 = vmatpush1.msra.mxu0 0.0
    %1483 = vmatprep.subr.mxu0 0.0
    %1484 = vmatpush1.msra.mxu0 0.0
    %1485 = vmatprep.mubr.f32.mxu0 0.0
    %1486 = vmatmul.mubr.f32.gmra.mrb[0].mxu0 %v1419
    %v1487 = vpop.f32.mrb[0].mxu0
    %v1488 = vadd.f32 %v714, %v1487
    %v1489 = vpop.f32.mrb[0].mxu0
    %1490 = vdwg.mxu0
    %v1491 = vsel %vm789, %v1488, -inf
    %1492 = vmax.xlane.f32.xlu0 %v1491
    %v1493 = vpop.xlane.xlu0 %1492
    %v1494 = vsub.f32 %v1488, %v1493
    %v1495 = vmul.f32 %v1494, 1.442695
    %v1496 = vpow.pop %v1495
    %v1497 = vsel %vm789, %v1496, 0.0
    %1498 = vadd.xlane.f32.xlu0 %v1497
    %v1499 = vpop.xlane.xlu0 %1498
    %v1500 = vlog2.pop %v1499
    %v1501 = vmul.f32 %v1500, 0.6931472
    %v1502 = vadd.f32 %v1493, %v1501
    %v1503 = vsub.f32 %v1488, %v1502
    %s1504 = scalar_lea.vmem [#allocation2], 2
    %1505 = vst [vmem:[%s1504] sm:$0x3] %v1503
    %s1506 = scalar_lea.vmem %s0, 4
    %v1507 = vld [vmem:[%s1506] sm:$0x3]
    %1508 = vrot.lane.b32.xlu0 %v919, 64
    %v1509 = vpop.permute.xlu0 %1508
    %v1511 = vsel %vm69, %v1507, %v1509
    %v1512 = vld [vmem:[%s4] sm:$0xff]
    %v1513 = vld [vmem:[%s4 + $0x8] sm:$0xff]
    %v1514 = vld [vmem:[%s4 + $0x10] sm:$0xff]
    %v1515 = vld [vmem:[%s4 + $0x18] sm:$0xff]
    %v1516 = vld [vmem:[%s4 + $0x20] sm:$0xff]
    %v1517 = vld [vmem:[%s4 + $0x28] sm:$0xff]
    %v1518 = vld [vmem:[%s4 + $0x30] sm:$0xff]
    %v1519 = vld [vmem:[%s4 + $0x38] sm:$0xff]
    %v1520 = vld [vmem:[%s5] sm:$0x1]
    %v1522 = vlaneseq
    %v1523 = vshrl.u32 %v1522, 7
    %v1524 = vsub.s32 0, %v1523
    %v1525 = vrot.slane %v1520, %v1524
    %v1528 = vsel %vm86, %v1511, 0
    %1530 = vmatprep.subr.mxu0 0.0
    %1531 = vmatpush1.msra.mxu0 %v1512
    %1532 = vmatprep.subr.mxu0 0.0
    %1533 = vmatpush1.msra.mxu0 %v1513
    %1534 = vmatprep.subr.mxu0 0.0
    %1535 = vmatpush1.msra.mxu0 %v1514
    %1536 = vmatprep.subr.mxu0 0.0
    %1537 = vmatpush1.msra.mxu0 %v1515
    %1538 = vmatprep.subr.mxu0 0.0
    %1539 = vmatpush1.msra.mxu0 %v1516
    %1540 = vmatprep.subr.mxu0 0.0
    %1541 = vmatpush1.msra.mxu0 %v1517
    %1542 = vmatprep.subr.mxu0 0.0
    %1543 = vmatpush1.msra.mxu0 %v1518
    %1544 = vmatprep.subr.mxu0 0.0
    %1545 = vmatpush1.msra.mxu0 %v1519
    %1546 = vmatprep.subr.mxu0 0.0
    %1547 = vmatpush1.msra.mxu0 0.0
    %1548 = vmatprep.subr.mxu0 0.0
    %1549 = vmatpush1.msra.mxu0 0.0
    %1550 = vmatprep.subr.mxu0 0.0
    %1551 = vmatpush1.msra.mxu0 0.0
    %1552 = vmatprep.subr.mxu0 0.0
    %1553 = vmatpush1.msra.mxu0 0.0
    %1554 = vmatprep.subr.mxu0 0.0
    %1555 = vmatpush1.msra.mxu0 0.0
    %1556 = vmatprep.subr.mxu0 0.0
    %1557 = vmatpush1.msra.mxu0 0.0
    %1558 = vmatprep.subr.mxu0 0.0
    %1559 = vmatpush1.msra.mxu0 0.0
    %1560 = vmatprep.subr.mxu0 0.0
    %1561 = vmatpush1.msra.mxu0 0.0
    %1562 = vmatprep.subr.mxu0 0.0
    %1563 = vmatpush1.msra.mxu0 0.0
    %1564 = vmatprep.subr.mxu0 0.0
    %1565 = vmatpush1.msra.mxu0 0.0
    %1566 = vmatprep.subr.mxu0 0.0
    %1567 = vmatpush1.msra.mxu0 0.0
    %1568 = vmatprep.subr.mxu0 0.0
    %1569 = vmatpush1.msra.mxu0 0.0
    %1570 = vmatprep.subr.mxu0 0.0
    %1571 = vmatpush1.msra.mxu0 0.0
    %1572 = vmatprep.subr.mxu0 0.0
    %1573 = vmatpush1.msra.mxu0 0.0
    %1574 = vmatprep.subr.mxu0 0.0
    %1575 = vmatpush1.msra.mxu0 0.0
    %1576 = vmatprep.subr.mxu0 0.0
    %1577 = vmatpush1.msra.mxu0 0.0
    %1578 = vmatprep.subr.mxu0 0.0
    %1579 = vmatpush1.msra.mxu0 0.0
    %1580 = vmatprep.subr.mxu0 0.0
    %1581 = vmatpush1.msra.mxu0 0.0
    %1582 = vmatprep.subr.mxu0 0.0
    %1583 = vmatpush1.msra.mxu0 0.0
    %1584 = vmatprep.subr.mxu0 0.0
    %1585 = vmatpush1.msra.mxu0 0.0
    %1586 = vmatprep.subr.mxu0 0.0
    %1587 = vmatpush1.msra.mxu0 0.0
    %1588 = vmatprep.subr.mxu0 0.0
    %1589 = vmatpush1.msra.mxu0 0.0
    %1590 = vmatprep.subr.mxu0 0.0
    %1591 = vmatpush1.msra.mxu0 0.0
    %1592 = vmatprep.subr.mxu0 0.0
    %1593 = vmatpush1.msra.mxu0 0.0
    %1594 = vmatprep.mubr.f32.mxu0 0.0
    %1595 = vmatmul.mubr.f32.gmra.mrb[0].mxu0 %v1528
    %v1596 = vpop.f32.mrb[0].mxu0
    %v1597 = vadd.f32 %v1525, %v1596
    %v1598 = vpop.f32.mrb[0].mxu0
    %1599 = vdwg.mxu0
    %v1600 = vmul.f32 %v1597, %v38
    %v1601 = vtanh.pop %v1600
    %v1602 = vmul.f32 %v1601, 0.5
    %v1603 = vadd.f32 %v1602, 0.5
    %v1604 = vsel %vm37, %v1601, %v1603
    %v1605 = vmul.f32 %v1604, %v913
    %1607 = vrot.lane.b32.xlu0 %v1604, 64
    %v1608 = vpop.permute.xlu0 %1607
    %v1610 = vmul.f32 %v1604, %v1608
    %1612 = vrot.lane.b32.xlu0 %v1610, 32
    %v1613 = vpop.permute.xlu0 %1612
    %v1615 = vadd.f32 %v1605, %v1613
    %v1616 = vtanh.pop %v1615
    %1618 = vrot.lane.b32.xlu0 %v1616, 64
    %v1619 = vpop.permute.xlu0 %1618
    %v1621 = vmul.f32 %v1604, %v1619
    %1623 = vrot.lane.b32.xlu0 %v1621, 32
    %v1624 = vpop.permute.xlu0 %1623
    %1626 = vrot.lane.b32.xlu0 %v1037, 64
    %v1627 = vpop.permute.xlu0 %1626
    %v1629 = vsel %vm69, %v1624, %v1627
    %v1630 = vld [vmem:[%s195] sm:$0xff]
    %v1631 = vld [vmem:[%s195 + $0x8] sm:$0xff]
    %v1632 = vld [vmem:[%s195 + $0x10] sm:$0xff]
    %v1633 = vld [vmem:[%s195 + $0x18] sm:$0xff]
    %v1634 = vld [vmem:[%s195 + $0x20] sm:$0xff]
    %v1635 = vld [vmem:[%s195 + $0x28] sm:$0xff]
    %v1636 = vld [vmem:[%s195 + $0x30] sm:$0xff]
    %v1637 = vld [vmem:[%s195 + $0x38] sm:$0xff]
    %v1638 = vld [vmem:[%s204] sm:$0x1]
    %v1640 = vlaneseq
    %v1641 = vshrl.u32 %v1640, 7
    %v1642 = vsub.s32 0, %v1641
    %v1643 = vrot.slane %v1638, %v1642
    %v1646 = vsel %vm86, %v1629, 0
    %1648 = vmatprep.subr.mxu0 0.0
    %1649 = vmatpush1.msra.mxu0 %v1630
    %1650 = vmatprep.subr.mxu0 0.0
    %1651 = vmatpush1.msra.mxu0 %v1631
    %1652 = vmatprep.subr.mxu0 0.0
    %1653 = vmatpush1.msra.mxu0 %v1632
    %1654 = vmatprep.subr.mxu0 0.0
    %1655 = vmatpush1.msra.mxu0 %v1633
    %1656 = vmatprep.subr.mxu0 0.0
    %1657 = vmatpush1.msra.mxu0 %v1634
    %1658 = vmatprep.subr.mxu0 0.0
    %1659 = vmatpush1.msra.mxu0 %v1635
    %1660 = vmatprep.subr.mxu0 0.0
    %1661 = vmatpush1.msra.mxu0 %v1636
    %1662 = vmatprep.subr.mxu0 0.0
    %1663 = vmatpush1.msra.mxu0 %v1637
    %1664 = vmatprep.subr.mxu0 0.0
    %1665 = vmatpush1.msra.mxu0 0.0
    %1666 = vmatprep.subr.mxu0 0.0
    %1667 = vmatpush1.msra.mxu0 0.0
    %1668 = vmatprep.subr.mxu0 0.0
    %1669 = vmatpush1.msra.mxu0 0.0
    %1670 = vmatprep.subr.mxu0 0.0
    %1671 = vmatpush1.msra.mxu0 0.0
    %1672 = vmatprep.subr.mxu0 0.0
    %1673 = vmatpush1.msra.mxu0 0.0
    %1674 = vmatprep.subr.mxu0 0.0
    %1675 = vmatpush1.msra.mxu0 0.0
    %1676 = vmatprep.subr.mxu0 0.0
    %1677 = vmatpush1.msra.mxu0 0.0
    %1678 = vmatprep.subr.mxu0 0.0
    %1679 = vmatpush1.msra.mxu0 0.0
    %1680 = vmatprep.subr.mxu0 0.0
    %1681 = vmatpush1.msra.mxu0 0.0
    %1682 = vmatprep.subr.mxu0 0.0
    %1683 = vmatpush1.msra.mxu0 0.0
    %1684 = vmatprep.subr.mxu0 0.0
    %1685 = vmatpush1.msra.mxu0 0.0
    %1686 = vmatprep.subr.mxu0 0.0
    %1687 = vmatpush1.msra.mxu0 0.0
    %1688 = vmatprep.subr.mxu0 0.0
    %1689 = vmatpush1.msra.mxu0 0.0
    %1690 = vmatprep.subr.mxu0 0.0
    %1691 = vmatpush1.msra.mxu0 0.0
    %1692 = vmatprep.subr.mxu0 0.0
    %1693 = vmatpush1.msra.mxu0 0.0
    %1694 = vmatprep.subr.mxu0 0.0
    %1695 = vmatpush1.msra.mxu0 0.0
    %1696 = vmatprep.subr.mxu0 0.0
    %1697 = vmatpush1.msra.mxu0 0.0
    %1698 = vmatprep.subr.mxu0 0.0
    %1699 = vmatpush1.msra.mxu0 0.0
    %1700 = vmatprep.subr.mxu0 0.0
    %1701 = vmatpush1.msra.mxu0 0.0
    %1702 = vmatprep.subr.mxu0 0.0
    %1703 = vmatpush1.msra.mxu0 0.0
    %1704 = vmatprep.subr.mxu0 0.0
    %1705 = vmatpush1.msra.mxu0 0.0
    %1706 = vmatprep.subr.mxu0 0.0
    %1707 = vmatpush1.msra.mxu0 0.0
    %1708 = vmatprep.subr.mxu0 0.0
    %1709 = vmatpush1.msra.mxu0 0.0
    %1710 = vmatprep.subr.mxu0 0.0
    %1711 = vmatpush1.msra.mxu0 0.0
    %1712 = vmatprep.mubr.f32.mxu0 0.0
    %1713 = vmatmul.mubr.f32.gmra.mrb[0].mxu0 %v1646
    %v1714 = vpop.f32.mrb[0].mxu0
    %v1715 = vadd.f32 %v1643, %v1714
    %v1716 = vpop.f32.mrb[0].mxu0
    %1717 = vdwg.mxu0
    %v1718 = vmul.f32 %v1715, %v38
    %v1719 = vtanh.pop %v1718
    %v1720 = vmul.f32 %v1719, 0.5
    %v1721 = vadd.f32 %v1720, 0.5
    %v1722 = vsel %vm37, %v1719, %v1721
    %v1723 = vmul.f32 %v1722, %v1031
    %1725 = vrot.lane.b32.xlu0 %v1722, 64
    %v1726 = vpop.permute.xlu0 %1725
    %v1728 = vmul.f32 %v1722, %v1726
    %1730 = vrot.lane.b32.xlu0 %v1728, 32
    %v1731 = vpop.permute.xlu0 %1730
    %v1733 = vadd.f32 %v1723, %v1731
    %v1734 = vtanh.pop %v1733
    %1736 = vrot.lane.b32.xlu0 %v1734, 64
    %v1737 = vpop.permute.xlu0 %1736
    %v1739 = vmul.f32 %v1722, %v1737
    %1741 = vrot.lane.b32.xlu0 %v1739, 32
    %v1742 = vpop.permute.xlu0 %1741
    %1744 = vrot.lane.b32.xlu0 %v1155, 64
    %v1745 = vpop.permute.xlu0 %1744
    %v1747 = vsel %vm69, %v1742, %v1745
    %v1748 = vld [vmem:[%s320] sm:$0xff]
    %v1749 = vld [vmem:[%s320 + $0x8] sm:$0xff]
    %v1750 = vld [vmem:[%s320 + $0x10] sm:$0xff]
    %v1751 = vld [vmem:[%s320 + $0x18] sm:$0xff]
    %v1752 = vld [vmem:[%s320 + $0x20] sm:$0xff]
    %v1753 = vld [vmem:[%s320 + $0x28] sm:$0xff]
    %v1754 = vld [vmem:[%s320 + $0x30] sm:$0xff]
    %v1755 = vld [vmem:[%s320 + $0x38] sm:$0xff]
    %v1756 = vld [vmem:[%s329] sm:$0x1]
    %v1758 = vlaneseq
    %v1759 = vshrl.u32 %v1758, 7
    %v1760 = vsub.s32 0, %v1759
    %v1761 = vrot.slane %v1756, %v1760
    %v1764 = vsel %vm86, %v1747, 0
    %1766 = vmatprep.subr.mxu0 0.0
    %1767 = vmatpush1.msra.mxu0 %v1748
    %1768 = vmatprep.subr.mxu0 0.0
    %1769 = vmatpush1.msra.mxu0 %v1749
    %1770 = vmatprep.subr.mxu0 0.0
    %1771 = vmatpush1.msra.mxu0 %v1750
    %1772 = vmatprep.subr.mxu0 0.0
    %1773 = vmatpush1.msra.mxu0 %v1751
    %1774 = vmatprep.subr.mxu0 0.0
    %1775 = vmatpush1.msra.mxu0 %v1752
    %1776 = vmatprep.subr.mxu0 0.0
    %1777 = vmatpush1.msra.mxu0 %v1753
    %1778 = vmatprep.subr.mxu0 0.0
    %1779 = vmatpush1.msra.mxu0 %v1754
    %1780 = vmatprep.subr.mxu0 0.0
    %1781 = vmatpush1.msra.mxu0 %v1755
    %1782 = vmatprep.subr.mxu0 0.0
    %1783 = vmatpush1.msra.mxu0 0.0
    %1784 = vmatprep.subr.mxu0 0.0
    %1785 = vmatpush1.msra.mxu0 0.0
    %1786 = vmatprep.subr.mxu0 0.0
    %1787 = vmatpush1.msra.mxu0 0.0
    %1788 = vmatprep.subr.mxu0 0.0
    %1789 = vmatpush1.msra.mxu0 0.0
    %1790 = vmatprep.subr.mxu0 0.0
    %1791 = vmatpush1.msra.mxu0 0.0
    %1792 = vmatprep.subr.mxu0 0.0
    %1793 = vmatpush1.msra.mxu0 0.0
    %1794 = vmatprep.subr.mxu0 0.0
    %1795 = vmatpush1.msra.mxu0 0.0
    %1796 = vmatprep.subr.mxu0 0.0
    %1797 = vmatpush1.msra.mxu0 0.0
    %1798 = vmatprep.subr.mxu0 0.0
    %1799 = vmatpush1.msra.mxu0 0.0
    %1800 = vmatprep.subr.mxu0 0.0
    %1801 = vmatpush1.msra.mxu0 0.0
    %1802 = vmatprep.subr.mxu0 0.0
    %1803 = vmatpush1.msra.mxu0 0.0
    %1804 = vmatprep.subr.mxu0 0.0
    %1805 = vmatpush1.msra.mxu0 0.0
    %1806 = vmatprep.subr.mxu0 0.0
    %1807 = vmatpush1.msra.mxu0 0.0
    %1808 = vmatprep.subr.mxu0 0.0
    %1809 = vmatpush1.msra.mxu0 0.0
    %1810 = vmatprep.subr.mxu0 0.0
    %1811 = vmatpush1.msra.mxu0 0.0
    %1812 = vmatprep.subr.mxu0 0.0
    %1813 = vmatpush1.msra.mxu0 0.0
    %1814 = vmatprep.subr.mxu0 0.0
    %1815 = vmatpush1.msra.mxu0 0.0
    %1816 = vmatprep.subr.mxu0 0.0
    %1817 = vmatpush1.msra.mxu0 0.0
    %1818 = vmatprep.subr.mxu0 0.0
    %1819 = vmatpush1.msra.mxu0 0.0
    %1820 = vmatprep.subr.mxu0 0.0
    %1821 = vmatpush1.msra.mxu0 0.0
    %1822 = vmatprep.subr.mxu0 0.0
    %1823 = vmatpush1.msra.mxu0 0.0
    %1824 = vmatprep.subr.mxu0 0.0
    %1825 = vmatpush1.msra.mxu0 0.0
    %1826 = vmatprep.subr.mxu0 0.0
    %1827 = vmatpush1.msra.mxu0 0.0
    %1828 = vmatprep.subr.mxu0 0.0
    %1829 = vmatpush1.msra.mxu0 0.0
    %1830 = vmatprep.mubr.f32.mxu0 0.0
    %1831 = vmatmul.mubr.f32.gmra.mrb[0].mxu0 %v1764
    %v1832 = vpop.f32.mrb[0].mxu0
    %v1833 = vadd.f32 %v1761, %v1832
    %v1834 = vpop.f32.mrb[0].mxu0
    %1835 = vdwg.mxu0
    %v1836 = vmul.f32 %v1833, %v38
    %v1837 = vtanh.pop %v1836
    %v1838 = vmul.f32 %v1837, 0.5
    %v1839 = vadd.f32 %v1838, 0.5
    %v1840 = vsel %vm37, %v1837, %v1839
    %v1841 = vmul.f32 %v1840, %v1149
    %1843 = vrot.lane.b32.xlu0 %v1840, 64
    %v1844 = vpop.permute.xlu0 %1843
    %v1846 = vmul.f32 %v1840, %v1844
    %1848 = vrot.lane.b32.xlu0 %v1846, 32
    %v1849 = vpop.permute.xlu0 %1848
    %v1851 = vadd.f32 %v1841, %v1849
    %v1852 = vtanh.pop %v1851
    %1854 = vrot.lane.b32.xlu0 %v1852, 64
    %v1855 = vpop.permute.xlu0 %1854
    %v1857 = vmul.f32 %v1840, %v1855
    %1859 = vrot.lane.b32.xlu0 %v1857, 32
    %v1860 = vpop.permute.xlu0 %1859
    %v1862 = vsel %vm69, %v1860, %v1415
    %v1863 = vld [vmem:[%s445] sm:$0xff]
    %v1864 = vld [vmem:[%s445 + $0x8] sm:$0xff]
    %v1865 = vld [vmem:[%s445 + $0x10] sm:$0xff]
    %v1866 = vld [vmem:[%s445 + $0x18] sm:$0xff]
    %v1867 = vld [vmem:[%s445 + $0x20] sm:$0xff]
    %v1868 = vld [vmem:[%s445 + $0x28] sm:$0xff]
    %v1869 = vld [vmem:[%s445 + $0x30] sm:$0xff]
    %v1870 = vld [vmem:[%s445 + $0x38] sm:$0xff]
    %v1871 = vld [vmem:[%s454] sm:$0x1]
    %v1873 = vlaneseq
    %v1874 = vshrl.u32 %v1873, 7
    %v1875 = vsub.s32 0, %v1874
    %v1876 = vrot.slane %v1871, %v1875
    %v1879 = vsel %vm86, %v1862, 0
    %1881 = vmatprep.subr.mxu0 0.0
    %1882 = vmatpush1.msra.mxu0 %v1863
    %1883 = vmatprep.subr.mxu0 0.0
    %1884 = vmatpush1.msra.mxu0 %v1864
    %1885 = vmatprep.subr.mxu0 0.0
    %1886 = vmatpush1.msra.mxu0 %v1865
    %1887 = vmatprep.subr.mxu0 0.0
    %1888 = vmatpush1.msra.mxu0 %v1866
    %1889 = vmatprep.subr.mxu0 0.0
    %1890 = vmatpush1.msra.mxu0 %v1867
    %1891 = vmatprep.subr.mxu0 0.0
    %1892 = vmatpush1.msra.mxu0 %v1868
    %1893 = vmatprep.subr.mxu0 0.0
    %1894 = vmatpush1.msra.mxu0 %v1869
    %1895 = vmatprep.subr.mxu0 0.0
    %1896 = vmatpush1.msra.mxu0 %v1870
    %1897 = vmatprep.subr.mxu0 0.0
    %1898 = vmatpush1.msra.mxu0 0.0
    %1899 = vmatprep.subr.mxu0 0.0
    %1900 = vmatpush1.msra.mxu0 0.0
    %1901 = vmatprep.subr.mxu0 0.0
    %1902 = vmatpush1.msra.mxu0 0.0
    %1903 = vmatprep.subr.mxu0 0.0
    %1904 = vmatpush1.msra.mxu0 0.0
    %1905 = vmatprep.subr.mxu0 0.0
    %1906 = vmatpush1.msra.mxu0 0.0
    %1907 = vmatprep.subr.mxu0 0.0
    %1908 = vmatpush1.msra.mxu0 0.0
    %1909 = vmatprep.subr.mxu0 0.0
    %1910 = vmatpush1.msra.mxu0 0.0
    %1911 = vmatprep.subr.mxu0 0.0
    %1912 = vmatpush1.msra.mxu0 0.0
    %1913 = vmatprep.subr.mxu0 0.0
    %1914 = vmatpush1.msra.mxu0 0.0
    %1915 = vmatprep.subr.mxu0 0.0
    %1916 = vmatpush1.msra.mxu0 0.0
    %1917 = vmatprep.subr.mxu0 0.0
    %1918 = vmatpush1.msra.mxu0 0.0
    %1919 = vmatprep.subr.mxu0 0.0
    %1920 = vmatpush1.msra.mxu0 0.0
    %1921 = vmatprep.subr.mxu0 0.0
    %1922 = vmatpush1.msra.mxu0 0.0
    %1923 = vmatprep.subr.mxu0 0.0
    %1924 = vmatpush1.msra.mxu0 0.0
    %1925 = vmatprep.subr.mxu0 0.0
    %1926 = vmatpush1.msra.mxu0 0.0
    %1927 = vmatprep.subr.mxu0 0.0
    %1928 = vmatpush1.msra.mxu0 0.0
    %1929 = vmatprep.subr.mxu0 0.0
    %1930 = vmatpush1.msra.mxu0 0.0
    %1931 = vmatprep.subr.mxu0 0.0
    %1932 = vmatpush1.msra.mxu0 0.0
    %1933 = vmatprep.subr.mxu0 0.0
    %1934 = vmatpush1.msra.mxu0 0.0
    %1935 = vmatprep.subr.mxu0 0.0
    %1936 = vmatpush1.msra.mxu0 0.0
    %1937 = vmatprep.subr.mxu0 0.0
    %1938 = vmatpush1.msra.mxu0 0.0
    %1939 = vmatprep.subr.mxu0 0.0
    %1940 = vmatpush1.msra.mxu0 0.0
    %1941 = vmatprep.subr.mxu0 0.0
    %1942 = vmatpush1.msra.mxu0 0.0
    %1943 = vmatprep.subr.mxu0 0.0
    %1944 = vmatpush1.msra.mxu0 0.0
    %1945 = vmatprep.mubr.f32.mxu0 0.0
    %1946 = vmatmul.mubr.f32.gmra.mrb[0].mxu0 %v1879
    %v1947 = vpop.f32.mrb[0].mxu0
    %v1948 = vadd.f32 %v1876, %v1947
    %v1949 = vpop.f32.mrb[0].mxu0
    %1950 = vdwg.mxu0
    %v1951 = vmul.f32 %v1948, %v38
    %v1952 = vtanh.pop %v1951
    %v1953 = vmul.f32 %v1952, 0.5
    %v1954 = vadd.f32 %v1953, 0.5
    %v1955 = vsel %vm37, %v1952, %v1954
    %v1956 = vmul.f32 %v1955, %v1264
    %1958 = vrot.lane.b32.xlu0 %v1955, 64
    %v1959 = vpop.permute.xlu0 %1958
    %v1961 = vmul.f32 %v1955, %v1959
    %1963 = vrot.lane.b32.xlu0 %v1961, 32
    %v1964 = vpop.permute.xlu0 %1963
    %v1966 = vadd.f32 %v1956, %v1964
    %v1967 = vtanh.pop %v1966
    %1969 = vrot.lane.b32.xlu0 %v1967, 64
    %v1970 = vpop.permute.xlu0 %1969
    %v1972 = vmul.f32 %v1955, %v1970
    %v1975 = vunpack.c.l.s4 1966171168
    %v1976 = vunpack.c.0.s8 %v1975
    %v1977 = vlaneseq
    %v1978 = vshrl.u32 %v1977, 7
    %v1979 = vsub.s32 %v1976, %v1978
    %v1980 = vrot.slane %v1972, %v1979
    %v1981 = vcombine.high %v1980, %v1980
    %v1983 = vunpack.c.l.s4 1966171168
    %v1984 = vunpack.c.0.s8 %v1983
    %v1985 = vlaneseq
    %v1986 = vshrl.u32 %v1985, 7
    %v1987 = vsub.s32 %v1984, %v1986
    %v1988 = vrot.slane %v1980, %v1987
    %v1990 = vunpack.c.l.s4 1966171168
    %v1991 = vunpack.c.0.s8 %v1990
    %v1992 = vlaneseq
    %v1993 = vshrl.u32 %v1992, 7
    %v1994 = vsub.s32 %v1991, %v1993
    %v1995 = vrot.slane %v1981, %v1994
    %v1996 = vlaneseq
    %v1997 = vshrl.u32 %v1996, 7
    %v1998 = vsub.s32 0, %v1997
    %v1999 = vrot.slane %v1988, %v1998
    %v2000 = vlaneseq
    %v2001 = vshrl.u32 %v2000, 7
    %v2002 = vsub.s32 0, %v2001
    %v2003 = vrot.slane %v1995, %v2002
    %2004 = vrot.lane.b32.xlu0 %v1999, 32
    %v2005 = vpop.permute.xlu0 %2004
    %2006 = vrot.lane.b32.xlu0 %v2003, 32
    %v2007 = vpop.permute.xlu0 %2006
    %v2010 = vmul.f32 %v39, %v2005
    %v2011 = vmul.f32 %v40, %v2007
    %v2012 = vsel %vm69, %v2010, 0.0
    %2013 = vadd.xlane.f32.xlu0 %v2012
    %v2014 = vpop.xlane.xlu0 %2013
    %v2015 = vsel %vm69, %v2011, 0.0
    %2016 = vadd.xlane.f32.xlu0 %v2015
    %v2017 = vpop.xlane.xlu0 %2016
    %v2020 = vlaneseq
    %v2021 = vshrl.u32 %v2020, 7
    %v2022 = vsub.s32 %v34, %v2021
    %v2023 = vrot.slane %v2014, %v2022
    %v2024 = vlaneseq
    %v2025 = vshrl.u32 %v2024, 7
    %v2026 = vsub.s32 %v34, %v2025
    %v2027 = vrot.slane %v2017, %v2026
    %v2028 = vsel %vm616, %v2027, %v2023
    %v2030 = vsel %vm619, %v2028, -inf
    %2031 = vmax.xlane.f32.xlu0 %v2030
    %v2032 = vpop.xlane.xlu0 %2031
    %v2034 = vlaneseq
    %v2035 = vshrl.u32 %v2034, 7
    %v2036 = vsub.s32 0, %v2035
    %v2037 = vrot.slane %v2032, %v2036
    %v2038 = vlaneseq
    %v2039 = vshrl.u32 %v2038, 7
    %v2040 = vsub.s32 1, %v2039
    %v2041 = vrot.slane %v2032, %v2040
    %v2044 = vsub.f32 %v2014, %v2037
    %v2045 = vsub.f32 %v2017, %v2041
    %v2046 = vmul.f32 %v2044, 1.442695
    %v2047 = vpow.pop %v2046
    %v2048 = vmul.f32 %v2045, 1.442695
    %v2049 = vpow.pop %v2048
    %2052 = vset.pattern.permute.xlu0 0
    %2053 = vperm.xlu0 %2052, %v2047
    %v2054 = vpop.permute.xlu0 %2053
    %2055 = vset.pattern.permute.xlu0 0
    %2056 = vperm.xlu0 %2055, %v2049
    %v2057 = vpop.permute.xlu0 %2056
    %v2058 = vlaneseq
    %v2059 = vshrl.u32 %v2058, 7
    %v2060 = vsub.s32 %v34, %v2059
    %v2061 = vrot.slane %v2054, %v2060
    %v2062 = vlaneseq
    %v2063 = vshrl.u32 %v2062, 7
    %v2064 = vsub.s32 %v34, %v2063
    %v2065 = vrot.slane %v2057, %v2064
    %v2066 = vsel %vm616, %v2065, %v2061
    %v2068 = vsel %vm619, %v2066, 0.0
    %2069 = vadd.xlane.f32.xlu0 %v2068
    %v2070 = vpop.xlane.xlu0 %2069
    %v2072 = vlaneseq
    %v2073 = vshrl.u32 %v2072, 7
    %v2074 = vsub.s32 0, %v2073
    %v2075 = vrot.slane %v2070, %v2074
    %v2076 = vlaneseq
    %v2077 = vshrl.u32 %v2076, 7
    %v2078 = vsub.s32 1, %v2077
    %v2079 = vrot.slane %v2070, %v2078
    %v2082 = vrcp.pop %v2075
    %v2083 = vmul.f32 %v2047, %v2082
    %v2084 = vrcp.pop %v2079
    %v2085 = vmul.f32 %v2049, %v2084
    %2087 = vset.pattern.permute.xlu0 0
    %2088 = vperm.xlu0 %2087, %v2083
    %v2089 = vpop.permute.xlu0 %2088
    %2092 = vset.pattern.permute.xlu0 0
    %2093 = vperm.xlu0 %2092, %v2085
    %v2094 = vpop.permute.xlu0 %2093
    %v2096 = vmul.f32 %v39, %v2089
    %v2097 = vmul.f32 %v40, %v2094
    %v2098 = vsel %vm69, %v2096, 0.0
    %v2099 = vrot.slane %v2098, 4
    %v2100 = vadd.f32 %v2098, %v2099
    %v2101 = vrot.slane %v2100, 2
    %v2102 = vadd.f32 %v2100, %v2101
    %v2103 = vrot.slane %v2102, 1
    %v2104 = vadd.f32 %v2102, %v2103
    %v2105 = vsel %vm69, %v2097, 0.0
    %v2106 = vrot.slane %v2105, 4
    %v2107 = vadd.f32 %v2105, %v2106
    %v2108 = vrot.slane %v2107, 2
    %v2109 = vadd.f32 %v2107, %v2108
    %v2110 = vrot.slane %v2109, 1
    %v2111 = vadd.f32 %v2109, %v2110
    %v2114 = vsel %vm616, %v2111, %v2104
    %2116 = vrot.lane.b32.xlu0 %v1972, 64
    %v2117 = vpop.permute.xlu0 %2116
    %v2119 = vsel %vm69, %v2114, %v2117
    %v2121 = vsel %vm86, %v2119, 0
    %2123 = vmatprep.subr.mxu0 0.0
    %2124 = vmatpush1.msra.mxu0 %v41
    %2125 = vmatprep.subr.mxu0 0.0
    %2126 = vmatpush1.msra.mxu0 %v42
    %2127 = vmatprep.subr.mxu0 0.0
    %2128 = vmatpush1.msra.mxu0 %v43
    %2129 = vmatprep.subr.mxu0 0.0
    %2130 = vmatpush1.msra.mxu0 %v44
    %2131 = vmatprep.subr.mxu0 0.0
    %2132 = vmatpush1.msra.mxu0 %v45
    %2133 = vmatprep.subr.mxu0 0.0
    %2134 = vmatpush1.msra.mxu0 %v46
    %2135 = vmatprep.subr.mxu0 0.0
    %2136 = vmatpush1.msra.mxu0 %v47
    %2137 = vmatprep.subr.mxu0 0.0
    %2138 = vmatpush1.msra.mxu0 %v48
    %2139 = vmatprep.subr.mxu0 0.0
    %2140 = vmatpush1.msra.mxu0 0.0
    %2141 = vmatprep.subr.mxu0 0.0
    %2142 = vmatpush1.msra.mxu0 0.0
    %2143 = vmatprep.subr.mxu0 0.0
    %2144 = vmatpush1.msra.mxu0 0.0
    %2145 = vmatprep.subr.mxu0 0.0
    %2146 = vmatpush1.msra.mxu0 0.0
    %2147 = vmatprep.subr.mxu0 0.0
    %2148 = vmatpush1.msra.mxu0 0.0
    %2149 = vmatprep.subr.mxu0 0.0
    %2150 = vmatpush1.msra.mxu0 0.0
    %2151 = vmatprep.subr.mxu0 0.0
    %2152 = vmatpush1.msra.mxu0 0.0
    %2153 = vmatprep.subr.mxu0 0.0
    %2154 = vmatpush1.msra.mxu0 0.0
    %2155 = vmatprep.subr.mxu0 0.0
    %2156 = vmatpush1.msra.mxu0 0.0
    %2157 = vmatprep.subr.mxu0 0.0
    %2158 = vmatpush1.msra.mxu0 0.0
    %2159 = vmatprep.subr.mxu0 0.0
    %2160 = vmatpush1.msra.mxu0 0.0
    %2161 = vmatprep.subr.mxu0 0.0
    %2162 = vmatpush1.msra.mxu0 0.0
    %2163 = vmatprep.subr.mxu0 0.0
    %2164 = vmatpush1.msra.mxu0 0.0
    %2165 = vmatprep.subr.mxu0 0.0
    %2166 = vmatpush1.msra.mxu0 0.0
    %2167 = vmatprep.subr.mxu0 0.0
    %2168 = vmatpush1.msra.mxu0 0.0
    %2169 = vmatprep.subr.mxu0 0.0
    %2170 = vmatpush1.msra.mxu0 0.0
    %2171 = vmatprep.subr.mxu0 0.0
    %2172 = vmatpush1.msra.mxu0 0.0
    %2173 = vmatprep.subr.mxu0 0.0
    %2174 = vmatpush1.msra.mxu0 0.0
    %2175 = vmatprep.subr.mxu0 0.0
    %2176 = vmatpush1.msra.mxu0 0.0
    %2177 = vmatprep.subr.mxu0 0.0
    %2178 = vmatpush1.msra.mxu0 0.0
    %2179 = vmatprep.subr.mxu0 0.0
    %2180 = vmatpush1.msra.mxu0 0.0
    %2181 = vmatprep.subr.mxu0 0.0
    %2182 = vmatpush1.msra.mxu0 0.0
    %2183 = vmatprep.subr.mxu0 0.0
    %2184 = vmatpush1.msra.mxu0 0.0
    %2185 = vmatprep.subr.mxu0 0.0
    %2186 = vmatpush1.msra.mxu0 0.0
    %2187 = vmatprep.mubr.f32.mxu0 0.0
    %2188 = vmatmul.mubr.f32.gmra.mrb[0].mxu0 %v2121
    %v2189 = vpop.f32.mrb[0].mxu0
    %v2190 = vadd.f32 %v714, %v2189
    %v2191 = vpop.f32.mrb[0].mxu0
    %2192 = vdwg.mxu0
    %v2193 = vsel %vm789, %v2190, -inf
    %2194 = vmax.xlane.f32.xlu0 %v2193
    %v2195 = vpop.xlane.xlu0 %2194
    %v2196 = vsub.f32 %v2190, %v2195
    %v2197 = vmul.f32 %v2196, 1.442695
    %v2198 = vpow.pop %v2197
    %v2199 = vsel %vm789, %v2198, 0.0
    %2200 = vadd.xlane.f32.xlu0 %v2199
    %v2201 = vpop.xlane.xlu0 %2200
    %v2202 = vlog2.pop %v2201
    %v2203 = vmul.f32 %v2202, 0.6931472
    %v2204 = vadd.f32 %v2195, %v2203
    %v2205 = vsub.f32 %v2190, %v2204
    %s2206 = scalar_lea.vmem [#allocation2], 4
    %2207 = vst [vmem:[%s2206] sm:$0x3] %v2205
    %s2208 = scalar_lea.vmem %s0, 6
    %v2209 = vld [vmem:[%s2208] sm:$0x3]
    %2210 = vrot.lane.b32.xlu0 %v1621, 64
    %v2211 = vpop.permute.xlu0 %2210
    %v2213 = vsel %vm69, %v2209, %v2211
    %v2214 = vld [vmem:[%s4] sm:$0xff]
    %v2215 = vld [vmem:[%s4 + $0x8] sm:$0xff]
    %v2216 = vld [vmem:[%s4 + $0x10] sm:$0xff]
    %v2217 = vld [vmem:[%s4 + $0x18] sm:$0xff]
    %v2218 = vld [vmem:[%s4 + $0x20] sm:$0xff]
    %v2219 = vld [vmem:[%s4 + $0x28] sm:$0xff]
    %v2220 = vld [vmem:[%s4 + $0x30] sm:$0xff]
    %v2221 = vld [vmem:[%s4 + $0x38] sm:$0xff]
    %v2222 = vld [vmem:[%s5] sm:$0x1]
    %v2224 = vlaneseq
    %v2225 = vshrl.u32 %v2224, 7
    %v2226 = vsub.s32 0, %v2225
    %v2227 = vrot.slane %v2222, %v2226
    %v2230 = vsel %vm86, %v2213, 0
    %2232 = vmatprep.subr.mxu0 0.0
    %2233 = vmatpush1.msra.mxu0 %v2214
    %2234 = vmatprep.subr.mxu0 0.0
    %2235 = vmatpush1.msra.mxu0 %v2215
    %2236 = vmatprep.subr.mxu0 0.0
    %2237 = vmatpush1.msra.mxu0 %v2216
    %2238 = vmatprep.subr.mxu0 0.0
    %2239 = vmatpush1.msra.mxu0 %v2217
    %2240 = vmatprep.subr.mxu0 0.0
    %2241 = vmatpush1.msra.mxu0 %v2218
    %2242 = vmatprep.subr.mxu0 0.0
    %2243 = vmatpush1.msra.mxu0 %v2219
    %2244 = vmatprep.subr.mxu0 0.0
    %2245 = vmatpush1.msra.mxu0 %v2220
    %2246 = vmatprep.subr.mxu0 0.0
    %2247 = vmatpush1.msra.mxu0 %v2221
    %2248 = vmatprep.subr.mxu0 0.0
    %2249 = vmatpush1.msra.mxu0 0.0
    %2250 = vmatprep.subr.mxu0 0.0
    %2251 = vmatpush1.msra.mxu0 0.0
    %2252 = vmatprep.subr.mxu0 0.0
    %2253 = vmatpush1.msra.mxu0 0.0
    %2254 = vmatprep.subr.mxu0 0.0
    %2255 = vmatpush1.msra.mxu0 0.0
    %2256 = vmatprep.subr.mxu0 0.0
    %2257 = vmatpush1.msra.mxu0 0.0
    %2258 = vmatprep.subr.mxu0 0.0
    %2259 = vmatpush1.msra.mxu0 0.0
    %2260 = vmatprep.subr.mxu0 0.0
    %2261 = vmatpush1.msra.mxu0 0.0
    %2262 = vmatprep.subr.mxu0 0.0
    %2263 = vmatpush1.msra.mxu0 0.0
    %2264 = vmatprep.subr.mxu0 0.0
    %2265 = vmatpush1.msra.mxu0 0.0
    %2266 = vmatprep.subr.mxu0 0.0
    %2267 = vmatpush1.msra.mxu0 0.0
    %2268 = vmatprep.subr.mxu0 0.0
    %2269 = vmatpush1.msra.mxu0 0.0
    %2270 = vmatprep.subr.mxu0 0.0
    %2271 = vmatpush1.msra.mxu0 0.0
    %2272 = vmatprep.subr.mxu0 0.0
    %2273 = vmatpush1.msra.mxu0 0.0
    %2274 = vmatprep.subr.mxu0 0.0
    %2275 = vmatpush1.msra.mxu0 0.0
    %2276 = vmatprep.subr.mxu0 0.0
    %2277 = vmatpush1.msra.mxu0 0.0
    %2278 = vmatprep.subr.mxu0 0.0
    %2279 = vmatpush1.msra.mxu0 0.0
    %2280 = vmatprep.subr.mxu0 0.0
    %2281 = vmatpush1.msra.mxu0 0.0
    %2282 = vmatprep.subr.mxu0 0.0
    %2283 = vmatpush1.msra.mxu0 0.0
    %2284 = vmatprep.subr.mxu0 0.0
    %2285 = vmatpush1.msra.mxu0 0.0
    %2286 = vmatprep.subr.mxu0 0.0
    %2287 = vmatpush1.msra.mxu0 0.0
    %2288 = vmatprep.subr.mxu0 0.0
    %2289 = vmatpush1.msra.mxu0 0.0
    %2290 = vmatprep.subr.mxu0 0.0
    %2291 = vmatpush1.msra.mxu0 0.0
    %2292 = vmatprep.subr.mxu0 0.0
    %2293 = vmatpush1.msra.mxu0 0.0
    %2294 = vmatprep.subr.mxu0 0.0
    %2295 = vmatpush1.msra.mxu0 0.0
    %2296 = vmatprep.mubr.f32.mxu0 0.0
    %2297 = vmatmul.mubr.f32.gmra.mrb[0].mxu0 %v2230
    %v2298 = vpop.f32.mrb[0].mxu0
    %v2299 = vadd.f32 %v2227, %v2298
    %v2300 = vpop.f32.mrb[0].mxu0
    %2301 = vdwg.mxu0
    %v2302 = vmul.f32 %v2299, %v38
    %v2303 = vtanh.pop %v2302
    %v2304 = vmul.f32 %v2303, 0.5
    %v2305 = vadd.f32 %v2304, 0.5
    %v2306 = vsel %vm37, %v2303, %v2305
    %v2307 = vmul.f32 %v2306, %v1615
    %2309 = vrot.lane.b32.xlu0 %v2306, 64
    %v2310 = vpop.permute.xlu0 %2309
    %v2312 = vmul.f32 %v2306, %v2310
    %2314 = vrot.lane.b32.xlu0 %v2312, 32
    %v2315 = vpop.permute.xlu0 %2314
    %v2317 = vadd.f32 %v2307, %v2315
    %v2318 = vtanh.pop %v2317
    %2320 = vrot.lane.b32.xlu0 %v2318, 64
    %v2321 = vpop.permute.xlu0 %2320
    %v2323 = vmul.f32 %v2306, %v2321
    %2325 = vrot.lane.b32.xlu0 %v2323, 32
    %v2326 = vpop.permute.xlu0 %2325
    %2328 = vrot.lane.b32.xlu0 %v1739, 64
    %v2329 = vpop.permute.xlu0 %2328
    %v2331 = vsel %vm69, %v2326, %v2329
    %v2332 = vld [vmem:[%s195] sm:$0xff]
    %v2333 = vld [vmem:[%s195 + $0x8] sm:$0xff]
    %v2334 = vld [vmem:[%s195 + $0x10] sm:$0xff]
    %v2335 = vld [vmem:[%s195 + $0x18] sm:$0xff]
    %v2336 = vld [vmem:[%s195 + $0x20] sm:$0xff]
    %v2337 = vld [vmem:[%s195 + $0x28] sm:$0xff]
    %v2338 = vld [vmem:[%s195 + $0x30] sm:$0xff]
    %v2339 = vld [vmem:[%s195 + $0x38] sm:$0xff]
    %v2340 = vld [vmem:[%s204] sm:$0x1]
    %v2342 = vlaneseq
    %v2343 = vshrl.u32 %v2342, 7
    %v2344 = vsub.s32 0, %v2343
    %v2345 = vrot.slane %v2340, %v2344
    %v2348 = vsel %vm86, %v2331, 0
    %2350 = vmatprep.subr.mxu0 0.0
    %2351 = vmatpush1.msra.mxu0 %v2332
    %2352 = vmatprep.subr.mxu0 0.0
    %2353 = vmatpush1.msra.mxu0 %v2333
    %2354 = vmatprep.subr.mxu0 0.0
    %2355 = vmatpush1.msra.mxu0 %v2334
    %2356 = vmatprep.subr.mxu0 0.0
    %2357 = vmatpush1.msra.mxu0 %v2335
    %2358 = vmatprep.subr.mxu0 0.0
    %2359 = vmatpush1.msra.mxu0 %v2336
    %2360 = vmatprep.subr.mxu0 0.0
    %2361 = vmatpush1.msra.mxu0 %v2337
    %2362 = vmatprep.subr.mxu0 0.0
    %2363 = vmatpush1.msra.mxu0 %v2338
    %2364 = vmatprep.subr.mxu0 0.0
    %2365 = vmatpush1.msra.mxu0 %v2339
    %2366 = vmatprep.subr.mxu0 0.0
    %2367 = vmatpush1.msra.mxu0 0.0
    %2368 = vmatprep.subr.mxu0 0.0
    %2369 = vmatpush1.msra.mxu0 0.0
    %2370 = vmatprep.subr.mxu0 0.0
    %2371 = vmatpush1.msra.mxu0 0.0
    %2372 = vmatprep.subr.mxu0 0.0
    %2373 = vmatpush1.msra.mxu0 0.0
    %2374 = vmatprep.subr.mxu0 0.0
    %2375 = vmatpush1.msra.mxu0 0.0
    %2376 = vmatprep.subr.mxu0 0.0
    %2377 = vmatpush1.msra.mxu0 0.0
    %2378 = vmatprep.subr.mxu0 0.0
    %2379 = vmatpush1.msra.mxu0 0.0
    %2380 = vmatprep.subr.mxu0 0.0
    %2381 = vmatpush1.msra.mxu0 0.0
    %2382 = vmatprep.subr.mxu0 0.0
    %2383 = vmatpush1.msra.mxu0 0.0
    %2384 = vmatprep.subr.mxu0 0.0
    %2385 = vmatpush1.msra.mxu0 0.0
    %2386 = vmatprep.subr.mxu0 0.0
    %2387 = vmatpush1.msra.mxu0 0.0
    %2388 = vmatprep.subr.mxu0 0.0
    %2389 = vmatpush1.msra.mxu0 0.0
    %2390 = vmatprep.subr.mxu0 0.0
    %2391 = vmatpush1.msra.mxu0 0.0
    %2392 = vmatprep.subr.mxu0 0.0
    %2393 = vmatpush1.msra.mxu0 0.0
    %2394 = vmatprep.subr.mxu0 0.0
    %2395 = vmatpush1.msra.mxu0 0.0
    %2396 = vmatprep.subr.mxu0 0.0
    %2397 = vmatpush1.msra.mxu0 0.0
    %2398 = vmatprep.subr.mxu0 0.0
    %2399 = vmatpush1.msra.mxu0 0.0
    %2400 = vmatprep.subr.mxu0 0.0
    %2401 = vmatpush1.msra.mxu0 0.0
    %2402 = vmatprep.subr.mxu0 0.0
    %2403 = vmatpush1.msra.mxu0 0.0
    %2404 = vmatprep.subr.mxu0 0.0
    %2405 = vmatpush1.msra.mxu0 0.0
    %2406 = vmatprep.subr.mxu0 0.0
    %2407 = vmatpush1.msra.mxu0 0.0
    %2408 = vmatprep.subr.mxu0 0.0
    %2409 = vmatpush1.msra.mxu0 0.0
    %2410 = vmatprep.subr.mxu0 0.0
    %2411 = vmatpush1.msra.mxu0 0.0
    %2412 = vmatprep.subr.mxu0 0.0
    %2413 = vmatpush1.msra.mxu0 0.0
    %2414 = vmatprep.mubr.f32.mxu0 0.0
    %2415 = vmatmul.mubr.f32.gmra.mrb[0].mxu0 %v2348
    %v2416 = vpop.f32.mrb[0].mxu0
    %v2417 = vadd.f32 %v2345, %v2416
    %v2418 = vpop.f32.mrb[0].mxu0
    %2419 = vdwg.mxu0
    %v2420 = vmul.f32 %v2417, %v38
    %v2421 = vtanh.pop %v2420
    %v2422 = vmul.f32 %v2421, 0.5
    %v2423 = vadd.f32 %v2422, 0.5
    %v2424 = vsel %vm37, %v2421, %v2423
    %v2425 = vmul.f32 %v2424, %v1733
    %2427 = vrot.lane.b32.xlu0 %v2424, 64
    %v2428 = vpop.permute.xlu0 %2427
    %v2430 = vmul.f32 %v2424, %v2428
    %2432 = vrot.lane.b32.xlu0 %v2430, 32
    %v2433 = vpop.permute.xlu0 %2432
    %v2435 = vadd.f32 %v2425, %v2433
    %v2436 = vtanh.pop %v2435
    %2438 = vrot.lane.b32.xlu0 %v2436, 64
    %v2439 = vpop.permute.xlu0 %2438
    %v2441 = vmul.f32 %v2424, %v2439
    %2443 = vrot.lane.b32.xlu0 %v2441, 32
    %v2444 = vpop.permute.xlu0 %2443
    %2446 = vrot.lane.b32.xlu0 %v1857, 64
    %v2447 = vpop.permute.xlu0 %2446
    %v2449 = vsel %vm69, %v2444, %v2447
    %v2450 = vld [vmem:[%s320] sm:$0xff]
    %v2451 = vld [vmem:[%s320 + $0x8] sm:$0xff]
    %v2452 = vld [vmem:[%s320 + $0x10] sm:$0xff]
    %v2453 = vld [vmem:[%s320 + $0x18] sm:$0xff]
    %v2454 = vld [vmem:[%s320 + $0x20] sm:$0xff]
    %v2455 = vld [vmem:[%s320 + $0x28] sm:$0xff]
    %v2456 = vld [vmem:[%s320 + $0x30] sm:$0xff]
    %v2457 = vld [vmem:[%s320 + $0x38] sm:$0xff]
    %v2458 = vld [vmem:[%s329] sm:$0x1]
    %v2460 = vlaneseq
    %v2461 = vshrl.u32 %v2460, 7
    %v2462 = vsub.s32 0, %v2461
    %v2463 = vrot.slane %v2458, %v2462
    %v2466 = vsel %vm86, %v2449, 0
    %2468 = vmatprep.subr.mxu0 0.0
    %2469 = vmatpush1.msra.mxu0 %v2450
    %2470 = vmatprep.subr.mxu0 0.0
    %2471 = vmatpush1.msra.mxu0 %v2451
    %2472 = vmatprep.subr.mxu0 0.0
    %2473 = vmatpush1.msra.mxu0 %v2452
    %2474 = vmatprep.subr.mxu0 0.0
    %2475 = vmatpush1.msra.mxu0 %v2453
    %2476 = vmatprep.subr.mxu0 0.0
    %2477 = vmatpush1.msra.mxu0 %v2454
    %2478 = vmatprep.subr.mxu0 0.0
    %2479 = vmatpush1.msra.mxu0 %v2455
    %2480 = vmatprep.subr.mxu0 0.0
    %2481 = vmatpush1.msra.mxu0 %v2456
    %2482 = vmatprep.subr.mxu0 0.0
    %2483 = vmatpush1.msra.mxu0 %v2457
    %2484 = vmatprep.subr.mxu0 0.0
    %2485 = vmatpush1.msra.mxu0 0.0
    %2486 = vmatprep.subr.mxu0 0.0
    %2487 = vmatpush1.msra.mxu0 0.0
    %2488 = vmatprep.subr.mxu0 0.0
    %2489 = vmatpush1.msra.mxu0 0.0
    %2490 = vmatprep.subr.mxu0 0.0
    %2491 = vmatpush1.msra.mxu0 0.0
    %2492 = vmatprep.subr.mxu0 0.0
    %2493 = vmatpush1.msra.mxu0 0.0
    %2494 = vmatprep.subr.mxu0 0.0
    %2495 = vmatpush1.msra.mxu0 0.0
    %2496 = vmatprep.subr.mxu0 0.0
    %2497 = vmatpush1.msra.mxu0 0.0
    %2498 = vmatprep.subr.mxu0 0.0
    %2499 = vmatpush1.msra.mxu0 0.0
    %2500 = vmatprep.subr.mxu0 0.0
    %2501 = vmatpush1.msra.mxu0 0.0
    %2502 = vmatprep.subr.mxu0 0.0
    %2503 = vmatpush1.msra.mxu0 0.0
    %2504 = vmatprep.subr.mxu0 0.0
    %2505 = vmatpush1.msra.mxu0 0.0
    %2506 = vmatprep.subr.mxu0 0.0
    %2507 = vmatpush1.msra.mxu0 0.0
    %2508 = vmatprep.subr.mxu0 0.0
    %2509 = vmatpush1.msra.mxu0 0.0
    %2510 = vmatprep.subr.mxu0 0.0
    %2511 = vmatpush1.msra.mxu0 0.0
    %2512 = vmatprep.subr.mxu0 0.0
    %2513 = vmatpush1.msra.mxu0 0.0
    %2514 = vmatprep.subr.mxu0 0.0
    %2515 = vmatpush1.msra.mxu0 0.0
    %2516 = vmatprep.subr.mxu0 0.0
    %2517 = vmatpush1.msra.mxu0 0.0
    %2518 = vmatprep.subr.mxu0 0.0
    %2519 = vmatpush1.msra.mxu0 0.0
    %2520 = vmatprep.subr.mxu0 0.0
    %2521 = vmatpush1.msra.mxu0 0.0
    %2522 = vmatprep.subr.mxu0 0.0
    %2523 = vmatpush1.msra.mxu0 0.0
    %2524 = vmatprep.subr.mxu0 0.0
    %2525 = vmatpush1.msra.mxu0 0.0
    %2526 = vmatprep.subr.mxu0 0.0
    %2527 = vmatpush1.msra.mxu0 0.0
    %2528 = vmatprep.subr.mxu0 0.0
    %2529 = vmatpush1.msra.mxu0 0.0
    %2530 = vmatprep.subr.mxu0 0.0
    %2531 = vmatpush1.msra.mxu0 0.0
    %2532 = vmatprep.mubr.f32.mxu0 0.0
    %2533 = vmatmul.mubr.f32.gmra.mrb[0].mxu0 %v2466
    %v2534 = vpop.f32.mrb[0].mxu0
    %v2535 = vadd.f32 %v2463, %v2534
    %v2536 = vpop.f32.mrb[0].mxu0
    %2537 = vdwg.mxu0
    %v2538 = vmul.f32 %v2535, %v38
    %v2539 = vtanh.pop %v2538
    %v2540 = vmul.f32 %v2539, 0.5
    %v2541 = vadd.f32 %v2540, 0.5
    %v2542 = vsel %vm37, %v2539, %v2541
    %v2543 = vmul.f32 %v2542, %v1851
    %2545 = vrot.lane.b32.xlu0 %v2542, 64
    %v2546 = vpop.permute.xlu0 %2545
    %v2548 = vmul.f32 %v2542, %v2546
    %2550 = vrot.lane.b32.xlu0 %v2548, 32
    %v2551 = vpop.permute.xlu0 %2550
    %v2553 = vadd.f32 %v2543, %v2551
    %v2554 = vtanh.pop %v2553
    %2556 = vrot.lane.b32.xlu0 %v2554, 64
    %v2557 = vpop.permute.xlu0 %2556
    %v2559 = vmul.f32 %v2542, %v2557
    %2561 = vrot.lane.b32.xlu0 %v2559, 32
    %v2562 = vpop.permute.xlu0 %2561
    %v2564 = vsel %vm69, %v2562, %v2117
    %v2565 = vld [vmem:[%s445] sm:$0xff]
    %v2566 = vld [vmem:[%s445 + $0x8] sm:$0xff]
    %v2567 = vld [vmem:[%s445 + $0x10] sm:$0xff]
    %v2568 = vld [vmem:[%s445 + $0x18] sm:$0xff]
    %v2569 = vld [vmem:[%s445 + $0x20] sm:$0xff]
    %v2570 = vld [vmem:[%s445 + $0x28] sm:$0xff]
    %v2571 = vld [vmem:[%s445 + $0x30] sm:$0xff]
    %v2572 = vld [vmem:[%s445 + $0x38] sm:$0xff]
    %v2573 = vld [vmem:[%s454] sm:$0x1]
    %v2575 = vlaneseq
    %v2576 = vshrl.u32 %v2575, 7
    %v2577 = vsub.s32 0, %v2576
    %v2578 = vrot.slane %v2573, %v2577
    %v2581 = vsel %vm86, %v2564, 0
    %2583 = vmatprep.subr.mxu0 0.0
    %2584 = vmatpush1.msra.mxu0 %v2565
    %2585 = vmatprep.subr.mxu0 0.0
    %2586 = vmatpush1.msra.mxu0 %v2566
    %2587 = vmatprep.subr.mxu0 0.0
    %2588 = vmatpush1.msra.mxu0 %v2567
    %2589 = vmatprep.subr.mxu0 0.0
    %2590 = vmatpush1.msra.mxu0 %v2568
    %2591 = vmatprep.subr.mxu0 0.0
    %2592 = vmatpush1.msra.mxu0 %v2569
    %2593 = vmatprep.subr.mxu0 0.0
    %2594 = vmatpush1.msra.mxu0 %v2570
    %2595 = vmatprep.subr.mxu0 0.0
    %2596 = vmatpush1.msra.mxu0 %v2571
    %2597 = vmatprep.subr.mxu0 0.0
    %2598 = vmatpush1.msra.mxu0 %v2572
    %2599 = vmatprep.subr.mxu0 0.0
    %2600 = vmatpush1.msra.mxu0 0.0
    %2601 = vmatprep.subr.mxu0 0.0
    %2602 = vmatpush1.msra.mxu0 0.0
    %2603 = vmatprep.subr.mxu0 0.0
    %2604 = vmatpush1.msra.mxu0 0.0
    %2605 = vmatprep.subr.mxu0 0.0
    %2606 = vmatpush1.msra.mxu0 0.0
    %2607 = vmatprep.subr.mxu0 0.0
    %2608 = vmatpush1.msra.mxu0 0.0
    %2609 = vmatprep.subr.mxu0 0.0
    %2610 = vmatpush1.msra.mxu0 0.0
    %2611 = vmatprep.subr.mxu0 0.0
    %2612 = vmatpush1.msra.mxu0 0.0
    %2613 = vmatprep.subr.mxu0 0.0
    %2614 = vmatpush1.msra.mxu0 0.0
    %2615 = vmatprep.subr.mxu0 0.0
    %2616 = vmatpush1.msra.mxu0 0.0
    %2617 = vmatprep.subr.mxu0 0.0
    %2618 = vmatpush1.msra.mxu0 0.0
    %2619 = vmatprep.subr.mxu0 0.0
    %2620 = vmatpush1.msra.mxu0 0.0
    %2621 = vmatprep.subr.mxu0 0.0
    %2622 = vmatpush1.msra.mxu0 0.0
    %2623 = vmatprep.subr.mxu0 0.0
    %2624 = vmatpush1.msra.mxu0 0.0
    %2625 = vmatprep.subr.mxu0 0.0
    %2626 = vmatpush1.msra.mxu0 0.0
    %2627 = vmatprep.subr.mxu0 0.0
    %2628 = vmatpush1.msra.mxu0 0.0
    %2629 = vmatprep.subr.mxu0 0.0
    %2630 = vmatpush1.msra.mxu0 0.0
    %2631 = vmatprep.subr.mxu0 0.0
    %2632 = vmatpush1.msra.mxu0 0.0
    %2633 = vmatprep.subr.mxu0 0.0
    %2634 = vmatpush1.msra.mxu0 0.0
    %2635 = vmatprep.subr.mxu0 0.0
    %2636 = vmatpush1.msra.mxu0 0.0
    %2637 = vmatprep.subr.mxu0 0.0
    %2638 = vmatpush1.msra.mxu0 0.0
    %2639 = vmatprep.subr.mxu0 0.0
    %2640 = vmatpush1.msra.mxu0 0.0
    %2641 = vmatprep.subr.mxu0 0.0
    %2642 = vmatpush1.msra.mxu0 0.0
    %2643 = vmatprep.subr.mxu0 0.0
    %2644 = vmatpush1.msra.mxu0 0.0
    %2645 = vmatprep.subr.mxu0 0.0
    %2646 = vmatpush1.msra.mxu0 0.0
    %2647 = vmatprep.mubr.f32.mxu0 0.0
    %2648 = vmatmul.mubr.f32.gmra.mrb[0].mxu0 %v2581
    %v2649 = vpop.f32.mrb[0].mxu0
    %v2650 = vadd.f32 %v2578, %v2649
    %v2651 = vpop.f32.mrb[0].mxu0
    %2652 = vdwg.mxu0
    %v2653 = vmul.f32 %v2650, %v38
    %v2654 = vtanh.pop %v2653
    %v2655 = vmul.f32 %v2654, 0.5
    %v2656 = vadd.f32 %v2655, 0.5
    %v2657 = vsel %vm37, %v2654, %v2656
    %v2658 = vmul.f32 %v2657, %v1966
    %2660 = vrot.lane.b32.xlu0 %v2657, 64
    %v2661 = vpop.permute.xlu0 %2660
    %v2663 = vmul.f32 %v2657, %v2661
    %2665 = vrot.lane.b32.xlu0 %v2663, 32
    %v2666 = vpop.permute.xlu0 %2665
    %v2668 = vadd.f32 %v2658, %v2666
    %v2669 = vtanh.pop %v2668
    %2671 = vrot.lane.b32.xlu0 %v2669, 64
    %v2672 = vpop.permute.xlu0 %2671
    %v2674 = vmul.f32 %v2657, %v2672
    %v2677 = vunpack.c.l.s4 1966171168
    %v2678 = vunpack.c.0.s8 %v2677
    %v2679 = vlaneseq
    %v2680 = vshrl.u32 %v2679, 7
    %v2681 = vsub.s32 %v2678, %v2680
    %v2682 = vrot.slane %v2674, %v2681
    %v2683 = vcombine.high %v2682, %v2682
    %v2685 = vunpack.c.l.s4 1966171168
    %v2686 = vunpack.c.0.s8 %v2685
    %v2687 = vlaneseq
    %v2688 = vshrl.u32 %v2687, 7
    %v2689 = vsub.s32 %v2686, %v2688
    %v2690 = vrot.slane %v2682, %v2689
    %v2692 = vunpack.c.l.s4 1966171168
    %v2693 = vunpack.c.0.s8 %v2692
    %v2694 = vlaneseq
    %v2695 = vshrl.u32 %v2694, 7
    %v2696 = vsub.s32 %v2693, %v2695
    %v2697 = vrot.slane %v2683, %v2696
    %v2698 = vlaneseq
    %v2699 = vshrl.u32 %v2698, 7
    %v2700 = vsub.s32 0, %v2699
    %v2701 = vrot.slane %v2690, %v2700
    %v2702 = vlaneseq
    %v2703 = vshrl.u32 %v2702, 7
    %v2704 = vsub.s32 0, %v2703
    %v2705 = vrot.slane %v2697, %v2704
    %2706 = vrot.lane.b32.xlu0 %v2701, 32
    %v2707 = vpop.permute.xlu0 %2706
    %2708 = vrot.lane.b32.xlu0 %v2705, 32
    %v2709 = vpop.permute.xlu0 %2708
    %v2712 = vmul.f32 %v39, %v2707
    %v2713 = vmul.f32 %v40, %v2709
    %v2714 = vsel %vm69, %v2712, 0.0
    %2715 = vadd.xlane.f32.xlu0 %v2714
    %v2716 = vpop.xlane.xlu0 %2715
    %v2717 = vsel %vm69, %v2713, 0.0
    %2718 = vadd.xlane.f32.xlu0 %v2717
    %v2719 = vpop.xlane.xlu0 %2718
    %v2722 = vlaneseq
    %v2723 = vshrl.u32 %v2722, 7
    %v2724 = vsub.s32 %v34, %v2723
    %v2725 = vrot.slane %v2716, %v2724
    %v2726 = vlaneseq
    %v2727 = vshrl.u32 %v2726, 7
    %v2728 = vsub.s32 %v34, %v2727
    %v2729 = vrot.slane %v2719, %v2728
    %v2730 = vsel %vm616, %v2729, %v2725
    %v2732 = vsel %vm619, %v2730, -inf
    %2733 = vmax.xlane.f32.xlu0 %v2732
    %v2734 = vpop.xlane.xlu0 %2733
    %v2736 = vlaneseq
    %v2737 = vshrl.u32 %v2736, 7
    %v2738 = vsub.s32 0, %v2737
    %v2739 = vrot.slane %v2734, %v2738
    %v2740 = vlaneseq
    %v2741 = vshrl.u32 %v2740, 7
    %v2742 = vsub.s32 1, %v2741
    %v2743 = vrot.slane %v2734, %v2742
    %v2746 = vsub.f32 %v2716, %v2739
    %v2747 = vsub.f32 %v2719, %v2743
    %v2748 = vmul.f32 %v2746, 1.442695
    %v2749 = vpow.pop %v2748
    %v2750 = vmul.f32 %v2747, 1.442695
    %v2751 = vpow.pop %v2750
    %2754 = vset.pattern.permute.xlu0 0
    %2755 = vperm.xlu0 %2754, %v2749
    %v2756 = vpop.permute.xlu0 %2755
    %2757 = vset.pattern.permute.xlu0 0
    %2758 = vperm.xlu0 %2757, %v2751
    %v2759 = vpop.permute.xlu0 %2758
    %v2760 = vlaneseq
    %v2761 = vshrl.u32 %v2760, 7
    %v2762 = vsub.s32 %v34, %v2761
    %v2763 = vrot.slane %v2756, %v2762
    %v2764 = vlaneseq
    %v2765 = vshrl.u32 %v2764, 7
    %v2766 = vsub.s32 %v34, %v2765
    %v2767 = vrot.slane %v2759, %v2766
    %v2768 = vsel %vm616, %v2767, %v2763
    %v2770 = vsel %vm619, %v2768, 0.0
    %2771 = vadd.xlane.f32.xlu0 %v2770
    %v2772 = vpop.xlane.xlu0 %2771
    %v2774 = vlaneseq
    %v2775 = vshrl.u32 %v2774, 7
    %v2776 = vsub.s32 0, %v2775
    %v2777 = vrot.slane %v2772, %v2776
    %v2778 = vlaneseq
    %v2779 = vshrl.u32 %v2778, 7
    %v2780 = vsub.s32 1, %v2779
    %v2781 = vrot.slane %v2772, %v2780
    %v2784 = vrcp.pop %v2777
    %v2785 = vmul.f32 %v2749, %v2784
    %v2786 = vrcp.pop %v2781
    %v2787 = vmul.f32 %v2751, %v2786
    %2789 = vset.pattern.permute.xlu0 0
    %2790 = vperm.xlu0 %2789, %v2785
    %v2791 = vpop.permute.xlu0 %2790
    %2794 = vset.pattern.permute.xlu0 0
    %2795 = vperm.xlu0 %2794, %v2787
    %v2796 = vpop.permute.xlu0 %2795
    %v2798 = vmul.f32 %v39, %v2791
    %v2799 = vmul.f32 %v40, %v2796
    %v2800 = vsel %vm69, %v2798, 0.0
    %v2801 = vrot.slane %v2800, 4
    %v2802 = vadd.f32 %v2800, %v2801
    %v2803 = vrot.slane %v2802, 2
    %v2804 = vadd.f32 %v2802, %v2803
    %v2805 = vrot.slane %v2804, 1
    %v2806 = vadd.f32 %v2804, %v2805
    %v2807 = vsel %vm69, %v2799, 0.0
    %v2808 = vrot.slane %v2807, 4
    %v2809 = vadd.f32 %v2807, %v2808
    %v2810 = vrot.slane %v2809, 2
    %v2811 = vadd.f32 %v2809, %v2810
    %v2812 = vrot.slane %v2811, 1
    %v2813 = vadd.f32 %v2811, %v2812
    %v2816 = vsel %vm616, %v2813, %v2806
    %2818 = vrot.lane.b32.xlu0 %v2674, 64
    %v2819 = vpop.permute.xlu0 %2818
    %v2821 = vsel %vm69, %v2816, %v2819
    %v2823 = vsel %vm86, %v2821, 0
    %2825 = vmatprep.subr.mxu0 0.0
    %2826 = vmatpush1.msra.mxu0 %v41
    %2827 = vmatprep.subr.mxu0 0.0
    %2828 = vmatpush1.msra.mxu0 %v42
    %2829 = vmatprep.subr.mxu0 0.0
    %2830 = vmatpush1.msra.mxu0 %v43
    %2831 = vmatprep.subr.mxu0 0.0
    %2832 = vmatpush1.msra.mxu0 %v44
    %2833 = vmatprep.subr.mxu0 0.0
    %2834 = vmatpush1.msra.mxu0 %v45
    %2835 = vmatprep.subr.mxu0 0.0
    %2836 = vmatpush1.msra.mxu0 %v46
    %2837 = vmatprep.subr.mxu0 0.0
    %2838 = vmatpush1.msra.mxu0 %v47
    %2839 = vmatprep.subr.mxu0 0.0
    %2840 = vmatpush1.msra.mxu0 %v48
    %2841 = vmatprep.subr.mxu0 0.0
    %2842 = vmatpush1.msra.mxu0 0.0
    %2843 = vmatprep.subr.mxu0 0.0
    %2844 = vmatpush1.msra.mxu0 0.0
    %2845 = vmatprep.subr.mxu0 0.0
    %2846 = vmatpush1.msra.mxu0 0.0
    %2847 = vmatprep.subr.mxu0 0.0
    %2848 = vmatpush1.msra.mxu0 0.0
    %2849 = vmatprep.subr.mxu0 0.0
    %2850 = vmatpush1.msra.mxu0 0.0
    %2851 = vmatprep.subr.mxu0 0.0
    %2852 = vmatpush1.msra.mxu0 0.0
    %2853 = vmatprep.subr.mxu0 0.0
    %2854 = vmatpush1.msra.mxu0 0.0
    %2855 = vmatprep.subr.mxu0 0.0
    %2856 = vmatpush1.msra.mxu0 0.0
    %2857 = vmatprep.subr.mxu0 0.0
    %2858 = vmatpush1.msra.mxu0 0.0
    %2859 = vmatprep.subr.mxu0 0.0
    %2860 = vmatpush1.msra.mxu0 0.0
    %2861 = vmatprep.subr.mxu0 0.0
    %2862 = vmatpush1.msra.mxu0 0.0
    %2863 = vmatprep.subr.mxu0 0.0
    %2864 = vmatpush1.msra.mxu0 0.0
    %2865 = vmatprep.subr.mxu0 0.0
    %2866 = vmatpush1.msra.mxu0 0.0
    %2867 = vmatprep.subr.mxu0 0.0
    %2868 = vmatpush1.msra.mxu0 0.0
    %2869 = vmatprep.subr.mxu0 0.0
    %2870 = vmatpush1.msra.mxu0 0.0
    %2871 = vmatprep.subr.mxu0 0.0
    %2872 = vmatpush1.msra.mxu0 0.0
    %2873 = vmatprep.subr.mxu0 0.0
    %2874 = vmatpush1.msra.mxu0 0.0
    %2875 = vmatprep.subr.mxu0 0.0
    %2876 = vmatpush1.msra.mxu0 0.0
    %2877 = vmatprep.subr.mxu0 0.0
    %2878 = vmatpush1.msra.mxu0 0.0
    %2879 = vmatprep.subr.mxu0 0.0
    %2880 = vmatpush1.msra.mxu0 0.0
    %2881 = vmatprep.subr.mxu0 0.0
    %2882 = vmatpush1.msra.mxu0 0.0
    %2883 = vmatprep.subr.mxu0 0.0
    %2884 = vmatpush1.msra.mxu0 0.0
    %2885 = vmatprep.subr.mxu0 0.0
    %2886 = vmatpush1.msra.mxu0 0.0
    %2887 = vmatprep.subr.mxu0 0.0
    %2888 = vmatpush1.msra.mxu0 0.0
    %2889 = vmatprep.mubr.f32.mxu0 0.0
    %2890 = vmatmul.mubr.f32.gmra.mrb[0].mxu0 %v2823
    %v2891 = vpop.f32.mrb[0].mxu0
    %v2892 = vadd.f32 %v714, %v2891
    %v2893 = vpop.f32.mrb[0].mxu0
    %2894 = vdwg.mxu0
    %v2895 = vsel %vm789, %v2892, -inf
    %2896 = vmax.xlane.f32.xlu0 %v2895
    %v2897 = vpop.xlane.xlu0 %2896
    %v2898 = vsub.f32 %v2892, %v2897
    %v2899 = vmul.f32 %v2898, 1.442695
    %v2900 = vpow.pop %v2899
    %v2901 = vsel %vm789, %v2900, 0.0
    %2902 = vadd.xlane.f32.xlu0 %v2901
    %v2903 = vpop.xlane.xlu0 %2902
    %v2904 = vlog2.pop %v2903
    %v2905 = vmul.f32 %v2904, 0.6931472
    %v2906 = vadd.f32 %v2897, %v2905
    %v2907 = vsub.f32 %v2892, %v2906
    %s2908 = scalar_lea.vmem [#allocation2], 6
    %2909 = vst [vmem:[%s2908] sm:$0x3] %v2907
    %s2910 = scalar_lea.vmem %s0, 8
    %v2911 = vld [vmem:[%s2910] sm:$0x3]
    %2912 = vrot.lane.b32.xlu0 %v2323, 64
    %v2913 = vpop.permute.xlu0 %2912
    %v2915 = vsel %vm69, %v2911, %v2913
    %v2916 = vld [vmem:[%s4] sm:$0xff]
    %v2917 = vld [vmem:[%s4 + $0x8] sm:$0xff]
    %v2918 = vld [vmem:[%s4 + $0x10] sm:$0xff]
    %v2919 = vld [vmem:[%s4 + $0x18] sm:$0xff]
    %v2920 = vld [vmem:[%s4 + $0x20] sm:$0xff]
    %v2921 = vld [vmem:[%s4 + $0x28] sm:$0xff]
    %v2922 = vld [vmem:[%s4 + $0x30] sm:$0xff]
    %v2923 = vld [vmem:[%s4 + $0x38] sm:$0xff]
    %v2924 = vld [vmem:[%s5] sm:$0x1]
    %v2926 = vlaneseq
    %v2927 = vshrl.u32 %v2926, 7
    %v2928 = vsub.s32 0, %v2927
    %v2929 = vrot.slane %v2924, %v2928
    %v2932 = vsel %vm86, %v2915, 0
    %2934 = vmatprep.subr.mxu0 0.0
    %2935 = vmatpush1.msra.mxu0 %v2916
    %2936 = vmatprep.subr.mxu0 0.0
    %2937 = vmatpush1.msra.mxu0 %v2917
    %2938 = vmatprep.subr.mxu0 0.0
    %2939 = vmatpush1.msra.mxu0 %v2918
    %2940 = vmatprep.subr.mxu0 0.0
    %2941 = vmatpush1.msra.mxu0 %v2919
    %2942 = vmatprep.subr.mxu0 0.0
    %2943 = vmatpush1.msra.mxu0 %v2920
    %2944 = vmatprep.subr.mxu0 0.0
    %2945 = vmatpush1.msra.mxu0 %v2921
    %2946 = vmatprep.subr.mxu0 0.0
    %2947 = vmatpush1.msra.mxu0 %v2922
    %2948 = vmatprep.subr.mxu0 0.0
    %2949 = vmatpush1.msra.mxu0 %v2923
    %2950 = vmatprep.subr.mxu0 0.0
    %2951 = vmatpush1.msra.mxu0 0.0
    %2952 = vmatprep.subr.mxu0 0.0
    %2953 = vmatpush1.msra.mxu0 0.0
    %2954 = vmatprep.subr.mxu0 0.0
    %2955 = vmatpush1.msra.mxu0 0.0
    %2956 = vmatprep.subr.mxu0 0.0
    %2957 = vmatpush1.msra.mxu0 0.0
    %2958 = vmatprep.subr.mxu0 0.0
    %2959 = vmatpush1.msra.mxu0 0.0
    %2960 = vmatprep.subr.mxu0 0.0
    %2961 = vmatpush1.msra.mxu0 0.0
    %2962 = vmatprep.subr.mxu0 0.0
    %2963 = vmatpush1.msra.mxu0 0.0
    %2964 = vmatprep.subr.mxu0 0.0
    %2965 = vmatpush1.msra.mxu0 0.0
    %2966 = vmatprep.subr.mxu0 0.0
    %2967 = vmatpush1.msra.mxu0 0.0
    %2968 = vmatprep.subr.mxu0 0.0
    %2969 = vmatpush1.msra.mxu0 0.0
    %2970 = vmatprep.subr.mxu0 0.0
    %2971 = vmatpush1.msra.mxu0 0.0
    %2972 = vmatprep.subr.mxu0 0.0
    %2973 = vmatpush1.msra.mxu0 0.0
    %2974 = vmatprep.subr.mxu0 0.0
    %2975 = vmatpush1.msra.mxu0 0.0
    %2976 = vmatprep.subr.mxu0 0.0
    %2977 = vmatpush1.msra.mxu0 0.0
    %2978 = vmatprep.subr.mxu0 0.0
    %2979 = vmatpush1.msra.mxu0 0.0
    %2980 = vmatprep.subr.mxu0 0.0
    %2981 = vmatpush1.msra.mxu0 0.0
    %2982 = vmatprep.subr.mxu0 0.0
    %2983 = vmatpush1.msra.mxu0 0.0
    %2984 = vmatprep.subr.mxu0 0.0
    %2985 = vmatpush1.msra.mxu0 0.0
    %2986 = vmatprep.subr.mxu0 0.0
    %2987 = vmatpush1.msra.mxu0 0.0
    %2988 = vmatprep.subr.mxu0 0.0
    %2989 = vmatpush1.msra.mxu0 0.0
    %2990 = vmatprep.subr.mxu0 0.0
    %2991 = vmatpush1.msra.mxu0 0.0
    %2992 = vmatprep.subr.mxu0 0.0
    %2993 = vmatpush1.msra.mxu0 0.0
    %2994 = vmatprep.subr.mxu0 0.0
    %2995 = vmatpush1.msra.mxu0 0.0
    %2996 = vmatprep.subr.mxu0 0.0
    %2997 = vmatpush1.msra.mxu0 0.0
    %2998 = vmatprep.mubr.f32.mxu0 0.0
    %2999 = vmatmul.mubr.f32.gmra.mrb[0].mxu0 %v2932
    %v3000 = vpop.f32.mrb[0].mxu0
    %v3001 = vadd.f32 %v2929, %v3000
    %v3002 = vpop.f32.mrb[0].mxu0
    %3003 = vdwg.mxu0
    %v3004 = vmul.f32 %v3001, %v38
    %v3005 = vtanh.pop %v3004
    %v3006 = vmul.f32 %v3005, 0.5
    %v3007 = vadd.f32 %v3006, 0.5
    %v3008 = vsel %vm37, %v3005, %v3007
    %v3009 = vmul.f32 %v3008, %v2317
    %3011 = vrot.lane.b32.xlu0 %v3008, 64
    %v3012 = vpop.permute.xlu0 %3011
    %v3014 = vmul.f32 %v3008, %v3012
    %3016 = vrot.lane.b32.xlu0 %v3014, 32
    %v3017 = vpop.permute.xlu0 %3016
    %v3019 = vadd.f32 %v3009, %v3017
    %v3020 = vtanh.pop %v3019
    %3022 = vrot.lane.b32.xlu0 %v3020, 64
    %v3023 = vpop.permute.xlu0 %3022
    %v3025 = vmul.f32 %v3008, %v3023
    %3027 = vrot.lane.b32.xlu0 %v3025, 32
    %v3028 = vpop.permute.xlu0 %3027
    %3030 = vrot.lane.b32.xlu0 %v2441, 64
    %v3031 = vpop.permute.xlu0 %3030
    %v3033 = vsel %vm69, %v3028, %v3031
    %v3034 = vld [vmem:[%s195] sm:$0xff]
    %v3035 = vld [vmem:[%s195 + $0x8] sm:$0xff]
    %v3036 = vld [vmem:[%s195 + $0x10] sm:$0xff]
    %v3037 = vld [vmem:[%s195 + $0x18] sm:$0xff]
    %v3038 = vld [vmem:[%s195 + $0x20] sm:$0xff]
    %v3039 = vld [vmem:[%s195 + $0x28] sm:$0xff]
    %v3040 = vld [vmem:[%s195 + $0x30] sm:$0xff]
    %v3041 = vld [vmem:[%s195 + $0x38] sm:$0xff]
    %v3042 = vld [vmem:[%s204] sm:$0x1]
    %v3044 = vlaneseq
    %v3045 = vshrl.u32 %v3044, 7
    %v3046 = vsub.s32 0, %v3045
    %v3047 = vrot.slane %v3042, %v3046
    %v3050 = vsel %vm86, %v3033, 0
    %3052 = vmatprep.subr.mxu0 0.0
    %3053 = vmatpush1.msra.mxu0 %v3034
    %3054 = vmatprep.subr.mxu0 0.0
    %3055 = vmatpush1.msra.mxu0 %v3035
    %3056 = vmatprep.subr.mxu0 0.0
    %3057 = vmatpush1.msra.mxu0 %v3036
    %3058 = vmatprep.subr.mxu0 0.0
    %3059 = vmatpush1.msra.mxu0 %v3037
    %3060 = vmatprep.subr.mxu0 0.0
    %3061 = vmatpush1.msra.mxu0 %v3038
    %3062 = vmatprep.subr.mxu0 0.0
    %3063 = vmatpush1.msra.mxu0 %v3039
    %3064 = vmatprep.subr.mxu0 0.0
    %3065 = vmatpush1.msra.mxu0 %v3040
    %3066 = vmatprep.subr.mxu0 0.0
    %3067 = vmatpush1.msra.mxu0 %v3041
    %3068 = vmatprep.subr.mxu0 0.0
    %3069 = vmatpush1.msra.mxu0 0.0
    %3070 = vmatprep.subr.mxu0 0.0
    %3071 = vmatpush1.msra.mxu0 0.0
    %3072 = vmatprep.subr.mxu0 0.0
    %3073 = vmatpush1.msra.mxu0 0.0
    %3074 = vmatprep.subr.mxu0 0.0
    %3075 = vmatpush1.msra.mxu0 0.0
    %3076 = vmatprep.subr.mxu0 0.0
    %3077 = vmatpush1.msra.mxu0 0.0
    %3078 = vmatprep.subr.mxu0 0.0
    %3079 = vmatpush1.msra.mxu0 0.0
    %3080 = vmatprep.subr.mxu0 0.0
    %3081 = vmatpush1.msra.mxu0 0.0
    %3082 = vmatprep.subr.mxu0 0.0
    %3083 = vmatpush1.msra.mxu0 0.0
    %3084 = vmatprep.subr.mxu0 0.0
    %3085 = vmatpush1.msra.mxu0 0.0
    %3086 = vmatprep.subr.mxu0 0.0
    %3087 = vmatpush1.msra.mxu0 0.0
    %3088 = vmatprep.subr.mxu0 0.0
    %3089 = vmatpush1.msra.mxu0 0.0
    %3090 = vmatprep.subr.mxu0 0.0
    %3091 = vmatpush1.msra.mxu0 0.0
    %3092 = vmatprep.subr.mxu0 0.0
    %3093 = vmatpush1.msra.mxu0 0.0
    %3094 = vmatprep.subr.mxu0 0.0
    %3095 = vmatpush1.msra.mxu0 0.0
    %3096 = vmatprep.subr.mxu0 0.0
    %3097 = vmatpush1.msra.mxu0 0.0
    %3098 = vmatprep.subr.mxu0 0.0
    %3099 = vmatpush1.msra.mxu0 0.0
    %3100 = vmatprep.subr.mxu0 0.0
    %3101 = vmatpush1.msra.mxu0 0.0
    %3102 = vmatprep.subr.mxu0 0.0
    %3103 = vmatpush1.msra.mxu0 0.0
    %3104 = vmatprep.subr.mxu0 0.0
    %3105 = vmatpush1.msra.mxu0 0.0
    %3106 = vmatprep.subr.mxu0 0.0
    %3107 = vmatpush1.msra.mxu0 0.0
    %3108 = vmatprep.subr.mxu0 0.0
    %3109 = vmatpush1.msra.mxu0 0.0
    %3110 = vmatprep.subr.mxu0 0.0
    %3111 = vmatpush1.msra.mxu0 0.0
    %3112 = vmatprep.subr.mxu0 0.0
    %3113 = vmatpush1.msra.mxu0 0.0
    %3114 = vmatprep.subr.mxu0 0.0
    %3115 = vmatpush1.msra.mxu0 0.0
    %3116 = vmatprep.mubr.f32.mxu0 0.0
    %3117 = vmatmul.mubr.f32.gmra.mrb[0].mxu0 %v3050
    %v3118 = vpop.f32.mrb[0].mxu0
    %v3119 = vadd.f32 %v3047, %v3118
    %v3120 = vpop.f32.mrb[0].mxu0
    %3121 = vdwg.mxu0
    %v3122 = vmul.f32 %v3119, %v38
    %v3123 = vtanh.pop %v3122
    %v3124 = vmul.f32 %v3123, 0.5
    %v3125 = vadd.f32 %v3124, 0.5
    %v3126 = vsel %vm37, %v3123, %v3125
    %v3127 = vmul.f32 %v3126, %v2435
    %3129 = vrot.lane.b32.xlu0 %v3126, 64
    %v3130 = vpop.permute.xlu0 %3129
    %v3132 = vmul.f32 %v3126, %v3130
    %3134 = vrot.lane.b32.xlu0 %v3132, 32
    %v3135 = vpop.permute.xlu0 %3134
    %v3137 = vadd.f32 %v3127, %v3135
    %v3138 = vtanh.pop %v3137
    %3140 = vrot.lane.b32.xlu0 %v3138, 64
    %v3141 = vpop.permute.xlu0 %3140
    %v3143 = vmul.f32 %v3126, %v3141
    %3145 = vrot.lane.b32.xlu0 %v3143, 32
    %v3146 = vpop.permute.xlu0 %3145
    %3148 = vrot.lane.b32.xlu0 %v2559, 64
    %v3149 = vpop.permute.xlu0 %3148
    %v3151 = vsel %vm69, %v3146, %v3149
    %v3152 = vld [vmem:[%s320] sm:$0xff]
    %v3153 = vld [vmem:[%s320 + $0x8] sm:$0xff]
    %v3154 = vld [vmem:[%s320 + $0x10] sm:$0xff]
    %v3155 = vld [vmem:[%s320 + $0x18] sm:$0xff]
    %v3156 = vld [vmem:[%s320 + $0x20] sm:$0xff]
    %v3157 = vld [vmem:[%s320 + $0x28] sm:$0xff]
    %v3158 = vld [vmem:[%s320 + $0x30] sm:$0xff]
    %v3159 = vld [vmem:[%s320 + $0x38] sm:$0xff]
    %v3160 = vld [vmem:[%s329] sm:$0x1]
    %v3162 = vlaneseq
    %v3163 = vshrl.u32 %v3162, 7
    %v3164 = vsub.s32 0, %v3163
    %v3165 = vrot.slane %v3160, %v3164
    %v3168 = vsel %vm86, %v3151, 0
    %3170 = vmatprep.subr.mxu0 0.0
    %3171 = vmatpush1.msra.mxu0 %v3152
    %3172 = vmatprep.subr.mxu0 0.0
    %3173 = vmatpush1.msra.mxu0 %v3153
    %3174 = vmatprep.subr.mxu0 0.0
    %3175 = vmatpush1.msra.mxu0 %v3154
    %3176 = vmatprep.subr.mxu0 0.0
    %3177 = vmatpush1.msra.mxu0 %v3155
    %3178 = vmatprep.subr.mxu0 0.0
    %3179 = vmatpush1.msra.mxu0 %v3156
    %3180 = vmatprep.subr.mxu0 0.0
    %3181 = vmatpush1.msra.mxu0 %v3157
    %3182 = vmatprep.subr.mxu0 0.0
    %3183 = vmatpush1.msra.mxu0 %v3158
    %3184 = vmatprep.subr.mxu0 0.0
    %3185 = vmatpush1.msra.mxu0 %v3159
    %3186 = vmatprep.subr.mxu0 0.0
    %3187 = vmatpush1.msra.mxu0 0.0
    %3188 = vmatprep.subr.mxu0 0.0
    %3189 = vmatpush1.msra.mxu0 0.0
    %3190 = vmatprep.subr.mxu0 0.0
    %3191 = vmatpush1.msra.mxu0 0.0
    %3192 = vmatprep.subr.mxu0 0.0
    %3193 = vmatpush1.msra.mxu0 0.0
    %3194 = vmatprep.subr.mxu0 0.0
    %3195 = vmatpush1.msra.mxu0 0.0
    %3196 = vmatprep.subr.mxu0 0.0
    %3197 = vmatpush1.msra.mxu0 0.0
    %3198 = vmatprep.subr.mxu0 0.0
    %3199 = vmatpush1.msra.mxu0 0.0
    %3200 = vmatprep.subr.mxu0 0.0
    %3201 = vmatpush1.msra.mxu0 0.0
    %3202 = vmatprep.subr.mxu0 0.0
    %3203 = vmatpush1.msra.mxu0 0.0
    %3204 = vmatprep.subr.mxu0 0.0
    %3205 = vmatpush1.msra.mxu0 0.0
    %3206 = vmatprep.subr.mxu0 0.0
    %3207 = vmatpush1.msra.mxu0 0.0
    %3208 = vmatprep.subr.mxu0 0.0
    %3209 = vmatpush1.msra.mxu0 0.0
    %3210 = vmatprep.subr.mxu0 0.0
    %3211 = vmatpush1.msra.mxu0 0.0
    %3212 = vmatprep.subr.mxu0 0.0
    %3213 = vmatpush1.msra.mxu0 0.0
    %3214 = vmatprep.subr.mxu0 0.0
    %3215 = vmatpush1.msra.mxu0 0.0
    %3216 = vmatprep.subr.mxu0 0.0
    %3217 = vmatpush1.msra.mxu0 0.0
    %3218 = vmatprep.subr.mxu0 0.0
    %3219 = vmatpush1.msra.mxu0 0.0
    %3220 = vmatprep.subr.mxu0 0.0
    %3221 = vmatpush1.msra.mxu0 0.0
    %3222 = vmatprep.subr.mxu0 0.0
    %3223 = vmatpush1.msra.mxu0 0.0
    %3224 = vmatprep.subr.mxu0 0.0
    %3225 = vmatpush1.msra.mxu0 0.0
    %3226 = vmatprep.subr.mxu0 0.0
    %3227 = vmatpush1.msra.mxu0 0.0
    %3228 = vmatprep.subr.mxu0 0.0
    %3229 = vmatpush1.msra.mxu0 0.0
    %3230 = vmatprep.subr.mxu0 0.0
    %3231 = vmatpush1.msra.mxu0 0.0
    %3232 = vmatprep.subr.mxu0 0.0
    %3233 = vmatpush1.msra.mxu0 0.0
    %3234 = vmatprep.mubr.f32.mxu0 0.0
    %3235 = vmatmul.mubr.f32.gmra.mrb[0].mxu0 %v3168
    %v3236 = vpop.f32.mrb[0].mxu0
    %v3237 = vadd.f32 %v3165, %v3236
    %v3238 = vpop.f32.mrb[0].mxu0
    %3239 = vdwg.mxu0
    %v3240 = vmul.f32 %v3237, %v38
    %v3241 = vtanh.pop %v3240
    %v3242 = vmul.f32 %v3241, 0.5
    %v3243 = vadd.f32 %v3242, 0.5
    %v3244 = vsel %vm37, %v3241, %v3243
    %v3245 = vmul.f32 %v3244, %v2553
    %3247 = vrot.lane.b32.xlu0 %v3244, 64
    %v3248 = vpop.permute.xlu0 %3247
    %v3250 = vmul.f32 %v3244, %v3248
    %3252 = vrot.lane.b32.xlu0 %v3250, 32
    %v3253 = vpop.permute.xlu0 %3252
    %v3255 = vadd.f32 %v3245, %v3253
    %v3256 = vtanh.pop %v3255
    %3258 = vrot.lane.b32.xlu0 %v3256, 64
    %v3259 = vpop.permute.xlu0 %3258
    %v3261 = vmul.f32 %v3244, %v3259
    %3263 = vrot.lane.b32.xlu0 %v3261, 32
    %v3264 = vpop.permute.xlu0 %3263
    %v3266 = vsel %vm69, %v3264, %v2819
    %v3267 = vld [vmem:[%s445] sm:$0xff]
    %v3268 = vld [vmem:[%s445 + $0x8] sm:$0xff]
    %v3269 = vld [vmem:[%s445 + $0x10] sm:$0xff]
    %v3270 = vld [vmem:[%s445 + $0x18] sm:$0xff]
    %v3271 = vld [vmem:[%s445 + $0x20] sm:$0xff]
    %v3272 = vld [vmem:[%s445 + $0x28] sm:$0xff]
    %v3273 = vld [vmem:[%s445 + $0x30] sm:$0xff]
    %v3274 = vld [vmem:[%s445 + $0x38] sm:$0xff]
    %v3275 = vld [vmem:[%s454] sm:$0x1]
    %v3277 = vlaneseq
    %v3278 = vshrl.u32 %v3277, 7
    %v3279 = vsub.s32 0, %v3278
    %v3280 = vrot.slane %v3275, %v3279
    %v3283 = vsel %vm86, %v3266, 0
    %3285 = vmatprep.subr.mxu0 0.0
    %3286 = vmatpush1.msra.mxu0 %v3267
    %3287 = vmatprep.subr.mxu0 0.0
    %3288 = vmatpush1.msra.mxu0 %v3268
    %3289 = vmatprep.subr.mxu0 0.0
    %3290 = vmatpush1.msra.mxu0 %v3269
    %3291 = vmatprep.subr.mxu0 0.0
    %3292 = vmatpush1.msra.mxu0 %v3270
    %3293 = vmatprep.subr.mxu0 0.0
    %3294 = vmatpush1.msra.mxu0 %v3271
    %3295 = vmatprep.subr.mxu0 0.0
    %3296 = vmatpush1.msra.mxu0 %v3272
    %3297 = vmatprep.subr.mxu0 0.0
    %3298 = vmatpush1.msra.mxu0 %v3273
    %3299 = vmatprep.subr.mxu0 0.0
    %3300 = vmatpush1.msra.mxu0 %v3274
    %3301 = vmatprep.subr.mxu0 0.0
    %3302 = vmatpush1.msra.mxu0 0.0
    %3303 = vmatprep.subr.mxu0 0.0
    %3304 = vmatpush1.msra.mxu0 0.0
    %3305 = vmatprep.subr.mxu0 0.0
    %3306 = vmatpush1.msra.mxu0 0.0
    %3307 = vmatprep.subr.mxu0 0.0
    %3308 = vmatpush1.msra.mxu0 0.0
    %3309 = vmatprep.subr.mxu0 0.0
    %3310 = vmatpush1.msra.mxu0 0.0
    %3311 = vmatprep.subr.mxu0 0.0
    %3312 = vmatpush1.msra.mxu0 0.0
    %3313 = vmatprep.subr.mxu0 0.0
    %3314 = vmatpush1.msra.mxu0 0.0
    %3315 = vmatprep.subr.mxu0 0.0
    %3316 = vmatpush1.msra.mxu0 0.0
    %3317 = vmatprep.subr.mxu0 0.0
    %3318 = vmatpush1.msra.mxu0 0.0
    %3319 = vmatprep.subr.mxu0 0.0
    %3320 = vmatpush1.msra.mxu0 0.0
    %3321 = vmatprep.subr.mxu0 0.0
    %3322 = vmatpush1.msra.mxu0 0.0
    %3323 = vmatprep.subr.mxu0 0.0
    %3324 = vmatpush1.msra.mxu0 0.0
    %3325 = vmatprep.subr.mxu0 0.0
    %3326 = vmatpush1.msra.mxu0 0.0
    %3327 = vmatprep.subr.mxu0 0.0
    %3328 = vmatpush1.msra.mxu0 0.0
    %3329 = vmatprep.subr.mxu0 0.0
    %3330 = vmatpush1.msra.mxu0 0.0
    %3331 = vmatprep.subr.mxu0 0.0
    %3332 = vmatpush1.msra.mxu0 0.0
    %3333 = vmatprep.subr.mxu0 0.0
    %3334 = vmatpush1.msra.mxu0 0.0
    %3335 = vmatprep.subr.mxu0 0.0
    %3336 = vmatpush1.msra.mxu0 0.0
    %3337 = vmatprep.subr.mxu0 0.0
    %3338 = vmatpush1.msra.mxu0 0.0
    %3339 = vmatprep.subr.mxu0 0.0
    %3340 = vmatpush1.msra.mxu0 0.0
    %3341 = vmatprep.subr.mxu0 0.0
    %3342 = vmatpush1.msra.mxu0 0.0
    %3343 = vmatprep.subr.mxu0 0.0
    %3344 = vmatpush1.msra.mxu0 0.0
    %3345 = vmatprep.subr.mxu0 0.0
    %3346 = vmatpush1.msra.mxu0 0.0
    %3347 = vmatprep.subr.mxu0 0.0
    %3348 = vmatpush1.msra.mxu0 0.0
    %3349 = vmatprep.mubr.f32.mxu0 0.0
    %3350 = vmatmul.mubr.f32.gmra.mrb[0].mxu0 %v3283
    %v3351 = vpop.f32.mrb[0].mxu0
    %v3352 = vadd.f32 %v3280, %v3351
    %v3353 = vpop.f32.mrb[0].mxu0
    %3354 = vdwg.mxu0
    %v3355 = vmul.f32 %v3352, %v38
    %v3356 = vtanh.pop %v3355
    %v3357 = vmul.f32 %v3356, 0.5
    %v3358 = vadd.f32 %v3357, 0.5
    %v3359 = vsel %vm37, %v3356, %v3358
    %v3360 = vmul.f32 %v3359, %v2668
    %3362 = vrot.lane.b32.xlu0 %v3359, 64
    %v3363 = vpop.permute.xlu0 %3362
    %v3365 = vmul.f32 %v3359, %v3363
    %3367 = vrot.lane.b32.xlu0 %v3365, 32
    %v3368 = vpop.permute.xlu0 %3367
    %v3370 = vadd.f32 %v3360, %v3368
    %v3371 = vtanh.pop %v3370
    %3373 = vrot.lane.b32.xlu0 %v3371, 64
    %v3374 = vpop.permute.xlu0 %3373
    %v3376 = vmul.f32 %v3359, %v3374
    %v3379 = vunpack.c.l.s4 1966171168
    %v3380 = vunpack.c.0.s8 %v3379
    %v3381 = vlaneseq
    %v3382 = vshrl.u32 %v3381, 7
    %v3383 = vsub.s32 %v3380, %v3382
    %v3384 = vrot.slane %v3376, %v3383
    %v3385 = vcombine.high %v3384, %v3384
    %v3387 = vunpack.c.l.s4 1966171168
    %v3388 = vunpack.c.0.s8 %v3387
    %v3389 = vlaneseq
    %v3390 = vshrl.u32 %v3389, 7
    %v3391 = vsub.s32 %v3388, %v3390
    %v3392 = vrot.slane %v3384, %v3391
    %v3394 = vunpack.c.l.s4 1966171168
    %v3395 = vunpack.c.0.s8 %v3394
    %v3396 = vlaneseq
    %v3397 = vshrl.u32 %v3396, 7
    %v3398 = vsub.s32 %v3395, %v3397
    %v3399 = vrot.slane %v3385, %v3398
    %v3400 = vlaneseq
    %v3401 = vshrl.u32 %v3400, 7
    %v3402 = vsub.s32 0, %v3401
    %v3403 = vrot.slane %v3392, %v3402
    %v3404 = vlaneseq
    %v3405 = vshrl.u32 %v3404, 7
    %v3406 = vsub.s32 0, %v3405
    %v3407 = vrot.slane %v3399, %v3406
    %3408 = vrot.lane.b32.xlu0 %v3403, 32
    %v3409 = vpop.permute.xlu0 %3408
    %3410 = vrot.lane.b32.xlu0 %v3407, 32
    %v3411 = vpop.permute.xlu0 %3410
    %v3414 = vmul.f32 %v39, %v3409
    %v3415 = vmul.f32 %v40, %v3411
    %v3416 = vsel %vm69, %v3414, 0.0
    %3417 = vadd.xlane.f32.xlu0 %v3416
    %v3418 = vpop.xlane.xlu0 %3417
    %v3419 = vsel %vm69, %v3415, 0.0
    %3420 = vadd.xlane.f32.xlu0 %v3419
    %v3421 = vpop.xlane.xlu0 %3420
    %v3424 = vlaneseq
    %v3425 = vshrl.u32 %v3424, 7
    %v3426 = vsub.s32 %v34, %v3425
    %v3427 = vrot.slane %v3418, %v3426
    %v3428 = vlaneseq
    %v3429 = vshrl.u32 %v3428, 7
    %v3430 = vsub.s32 %v34, %v3429
    %v3431 = vrot.slane %v3421, %v3430
    %v3432 = vsel %vm616, %v3431, %v3427
    %v3434 = vsel %vm619, %v3432, -inf
    %3435 = vmax.xlane.f32.xlu0 %v3434
    %v3436 = vpop.xlane.xlu0 %3435
    %v3438 = vlaneseq
    %v3439 = vshrl.u32 %v3438, 7
    %v3440 = vsub.s32 0, %v3439
    %v3441 = vrot.slane %v3436, %v3440
    %v3442 = vlaneseq
    %v3443 = vshrl.u32 %v3442, 7
    %v3444 = vsub.s32 1, %v3443
    %v3445 = vrot.slane %v3436, %v3444
    %v3448 = vsub.f32 %v3418, %v3441
    %v3449 = vsub.f32 %v3421, %v3445
    %v3450 = vmul.f32 %v3448, 1.442695
    %v3451 = vpow.pop %v3450
    %v3452 = vmul.f32 %v3449, 1.442695
    %v3453 = vpow.pop %v3452
    %3456 = vset.pattern.permute.xlu0 0
    %3457 = vperm.xlu0 %3456, %v3451
    %v3458 = vpop.permute.xlu0 %3457
    %3459 = vset.pattern.permute.xlu0 0
    %3460 = vperm.xlu0 %3459, %v3453
    %v3461 = vpop.permute.xlu0 %3460
    %v3462 = vlaneseq
    %v3463 = vshrl.u32 %v3462, 7
    %v3464 = vsub.s32 %v34, %v3463
    %v3465 = vrot.slane %v3458, %v3464
    %v3466 = vlaneseq
    %v3467 = vshrl.u32 %v3466, 7
    %v3468 = vsub.s32 %v34, %v3467
    %v3469 = vrot.slane %v3461, %v3468
    %v3470 = vsel %vm616, %v3469, %v3465
    %v3472 = vsel %vm619, %v3470, 0.0
    %3473 = vadd.xlane.f32.xlu0 %v3472
    %v3474 = vpop.xlane.xlu0 %3473
    %v3476 = vlaneseq
    %v3477 = vshrl.u32 %v3476, 7
    %v3478 = vsub.s32 0, %v3477
    %v3479 = vrot.slane %v3474, %v3478
    %v3480 = vlaneseq
    %v3481 = vshrl.u32 %v3480, 7
    %v3482 = vsub.s32 1, %v3481
    %v3483 = vrot.slane %v3474, %v3482
    %v3486 = vrcp.pop %v3479
    %v3487 = vmul.f32 %v3451, %v3486
    %v3488 = vrcp.pop %v3483
    %v3489 = vmul.f32 %v3453, %v3488
    %3491 = vset.pattern.permute.xlu0 0
    %3492 = vperm.xlu0 %3491, %v3487
    %v3493 = vpop.permute.xlu0 %3492
    %3496 = vset.pattern.permute.xlu0 0
    %3497 = vperm.xlu0 %3496, %v3489
    %v3498 = vpop.permute.xlu0 %3497
    %v3500 = vmul.f32 %v39, %v3493
    %v3501 = vmul.f32 %v40, %v3498
    %v3502 = vsel %vm69, %v3500, 0.0
    %v3503 = vrot.slane %v3502, 4
    %v3504 = vadd.f32 %v3502, %v3503
    %v3505 = vrot.slane %v3504, 2
    %v3506 = vadd.f32 %v3504, %v3505
    %v3507 = vrot.slane %v3506, 1
    %v3508 = vadd.f32 %v3506, %v3507
    %v3509 = vsel %vm69, %v3501, 0.0
    %v3510 = vrot.slane %v3509, 4
    %v3511 = vadd.f32 %v3509, %v3510
    %v3512 = vrot.slane %v3511, 2
    %v3513 = vadd.f32 %v3511, %v3512
    %v3514 = vrot.slane %v3513, 1
    %v3515 = vadd.f32 %v3513, %v3514
    %v3518 = vsel %vm616, %v3515, %v3508
    %3520 = vrot.lane.b32.xlu0 %v3376, 64
    %v3521 = vpop.permute.xlu0 %3520
    %v3523 = vsel %vm69, %v3518, %v3521
    %v3525 = vsel %vm86, %v3523, 0
    %3527 = vmatprep.subr.mxu0 0.0
    %3528 = vmatpush1.msra.mxu0 %v41
    %3529 = vmatprep.subr.mxu0 0.0
    %3530 = vmatpush1.msra.mxu0 %v42
    %3531 = vmatprep.subr.mxu0 0.0
    %3532 = vmatpush1.msra.mxu0 %v43
    %3533 = vmatprep.subr.mxu0 0.0
    %3534 = vmatpush1.msra.mxu0 %v44
    %3535 = vmatprep.subr.mxu0 0.0
    %3536 = vmatpush1.msra.mxu0 %v45
    %3537 = vmatprep.subr.mxu0 0.0
    %3538 = vmatpush1.msra.mxu0 %v46
    %3539 = vmatprep.subr.mxu0 0.0
    %3540 = vmatpush1.msra.mxu0 %v47
    %3541 = vmatprep.subr.mxu0 0.0
    %3542 = vmatpush1.msra.mxu0 %v48
    %3543 = vmatprep.subr.mxu0 0.0
    %3544 = vmatpush1.msra.mxu0 0.0
    %3545 = vmatprep.subr.mxu0 0.0
    %3546 = vmatpush1.msra.mxu0 0.0
    %3547 = vmatprep.subr.mxu0 0.0
    %3548 = vmatpush1.msra.mxu0 0.0
    %3549 = vmatprep.subr.mxu0 0.0
    %3550 = vmatpush1.msra.mxu0 0.0
    %3551 = vmatprep.subr.mxu0 0.0
    %3552 = vmatpush1.msra.mxu0 0.0
    %3553 = vmatprep.subr.mxu0 0.0
    %3554 = vmatpush1.msra.mxu0 0.0
    %3555 = vmatprep.subr.mxu0 0.0
    %3556 = vmatpush1.msra.mxu0 0.0
    %3557 = vmatprep.subr.mxu0 0.0
    %3558 = vmatpush1.msra.mxu0 0.0
    %3559 = vmatprep.subr.mxu0 0.0
    %3560 = vmatpush1.msra.mxu0 0.0
    %3561 = vmatprep.subr.mxu0 0.0
    %3562 = vmatpush1.msra.mxu0 0.0
    %3563 = vmatprep.subr.mxu0 0.0
    %3564 = vmatpush1.msra.mxu0 0.0
    %3565 = vmatprep.subr.mxu0 0.0
    %3566 = vmatpush1.msra.mxu0 0.0
    %3567 = vmatprep.subr.mxu0 0.0
    %3568 = vmatpush1.msra.mxu0 0.0
    %3569 = vmatprep.subr.mxu0 0.0
    %3570 = vmatpush1.msra.mxu0 0.0
    %3571 = vmatprep.subr.mxu0 0.0
    %3572 = vmatpush1.msra.mxu0 0.0
    %3573 = vmatprep.subr.mxu0 0.0
    %3574 = vmatpush1.msra.mxu0 0.0
    %3575 = vmatprep.subr.mxu0 0.0
    %3576 = vmatpush1.msra.mxu0 0.0
    %3577 = vmatprep.subr.mxu0 0.0
    %3578 = vmatpush1.msra.mxu0 0.0
    %3579 = vmatprep.subr.mxu0 0.0
    %3580 = vmatpush1.msra.mxu0 0.0
    %3581 = vmatprep.subr.mxu0 0.0
    %3582 = vmatpush1.msra.mxu0 0.0
    %3583 = vmatprep.subr.mxu0 0.0
    %3584 = vmatpush1.msra.mxu0 0.0
    %3585 = vmatprep.subr.mxu0 0.0
    %3586 = vmatpush1.msra.mxu0 0.0
    %3587 = vmatprep.subr.mxu0 0.0
    %3588 = vmatpush1.msra.mxu0 0.0
    %3589 = vmatprep.subr.mxu0 0.0
    %3590 = vmatpush1.msra.mxu0 0.0
    %3591 = vmatprep.mubr.f32.mxu0 0.0
    %3592 = vmatmul.mubr.f32.gmra.mrb[0].mxu0 %v3525
    %v3593 = vpop.f32.mrb[0].mxu0
    %v3594 = vadd.f32 %v714, %v3593
    %v3595 = vpop.f32.mrb[0].mxu0
    %3596 = vdwg.mxu0
    %v3597 = vsel %vm789, %v3594, -inf
    %3598 = vmax.xlane.f32.xlu0 %v3597
    %v3599 = vpop.xlane.xlu0 %3598
    %v3600 = vsub.f32 %v3594, %v3599
    %v3601 = vmul.f32 %v3600, 1.442695
    %v3602 = vpow.pop %v3601
    %v3603 = vsel %vm789, %v3602, 0.0
    %3604 = vadd.xlane.f32.xlu0 %v3603
    %v3605 = vpop.xlane.xlu0 %3604
    %v3606 = vlog2.pop %v3605
    %v3607 = vmul.f32 %v3606, 0.6931472
    %v3608 = vadd.f32 %v3599, %v3607
    %v3609 = vsub.f32 %v3594, %v3608
    %s3610 = scalar_lea.vmem [#allocation2], 8
    %3611 = vst [vmem:[%s3610] sm:$0x3] %v3609
    %s3612 = scalar_lea.vmem %s0, 10
    %v3613 = vld [vmem:[%s3612] sm:$0x3]
    %3614 = vrot.lane.b32.xlu0 %v3025, 64
    %v3615 = vpop.permute.xlu0 %3614
    %v3617 = vsel %vm69, %v3613, %v3615
    %v3618 = vld [vmem:[%s4] sm:$0xff]
    %v3619 = vld [vmem:[%s4 + $0x8] sm:$0xff]
    %v3620 = vld [vmem:[%s4 + $0x10] sm:$0xff]
    %v3621 = vld [vmem:[%s4 + $0x18] sm:$0xff]
    %v3622 = vld [vmem:[%s4 + $0x20] sm:$0xff]
    %v3623 = vld [vmem:[%s4 + $0x28] sm:$0xff]
    %v3624 = vld [vmem:[%s4 + $0x30] sm:$0xff]
    %v3625 = vld [vmem:[%s4 + $0x38] sm:$0xff]
    %v3626 = vld [vmem:[%s5] sm:$0x1]
    %v3628 = vlaneseq
    %v3629 = vshrl.u32 %v3628, 7
    %v3630 = vsub.s32 0, %v3629
    %v3631 = vrot.slane %v3626, %v3630
    %v3634 = vsel %vm86, %v3617, 0
    %3636 = vmatprep.subr.mxu0 0.0
    %3637 = vmatpush1.msra.mxu0 %v3618
    %3638 = vmatprep.subr.mxu0 0.0
    %3639 = vmatpush1.msra.mxu0 %v3619
    %3640 = vmatprep.subr.mxu0 0.0
    %3641 = vmatpush1.msra.mxu0 %v3620
    %3642 = vmatprep.subr.mxu0 0.0
    %3643 = vmatpush1.msra.mxu0 %v3621
    %3644 = vmatprep.subr.mxu0 0.0
    %3645 = vmatpush1.msra.mxu0 %v3622
    %3646 = vmatprep.subr.mxu0 0.0
    %3647 = vmatpush1.msra.mxu0 %v3623
    %3648 = vmatprep.subr.mxu0 0.0
    %3649 = vmatpush1.msra.mxu0 %v3624
    %3650 = vmatprep.subr.mxu0 0.0
    %3651 = vmatpush1.msra.mxu0 %v3625
    %3652 = vmatprep.subr.mxu0 0.0
    %3653 = vmatpush1.msra.mxu0 0.0
    %3654 = vmatprep.subr.mxu0 0.0
    %3655 = vmatpush1.msra.mxu0 0.0
    %3656 = vmatprep.subr.mxu0 0.0
    %3657 = vmatpush1.msra.mxu0 0.0
    %3658 = vmatprep.subr.mxu0 0.0
    %3659 = vmatpush1.msra.mxu0 0.0
    %3660 = vmatprep.subr.mxu0 0.0
    %3661 = vmatpush1.msra.mxu0 0.0
    %3662 = vmatprep.subr.mxu0 0.0
    %3663 = vmatpush1.msra.mxu0 0.0
    %3664 = vmatprep.subr.mxu0 0.0
    %3665 = vmatpush1.msra.mxu0 0.0
    %3666 = vmatprep.subr.mxu0 0.0
    %3667 = vmatpush1.msra.mxu0 0.0
    %3668 = vmatprep.subr.mxu0 0.0
    %3669 = vmatpush1.msra.mxu0 0.0
    %3670 = vmatprep.subr.mxu0 0.0
    %3671 = vmatpush1.msra.mxu0 0.0
    %3672 = vmatprep.subr.mxu0 0.0
    %3673 = vmatpush1.msra.mxu0 0.0
    %3674 = vmatprep.subr.mxu0 0.0
    %3675 = vmatpush1.msra.mxu0 0.0
    %3676 = vmatprep.subr.mxu0 0.0
    %3677 = vmatpush1.msra.mxu0 0.0
    %3678 = vmatprep.subr.mxu0 0.0
    %3679 = vmatpush1.msra.mxu0 0.0
    %3680 = vmatprep.subr.mxu0 0.0
    %3681 = vmatpush1.msra.mxu0 0.0
    %3682 = vmatprep.subr.mxu0 0.0
    %3683 = vmatpush1.msra.mxu0 0.0
    %3684 = vmatprep.subr.mxu0 0.0
    %3685 = vmatpush1.msra.mxu0 0.0
    %3686 = vmatprep.subr.mxu0 0.0
    %3687 = vmatpush1.msra.mxu0 0.0
    %3688 = vmatprep.subr.mxu0 0.0
    %3689 = vmatpush1.msra.mxu0 0.0
    %3690 = vmatprep.subr.mxu0 0.0
    %3691 = vmatpush1.msra.mxu0 0.0
    %3692 = vmatprep.subr.mxu0 0.0
    %3693 = vmatpush1.msra.mxu0 0.0
    %3694 = vmatprep.subr.mxu0 0.0
    %3695 = vmatpush1.msra.mxu0 0.0
    %3696 = vmatprep.subr.mxu0 0.0
    %3697 = vmatpush1.msra.mxu0 0.0
    %3698 = vmatprep.subr.mxu0 0.0
    %3699 = vmatpush1.msra.mxu0 0.0
    %3700 = vmatprep.mubr.f32.mxu0 0.0
    %3701 = vmatmul.mubr.f32.gmra.mrb[0].mxu0 %v3634
    %v3702 = vpop.f32.mrb[0].mxu0
    %v3703 = vadd.f32 %v3631, %v3702
    %v3704 = vpop.f32.mrb[0].mxu0
    %3705 = vdwg.mxu0
    %v3706 = vmul.f32 %v3703, %v38
    %v3707 = vtanh.pop %v3706
    %v3708 = vmul.f32 %v3707, 0.5
    %v3709 = vadd.f32 %v3708, 0.5
    %v3710 = vsel %vm37, %v3707, %v3709
    %v3711 = vmul.f32 %v3710, %v3019
    %3713 = vrot.lane.b32.xlu0 %v3710, 64
    %v3714 = vpop.permute.xlu0 %3713
    %v3716 = vmul.f32 %v3710, %v3714
    %3718 = vrot.lane.b32.xlu0 %v3716, 32
    %v3719 = vpop.permute.xlu0 %3718
    %v3721 = vadd.f32 %v3711, %v3719
    %v3722 = vtanh.pop %v3721
    %3724 = vrot.lane.b32.xlu0 %v3722, 64
    %v3725 = vpop.permute.xlu0 %3724
    %v3727 = vmul.f32 %v3710, %v3725
    %3729 = vrot.lane.b32.xlu0 %v3727, 32
    %v3730 = vpop.permute.xlu0 %3729
    %3732 = vrot.lane.b32.xlu0 %v3143, 64
    %v3733 = vpop.permute.xlu0 %3732
    %v3735 = vsel %vm69, %v3730, %v3733
    %v3736 = vld [vmem:[%s195] sm:$0xff]
    %v3737 = vld [vmem:[%s195 + $0x8] sm:$0xff]
    %v3738 = vld [vmem:[%s195 + $0x10] sm:$0xff]
    %v3739 = vld [vmem:[%s195 + $0x18] sm:$0xff]
    %v3740 = vld [vmem:[%s195 + $0x20] sm:$0xff]
    %v3741 = vld [vmem:[%s195 + $0x28] sm:$0xff]
    %v3742 = vld [vmem:[%s195 + $0x30] sm:$0xff]
    %v3743 = vld [vmem:[%s195 + $0x38] sm:$0xff]
    %v3744 = vld [vmem:[%s204] sm:$0x1]
    %v3746 = vlaneseq
    %v3747 = vshrl.u32 %v3746, 7
    %v3748 = vsub.s32 0, %v3747
    %v3749 = vrot.slane %v3744, %v3748
    %v3752 = vsel %vm86, %v3735, 0
    %3754 = vmatprep.subr.mxu0 0.0
    %3755 = vmatpush1.msra.mxu0 %v3736
    %3756 = vmatprep.subr.mxu0 0.0
    %3757 = vmatpush1.msra.mxu0 %v3737
    %3758 = vmatprep.subr.mxu0 0.0
    %3759 = vmatpush1.msra.mxu0 %v3738
    %3760 = vmatprep.subr.mxu0 0.0
    %3761 = vmatpush1.msra.mxu0 %v3739
    %3762 = vmatprep.subr.mxu0 0.0
    %3763 = vmatpush1.msra.mxu0 %v3740
    %3764 = vmatprep.subr.mxu0 0.0
    %3765 = vmatpush1.msra.mxu0 %v3741
    %3766 = vmatprep.subr.mxu0 0.0
    %3767 = vmatpush1.msra.mxu0 %v3742
    %3768 = vmatprep.subr.mxu0 0.0
    %3769 = vmatpush1.msra.mxu0 %v3743
    %3770 = vmatprep.subr.mxu0 0.0
    %3771 = vmatpush1.msra.mxu0 0.0
    %3772 = vmatprep.subr.mxu0 0.0
    %3773 = vmatpush1.msra.mxu0 0.0
    %3774 = vmatprep.subr.mxu0 0.0
    %3775 = vmatpush1.msra.mxu0 0.0
    %3776 = vmatprep.subr.mxu0 0.0
    %3777 = vmatpush1.msra.mxu0 0.0
    %3778 = vmatprep.subr.mxu0 0.0
    %3779 = vmatpush1.msra.mxu0 0.0
    %3780 = vmatprep.subr.mxu0 0.0
    %3781 = vmatpush1.msra.mxu0 0.0
    %3782 = vmatprep.subr.mxu0 0.0
    %3783 = vmatpush1.msra.mxu0 0.0
    %3784 = vmatprep.subr.mxu0 0.0
    %3785 = vmatpush1.msra.mxu0 0.0
    %3786 = vmatprep.subr.mxu0 0.0
    %3787 = vmatpush1.msra.mxu0 0.0
    %3788 = vmatprep.subr.mxu0 0.0
    %3789 = vmatpush1.msra.mxu0 0.0
    %3790 = vmatprep.subr.mxu0 0.0
    %3791 = vmatpush1.msra.mxu0 0.0
    %3792 = vmatprep.subr.mxu0 0.0
    %3793 = vmatpush1.msra.mxu0 0.0
    %3794 = vmatprep.subr.mxu0 0.0
    %3795 = vmatpush1.msra.mxu0 0.0
    %3796 = vmatprep.subr.mxu0 0.0
    %3797 = vmatpush1.msra.mxu0 0.0
    %3798 = vmatprep.subr.mxu0 0.0
    %3799 = vmatpush1.msra.mxu0 0.0
    %3800 = vmatprep.subr.mxu0 0.0
    %3801 = vmatpush1.msra.mxu0 0.0
    %3802 = vmatprep.subr.mxu0 0.0
    %3803 = vmatpush1.msra.mxu0 0.0
    %3804 = vmatprep.subr.mxu0 0.0
    %3805 = vmatpush1.msra.mxu0 0.0
    %3806 = vmatprep.subr.mxu0 0.0
    %3807 = vmatpush1.msra.mxu0 0.0
    %3808 = vmatprep.subr.mxu0 0.0
    %3809 = vmatpush1.msra.mxu0 0.0
    %3810 = vmatprep.subr.mxu0 0.0
    %3811 = vmatpush1.msra.mxu0 0.0
    %3812 = vmatprep.subr.mxu0 0.0
    %3813 = vmatpush1.msra.mxu0 0.0
    %3814 = vmatprep.subr.mxu0 0.0
    %3815 = vmatpush1.msra.mxu0 0.0
    %3816 = vmatprep.subr.mxu0 0.0
    %3817 = vmatpush1.msra.mxu0 0.0
    %3818 = vmatprep.mubr.f32.mxu0 0.0
    %3819 = vmatmul.mubr.f32.gmra.mrb[0].mxu0 %v3752
    %v3820 = vpop.f32.mrb[0].mxu0
    %v3821 = vadd.f32 %v3749, %v3820
    %v3822 = vpop.f32.mrb[0].mxu0
    %3823 = vdwg.mxu0
    %v3824 = vmul.f32 %v3821, %v38
    %v3825 = vtanh.pop %v3824
    %v3826 = vmul.f32 %v3825, 0.5
    %v3827 = vadd.f32 %v3826, 0.5
    %v3828 = vsel %vm37, %v3825, %v3827
    %v3829 = vmul.f32 %v3828, %v3137
    %3831 = vrot.lane.b32.xlu0 %v3828, 64
    %v3832 = vpop.permute.xlu0 %3831
    %v3834 = vmul.f32 %v3828, %v3832
    %3836 = vrot.lane.b32.xlu0 %v3834, 32
    %v3837 = vpop.permute.xlu0 %3836
    %v3839 = vadd.f32 %v3829, %v3837
    %v3840 = vtanh.pop %v3839
    %3842 = vrot.lane.b32.xlu0 %v3840, 64
    %v3843 = vpop.permute.xlu0 %3842
    %v3845 = vmul.f32 %v3828, %v3843
    %3847 = vrot.lane.b32.xlu0 %v3845, 32
    %v3848 = vpop.permute.xlu0 %3847
    %3850 = vrot.lane.b32.xlu0 %v3261, 64
    %v3851 = vpop.permute.xlu0 %3850
    %v3853 = vsel %vm69, %v3848, %v3851
    %v3854 = vld [vmem:[%s320] sm:$0xff]
    %v3855 = vld [vmem:[%s320 + $0x8] sm:$0xff]
    %v3856 = vld [vmem:[%s320 + $0x10] sm:$0xff]
    %v3857 = vld [vmem:[%s320 + $0x18] sm:$0xff]
    %v3858 = vld [vmem:[%s320 + $0x20] sm:$0xff]
    %v3859 = vld [vmem:[%s320 + $0x28] sm:$0xff]
    %v3860 = vld [vmem:[%s320 + $0x30] sm:$0xff]
    %v3861 = vld [vmem:[%s320 + $0x38] sm:$0xff]
    %v3862 = vld [vmem:[%s329] sm:$0x1]
    %v3864 = vlaneseq
    %v3865 = vshrl.u32 %v3864, 7
    %v3866 = vsub.s32 0, %v3865
    %v3867 = vrot.slane %v3862, %v3866
    %v3870 = vsel %vm86, %v3853, 0
    %3872 = vmatprep.subr.mxu0 0.0
    %3873 = vmatpush1.msra.mxu0 %v3854
    %3874 = vmatprep.subr.mxu0 0.0
    %3875 = vmatpush1.msra.mxu0 %v3855
    %3876 = vmatprep.subr.mxu0 0.0
    %3877 = vmatpush1.msra.mxu0 %v3856
    %3878 = vmatprep.subr.mxu0 0.0
    %3879 = vmatpush1.msra.mxu0 %v3857
    %3880 = vmatprep.subr.mxu0 0.0
    %3881 = vmatpush1.msra.mxu0 %v3858
    %3882 = vmatprep.subr.mxu0 0.0
    %3883 = vmatpush1.msra.mxu0 %v3859
    %3884 = vmatprep.subr.mxu0 0.0
    %3885 = vmatpush1.msra.mxu0 %v3860
    %3886 = vmatprep.subr.mxu0 0.0
    %3887 = vmatpush1.msra.mxu0 %v3861
    %3888 = vmatprep.subr.mxu0 0.0
    %3889 = vmatpush1.msra.mxu0 0.0
    %3890 = vmatprep.subr.mxu0 0.0
    %3891 = vmatpush1.msra.mxu0 0.0
    %3892 = vmatprep.subr.mxu0 0.0
    %3893 = vmatpush1.msra.mxu0 0.0
    %3894 = vmatprep.subr.mxu0 0.0
    %3895 = vmatpush1.msra.mxu0 0.0
    %3896 = vmatprep.subr.mxu0 0.0
    %3897 = vmatpush1.msra.mxu0 0.0
    %3898 = vmatprep.subr.mxu0 0.0
    %3899 = vmatpush1.msra.mxu0 0.0
    %3900 = vmatprep.subr.mxu0 0.0
    %3901 = vmatpush1.msra.mxu0 0.0
    %3902 = vmatprep.subr.mxu0 0.0
    %3903 = vmatpush1.msra.mxu0 0.0
    %3904 = vmatprep.subr.mxu0 0.0
    %3905 = vmatpush1.msra.mxu0 0.0
    %3906 = vmatprep.subr.mxu0 0.0
    %3907 = vmatpush1.msra.mxu0 0.0
    %3908 = vmatprep.subr.mxu0 0.0
    %3909 = vmatpush1.msra.mxu0 0.0
    %3910 = vmatprep.subr.mxu0 0.0
    %3911 = vmatpush1.msra.mxu0 0.0
    %3912 = vmatprep.subr.mxu0 0.0
    %3913 = vmatpush1.msra.mxu0 0.0
    %3914 = vmatprep.subr.mxu0 0.0
    %3915 = vmatpush1.msra.mxu0 0.0
    %3916 = vmatprep.subr.mxu0 0.0
    %3917 = vmatpush1.msra.mxu0 0.0
    %3918 = vmatprep.subr.mxu0 0.0
    %3919 = vmatpush1.msra.mxu0 0.0
    %3920 = vmatprep.subr.mxu0 0.0
    %3921 = vmatpush1.msra.mxu0 0.0
    %3922 = vmatprep.subr.mxu0 0.0
    %3923 = vmatpush1.msra.mxu0 0.0
    %3924 = vmatprep.subr.mxu0 0.0
    %3925 = vmatpush1.msra.mxu0 0.0
    %3926 = vmatprep.subr.mxu0 0.0
    %3927 = vmatpush1.msra.mxu0 0.0
    %3928 = vmatprep.subr.mxu0 0.0
    %3929 = vmatpush1.msra.mxu0 0.0
    %3930 = vmatprep.subr.mxu0 0.0
    %3931 = vmatpush1.msra.mxu0 0.0
    %3932 = vmatprep.subr.mxu0 0.0
    %3933 = vmatpush1.msra.mxu0 0.0
    %3934 = vmatprep.subr.mxu0 0.0
    %3935 = vmatpush1.msra.mxu0 0.0
    %3936 = vmatprep.mubr.f32.mxu0 0.0
    %3937 = vmatmul.mubr.f32.gmra.mrb[0].mxu0 %v3870
    %v3938 = vpop.f32.mrb[0].mxu0
    %v3939 = vadd.f32 %v3867, %v3938
    %v3940 = vpop.f32.mrb[0].mxu0
    %3941 = vdwg.mxu0
    %v3942 = vmul.f32 %v3939, %v38
    %v3943 = vtanh.pop %v3942
    %v3944 = vmul.f32 %v3943, 0.5
    %v3945 = vadd.f32 %v3944, 0.5
    %v3946 = vsel %vm37, %v3943, %v3945
    %v3947 = vmul.f32 %v3946, %v3255
    %3949 = vrot.lane.b32.xlu0 %v3946, 64
    %v3950 = vpop.permute.xlu0 %3949
    %v3952 = vmul.f32 %v3946, %v3950
    %3954 = vrot.lane.b32.xlu0 %v3952, 32
    %v3955 = vpop.permute.xlu0 %3954
    %v3957 = vadd.f32 %v3947, %v3955
    %v3958 = vtanh.pop %v3957
    %3960 = vrot.lane.b32.xlu0 %v3958, 64
    %v3961 = vpop.permute.xlu0 %3960
    %v3963 = vmul.f32 %v3946, %v3961
    %3965 = vrot.lane.b32.xlu0 %v3963, 32
    %v3966 = vpop.permute.xlu0 %3965
    %v3968 = vsel %vm69, %v3966, %v3521
    %v3969 = vld [vmem:[%s445] sm:$0xff]
    %v3970 = vld [vmem:[%s445 + $0x8] sm:$0xff]
    %v3971 = vld [vmem:[%s445 + $0x10] sm:$0xff]
    %v3972 = vld [vmem:[%s445 + $0x18] sm:$0xff]
    %v3973 = vld [vmem:[%s445 + $0x20] sm:$0xff]
    %v3974 = vld [vmem:[%s445 + $0x28] sm:$0xff]
    %v3975 = vld [vmem:[%s445 + $0x30] sm:$0xff]
    %v3976 = vld [vmem:[%s445 + $0x38] sm:$0xff]
    %v3977 = vld [vmem:[%s454] sm:$0x1]
    %v3979 = vlaneseq
    %v3980 = vshrl.u32 %v3979, 7
    %v3981 = vsub.s32 0, %v3980
    %v3982 = vrot.slane %v3977, %v3981
    %v3985 = vsel %vm86, %v3968, 0
    %3987 = vmatprep.subr.mxu0 0.0
    %3988 = vmatpush1.msra.mxu0 %v3969
    %3989 = vmatprep.subr.mxu0 0.0
    %3990 = vmatpush1.msra.mxu0 %v3970
    %3991 = vmatprep.subr.mxu0 0.0
    %3992 = vmatpush1.msra.mxu0 %v3971
    %3993 = vmatprep.subr.mxu0 0.0
    %3994 = vmatpush1.msra.mxu0 %v3972
    %3995 = vmatprep.subr.mxu0 0.0
    %3996 = vmatpush1.msra.mxu0 %v3973
    %3997 = vmatprep.subr.mxu0 0.0
    %3998 = vmatpush1.msra.mxu0 %v3974
    %3999 = vmatprep.subr.mxu0 0.0
    %4000 = vmatpush1.msra.mxu0 %v3975
    %4001 = vmatprep.subr.mxu0 0.0
    %4002 = vmatpush1.msra.mxu0 %v3976
    %4003 = vmatprep.subr.mxu0 0.0
    %4004 = vmatpush1.msra.mxu0 0.0
    %4005 = vmatprep.subr.mxu0 0.0
    %4006 = vmatpush1.msra.mxu0 0.0
    %4007 = vmatprep.subr.mxu0 0.0
    %4008 = vmatpush1.msra.mxu0 0.0
    %4009 = vmatprep.subr.mxu0 0.0
    %4010 = vmatpush1.msra.mxu0 0.0
    %4011 = vmatprep.subr.mxu0 0.0
    %4012 = vmatpush1.msra.mxu0 0.0
    %4013 = vmatprep.subr.mxu0 0.0
    %4014 = vmatpush1.msra.mxu0 0.0
    %4015 = vmatprep.subr.mxu0 0.0
    %4016 = vmatpush1.msra.mxu0 0.0
    %4017 = vmatprep.subr.mxu0 0.0
    %4018 = vmatpush1.msra.mxu0 0.0
    %4019 = vmatprep.subr.mxu0 0.0
    %4020 = vmatpush1.msra.mxu0 0.0
    %4021 = vmatprep.subr.mxu0 0.0
    %4022 = vmatpush1.msra.mxu0 0.0
    %4023 = vmatprep.subr.mxu0 0.0
    %4024 = vmatpush1.msra.mxu0 0.0
    %4025 = vmatprep.subr.mxu0 0.0
    %4026 = vmatpush1.msra.mxu0 0.0
    %4027 = vmatprep.subr.mxu0 0.0
    %4028 = vmatpush1.msra.mxu0 0.0
    %4029 = vmatprep.subr.mxu0 0.0
    %4030 = vmatpush1.msra.mxu0 0.0
    %4031 = vmatprep.subr.mxu0 0.0
    %4032 = vmatpush1.msra.mxu0 0.0
    %4033 = vmatprep.subr.mxu0 0.0
    %4034 = vmatpush1.msra.mxu0 0.0
    %4035 = vmatprep.subr.mxu0 0.0
    %4036 = vmatpush1.msra.mxu0 0.0
    %4037 = vmatprep.subr.mxu0 0.0
    %4038 = vmatpush1.msra.mxu0 0.0
    %4039 = vmatprep.subr.mxu0 0.0
    %4040 = vmatpush1.msra.mxu0 0.0
    %4041 = vmatprep.subr.mxu0 0.0
    %4042 = vmatpush1.msra.mxu0 0.0
    %4043 = vmatprep.subr.mxu0 0.0
    %4044 = vmatpush1.msra.mxu0 0.0
    %4045 = vmatprep.subr.mxu0 0.0
    %4046 = vmatpush1.msra.mxu0 0.0
    %4047 = vmatprep.subr.mxu0 0.0
    %4048 = vmatpush1.msra.mxu0 0.0
    %4049 = vmatprep.subr.mxu0 0.0
    %4050 = vmatpush1.msra.mxu0 0.0
    %4051 = vmatprep.mubr.f32.mxu0 0.0
    %4052 = vmatmul.mubr.f32.gmra.mrb[0].mxu0 %v3985
    %v4053 = vpop.f32.mrb[0].mxu0
    %v4054 = vadd.f32 %v3982, %v4053
    %v4055 = vpop.f32.mrb[0].mxu0
    %4056 = vdwg.mxu0
    %v4057 = vmul.f32 %v4054, %v38
    %v4058 = vtanh.pop %v4057
    %v4059 = vmul.f32 %v4058, 0.5
    %v4060 = vadd.f32 %v4059, 0.5
    %v4061 = vsel %vm37, %v4058, %v4060
    %v4062 = vmul.f32 %v4061, %v3370
    %4064 = vrot.lane.b32.xlu0 %v4061, 64
    %v4065 = vpop.permute.xlu0 %4064
    %v4067 = vmul.f32 %v4061, %v4065
    %4069 = vrot.lane.b32.xlu0 %v4067, 32
    %v4070 = vpop.permute.xlu0 %4069
    %v4072 = vadd.f32 %v4062, %v4070
    %v4073 = vtanh.pop %v4072
    %4075 = vrot.lane.b32.xlu0 %v4073, 64
    %v4076 = vpop.permute.xlu0 %4075
    %v4078 = vmul.f32 %v4061, %v4076
    %v4081 = vunpack.c.l.s4 1966171168
    %v4082 = vunpack.c.0.s8 %v4081
    %v4083 = vlaneseq
    %v4084 = vshrl.u32 %v4083, 7
    %v4085 = vsub.s32 %v4082, %v4084
    %v4086 = vrot.slane %v4078, %v4085
    %v4087 = vcombine.high %v4086, %v4086
    %v4089 = vunpack.c.l.s4 1966171168
    %v4090 = vunpack.c.0.s8 %v4089
    %v4091 = vlaneseq
    %v4092 = vshrl.u32 %v4091, 7
    %v4093 = vsub.s32 %v4090, %v4092
    %v4094 = vrot.slane %v4086, %v4093
    %v4096 = vunpack.c.l.s4 1966171168
    %v4097 = vunpack.c.0.s8 %v4096
    %v4098 = vlaneseq
    %v4099 = vshrl.u32 %v4098, 7
    %v4100 = vsub.s32 %v4097, %v4099
    %v4101 = vrot.slane %v4087, %v4100
    %v4102 = vlaneseq
    %v4103 = vshrl.u32 %v4102, 7
    %v4104 = vsub.s32 0, %v4103
    %v4105 = vrot.slane %v4094, %v4104
    %v4106 = vlaneseq
    %v4107 = vshrl.u32 %v4106, 7
    %v4108 = vsub.s32 0, %v4107
    %v4109 = vrot.slane %v4101, %v4108
    %4110 = vrot.lane.b32.xlu0 %v4105, 32
    %v4111 = vpop.permute.xlu0 %4110
    %4112 = vrot.lane.b32.xlu0 %v4109, 32
    %v4113 = vpop.permute.xlu0 %4112
    %v4116 = vmul.f32 %v39, %v4111
    %v4117 = vmul.f32 %v40, %v4113
    %v4118 = vsel %vm69, %v4116, 0.0
    %4119 = vadd.xlane.f32.xlu0 %v4118
    %v4120 = vpop.xlane.xlu0 %4119
    %v4121 = vsel %vm69, %v4117, 0.0
    %4122 = vadd.xlane.f32.xlu0 %v4121
    %v4123 = vpop.xlane.xlu0 %4122
    %v4126 = vlaneseq
    %v4127 = vshrl.u32 %v4126, 7
    %v4128 = vsub.s32 %v34, %v4127
    %v4129 = vrot.slane %v4120, %v4128
    %v4130 = vlaneseq
    %v4131 = vshrl.u32 %v4130, 7
    %v4132 = vsub.s32 %v34, %v4131
    %v4133 = vrot.slane %v4123, %v4132
    %v4134 = vsel %vm616, %v4133, %v4129
    %v4136 = vsel %vm619, %v4134, -inf
    %4137 = vmax.xlane.f32.xlu0 %v4136
    %v4138 = vpop.xlane.xlu0 %4137
    %v4140 = vlaneseq
    %v4141 = vshrl.u32 %v4140, 7
    %v4142 = vsub.s32 0, %v4141
    %v4143 = vrot.slane %v4138, %v4142
    %v4144 = vlaneseq
    %v4145 = vshrl.u32 %v4144, 7
    %v4146 = vsub.s32 1, %v4145
    %v4147 = vrot.slane %v4138, %v4146
    %v4150 = vsub.f32 %v4120, %v4143
    %v4151 = vsub.f32 %v4123, %v4147
    %v4152 = vmul.f32 %v4150, 1.442695
    %v4153 = vpow.pop %v4152
    %v4154 = vmul.f32 %v4151, 1.442695
    %v4155 = vpow.pop %v4154
    %4158 = vset.pattern.permute.xlu0 0
    %4159 = vperm.xlu0 %4158, %v4153
    %v4160 = vpop.permute.xlu0 %4159
    %4161 = vset.pattern.permute.xlu0 0
    %4162 = vperm.xlu0 %4161, %v4155
    %v4163 = vpop.permute.xlu0 %4162
    %v4164 = vlaneseq
    %v4165 = vshrl.u32 %v4164, 7
    %v4166 = vsub.s32 %v34, %v4165
    %v4167 = vrot.slane %v4160, %v4166
    %v4168 = vlaneseq
    %v4169 = vshrl.u32 %v4168, 7
    %v4170 = vsub.s32 %v34, %v4169
    %v4171 = vrot.slane %v4163, %v4170
    %v4172 = vsel %vm616, %v4171, %v4167
    %v4174 = vsel %vm619, %v4172, 0.0
    %4175 = vadd.xlane.f32.xlu0 %v4174
    %v4176 = vpop.xlane.xlu0 %4175
    %v4178 = vlaneseq
    %v4179 = vshrl.u32 %v4178, 7
    %v4180 = vsub.s32 0, %v4179
    %v4181 = vrot.slane %v4176, %v4180
    %v4182 = vlaneseq
    %v4183 = vshrl.u32 %v4182, 7
    %v4184 = vsub.s32 1, %v4183
    %v4185 = vrot.slane %v4176, %v4184
    %v4188 = vrcp.pop %v4181
    %v4189 = vmul.f32 %v4153, %v4188
    %v4190 = vrcp.pop %v4185
    %v4191 = vmul.f32 %v4155, %v4190
    %4193 = vset.pattern.permute.xlu0 0
    %4194 = vperm.xlu0 %4193, %v4189
    %v4195 = vpop.permute.xlu0 %4194
    %4198 = vset.pattern.permute.xlu0 0
    %4199 = vperm.xlu0 %4198, %v4191
    %v4200 = vpop.permute.xlu0 %4199
    %v4202 = vmul.f32 %v39, %v4195
    %v4203 = vmul.f32 %v40, %v4200
    %v4204 = vsel %vm69, %v4202, 0.0
    %v4205 = vrot.slane %v4204, 4
    %v4206 = vadd.f32 %v4204, %v4205
    %v4207 = vrot.slane %v4206, 2
    %v4208 = vadd.f32 %v4206, %v4207
    %v4209 = vrot.slane %v4208, 1
    %v4210 = vadd.f32 %v4208, %v4209
    %v4211 = vsel %vm69, %v4203, 0.0
    %v4212 = vrot.slane %v4211, 4
    %v4213 = vadd.f32 %v4211, %v4212
    %v4214 = vrot.slane %v4213, 2
    %v4215 = vadd.f32 %v4213, %v4214
    %v4216 = vrot.slane %v4215, 1
    %v4217 = vadd.f32 %v4215, %v4216
    %v4220 = vsel %vm616, %v4217, %v4210
    %4222 = vrot.lane.b32.xlu0 %v4078, 64
    %v4223 = vpop.permute.xlu0 %4222
    %v4225 = vsel %vm69, %v4220, %v4223
    %v4227 = vsel %vm86, %v4225, 0
    %4229 = vmatprep.subr.mxu0 0.0
    %4230 = vmatpush1.msra.mxu0 %v41
    %4231 = vmatprep.subr.mxu0 0.0
    %4232 = vmatpush1.msra.mxu0 %v42
    %4233 = vmatprep.subr.mxu0 0.0
    %4234 = vmatpush1.msra.mxu0 %v43
    %4235 = vmatprep.subr.mxu0 0.0
    %4236 = vmatpush1.msra.mxu0 %v44
    %4237 = vmatprep.subr.mxu0 0.0
    %4238 = vmatpush1.msra.mxu0 %v45
    %4239 = vmatprep.subr.mxu0 0.0
    %4240 = vmatpush1.msra.mxu0 %v46
    %4241 = vmatprep.subr.mxu0 0.0
    %4242 = vmatpush1.msra.mxu0 %v47
    %4243 = vmatprep.subr.mxu0 0.0
    %4244 = vmatpush1.msra.mxu0 %v48
    %4245 = vmatprep.subr.mxu0 0.0
    %4246 = vmatpush1.msra.mxu0 0.0
    %4247 = vmatprep.subr.mxu0 0.0
    %4248 = vmatpush1.msra.mxu0 0.0
    %4249 = vmatprep.subr.mxu0 0.0
    %4250 = vmatpush1.msra.mxu0 0.0
    %4251 = vmatprep.subr.mxu0 0.0
    %4252 = vmatpush1.msra.mxu0 0.0
    %4253 = vmatprep.subr.mxu0 0.0
    %4254 = vmatpush1.msra.mxu0 0.0
    %4255 = vmatprep.subr.mxu0 0.0
    %4256 = vmatpush1.msra.mxu0 0.0
    %4257 = vmatprep.subr.mxu0 0.0
    %4258 = vmatpush1.msra.mxu0 0.0
    %4259 = vmatprep.subr.mxu0 0.0
    %4260 = vmatpush1.msra.mxu0 0.0
    %4261 = vmatprep.subr.mxu0 0.0
    %4262 = vmatpush1.msra.mxu0 0.0
    %4263 = vmatprep.subr.mxu0 0.0
    %4264 = vmatpush1.msra.mxu0 0.0
    %4265 = vmatprep.subr.mxu0 0.0
    %4266 = vmatpush1.msra.mxu0 0.0
    %4267 = vmatprep.subr.mxu0 0.0
    %4268 = vmatpush1.msra.mxu0 0.0
    %4269 = vmatprep.subr.mxu0 0.0
    %4270 = vmatpush1.msra.mxu0 0.0
    %4271 = vmatprep.subr.mxu0 0.0
    %4272 = vmatpush1.msra.mxu0 0.0
    %4273 = vmatprep.subr.mxu0 0.0
    %4274 = vmatpush1.msra.mxu0 0.0
    %4275 = vmatprep.subr.mxu0 0.0
    %4276 = vmatpush1.msra.mxu0 0.0
    %4277 = vmatprep.subr.mxu0 0.0
    %4278 = vmatpush1.msra.mxu0 0.0
    %4279 = vmatprep.subr.mxu0 0.0
    %4280 = vmatpush1.msra.mxu0 0.0
    %4281 = vmatprep.subr.mxu0 0.0
    %4282 = vmatpush1.msra.mxu0 0.0
    %4283 = vmatprep.subr.mxu0 0.0
    %4284 = vmatpush1.msra.mxu0 0.0
    %4285 = vmatprep.subr.mxu0 0.0
    %4286 = vmatpush1.msra.mxu0 0.0
    %4287 = vmatprep.subr.mxu0 0.0
    %4288 = vmatpush1.msra.mxu0 0.0
    %4289 = vmatprep.subr.mxu0 0.0
    %4290 = vmatpush1.msra.mxu0 0.0
    %4291 = vmatprep.subr.mxu0 0.0
    %4292 = vmatpush1.msra.mxu0 0.0
    %4293 = vmatprep.mubr.f32.mxu0 0.0
    %4294 = vmatmul.mubr.f32.gmra.mrb[0].mxu0 %v4227
    %v4295 = vpop.f32.mrb[0].mxu0
    %v4296 = vadd.f32 %v714, %v4295
    %v4297 = vpop.f32.mrb[0].mxu0
    %4298 = vdwg.mxu0
    %v4299 = vsel %vm789, %v4296, -inf
    %4300 = vmax.xlane.f32.xlu0 %v4299
    %v4301 = vpop.xlane.xlu0 %4300
    %v4302 = vsub.f32 %v4296, %v4301
    %v4303 = vmul.f32 %v4302, 1.442695
    %v4304 = vpow.pop %v4303
    %v4305 = vsel %vm789, %v4304, 0.0
    %4306 = vadd.xlane.f32.xlu0 %v4305
    %v4307 = vpop.xlane.xlu0 %4306
    %v4308 = vlog2.pop %v4307
    %v4309 = vmul.f32 %v4308, 0.6931472
    %v4310 = vadd.f32 %v4301, %v4309
    %v4311 = vsub.f32 %v4296, %v4310
    %s4312 = scalar_lea.vmem [#allocation2], 10
    %4313 = vst [vmem:[%s4312] sm:$0x3] %v4311
    %s4314 = scalar_lea.vmem %s0, 12
    %v4315 = vld [vmem:[%s4314] sm:$0x3]
    %4316 = vrot.lane.b32.xlu0 %v3727, 64
    %v4317 = vpop.permute.xlu0 %4316
    %v4319 = vsel %vm69, %v4315, %v4317
    %v4320 = vld [vmem:[%s4] sm:$0xff]
    %v4321 = vld [vmem:[%s4 + $0x8] sm:$0xff]
    %v4322 = vld [vmem:[%s4 + $0x10] sm:$0xff]
    %v4323 = vld [vmem:[%s4 + $0x18] sm:$0xff]
    %v4324 = vld [vmem:[%s4 + $0x20] sm:$0xff]
    %v4325 = vld [vmem:[%s4 + $0x28] sm:$0xff]
    %v4326 = vld [vmem:[%s4 + $0x30] sm:$0xff]
    %v4327 = vld [vmem:[%s4 + $0x38] sm:$0xff]
    %v4328 = vld [vmem:[%s5] sm:$0x1]
    %v4330 = vlaneseq
    %v4331 = vshrl.u32 %v4330, 7
    %v4332 = vsub.s32 0, %v4331
    %v4333 = vrot.slane %v4328, %v4332
    %v4336 = vsel %vm86, %v4319, 0
    %4338 = vmatprep.subr.mxu0 0.0
    %4339 = vmatpush1.msra.mxu0 %v4320
    %4340 = vmatprep.subr.mxu0 0.0
    %4341 = vmatpush1.msra.mxu0 %v4321
    %4342 = vmatprep.subr.mxu0 0.0
    %4343 = vmatpush1.msra.mxu0 %v4322
    %4344 = vmatprep.subr.mxu0 0.0
    %4345 = vmatpush1.msra.mxu0 %v4323
    %4346 = vmatprep.subr.mxu0 0.0
    %4347 = vmatpush1.msra.mxu0 %v4324
    %4348 = vmatprep.subr.mxu0 0.0
    %4349 = vmatpush1.msra.mxu0 %v4325
    %4350 = vmatprep.subr.mxu0 0.0
    %4351 = vmatpush1.msra.mxu0 %v4326
    %4352 = vmatprep.subr.mxu0 0.0
    %4353 = vmatpush1.msra.mxu0 %v4327
    %4354 = vmatprep.subr.mxu0 0.0
    %4355 = vmatpush1.msra.mxu0 0.0
    %4356 = vmatprep.subr.mxu0 0.0
    %4357 = vmatpush1.msra.mxu0 0.0
    %4358 = vmatprep.subr.mxu0 0.0
    %4359 = vmatpush1.msra.mxu0 0.0
    %4360 = vmatprep.subr.mxu0 0.0
    %4361 = vmatpush1.msra.mxu0 0.0
    %4362 = vmatprep.subr.mxu0 0.0
    %4363 = vmatpush1.msra.mxu0 0.0
    %4364 = vmatprep.subr.mxu0 0.0
    %4365 = vmatpush1.msra.mxu0 0.0
    %4366 = vmatprep.subr.mxu0 0.0
    %4367 = vmatpush1.msra.mxu0 0.0
    %4368 = vmatprep.subr.mxu0 0.0
    %4369 = vmatpush1.msra.mxu0 0.0
    %4370 = vmatprep.subr.mxu0 0.0
    %4371 = vmatpush1.msra.mxu0 0.0
    %4372 = vmatprep.subr.mxu0 0.0
    %4373 = vmatpush1.msra.mxu0 0.0
    %4374 = vmatprep.subr.mxu0 0.0
    %4375 = vmatpush1.msra.mxu0 0.0
    %4376 = vmatprep.subr.mxu0 0.0
    %4377 = vmatpush1.msra.mxu0 0.0
    %4378 = vmatprep.subr.mxu0 0.0
    %4379 = vmatpush1.msra.mxu0 0.0
    %4380 = vmatprep.subr.mxu0 0.0
    %4381 = vmatpush1.msra.mxu0 0.0
    %4382 = vmatprep.subr.mxu0 0.0
    %4383 = vmatpush1.msra.mxu0 0.0
    %4384 = vmatprep.subr.mxu0 0.0
    %4385 = vmatpush1.msra.mxu0 0.0
    %4386 = vmatprep.subr.mxu0 0.0
    %4387 = vmatpush1.msra.mxu0 0.0
    %4388 = vmatprep.subr.mxu0 0.0
    %4389 = vmatpush1.msra.mxu0 0.0
    %4390 = vmatprep.subr.mxu0 0.0
    %4391 = vmatpush1.msra.mxu0 0.0
    %4392 = vmatprep.subr.mxu0 0.0
    %4393 = vmatpush1.msra.mxu0 0.0
    %4394 = vmatprep.subr.mxu0 0.0
    %4395 = vmatpush1.msra.mxu0 0.0
    %4396 = vmatprep.subr.mxu0 0.0
    %4397 = vmatpush1.msra.mxu0 0.0
    %4398 = vmatprep.subr.mxu0 0.0
    %4399 = vmatpush1.msra.mxu0 0.0
    %4400 = vmatprep.subr.mxu0 0.0
    %4401 = vmatpush1.msra.mxu0 0.0
    %4402 = vmatprep.mubr.f32.mxu0 0.0
    %4403 = vmatmul.mubr.f32.gmra.mrb[0].mxu0 %v4336
    %v4404 = vpop.f32.mrb[0].mxu0
    %v4405 = vadd.f32 %v4333, %v4404
    %v4406 = vpop.f32.mrb[0].mxu0
    %4407 = vdwg.mxu0
    %v4408 = vmul.f32 %v4405, %v38
    %v4409 = vtanh.pop %v4408
    %v4410 = vmul.f32 %v4409, 0.5
    %v4411 = vadd.f32 %v4410, 0.5
    %v4412 = vsel %vm37, %v4409, %v4411
    %v4413 = vmul.f32 %v4412, %v3721
    %4415 = vrot.lane.b32.xlu0 %v4412, 64
    %v4416 = vpop.permute.xlu0 %4415
    %v4418 = vmul.f32 %v4412, %v4416
    %4420 = vrot.lane.b32.xlu0 %v4418, 32
    %v4421 = vpop.permute.xlu0 %4420
    %v4423 = vadd.f32 %v4413, %v4421
    %v4424 = vtanh.pop %v4423
    %4426 = vrot.lane.b32.xlu0 %v4424, 64
    %v4427 = vpop.permute.xlu0 %4426
    %v4429 = vmul.f32 %v4412, %v4427
    %4431 = vrot.lane.b32.xlu0 %v4429, 32
    %v4432 = vpop.permute.xlu0 %4431
    %4434 = vrot.lane.b32.xlu0 %v3845, 64
    %v4435 = vpop.permute.xlu0 %4434
    %v4437 = vsel %vm69, %v4432, %v4435
    %v4438 = vld [vmem:[%s195] sm:$0xff]
    %v4439 = vld [vmem:[%s195 + $0x8] sm:$0xff]
    %v4440 = vld [vmem:[%s195 + $0x10] sm:$0xff]
    %v4441 = vld [vmem:[%s195 + $0x18] sm:$0xff]
    %v4442 = vld [vmem:[%s195 + $0x20] sm:$0xff]
    %v4443 = vld [vmem:[%s195 + $0x28] sm:$0xff]
    %v4444 = vld [vmem:[%s195 + $0x30] sm:$0xff]
    %v4445 = vld [vmem:[%s195 + $0x38] sm:$0xff]
    %v4446 = vld [vmem:[%s204] sm:$0x1]
    %v4448 = vlaneseq
    %v4449 = vshrl.u32 %v4448, 7
    %v4450 = vsub.s32 0, %v4449
    %v4451 = vrot.slane %v4446, %v4450
    %v4454 = vsel %vm86, %v4437, 0
    %4456 = vmatprep.subr.mxu0 0.0
    %4457 = vmatpush1.msra.mxu0 %v4438
    %4458 = vmatprep.subr.mxu0 0.0
    %4459 = vmatpush1.msra.mxu0 %v4439
    %4460 = vmatprep.subr.mxu0 0.0
    %4461 = vmatpush1.msra.mxu0 %v4440
    %4462 = vmatprep.subr.mxu0 0.0
    %4463 = vmatpush1.msra.mxu0 %v4441
    %4464 = vmatprep.subr.mxu0 0.0
    %4465 = vmatpush1.msra.mxu0 %v4442
    %4466 = vmatprep.subr.mxu0 0.0
    %4467 = vmatpush1.msra.mxu0 %v4443
    %4468 = vmatprep.subr.mxu0 0.0
    %4469 = vmatpush1.msra.mxu0 %v4444
    %4470 = vmatprep.subr.mxu0 0.0
    %4471 = vmatpush1.msra.mxu0 %v4445
    %4472 = vmatprep.subr.mxu0 0.0
    %4473 = vmatpush1.msra.mxu0 0.0
    %4474 = vmatprep.subr.mxu0 0.0
    %4475 = vmatpush1.msra.mxu0 0.0
    %4476 = vmatprep.subr.mxu0 0.0
    %4477 = vmatpush1.msra.mxu0 0.0
    %4478 = vmatprep.subr.mxu0 0.0
    %4479 = vmatpush1.msra.mxu0 0.0
    %4480 = vmatprep.subr.mxu0 0.0
    %4481 = vmatpush1.msra.mxu0 0.0
    %4482 = vmatprep.subr.mxu0 0.0
    %4483 = vmatpush1.msra.mxu0 0.0
    %4484 = vmatprep.subr.mxu0 0.0
    %4485 = vmatpush1.msra.mxu0 0.0
    %4486 = vmatprep.subr.mxu0 0.0
    %4487 = vmatpush1.msra.mxu0 0.0
    %4488 = vmatprep.subr.mxu0 0.0
    %4489 = vmatpush1.msra.mxu0 0.0
    %4490 = vmatprep.subr.mxu0 0.0
    %4491 = vmatpush1.msra.mxu0 0.0
    %4492 = vmatprep.subr.mxu0 0.0
    %4493 = vmatpush1.msra.mxu0 0.0
    %4494 = vmatprep.subr.mxu0 0.0
    %4495 = vmatpush1.msra.mxu0 0.0
    %4496 = vmatprep.subr.mxu0 0.0
    %4497 = vmatpush1.msra.mxu0 0.0
    %4498 = vmatprep.subr.mxu0 0.0
    %4499 = vmatpush1.msra.mxu0 0.0
    %4500 = vmatprep.subr.mxu0 0.0
    %4501 = vmatpush1.msra.mxu0 0.0
    %4502 = vmatprep.subr.mxu0 0.0
    %4503 = vmatpush1.msra.mxu0 0.0
    %4504 = vmatprep.subr.mxu0 0.0
    %4505 = vmatpush1.msra.mxu0 0.0
    %4506 = vmatprep.subr.mxu0 0.0
    %4507 = vmatpush1.msra.mxu0 0.0
    %4508 = vmatprep.subr.mxu0 0.0
    %4509 = vmatpush1.msra.mxu0 0.0
    %4510 = vmatprep.subr.mxu0 0.0
    %4511 = vmatpush1.msra.mxu0 0.0
    %4512 = vmatprep.subr.mxu0 0.0
    %4513 = vmatpush1.msra.mxu0 0.0
    %4514 = vmatprep.subr.mxu0 0.0
    %4515 = vmatpush1.msra.mxu0 0.0
    %4516 = vmatprep.subr.mxu0 0.0
    %4517 = vmatpush1.msra.mxu0 0.0
    %4518 = vmatprep.subr.mxu0 0.0
    %4519 = vmatpush1.msra.mxu0 0.0
    %4520 = vmatprep.mubr.f32.mxu0 0.0
    %4521 = vmatmul.mubr.f32.gmra.mrb[0].mxu0 %v4454
    %v4522 = vpop.f32.mrb[0].mxu0
    %v4523 = vadd.f32 %v4451, %v4522
    %v4524 = vpop.f32.mrb[0].mxu0
    %4525 = vdwg.mxu0
    %v4526 = vmul.f32 %v4523, %v38
    %v4527 = vtanh.pop %v4526
    %v4528 = vmul.f32 %v4527, 0.5
    %v4529 = vadd.f32 %v4528, 0.5
    %v4530 = vsel %vm37, %v4527, %v4529
    %v4531 = vmul.f32 %v4530, %v3839
    %4533 = vrot.lane.b32.xlu0 %v4530, 64
    %v4534 = vpop.permute.xlu0 %4533
    %v4536 = vmul.f32 %v4530, %v4534
    %4538 = vrot.lane.b32.xlu0 %v4536, 32
    %v4539 = vpop.permute.xlu0 %4538
    %v4541 = vadd.f32 %v4531, %v4539
    %v4542 = vtanh.pop %v4541
    %4544 = vrot.lane.b32.xlu0 %v4542, 64
    %v4545 = vpop.permute.xlu0 %4544
    %v4547 = vmul.f32 %v4530, %v4545
    %4549 = vrot.lane.b32.xlu0 %v4547, 32
    %v4550 = vpop.permute.xlu0 %4549
    %4552 = vrot.lane.b32.xlu0 %v3963, 64
    %v4553 = vpop.permute.xlu0 %4552
    %v4555 = vsel %vm69, %v4550, %v4553
    %v4556 = vld [vmem:[%s320] sm:$0xff]
    %v4557 = vld [vmem:[%s320 + $0x8] sm:$0xff]
    %v4558 = vld [vmem:[%s320 + $0x10] sm:$0xff]
    %v4559 = vld [vmem:[%s320 + $0x18] sm:$0xff]
    %v4560 = vld [vmem:[%s320 + $0x20] sm:$0xff]
    %v4561 = vld [vmem:[%s320 + $0x28] sm:$0xff]
    %v4562 = vld [vmem:[%s320 + $0x30] sm:$0xff]
    %v4563 = vld [vmem:[%s320 + $0x38] sm:$0xff]
    %v4564 = vld [vmem:[%s329] sm:$0x1]
    %v4566 = vlaneseq
    %v4567 = vshrl.u32 %v4566, 7
    %v4568 = vsub.s32 0, %v4567
    %v4569 = vrot.slane %v4564, %v4568
    %v4572 = vsel %vm86, %v4555, 0
    %4574 = vmatprep.subr.mxu0 0.0
    %4575 = vmatpush1.msra.mxu0 %v4556
    %4576 = vmatprep.subr.mxu0 0.0
    %4577 = vmatpush1.msra.mxu0 %v4557
    %4578 = vmatprep.subr.mxu0 0.0
    %4579 = vmatpush1.msra.mxu0 %v4558
    %4580 = vmatprep.subr.mxu0 0.0
    %4581 = vmatpush1.msra.mxu0 %v4559
    %4582 = vmatprep.subr.mxu0 0.0
    %4583 = vmatpush1.msra.mxu0 %v4560
    %4584 = vmatprep.subr.mxu0 0.0
    %4585 = vmatpush1.msra.mxu0 %v4561
    %4586 = vmatprep.subr.mxu0 0.0
    %4587 = vmatpush1.msra.mxu0 %v4562
    %4588 = vmatprep.subr.mxu0 0.0
    %4589 = vmatpush1.msra.mxu0 %v4563
    %4590 = vmatprep.subr.mxu0 0.0
    %4591 = vmatpush1.msra.mxu0 0.0
    %4592 = vmatprep.subr.mxu0 0.0
    %4593 = vmatpush1.msra.mxu0 0.0
    %4594 = vmatprep.subr.mxu0 0.0
    %4595 = vmatpush1.msra.mxu0 0.0
    %4596 = vmatprep.subr.mxu0 0.0
    %4597 = vmatpush1.msra.mxu0 0.0
    %4598 = vmatprep.subr.mxu0 0.0
    %4599 = vmatpush1.msra.mxu0 0.0
    %4600 = vmatprep.subr.mxu0 0.0
    %4601 = vmatpush1.msra.mxu0 0.0
    %4602 = vmatprep.subr.mxu0 0.0
    %4603 = vmatpush1.msra.mxu0 0.0
    %4604 = vmatprep.subr.mxu0 0.0
    %4605 = vmatpush1.msra.mxu0 0.0
    %4606 = vmatprep.subr.mxu0 0.0
    %4607 = vmatpush1.msra.mxu0 0.0
    %4608 = vmatprep.subr.mxu0 0.0
    %4609 = vmatpush1.msra.mxu0 0.0
    %4610 = vmatprep.subr.mxu0 0.0
    %4611 = vmatpush1.msra.mxu0 0.0
    %4612 = vmatprep.subr.mxu0 0.0
    %4613 = vmatpush1.msra.mxu0 0.0
    %4614 = vmatprep.subr.mxu0 0.0
    %4615 = vmatpush1.msra.mxu0 0.0
    %4616 = vmatprep.subr.mxu0 0.0
    %4617 = vmatpush1.msra.mxu0 0.0
    %4618 = vmatprep.subr.mxu0 0.0
    %4619 = vmatpush1.msra.mxu0 0.0
    %4620 = vmatprep.subr.mxu0 0.0
    %4621 = vmatpush1.msra.mxu0 0.0
    %4622 = vmatprep.subr.mxu0 0.0
    %4623 = vmatpush1.msra.mxu0 0.0
    %4624 = vmatprep.subr.mxu0 0.0
    %4625 = vmatpush1.msra.mxu0 0.0
    %4626 = vmatprep.subr.mxu0 0.0
    %4627 = vmatpush1.msra.mxu0 0.0
    %4628 = vmatprep.subr.mxu0 0.0
    %4629 = vmatpush1.msra.mxu0 0.0
    %4630 = vmatprep.subr.mxu0 0.0
    %4631 = vmatpush1.msra.mxu0 0.0
    %4632 = vmatprep.subr.mxu0 0.0
    %4633 = vmatpush1.msra.mxu0 0.0
    %4634 = vmatprep.subr.mxu0 0.0
    %4635 = vmatpush1.msra.mxu0 0.0
    %4636 = vmatprep.subr.mxu0 0.0
    %4637 = vmatpush1.msra.mxu0 0.0
    %4638 = vmatprep.mubr.f32.mxu0 0.0
    %4639 = vmatmul.mubr.f32.gmra.mrb[0].mxu0 %v4572
    %v4640 = vpop.f32.mrb[0].mxu0
    %v4641 = vadd.f32 %v4569, %v4640
    %v4642 = vpop.f32.mrb[0].mxu0
    %4643 = vdwg.mxu0
    %v4644 = vmul.f32 %v4641, %v38
    %v4645 = vtanh.pop %v4644
    %v4646 = vmul.f32 %v4645, 0.5
    %v4647 = vadd.f32 %v4646, 0.5
    %v4648 = vsel %vm37, %v4645, %v4647
    %v4649 = vmul.f32 %v4648, %v3957
    %4651 = vrot.lane.b32.xlu0 %v4648, 64
    %v4652 = vpop.permute.xlu0 %4651
    %v4654 = vmul.f32 %v4648, %v4652
    %4656 = vrot.lane.b32.xlu0 %v4654, 32
    %v4657 = vpop.permute.xlu0 %4656
    %v4659 = vadd.f32 %v4649, %v4657
    %v4660 = vtanh.pop %v4659
    %4662 = vrot.lane.b32.xlu0 %v4660, 64
    %v4663 = vpop.permute.xlu0 %4662
    %v4665 = vmul.f32 %v4648, %v4663
    %4667 = vrot.lane.b32.xlu0 %v4665, 32
    %v4668 = vpop.permute.xlu0 %4667
    %v4670 = vsel %vm69, %v4668, %v4223
    %v4671 = vld [vmem:[%s445] sm:$0xff]
    %v4672 = vld [vmem:[%s445 + $0x8] sm:$0xff]
    %v4673 = vld [vmem:[%s445 + $0x10] sm:$0xff]
    %v4674 = vld [vmem:[%s445 + $0x18] sm:$0xff]
    %v4675 = vld [vmem:[%s445 + $0x20] sm:$0xff]
    %v4676 = vld [vmem:[%s445 + $0x28] sm:$0xff]
    %v4677 = vld [vmem:[%s445 + $0x30] sm:$0xff]
    %v4678 = vld [vmem:[%s445 + $0x38] sm:$0xff]
    %v4679 = vld [vmem:[%s454] sm:$0x1]
    %v4681 = vlaneseq
    %v4682 = vshrl.u32 %v4681, 7
    %v4683 = vsub.s32 0, %v4682
    %v4684 = vrot.slane %v4679, %v4683
    %v4687 = vsel %vm86, %v4670, 0
    %4689 = vmatprep.subr.mxu0 0.0
    %4690 = vmatpush1.msra.mxu0 %v4671
    %4691 = vmatprep.subr.mxu0 0.0
    %4692 = vmatpush1.msra.mxu0 %v4672
    %4693 = vmatprep.subr.mxu0 0.0
    %4694 = vmatpush1.msra.mxu0 %v4673
    %4695 = vmatprep.subr.mxu0 0.0
    %4696 = vmatpush1.msra.mxu0 %v4674
    %4697 = vmatprep.subr.mxu0 0.0
    %4698 = vmatpush1.msra.mxu0 %v4675
    %4699 = vmatprep.subr.mxu0 0.0
    %4700 = vmatpush1.msra.mxu0 %v4676
    %4701 = vmatprep.subr.mxu0 0.0
    %4702 = vmatpush1.msra.mxu0 %v4677
    %4703 = vmatprep.subr.mxu0 0.0
    %4704 = vmatpush1.msra.mxu0 %v4678
    %4705 = vmatprep.subr.mxu0 0.0
    %4706 = vmatpush1.msra.mxu0 0.0
    %4707 = vmatprep.subr.mxu0 0.0
    %4708 = vmatpush1.msra.mxu0 0.0
    %4709 = vmatprep.subr.mxu0 0.0
    %4710 = vmatpush1.msra.mxu0 0.0
    %4711 = vmatprep.subr.mxu0 0.0
    %4712 = vmatpush1.msra.mxu0 0.0
    %4713 = vmatprep.subr.mxu0 0.0
    %4714 = vmatpush1.msra.mxu0 0.0
    %4715 = vmatprep.subr.mxu0 0.0
    %4716 = vmatpush1.msra.mxu0 0.0
    %4717 = vmatprep.subr.mxu0 0.0
    %4718 = vmatpush1.msra.mxu0 0.0
    %4719 = vmatprep.subr.mxu0 0.0
    %4720 = vmatpush1.msra.mxu0 0.0
    %4721 = vmatprep.subr.mxu0 0.0
    %4722 = vmatpush1.msra.mxu0 0.0
    %4723 = vmatprep.subr.mxu0 0.0
    %4724 = vmatpush1.msra.mxu0 0.0
    %4725 = vmatprep.subr.mxu0 0.0
    %4726 = vmatpush1.msra.mxu0 0.0
    %4727 = vmatprep.subr.mxu0 0.0
    %4728 = vmatpush1.msra.mxu0 0.0
    %4729 = vmatprep.subr.mxu0 0.0
    %4730 = vmatpush1.msra.mxu0 0.0
    %4731 = vmatprep.subr.mxu0 0.0
    %4732 = vmatpush1.msra.mxu0 0.0
    %4733 = vmatprep.subr.mxu0 0.0
    %4734 = vmatpush1.msra.mxu0 0.0
    %4735 = vmatprep.subr.mxu0 0.0
    %4736 = vmatpush1.msra.mxu0 0.0
    %4737 = vmatprep.subr.mxu0 0.0
    %4738 = vmatpush1.msra.mxu0 0.0
    %4739 = vmatprep.subr.mxu0 0.0
    %4740 = vmatpush1.msra.mxu0 0.0
    %4741 = vmatprep.subr.mxu0 0.0
    %4742 = vmatpush1.msra.mxu0 0.0
    %4743 = vmatprep.subr.mxu0 0.0
    %4744 = vmatpush1.msra.mxu0 0.0
    %4745 = vmatprep.subr.mxu0 0.0
    %4746 = vmatpush1.msra.mxu0 0.0
    %4747 = vmatprep.subr.mxu0 0.0
    %4748 = vmatpush1.msra.mxu0 0.0
    %4749 = vmatprep.subr.mxu0 0.0
    %4750 = vmatpush1.msra.mxu0 0.0
    %4751 = vmatprep.subr.mxu0 0.0
    %4752 = vmatpush1.msra.mxu0 0.0
    %4753 = vmatprep.mubr.f32.mxu0 0.0
    %4754 = vmatmul.mubr.f32.gmra.mrb[0].mxu0 %v4687
    %v4755 = vpop.f32.mrb[0].mxu0
    %v4756 = vadd.f32 %v4684, %v4755
    %v4757 = vpop.f32.mrb[0].mxu0
    %4758 = vdwg.mxu0
    %v4759 = vmul.f32 %v4756, %v38
    %v4760 = vtanh.pop %v4759
    %v4761 = vmul.f32 %v4760, 0.5
    %v4762 = vadd.f32 %v4761, 0.5
    %v4763 = vsel %vm37, %v4760, %v4762
    %v4764 = vmul.f32 %v4763, %v4072
    %4766 = vrot.lane.b32.xlu0 %v4763, 64
    %v4767 = vpop.permute.xlu0 %4766
    %v4769 = vmul.f32 %v4763, %v4767
    %4771 = vrot.lane.b32.xlu0 %v4769, 32
    %v4772 = vpop.permute.xlu0 %4771
    %v4774 = vadd.f32 %v4764, %v4772
    %v4775 = vtanh.pop %v4774
    %4777 = vrot.lane.b32.xlu0 %v4775, 64
    %v4778 = vpop.permute.xlu0 %4777
    %v4780 = vmul.f32 %v4763, %v4778
    %v4783 = vunpack.c.l.s4 1966171168
    %v4784 = vunpack.c.0.s8 %v4783
    %v4785 = vlaneseq
    %v4786 = vshrl.u32 %v4785, 7
    %v4787 = vsub.s32 %v4784, %v4786
    %v4788 = vrot.slane %v4780, %v4787
    %v4789 = vcombine.high %v4788, %v4788
    %v4791 = vunpack.c.l.s4 1966171168
    %v4792 = vunpack.c.0.s8 %v4791
    %v4793 = vlaneseq
    %v4794 = vshrl.u32 %v4793, 7
    %v4795 = vsub.s32 %v4792, %v4794
    %v4796 = vrot.slane %v4788, %v4795
    %v4798 = vunpack.c.l.s4 1966171168
    %v4799 = vunpack.c.0.s8 %v4798
    %v4800 = vlaneseq
    %v4801 = vshrl.u32 %v4800, 7
    %v4802 = vsub.s32 %v4799, %v4801
    %v4803 = vrot.slane %v4789, %v4802
    %v4804 = vlaneseq
    %v4805 = vshrl.u32 %v4804, 7
    %v4806 = vsub.s32 0, %v4805
    %v4807 = vrot.slane %v4796, %v4806
    %v4808 = vlaneseq
    %v4809 = vshrl.u32 %v4808, 7
    %v4810 = vsub.s32 0, %v4809
    %v4811 = vrot.slane %v4803, %v4810
    %4812 = vrot.lane.b32.xlu0 %v4807, 32
    %v4813 = vpop.permute.xlu0 %4812
    %4814 = vrot.lane.b32.xlu0 %v4811, 32
    %v4815 = vpop.permute.xlu0 %4814
    %v4818 = vmul.f32 %v39, %v4813
    %v4819 = vmul.f32 %v40, %v4815
    %v4820 = vsel %vm69, %v4818, 0.0
    %4821 = vadd.xlane.f32.xlu0 %v4820
    %v4822 = vpop.xlane.xlu0 %4821
    %v4823 = vsel %vm69, %v4819, 0.0
    %4824 = vadd.xlane.f32.xlu0 %v4823
    %v4825 = vpop.xlane.xlu0 %4824
    %v4828 = vlaneseq
    %v4829 = vshrl.u32 %v4828, 7
    %v4830 = vsub.s32 %v34, %v4829
    %v4831 = vrot.slane %v4822, %v4830
    %v4832 = vlaneseq
    %v4833 = vshrl.u32 %v4832, 7
    %v4834 = vsub.s32 %v34, %v4833
    %v4835 = vrot.slane %v4825, %v4834
    %v4836 = vsel %vm616, %v4835, %v4831
    %v4838 = vsel %vm619, %v4836, -inf
    %4839 = vmax.xlane.f32.xlu0 %v4838
    %v4840 = vpop.xlane.xlu0 %4839
    %v4842 = vlaneseq
    %v4843 = vshrl.u32 %v4842, 7
    %v4844 = vsub.s32 0, %v4843
    %v4845 = vrot.slane %v4840, %v4844
    %v4846 = vlaneseq
    %v4847 = vshrl.u32 %v4846, 7
    %v4848 = vsub.s32 1, %v4847
    %v4849 = vrot.slane %v4840, %v4848
    %v4852 = vsub.f32 %v4822, %v4845
    %v4853 = vsub.f32 %v4825, %v4849
    %v4854 = vmul.f32 %v4852, 1.442695
    %v4855 = vpow.pop %v4854
    %v4856 = vmul.f32 %v4853, 1.442695
    %v4857 = vpow.pop %v4856
    %4860 = vset.pattern.permute.xlu0 0
    %4861 = vperm.xlu0 %4860, %v4855
    %v4862 = vpop.permute.xlu0 %4861
    %4863 = vset.pattern.permute.xlu0 0
    %4864 = vperm.xlu0 %4863, %v4857
    %v4865 = vpop.permute.xlu0 %4864
    %v4866 = vlaneseq
    %v4867 = vshrl.u32 %v4866, 7
    %v4868 = vsub.s32 %v34, %v4867
    %v4869 = vrot.slane %v4862, %v4868
    %v4870 = vlaneseq
    %v4871 = vshrl.u32 %v4870, 7
    %v4872 = vsub.s32 %v34, %v4871
    %v4873 = vrot.slane %v4865, %v4872
    %v4874 = vsel %vm616, %v4873, %v4869
    %v4876 = vsel %vm619, %v4874, 0.0
    %4877 = vadd.xlane.f32.xlu0 %v4876
    %v4878 = vpop.xlane.xlu0 %4877
    %v4880 = vlaneseq
    %v4881 = vshrl.u32 %v4880, 7
    %v4882 = vsub.s32 0, %v4881
    %v4883 = vrot.slane %v4878, %v4882
    %v4884 = vlaneseq
    %v4885 = vshrl.u32 %v4884, 7
    %v4886 = vsub.s32 1, %v4885
    %v4887 = vrot.slane %v4878, %v4886
    %v4890 = vrcp.pop %v4883
    %v4891 = vmul.f32 %v4855, %v4890
    %v4892 = vrcp.pop %v4887
    %v4893 = vmul.f32 %v4857, %v4892
    %4895 = vset.pattern.permute.xlu0 0
    %4896 = vperm.xlu0 %4895, %v4891
    %v4897 = vpop.permute.xlu0 %4896
    %4900 = vset.pattern.permute.xlu0 0
    %4901 = vperm.xlu0 %4900, %v4893
    %v4902 = vpop.permute.xlu0 %4901
    %v4904 = vmul.f32 %v39, %v4897
    %v4905 = vmul.f32 %v40, %v4902
    %v4906 = vsel %vm69, %v4904, 0.0
    %v4907 = vrot.slane %v4906, 4
    %v4908 = vadd.f32 %v4906, %v4907
    %v4909 = vrot.slane %v4908, 2
    %v4910 = vadd.f32 %v4908, %v4909
    %v4911 = vrot.slane %v4910, 1
    %v4912 = vadd.f32 %v4910, %v4911
    %v4913 = vsel %vm69, %v4905, 0.0
    %v4914 = vrot.slane %v4913, 4
    %v4915 = vadd.f32 %v4913, %v4914
    %v4916 = vrot.slane %v4915, 2
    %v4917 = vadd.f32 %v4915, %v4916
    %v4918 = vrot.slane %v4917, 1
    %v4919 = vadd.f32 %v4917, %v4918
    %v4922 = vsel %vm616, %v4919, %v4912
    %4924 = vrot.lane.b32.xlu0 %v4780, 64
    %v4925 = vpop.permute.xlu0 %4924
    %v4927 = vsel %vm69, %v4922, %v4925
    %v4929 = vsel %vm86, %v4927, 0
    %4931 = vmatprep.subr.mxu0 0.0
    %4932 = vmatpush1.msra.mxu0 %v41
    %4933 = vmatprep.subr.mxu0 0.0
    %4934 = vmatpush1.msra.mxu0 %v42
    %4935 = vmatprep.subr.mxu0 0.0
    %4936 = vmatpush1.msra.mxu0 %v43
    %4937 = vmatprep.subr.mxu0 0.0
    %4938 = vmatpush1.msra.mxu0 %v44
    %4939 = vmatprep.subr.mxu0 0.0
    %4940 = vmatpush1.msra.mxu0 %v45
    %4941 = vmatprep.subr.mxu0 0.0
    %4942 = vmatpush1.msra.mxu0 %v46
    %4943 = vmatprep.subr.mxu0 0.0
    %4944 = vmatpush1.msra.mxu0 %v47
    %4945 = vmatprep.subr.mxu0 0.0
    %4946 = vmatpush1.msra.mxu0 %v48
    %4947 = vmatprep.subr.mxu0 0.0
    %4948 = vmatpush1.msra.mxu0 0.0
    %4949 = vmatprep.subr.mxu0 0.0
    %4950 = vmatpush1.msra.mxu0 0.0
    %4951 = vmatprep.subr.mxu0 0.0
    %4952 = vmatpush1.msra.mxu0 0.0
    %4953 = vmatprep.subr.mxu0 0.0
    %4954 = vmatpush1.msra.mxu0 0.0
    %4955 = vmatprep.subr.mxu0 0.0
    %4956 = vmatpush1.msra.mxu0 0.0
    %4957 = vmatprep.subr.mxu0 0.0
    %4958 = vmatpush1.msra.mxu0 0.0
    %4959 = vmatprep.subr.mxu0 0.0
    %4960 = vmatpush1.msra.mxu0 0.0
    %4961 = vmatprep.subr.mxu0 0.0
    %4962 = vmatpush1.msra.mxu0 0.0
    %4963 = vmatprep.subr.mxu0 0.0
    %4964 = vmatpush1.msra.mxu0 0.0
    %4965 = vmatprep.subr.mxu0 0.0
    %4966 = vmatpush1.msra.mxu0 0.0
    %4967 = vmatprep.subr.mxu0 0.0
    %4968 = vmatpush1.msra.mxu0 0.0
    %4969 = vmatprep.subr.mxu0 0.0
    %4970 = vmatpush1.msra.mxu0 0.0
    %4971 = vmatprep.subr.mxu0 0.0
    %4972 = vmatpush1.msra.mxu0 0.0
    %4973 = vmatprep.subr.mxu0 0.0
    %4974 = vmatpush1.msra.mxu0 0.0
    %4975 = vmatprep.subr.mxu0 0.0
    %4976 = vmatpush1.msra.mxu0 0.0
    %4977 = vmatprep.subr.mxu0 0.0
    %4978 = vmatpush1.msra.mxu0 0.0
    %4979 = vmatprep.subr.mxu0 0.0
    %4980 = vmatpush1.msra.mxu0 0.0
    %4981 = vmatprep.subr.mxu0 0.0
    %4982 = vmatpush1.msra.mxu0 0.0
    %4983 = vmatprep.subr.mxu0 0.0
    %4984 = vmatpush1.msra.mxu0 0.0
    %4985 = vmatprep.subr.mxu0 0.0
    %4986 = vmatpush1.msra.mxu0 0.0
    %4987 = vmatprep.subr.mxu0 0.0
    %4988 = vmatpush1.msra.mxu0 0.0
    %4989 = vmatprep.subr.mxu0 0.0
    %4990 = vmatpush1.msra.mxu0 0.0
    %4991 = vmatprep.subr.mxu0 0.0
    %4992 = vmatpush1.msra.mxu0 0.0
    %4993 = vmatprep.subr.mxu0 0.0
    %4994 = vmatpush1.msra.mxu0 0.0
    %4995 = vmatprep.mubr.f32.mxu0 0.0
    %4996 = vmatmul.mubr.f32.gmra.mrb[0].mxu0 %v4929
    %v4997 = vpop.f32.mrb[0].mxu0
    %v4998 = vadd.f32 %v714, %v4997
    %v4999 = vpop.f32.mrb[0].mxu0
    %5000 = vdwg.mxu0
    %v5001 = vsel %vm789, %v4998, -inf
    %5002 = vmax.xlane.f32.xlu0 %v5001
    %v5003 = vpop.xlane.xlu0 %5002
    %v5004 = vsub.f32 %v4998, %v5003
    %v5005 = vmul.f32 %v5004, 1.442695
    %v5006 = vpow.pop %v5005
    %v5007 = vsel %vm789, %v5006, 0.0
    %5008 = vadd.xlane.f32.xlu0 %v5007
    %v5009 = vpop.xlane.xlu0 %5008
    %v5010 = vlog2.pop %v5009
    %v5011 = vmul.f32 %v5010, 0.6931472
    %v5012 = vadd.f32 %v5003, %v5011
    %v5013 = vsub.f32 %v4998, %v5012
    %s5014 = scalar_lea.vmem [#allocation2], 12
    %5015 = vst [vmem:[%s5014] sm:$0x3] %v5013
    %s5016 = scalar_lea.vmem %s0, 14
    %v5017 = vld [vmem:[%s5016] sm:$0x3]
    %5018 = vrot.lane.b32.xlu0 %v4429, 64
    %v5019 = vpop.permute.xlu0 %5018
    %v5021 = vsel %vm69, %v5017, %v5019
    %v5022 = vld [vmem:[%s4] sm:$0xff]
    %v5023 = vld [vmem:[%s4 + $0x8] sm:$0xff]
    %v5024 = vld [vmem:[%s4 + $0x10] sm:$0xff]
    %v5025 = vld [vmem:[%s4 + $0x18] sm:$0xff]
    %v5026 = vld [vmem:[%s4 + $0x20] sm:$0xff]
    %v5027 = vld [vmem:[%s4 + $0x28] sm:$0xff]
    %v5028 = vld [vmem:[%s4 + $0x30] sm:$0xff]
    %v5029 = vld [vmem:[%s4 + $0x38] sm:$0xff]
    %v5030 = vld [vmem:[%s5] sm:$0x1]
    %v5032 = vlaneseq
    %v5033 = vshrl.u32 %v5032, 7
    %v5034 = vsub.s32 0, %v5033
    %v5035 = vrot.slane %v5030, %v5034
    %v5038 = vsel %vm86, %v5021, 0
    %5040 = vmatprep.subr.mxu0 0.0
    %5041 = vmatpush1.msra.mxu0 %v5022
    %5042 = vmatprep.subr.mxu0 0.0
    %5043 = vmatpush1.msra.mxu0 %v5023
    %5044 = vmatprep.subr.mxu0 0.0
    %5045 = vmatpush1.msra.mxu0 %v5024
    %5046 = vmatprep.subr.mxu0 0.0
    %5047 = vmatpush1.msra.mxu0 %v5025
    %5048 = vmatprep.subr.mxu0 0.0
    %5049 = vmatpush1.msra.mxu0 %v5026
    %5050 = vmatprep.subr.mxu0 0.0
    %5051 = vmatpush1.msra.mxu0 %v5027
    %5052 = vmatprep.subr.mxu0 0.0
    %5053 = vmatpush1.msra.mxu0 %v5028
    %5054 = vmatprep.subr.mxu0 0.0
    %5055 = vmatpush1.msra.mxu0 %v5029
    %5056 = vmatprep.subr.mxu0 0.0
    %5057 = vmatpush1.msra.mxu0 0.0
    %5058 = vmatprep.subr.mxu0 0.0
    %5059 = vmatpush1.msra.mxu0 0.0
    %5060 = vmatprep.subr.mxu0 0.0
    %5061 = vmatpush1.msra.mxu0 0.0
    %5062 = vmatprep.subr.mxu0 0.0
    %5063 = vmatpush1.msra.mxu0 0.0
    %5064 = vmatprep.subr.mxu0 0.0
    %5065 = vmatpush1.msra.mxu0 0.0
    %5066 = vmatprep.subr.mxu0 0.0
    %5067 = vmatpush1.msra.mxu0 0.0
    %5068 = vmatprep.subr.mxu0 0.0
    %5069 = vmatpush1.msra.mxu0 0.0
    %5070 = vmatprep.subr.mxu0 0.0
    %5071 = vmatpush1.msra.mxu0 0.0
    %5072 = vmatprep.subr.mxu0 0.0
    %5073 = vmatpush1.msra.mxu0 0.0
    %5074 = vmatprep.subr.mxu0 0.0
    %5075 = vmatpush1.msra.mxu0 0.0
    %5076 = vmatprep.subr.mxu0 0.0
    %5077 = vmatpush1.msra.mxu0 0.0
    %5078 = vmatprep.subr.mxu0 0.0
    %5079 = vmatpush1.msra.mxu0 0.0
    %5080 = vmatprep.subr.mxu0 0.0
    %5081 = vmatpush1.msra.mxu0 0.0
    %5082 = vmatprep.subr.mxu0 0.0
    %5083 = vmatpush1.msra.mxu0 0.0
    %5084 = vmatprep.subr.mxu0 0.0
    %5085 = vmatpush1.msra.mxu0 0.0
    %5086 = vmatprep.subr.mxu0 0.0
    %5087 = vmatpush1.msra.mxu0 0.0
    %5088 = vmatprep.subr.mxu0 0.0
    %5089 = vmatpush1.msra.mxu0 0.0
    %5090 = vmatprep.subr.mxu0 0.0
    %5091 = vmatpush1.msra.mxu0 0.0
    %5092 = vmatprep.subr.mxu0 0.0
    %5093 = vmatpush1.msra.mxu0 0.0
    %5094 = vmatprep.subr.mxu0 0.0
    %5095 = vmatpush1.msra.mxu0 0.0
    %5096 = vmatprep.subr.mxu0 0.0
    %5097 = vmatpush1.msra.mxu0 0.0
    %5098 = vmatprep.subr.mxu0 0.0
    %5099 = vmatpush1.msra.mxu0 0.0
    %5100 = vmatprep.subr.mxu0 0.0
    %5101 = vmatpush1.msra.mxu0 0.0
    %5102 = vmatprep.subr.mxu0 0.0
    %5103 = vmatpush1.msra.mxu0 0.0
    %5104 = vmatprep.mubr.f32.mxu0 0.0
    %5105 = vmatmul.mubr.f32.gmra.mrb[0].mxu0 %v5038
    %v5106 = vpop.f32.mrb[0].mxu0
    %v5107 = vadd.f32 %v5035, %v5106
    %v5108 = vpop.f32.mrb[0].mxu0
    %5109 = vdwg.mxu0
    %v5110 = vmul.f32 %v5107, %v38
    %v5111 = vtanh.pop %v5110
    %v5112 = vmul.f32 %v5111, 0.5
    %v5113 = vadd.f32 %v5112, 0.5
    %v5114 = vsel %vm37, %v5111, %v5113
    %v5115 = vmul.f32 %v5114, %v4423
    %5117 = vrot.lane.b32.xlu0 %v5114, 64
    %v5118 = vpop.permute.xlu0 %5117
    %v5120 = vmul.f32 %v5114, %v5118
    %5122 = vrot.lane.b32.xlu0 %v5120, 32
    %v5123 = vpop.permute.xlu0 %5122
    %v5125 = vadd.f32 %v5115, %v5123
    %v5126 = vtanh.pop %v5125
    %5128 = vrot.lane.b32.xlu0 %v5126, 64
    %v5129 = vpop.permute.xlu0 %5128
    %v5131 = vmul.f32 %v5114, %v5129
    %5133 = vrot.lane.b32.xlu0 %v5131, 32
    %v5134 = vpop.permute.xlu0 %5133
    %5136 = vrot.lane.b32.xlu0 %v4547, 64
    %v5137 = vpop.permute.xlu0 %5136
    %v5139 = vsel %vm69, %v5134, %v5137
    %v5140 = vld [vmem:[%s195] sm:$0xff]
    %v5141 = vld [vmem:[%s195 + $0x8] sm:$0xff]
    %v5142 = vld [vmem:[%s195 + $0x10] sm:$0xff]
    %v5143 = vld [vmem:[%s195 + $0x18] sm:$0xff]
    %v5144 = vld [vmem:[%s195 + $0x20] sm:$0xff]
    %v5145 = vld [vmem:[%s195 + $0x28] sm:$0xff]
    %v5146 = vld [vmem:[%s195 + $0x30] sm:$0xff]
    %v5147 = vld [vmem:[%s195 + $0x38] sm:$0xff]
    %v5148 = vld [vmem:[%s204] sm:$0x1]
    %v5150 = vlaneseq
    %v5151 = vshrl.u32 %v5150, 7
    %v5152 = vsub.s32 0, %v5151
    %v5153 = vrot.slane %v5148, %v5152
    %v5156 = vsel %vm86, %v5139, 0
    %5158 = vmatprep.subr.mxu0 0.0
    %5159 = vmatpush1.msra.mxu0 %v5140
    %5160 = vmatprep.subr.mxu0 0.0
    %5161 = vmatpush1.msra.mxu0 %v5141
    %5162 = vmatprep.subr.mxu0 0.0
    %5163 = vmatpush1.msra.mxu0 %v5142
    %5164 = vmatprep.subr.mxu0 0.0
    %5165 = vmatpush1.msra.mxu0 %v5143
    %5166 = vmatprep.subr.mxu0 0.0
    %5167 = vmatpush1.msra.mxu0 %v5144
    %5168 = vmatprep.subr.mxu0 0.0
    %5169 = vmatpush1.msra.mxu0 %v5145
    %5170 = vmatprep.subr.mxu0 0.0
    %5171 = vmatpush1.msra.mxu0 %v5146
    %5172 = vmatprep.subr.mxu0 0.0
    %5173 = vmatpush1.msra.mxu0 %v5147
    %5174 = vmatprep.subr.mxu0 0.0
    %5175 = vmatpush1.msra.mxu0 0.0
    %5176 = vmatprep.subr.mxu0 0.0
    %5177 = vmatpush1.msra.mxu0 0.0
    %5178 = vmatprep.subr.mxu0 0.0
    %5179 = vmatpush1.msra.mxu0 0.0
    %5180 = vmatprep.subr.mxu0 0.0
    %5181 = vmatpush1.msra.mxu0 0.0
    %5182 = vmatprep.subr.mxu0 0.0
    %5183 = vmatpush1.msra.mxu0 0.0
    %5184 = vmatprep.subr.mxu0 0.0
    %5185 = vmatpush1.msra.mxu0 0.0
    %5186 = vmatprep.subr.mxu0 0.0
    %5187 = vmatpush1.msra.mxu0 0.0
    %5188 = vmatprep.subr.mxu0 0.0
    %5189 = vmatpush1.msra.mxu0 0.0
    %5190 = vmatprep.subr.mxu0 0.0
    %5191 = vmatpush1.msra.mxu0 0.0
    %5192 = vmatprep.subr.mxu0 0.0
    %5193 = vmatpush1.msra.mxu0 0.0
    %5194 = vmatprep.subr.mxu0 0.0
    %5195 = vmatpush1.msra.mxu0 0.0
    %5196 = vmatprep.subr.mxu0 0.0
    %5197 = vmatpush1.msra.mxu0 0.0
    %5198 = vmatprep.subr.mxu0 0.0
    %5199 = vmatpush1.msra.mxu0 0.0
    %5200 = vmatprep.subr.mxu0 0.0
    %5201 = vmatpush1.msra.mxu0 0.0
    %5202 = vmatprep.subr.mxu0 0.0
    %5203 = vmatpush1.msra.mxu0 0.0
    %5204 = vmatprep.subr.mxu0 0.0
    %5205 = vmatpush1.msra.mxu0 0.0
    %5206 = vmatprep.subr.mxu0 0.0
    %5207 = vmatpush1.msra.mxu0 0.0
    %5208 = vmatprep.subr.mxu0 0.0
    %5209 = vmatpush1.msra.mxu0 0.0
    %5210 = vmatprep.subr.mxu0 0.0
    %5211 = vmatpush1.msra.mxu0 0.0
    %5212 = vmatprep.subr.mxu0 0.0
    %5213 = vmatpush1.msra.mxu0 0.0
    %5214 = vmatprep.subr.mxu0 0.0
    %5215 = vmatpush1.msra.mxu0 0.0
    %5216 = vmatprep.subr.mxu0 0.0
    %5217 = vmatpush1.msra.mxu0 0.0
    %5218 = vmatprep.subr.mxu0 0.0
    %5219 = vmatpush1.msra.mxu0 0.0
    %5220 = vmatprep.subr.mxu0 0.0
    %5221 = vmatpush1.msra.mxu0 0.0
    %5222 = vmatprep.mubr.f32.mxu0 0.0
    %5223 = vmatmul.mubr.f32.gmra.mrb[0].mxu0 %v5156
    %v5224 = vpop.f32.mrb[0].mxu0
    %v5225 = vadd.f32 %v5153, %v5224
    %v5226 = vpop.f32.mrb[0].mxu0
    %5227 = vdwg.mxu0
    %v5228 = vmul.f32 %v5225, %v38
    %v5229 = vtanh.pop %v5228
    %v5230 = vmul.f32 %v5229, 0.5
    %v5231 = vadd.f32 %v5230, 0.5
    %v5232 = vsel %vm37, %v5229, %v5231
    %v5233 = vmul.f32 %v5232, %v4541
    %5235 = vrot.lane.b32.xlu0 %v5232, 64
    %v5236 = vpop.permute.xlu0 %5235
    %v5238 = vmul.f32 %v5232, %v5236
    %5240 = vrot.lane.b32.xlu0 %v5238, 32
    %v5241 = vpop.permute.xlu0 %5240
    %v5243 = vadd.f32 %v5233, %v5241
    %v5244 = vtanh.pop %v5243
    %5246 = vrot.lane.b32.xlu0 %v5244, 64
    %v5247 = vpop.permute.xlu0 %5246
    %v5249 = vmul.f32 %v5232, %v5247
    %5251 = vrot.lane.b32.xlu0 %v5249, 32
    %v5252 = vpop.permute.xlu0 %5251
    %5254 = vrot.lane.b32.xlu0 %v4665, 64
    %v5255 = vpop.permute.xlu0 %5254
    %v5257 = vsel %vm69, %v5252, %v5255
    %v5258 = vld [vmem:[%s320] sm:$0xff]
    %v5259 = vld [vmem:[%s320 + $0x8] sm:$0xff]
    %v5260 = vld [vmem:[%s320 + $0x10] sm:$0xff]
    %v5261 = vld [vmem:[%s320 + $0x18] sm:$0xff]
    %v5262 = vld [vmem:[%s320 + $0x20] sm:$0xff]
    %v5263 = vld [vmem:[%s320 + $0x28] sm:$0xff]
    %v5264 = vld [vmem:[%s320 + $0x30] sm:$0xff]
    %v5265 = vld [vmem:[%s320 + $0x38] sm:$0xff]
    %v5266 = vld [vmem:[%s329] sm:$0x1]
    %v5268 = vlaneseq
    %v5269 = vshrl.u32 %v5268, 7
    %v5270 = vsub.s32 0, %v5269
    %v5271 = vrot.slane %v5266, %v5270
    %v5274 = vsel %vm86, %v5257, 0
    %5276 = vmatprep.subr.mxu0 0.0
    %5277 = vmatpush1.msra.mxu0 %v5258
    %5278 = vmatprep.subr.mxu0 0.0
    %5279 = vmatpush1.msra.mxu0 %v5259
    %5280 = vmatprep.subr.mxu0 0.0
    %5281 = vmatpush1.msra.mxu0 %v5260
    %5282 = vmatprep.subr.mxu0 0.0
    %5283 = vmatpush1.msra.mxu0 %v5261
    %5284 = vmatprep.subr.mxu0 0.0
    %5285 = vmatpush1.msra.mxu0 %v5262
    %5286 = vmatprep.subr.mxu0 0.0
    %5287 = vmatpush1.msra.mxu0 %v5263
    %5288 = vmatprep.subr.mxu0 0.0
    %5289 = vmatpush1.msra.mxu0 %v5264
    %5290 = vmatprep.subr.mxu0 0.0
    %5291 = vmatpush1.msra.mxu0 %v5265
    %5292 = vmatprep.subr.mxu0 0.0
    %5293 = vmatpush1.msra.mxu0 0.0
    %5294 = vmatprep.subr.mxu0 0.0
    %5295 = vmatpush1.msra.mxu0 0.0
    %5296 = vmatprep.subr.mxu0 0.0
    %5297 = vmatpush1.msra.mxu0 0.0
    %5298 = vmatprep.subr.mxu0 0.0
    %5299 = vmatpush1.msra.mxu0 0.0
    %5300 = vmatprep.subr.mxu0 0.0
    %5301 = vmatpush1.msra.mxu0 0.0
    %5302 = vmatprep.subr.mxu0 0.0
    %5303 = vmatpush1.msra.mxu0 0.0
    %5304 = vmatprep.subr.mxu0 0.0
    %5305 = vmatpush1.msra.mxu0 0.0
    %5306 = vmatprep.subr.mxu0 0.0
    %5307 = vmatpush1.msra.mxu0 0.0
    %5308 = vmatprep.subr.mxu0 0.0
    %5309 = vmatpush1.msra.mxu0 0.0
    %5310 = vmatprep.subr.mxu0 0.0
    %5311 = vmatpush1.msra.mxu0 0.0
    %5312 = vmatprep.subr.mxu0 0.0
    %5313 = vmatpush1.msra.mxu0 0.0
    %5314 = vmatprep.subr.mxu0 0.0
    %5315 = vmatpush1.msra.mxu0 0.0
    %5316 = vmatprep.subr.mxu0 0.0
    %5317 = vmatpush1.msra.mxu0 0.0
    %5318 = vmatprep.subr.mxu0 0.0
    %5319 = vmatpush1.msra.mxu0 0.0
    %5320 = vmatprep.subr.mxu0 0.0
    %5321 = vmatpush1.msra.mxu0 0.0
    %5322 = vmatprep.subr.mxu0 0.0
    %5323 = vmatpush1.msra.mxu0 0.0
    %5324 = vmatprep.subr.mxu0 0.0
    %5325 = vmatpush1.msra.mxu0 0.0
    %5326 = vmatprep.subr.mxu0 0.0
    %5327 = vmatpush1.msra.mxu0 0.0
    %5328 = vmatprep.subr.mxu0 0.0
    %5329 = vmatpush1.msra.mxu0 0.0
    %5330 = vmatprep.subr.mxu0 0.0
    %5331 = vmatpush1.msra.mxu0 0.0
    %5332 = vmatprep.subr.mxu0 0.0
    %5333 = vmatpush1.msra.mxu0 0.0
    %5334 = vmatprep.subr.mxu0 0.0
    %5335 = vmatpush1.msra.mxu0 0.0
    %5336 = vmatprep.subr.mxu0 0.0
    %5337 = vmatpush1.msra.mxu0 0.0
    %5338 = vmatprep.subr.mxu0 0.0
    %5339 = vmatpush1.msra.mxu0 0.0
    %5340 = vmatprep.mubr.f32.mxu0 0.0
    %5341 = vmatmul.mubr.f32.gmra.mrb[0].mxu0 %v5274
    %v5342 = vpop.f32.mrb[0].mxu0
    %v5343 = vadd.f32 %v5271, %v5342
    %v5344 = vpop.f32.mrb[0].mxu0
    %5345 = vdwg.mxu0
    %v5346 = vmul.f32 %v5343, %v38
    %v5347 = vtanh.pop %v5346
    %v5348 = vmul.f32 %v5347, 0.5
    %v5349 = vadd.f32 %v5348, 0.5
    %v5350 = vsel %vm37, %v5347, %v5349
    %v5351 = vmul.f32 %v5350, %v4659
    %5353 = vrot.lane.b32.xlu0 %v5350, 64
    %v5354 = vpop.permute.xlu0 %5353
    %v5356 = vmul.f32 %v5350, %v5354
    %5358 = vrot.lane.b32.xlu0 %v5356, 32
    %v5359 = vpop.permute.xlu0 %5358
    %v5361 = vadd.f32 %v5351, %v5359
    %v5362 = vtanh.pop %v5361
    %5364 = vrot.lane.b32.xlu0 %v5362, 64
    %v5365 = vpop.permute.xlu0 %5364
    %v5367 = vmul.f32 %v5350, %v5365
    %5369 = vrot.lane.b32.xlu0 %v5367, 32
    %v5370 = vpop.permute.xlu0 %5369
    %v5372 = vsel %vm69, %v5370, %v4925
    %v5373 = vld [vmem:[%s445] sm:$0xff]
    %v5374 = vld [vmem:[%s445 + $0x8] sm:$0xff]
    %v5375 = vld [vmem:[%s445 + $0x10] sm:$0xff]
    %v5376 = vld [vmem:[%s445 + $0x18] sm:$0xff]
    %v5377 = vld [vmem:[%s445 + $0x20] sm:$0xff]
    %v5378 = vld [vmem:[%s445 + $0x28] sm:$0xff]
    %v5379 = vld [vmem:[%s445 + $0x30] sm:$0xff]
    %v5380 = vld [vmem:[%s445 + $0x38] sm:$0xff]
    %v5381 = vld [vmem:[%s454] sm:$0x1]
    %v5383 = vlaneseq
    %v5384 = vshrl.u32 %v5383, 7
    %v5385 = vsub.s32 0, %v5384
    %v5386 = vrot.slane %v5381, %v5385
    %v5389 = vsel %vm86, %v5372, 0
    %5391 = vmatprep.subr.mxu0 0.0
    %5392 = vmatpush1.msra.mxu0 %v5373
    %5393 = vmatprep.subr.mxu0 0.0
    %5394 = vmatpush1.msra.mxu0 %v5374
    %5395 = vmatprep.subr.mxu0 0.0
    %5396 = vmatpush1.msra.mxu0 %v5375
    %5397 = vmatprep.subr.mxu0 0.0
    %5398 = vmatpush1.msra.mxu0 %v5376
    %5399 = vmatprep.subr.mxu0 0.0
    %5400 = vmatpush1.msra.mxu0 %v5377
    %5401 = vmatprep.subr.mxu0 0.0
    %5402 = vmatpush1.msra.mxu0 %v5378
    %5403 = vmatprep.subr.mxu0 0.0
    %5404 = vmatpush1.msra.mxu0 %v5379
    %5405 = vmatprep.subr.mxu0 0.0
    %5406 = vmatpush1.msra.mxu0 %v5380
    %5407 = vmatprep.subr.mxu0 0.0
    %5408 = vmatpush1.msra.mxu0 0.0
    %5409 = vmatprep.subr.mxu0 0.0
    %5410 = vmatpush1.msra.mxu0 0.0
    %5411 = vmatprep.subr.mxu0 0.0
    %5412 = vmatpush1.msra.mxu0 0.0
    %5413 = vmatprep.subr.mxu0 0.0
    %5414 = vmatpush1.msra.mxu0 0.0
    %5415 = vmatprep.subr.mxu0 0.0
    %5416 = vmatpush1.msra.mxu0 0.0
    %5417 = vmatprep.subr.mxu0 0.0
    %5418 = vmatpush1.msra.mxu0 0.0
    %5419 = vmatprep.subr.mxu0 0.0
    %5420 = vmatpush1.msra.mxu0 0.0
    %5421 = vmatprep.subr.mxu0 0.0
    %5422 = vmatpush1.msra.mxu0 0.0
    %5423 = vmatprep.subr.mxu0 0.0
    %5424 = vmatpush1.msra.mxu0 0.0
    %5425 = vmatprep.subr.mxu0 0.0
    %5426 = vmatpush1.msra.mxu0 0.0
    %5427 = vmatprep.subr.mxu0 0.0
    %5428 = vmatpush1.msra.mxu0 0.0
    %5429 = vmatprep.subr.mxu0 0.0
    %5430 = vmatpush1.msra.mxu0 0.0
    %5431 = vmatprep.subr.mxu0 0.0
    %5432 = vmatpush1.msra.mxu0 0.0
    %5433 = vmatprep.subr.mxu0 0.0
    %5434 = vmatpush1.msra.mxu0 0.0
    %5435 = vmatprep.subr.mxu0 0.0
    %5436 = vmatpush1.msra.mxu0 0.0
    %5437 = vmatprep.subr.mxu0 0.0
    %5438 = vmatpush1.msra.mxu0 0.0
    %5439 = vmatprep.subr.mxu0 0.0
    %5440 = vmatpush1.msra.mxu0 0.0
    %5441 = vmatprep.subr.mxu0 0.0
    %5442 = vmatpush1.msra.mxu0 0.0
    %5443 = vmatprep.subr.mxu0 0.0
    %5444 = vmatpush1.msra.mxu0 0.0
    %5445 = vmatprep.subr.mxu0 0.0
    %5446 = vmatpush1.msra.mxu0 0.0
    %5447 = vmatprep.subr.mxu0 0.0
    %5448 = vmatpush1.msra.mxu0 0.0
    %5449 = vmatprep.subr.mxu0 0.0
    %5450 = vmatpush1.msra.mxu0 0.0
    %5451 = vmatprep.subr.mxu0 0.0
    %5452 = vmatpush1.msra.mxu0 0.0
    %5453 = vmatprep.subr.mxu0 0.0
    %5454 = vmatpush1.msra.mxu0 0.0
    %5455 = vmatprep.mubr.f32.mxu0 0.0
    %5456 = vmatmul.mubr.f32.gmra.mrb[0].mxu0 %v5389
    %v5457 = vpop.f32.mrb[0].mxu0
    %v5458 = vadd.f32 %v5386, %v5457
    %v5459 = vpop.f32.mrb[0].mxu0
    %5460 = vdwg.mxu0
    %v5461 = vmul.f32 %v5458, %v38
    %v5462 = vtanh.pop %v5461
    %v5463 = vmul.f32 %v5462, 0.5
    %v5464 = vadd.f32 %v5463, 0.5
    %v5465 = vsel %vm37, %v5462, %v5464
    %v5466 = vmul.f32 %v5465, %v4774
    %5468 = vrot.lane.b32.xlu0 %v5465, 64
    %v5469 = vpop.permute.xlu0 %5468
    %v5471 = vmul.f32 %v5465, %v5469
    %5473 = vrot.lane.b32.xlu0 %v5471, 32
    %v5474 = vpop.permute.xlu0 %5473
    %v5476 = vadd.f32 %v5466, %v5474
    %v5477 = vtanh.pop %v5476
    %5479 = vrot.lane.b32.xlu0 %v5477, 64
    %v5480 = vpop.permute.xlu0 %5479
    %v5482 = vmul.f32 %v5465, %v5480
    %v5485 = vunpack.c.l.s4 1966171168
    %v5486 = vunpack.c.0.s8 %v5485
    %v5487 = vlaneseq
    %v5488 = vshrl.u32 %v5487, 7
    %v5489 = vsub.s32 %v5486, %v5488
    %v5490 = vrot.slane %v5482, %v5489
    %v5491 = vcombine.high %v5490, %v5490
    %v5493 = vunpack.c.l.s4 1966171168
    %v5494 = vunpack.c.0.s8 %v5493
    %v5495 = vlaneseq
    %v5496 = vshrl.u32 %v5495, 7
    %v5497 = vsub.s32 %v5494, %v5496
    %v5498 = vrot.slane %v5490, %v5497
    %v5500 = vunpack.c.l.s4 1966171168
    %v5501 = vunpack.c.0.s8 %v5500
    %v5502 = vlaneseq
    %v5503 = vshrl.u32 %v5502, 7
    %v5504 = vsub.s32 %v5501, %v5503
    %v5505 = vrot.slane %v5491, %v5504
    %v5506 = vlaneseq
    %v5507 = vshrl.u32 %v5506, 7
    %v5508 = vsub.s32 0, %v5507
    %v5509 = vrot.slane %v5498, %v5508
    %v5510 = vlaneseq
    %v5511 = vshrl.u32 %v5510, 7
    %v5512 = vsub.s32 0, %v5511
    %v5513 = vrot.slane %v5505, %v5512
    %5514 = vrot.lane.b32.xlu0 %v5509, 32
    %v5515 = vpop.permute.xlu0 %5514
    %5516 = vrot.lane.b32.xlu0 %v5513, 32
    %v5517 = vpop.permute.xlu0 %5516
    %v5520 = vmul.f32 %v39, %v5515
    %v5521 = vmul.f32 %v40, %v5517
    %v5522 = vsel %vm69, %v5520, 0.0
    %5523 = vadd.xlane.f32.xlu0 %v5522
    %v5524 = vpop.xlane.xlu0 %5523
    %v5525 = vsel %vm69, %v5521, 0.0
    %5526 = vadd.xlane.f32.xlu0 %v5525
    %v5527 = vpop.xlane.xlu0 %5526
    %v5530 = vlaneseq
    %v5531 = vshrl.u32 %v5530, 7
    %v5532 = vsub.s32 %v34, %v5531
    %v5533 = vrot.slane %v5524, %v5532
    %v5534 = vlaneseq
    %v5535 = vshrl.u32 %v5534, 7
    %v5536 = vsub.s32 %v34, %v5535
    %v5537 = vrot.slane %v5527, %v5536
    %v5538 = vsel %vm616, %v5537, %v5533
    %v5540 = vsel %vm619, %v5538, -inf
    %5541 = vmax.xlane.f32.xlu0 %v5540
    %v5542 = vpop.xlane.xlu0 %5541
    %v5544 = vlaneseq
    %v5545 = vshrl.u32 %v5544, 7
    %v5546 = vsub.s32 0, %v5545
    %v5547 = vrot.slane %v5542, %v5546
    %v5548 = vlaneseq
    %v5549 = vshrl.u32 %v5548, 7
    %v5550 = vsub.s32 1, %v5549
    %v5551 = vrot.slane %v5542, %v5550
    %v5554 = vsub.f32 %v5524, %v5547
    %v5555 = vsub.f32 %v5527, %v5551
    %v5556 = vmul.f32 %v5554, 1.442695
    %v5557 = vpow.pop %v5556
    %v5558 = vmul.f32 %v5555, 1.442695
    %v5559 = vpow.pop %v5558
    %5562 = vset.pattern.permute.xlu0 0
    %5563 = vperm.xlu0 %5562, %v5557
    %v5564 = vpop.permute.xlu0 %5563
    %5565 = vset.pattern.permute.xlu0 0
    %5566 = vperm.xlu0 %5565, %v5559
    %v5567 = vpop.permute.xlu0 %5566
    %v5568 = vlaneseq
    %v5569 = vshrl.u32 %v5568, 7
    %v5570 = vsub.s32 %v34, %v5569
    %v5571 = vrot.slane %v5564, %v5570
    %v5572 = vlaneseq
    %v5573 = vshrl.u32 %v5572, 7
    %v5574 = vsub.s32 %v34, %v5573
    %v5575 = vrot.slane %v5567, %v5574
    %v5576 = vsel %vm616, %v5575, %v5571
    %v5578 = vsel %vm619, %v5576, 0.0
    %5579 = vadd.xlane.f32.xlu0 %v5578
    %v5580 = vpop.xlane.xlu0 %5579
    %v5582 = vlaneseq
    %v5583 = vshrl.u32 %v5582, 7
    %v5584 = vsub.s32 0, %v5583
    %v5585 = vrot.slane %v5580, %v5584
    %v5586 = vlaneseq
    %v5587 = vshrl.u32 %v5586, 7
    %v5588 = vsub.s32 1, %v5587
    %v5589 = vrot.slane %v5580, %v5588
    %v5592 = vrcp.pop %v5585
    %v5593 = vmul.f32 %v5557, %v5592
    %v5594 = vrcp.pop %v5589
    %v5595 = vmul.f32 %v5559, %v5594
    %5597 = vset.pattern.permute.xlu0 0
    %5598 = vperm.xlu0 %5597, %v5593
    %v5599 = vpop.permute.xlu0 %5598
    %5602 = vset.pattern.permute.xlu0 0
    %5603 = vperm.xlu0 %5602, %v5595
    %v5604 = vpop.permute.xlu0 %5603
    %v5606 = vmul.f32 %v39, %v5599
    %v5607 = vmul.f32 %v40, %v5604
    %v5608 = vsel %vm69, %v5606, 0.0
    %v5609 = vrot.slane %v5608, 4
    %v5610 = vadd.f32 %v5608, %v5609
    %v5611 = vrot.slane %v5610, 2
    %v5612 = vadd.f32 %v5610, %v5611
    %v5613 = vrot.slane %v5612, 1
    %v5614 = vadd.f32 %v5612, %v5613
    %v5615 = vsel %vm69, %v5607, 0.0
    %v5616 = vrot.slane %v5615, 4
    %v5617 = vadd.f32 %v5615, %v5616
    %v5618 = vrot.slane %v5617, 2
    %v5619 = vadd.f32 %v5617, %v5618
    %v5620 = vrot.slane %v5619, 1
    %v5621 = vadd.f32 %v5619, %v5620
    %v5624 = vsel %vm616, %v5621, %v5614
    %5626 = vrot.lane.b32.xlu0 %v5482, 64
    %v5627 = vpop.permute.xlu0 %5626
    %v5629 = vsel %vm69, %v5624, %v5627
    %v5631 = vsel %vm86, %v5629, 0
    %5633 = vmatprep.subr.mxu0 0.0
    %5634 = vmatpush1.msra.mxu0 %v41
    %5635 = vmatprep.subr.mxu0 0.0
    %5636 = vmatpush1.msra.mxu0 %v42
    %5637 = vmatprep.subr.mxu0 0.0
    %5638 = vmatpush1.msra.mxu0 %v43
    %5639 = vmatprep.subr.mxu0 0.0
    %5640 = vmatpush1.msra.mxu0 %v44
    %5641 = vmatprep.subr.mxu0 0.0
    %5642 = vmatpush1.msra.mxu0 %v45
    %5643 = vmatprep.subr.mxu0 0.0
    %5644 = vmatpush1.msra.mxu0 %v46
    %5645 = vmatprep.subr.mxu0 0.0
    %5646 = vmatpush1.msra.mxu0 %v47
    %5647 = vmatprep.subr.mxu0 0.0
    %5648 = vmatpush1.msra.mxu0 %v48
    %5649 = vmatprep.subr.mxu0 0.0
    %5650 = vmatpush1.msra.mxu0 0.0
    %5651 = vmatprep.subr.mxu0 0.0
    %5652 = vmatpush1.msra.mxu0 0.0
    %5653 = vmatprep.subr.mxu0 0.0
    %5654 = vmatpush1.msra.mxu0 0.0
    %5655 = vmatprep.subr.mxu0 0.0
    %5656 = vmatpush1.msra.mxu0 0.0
    %5657 = vmatprep.subr.mxu0 0.0
    %5658 = vmatpush1.msra.mxu0 0.0
    %5659 = vmatprep.subr.mxu0 0.0
    %5660 = vmatpush1.msra.mxu0 0.0
    %5661 = vmatprep.subr.mxu0 0.0
    %5662 = vmatpush1.msra.mxu0 0.0
    %5663 = vmatprep.subr.mxu0 0.0
    %5664 = vmatpush1.msra.mxu0 0.0
    %5665 = vmatprep.subr.mxu0 0.0
    %5666 = vmatpush1.msra.mxu0 0.0
    %5667 = vmatprep.subr.mxu0 0.0
    %5668 = vmatpush1.msra.mxu0 0.0
    %5669 = vmatprep.subr.mxu0 0.0
    %5670 = vmatpush1.msra.mxu0 0.0
    %5671 = vmatprep.subr.mxu0 0.0
    %5672 = vmatpush1.msra.mxu0 0.0
    %5673 = vmatprep.subr.mxu0 0.0
    %5674 = vmatpush1.msra.mxu0 0.0
    %5675 = vmatprep.subr.mxu0 0.0
    %5676 = vmatpush1.msra.mxu0 0.0
    %5677 = vmatprep.subr.mxu0 0.0
    %5678 = vmatpush1.msra.mxu0 0.0
    %5679 = vmatprep.subr.mxu0 0.0
    %5680 = vmatpush1.msra.mxu0 0.0
    %5681 = vmatprep.subr.mxu0 0.0
    %5682 = vmatpush1.msra.mxu0 0.0
    %5683 = vmatprep.subr.mxu0 0.0
    %5684 = vmatpush1.msra.mxu0 0.0
    %5685 = vmatprep.subr.mxu0 0.0
    %5686 = vmatpush1.msra.mxu0 0.0
    %5687 = vmatprep.subr.mxu0 0.0
    %5688 = vmatpush1.msra.mxu0 0.0
    %5689 = vmatprep.subr.mxu0 0.0
    %5690 = vmatpush1.msra.mxu0 0.0
    %5691 = vmatprep.subr.mxu0 0.0
    %5692 = vmatpush1.msra.mxu0 0.0
    %5693 = vmatprep.subr.mxu0 0.0
    %5694 = vmatpush1.msra.mxu0 0.0
    %5695 = vmatprep.subr.mxu0 0.0
    %5696 = vmatpush1.msra.mxu0 0.0
    %5697 = vmatprep.mubr.f32.mxu0 0.0
    %5698 = vmatmul.mubr.f32.gmra.mrb[0].mxu0 %v5631
    %v5699 = vpop.f32.mrb[0].mxu0
    %v5700 = vadd.f32 %v714, %v5699
    %v5701 = vpop.f32.mrb[0].mxu0
    %5702 = vdwg.mxu0
    %v5703 = vsel %vm789, %v5700, -inf
    %5704 = vmax.xlane.f32.xlu0 %v5703
    %v5705 = vpop.xlane.xlu0 %5704
    %v5706 = vsub.f32 %v5700, %v5705
    %v5707 = vmul.f32 %v5706, 1.442695
    %v5708 = vpow.pop %v5707
    %v5709 = vsel %vm789, %v5708, 0.0
    %5710 = vadd.xlane.f32.xlu0 %v5709
    %v5711 = vpop.xlane.xlu0 %5710
    %v5712 = vlog2.pop %v5711
    %v5713 = vmul.f32 %v5712, 0.6931472
    %v5714 = vadd.f32 %v5705, %v5713
    %v5715 = vsub.f32 %v5700, %v5714
    %s5716 = scalar_lea.vmem [#allocation2], 14
    %5717 = vst [vmem:[%s5716] sm:$0x3] %v5715
    %5718 = vrot.lane.b32.xlu0 %v5249, 64
    %v5719 = vpop.permute.xlu0 %5718
    %5721 = vrot.lane.b32.xlu0 %v5367, 96
    %v5722 = vpop.permute.xlu0 %5721
    %v5724 = vsel %vm69, %v5134, %v5719
    %v5725 = vsel %vm86, %v5724, %v5722
    %vm5726 = vcmask 785408
    %v5727 = vsel %vm5726, %v5725, %v5482
    %5728 = vst [vmem:[%s9] sm:$0x3] %v5727
    %5730 = vrot.lane.b32.xlu0 %v5125, 96
    %v5731 = vpop.permute.xlu0 %5730
    %5734 = vrot.lane.b32.xlu0 %v5361, 32
    %v5735 = vpop.permute.xlu0 %5734
    %5738 = vrot.lane.b32.xlu0 %v5476, 64
    %v5739 = vpop.permute.xlu0 %5738
    %v5741 = vsel %vm69, %v5731, %v5243
    %v5742 = vsel %vm86, %v5741, %v5735
    %v5743 = vsel %vm5726, %v5742, %v5739
    %5744 = vst [vmem:[%s10] sm:$0x3] %v5743
    // Predicated region
    $region34: #{attn_decoder_forward.1} parent=1 // pred_check
      _
    $region35: #{attn_decoder_forward.1} parent=1 // pred_check_branch
      %5746 = sbr.rel (0) target = $region37
    $region36: #{attn_decoder_forward.1} parent=1 // pred_region
      %s5748 = ssub.s32 256, 256
      %5749 = vsyncadd [#allocation3], %s5748
      %s5750 = sshll.u32 [#allocation2], 4
      %s5751 = int_to_ptr.vmem [resolvable:$true] %s5750
      %5756 = dma.vmem_to_hbm [thread:$0]  %s5751, 256, %s8, [#allocation3], 32, 32, 2
    $region37: #{attn_decoder_forward.1} parent=1 // pred_fallthru
      _
    // Predicated region
    $region38: #{attn_decoder_forward.1} parent=1 // pred_check
      _
    $region39: #{attn_decoder_forward.1} parent=1 // pred_check_branch
      %5758 = sbr.rel (0) target = $region41
    $region40: #{attn_decoder_forward.1} parent=1 // pred_region
      _
    $region41: #{attn_decoder_forward.1} parent=1 // pred_fallthru
      _
    // Predicated region
    $region42: #{attn_decoder_forward.1} parent=1 // pred_check
      _
    $region43: #{attn_decoder_forward.1} parent=1 // pred_check_branch
      %5760 = sbr.rel (0) target = $region45
    $region44: #{attn_decoder_forward.1} parent=1 // pred_region
      _
    $region45: #{attn_decoder_forward.1} parent=1 // pred_fallthru
      _
    // Predicated region
    $region46: #{attn_decoder_forward.1} parent=1 // pred_check
      _
    $region47: #{attn_decoder_forward.1} parent=1 // pred_check_branch
      %5762 = sbr.rel (0) target = $region49
    $region48: #{attn_decoder_forward.1} parent=1 // pred_region
      %5763 = dma.done [#allocation3], 256
    $region49: #{attn_decoder_forward.1} parent=1 // pred_fallthru
      _
    // Predicated region
    $region50: #{attn_decoder_forward.1} parent=1 // pred_check
      _
    $region51: #{attn_decoder_forward.1} parent=1 // pred_check_branch
      %5765 = sbr.rel (0) target = $region53
    $region52: #{attn_decoder_forward.1} parent=1 // pred_region
      _
    $region53: #{attn_decoder_forward.1} parent=1 // pred_fallthru
      _
    // Predicated region
    $region54: #{attn_decoder_forward.1} parent=1 // pred_check
      _
    $region55: #{attn_decoder_forward.1} parent=1 // pred_check_branch
      %5767 = sbr.rel (0) target = $region57
    $region56: #{attn_decoder_forward.1} parent=1 // pred_region
      _
    $region57: #{attn_decoder_forward.1} parent=1 // pred_fallthru
      _
    %5768 = vsyncpa [#allocation3], 1

</llo_original>
